<compile_context>
chip_gen: v6e
topology: v6e:2x2x1
jax: 0.10.0
libtpu: 0.0.40
codegen_flags: <defaults>
</compile_context>

<pallas_src>
import functools

import jax
import jax.numpy as jnp
from jax.experimental import pallas as pl
from jax.experimental.pallas import tpu as pltpu


def _round_up(x, m):
    return ((x + m - 1) // m) * m


# ------------------------------ fused CharRNN kernel ------------------------------

def _char_rnn_kernel(L, T, Bb, H, Tc, unroll, *refs):
    """Fused L-layer LSTM + FC head for one batch block.

    Bb = per-block (padded) batch, H = padded hidden size (multiple of 128),
    Tc = time-chunk length (divides T), unroll = fori_loop partial unroll factor.

    refs = [x, h0, c0, (wih_t, whh_t, bias) * L, fc_w_t, fc_b]   (inputs)
           + [out, h_n, c_n]                                     (outputs)
           + [g0_sc, g1_sc, y0_sc, y1_sc]                        (VMEM scratch)
    """
    n_chunks = T // Tc
    rows_per_chunk = Tc * Bb
    n_in = 3 + 3 * L + 2

    x_ref, h0_ref, c0_ref = refs[0], refs[1], refs[2]
    layer_refs = [refs[3 + 3 * l: 3 + 3 * (l + 1)] for l in range(L)]
    fcw_ref, fcb_ref = refs[3 + 3 * L], refs[4 + 3 * L]
    out_ref, hN_ref, cN_ref = refs[n_in], refs[n_in + 1], refs[n_in + 2]
    g0_sc, g1_sc, y0_sc, y1_sc = refs[n_in + 3: n_in + 7]

    g_bufs = (g0_sc, g1_sc)          # double-buffered gate chunks, f32 (Tc*Bb, 4H)
    y_bufs = (y0_sc, y1_sc)          # ping-pong layer outputs, bf16 (T*Bb, H)

    for l in range(L):               # L is static -> unrolled at trace time
        wih_ref, whh_ref, b_ref = layer_refs[l]
        y_out = y_bufs[l % 2]
        y_in = y_bufs[(l - 1) % 2] if l > 0 else None

        def project(c, gbuf, l=l, wih_ref=wih_ref, b_ref=b_ref, y_in=y_in):
            # Input projection of one time chunk: one MXU matmul with M = Tc*Bb.
            if l == 0:
                xin = x_ref[pl.ds(c * rows_per_chunk, rows_per_chunk), :]       # bf16
            else:
                xin = y_in[pl.ds(c * rows_per_chunk, rows_per_chunk), :]        # bf16
            gbuf[...] = (jnp.dot(xin, wih_ref[...],
                                 preferred_element_type=jnp.float32) + b_ref[...])

        # Prologue: gate projection for chunk 0.
        project(0, g_bufs[0])

        h_c = (h0_ref[l], c0_ref[l])                          # f32 (Bb, H) carries

        for c in range(n_chunks):                             # static, modest count
            gbuf = g_bufs[c % 2]
            # Issue chunk c+1's projection before chunk c's recurrence (double-buffered).
            if c + 1 < n_chunks:
                project(c + 1, g_bufs[(c + 1) % 2])

            base = c * rows_per_chunk

            def step(t, carry, gbuf=gbuf, base=base, whh_ref=whh_ref, y_out=y_out):
                h_prev, c_prev = carry                        # f32 (Bb, H)
                grow = pl.multiple_of(t * Bb, Bb)
                g = (gbuf[pl.ds(grow, Bb), :]
                     + jnp.dot(h_prev.astype(jnp.bfloat16), whh_ref[...],
                               preferred_element_type=jnp.float32))   # (Bb, 4H) f32
                i_g = jax.nn.sigmoid(g[:, 0 * H:1 * H])
                f_g = jax.nn.sigmoid(g[:, 1 * H:2 * H])
                g_g = jnp.tanh(g[:, 2 * H:3 * H])
                o_g = jax.nn.sigmoid(g[:, 3 * H:4 * H])
                c_new = f_g * c_prev + i_g * g_g
                h_new = o_g * jnp.tanh(c_new)
                yrow = pl.multiple_of(base + t * Bb, Bb)
                y_out[pl.ds(yrow, Bb), :] = h_new.astype(jnp.bfloat16)
                return (h_new, c_new)

            h_c = jax.lax.fori_loop(0, Tc, step, h_c, unroll=unroll)

        hN_ref[l] = h_c[0]
        cN_ref[l] = h_c[1]

    # FC head on the whole sequence: one matmul on the VMEM-resident bf16 last-layer output.
    y_last = y_bufs[(L - 1) % 2][...]                         # (T*Bb, H) bf16
    out_ref[...] = (jnp.dot(y_last, fcw_ref[...],
                            preferred_element_type=jnp.float32) + fcb_ref[...])


# --------------------------- parameter prep (done once) ---------------------------

def prepare_params(params):
    """PyTorch-layout params -> kernel layout.

    Transposed, bias pre-summed, bf16 MXU operands, H and V zero-padded to multiples of 128
    with each gate in its own lane-aligned Hp-wide block.
    """
    H = params["lstm"][0][1].shape[1]       # w_hh: (4H, H)
    V = params["fc_w"].shape[0]             # fc_w: (V, H)
    Hp = _round_up(H, 128)
    Vp = _round_up(V, 128)

    layers = []
    for li, (w_ih, w_hh, b_ih, b_hh) in enumerate(params["lstm"]):
        din = w_ih.shape[1]
        din_p = Vp if li == 0 else Hp
        wih_full = jnp.transpose(w_ih).astype(jnp.float32)      # (din, 4H)
        whh_full = jnp.transpose(w_hh).astype(jnp.float32)      # (H, 4H)
        b_full = (b_ih + b_hh).astype(jnp.float32)              # (4H,)

        wih_p = jnp.zeros((din_p, 4 * Hp), jnp.float32)
        whh_p = jnp.zeros((Hp, 4 * Hp), jnp.float32)
        b_p = jnp.zeros((1, 4 * Hp), jnp.float32)
        for k in range(4):
            wih_p = wih_p.at[:din, k * Hp:k * Hp + H].set(wih_full[:, k * H:(k + 1) * H])
            whh_p = whh_p.at[:H, k * Hp:k * Hp + H].set(whh_full[:, k * H:(k + 1) * H])
            b_p = b_p.at[0, k * Hp:k * Hp + H].set(b_full[k * H:(k + 1) * H])
        layers.append((wih_p.astype(jnp.bfloat16),
                       whh_p.astype(jnp.bfloat16),
                       b_p))

    fcw_p = jnp.zeros((Hp, Vp), jnp.float32).at[:H, :V].set(
        jnp.transpose(params["fc_w"]).astype(jnp.float32))
    fcb_p = jnp.zeros((1, Vp), jnp.float32).at[0, :V].set(params["fc_b"].astype(jnp.float32))

    return {"layers": layers, "fc_w_t": fcw_p.astype(jnp.bfloat16), "fc_b": fcb_p}


# --------------------------------- forward wrapper ---------------------------------

def char_rnn_forward(x, hidden, kparams, *, batch_block=32, time_chunk=16, unroll=8):
    """x: (B, T, V) one-hot; hidden: (h0, c0) each (L, B, H). Returns (out (B*T, V), (h_n, c_n))."""
    h0, c0 = hidden
    B, T, V = x.shape
    L, _, H = h0.shape
    Hp = kparams["layers"][0][1].shape[0]     # whh_p: (Hp, 4Hp)
    Vp = kparams["fc_b"].shape[1]

    # Batch padded to a sublane-clean multiple of 16 (bf16 per-step stores stay tile-aligned).
    Bpad = _round_up(B, 16)
    if Bpad > batch_block and Bpad % batch_block == 0:
        Bb = batch_block                      # batch-parallel grid axis (2 TCs on v7x)
    else:
        Bb = Bpad
    nb = Bpad // Bb
    Tc = time_chunk if (T % time_chunk == 0) else T
    un = max(1, min(Tc, unroll))

    # Layout plumbing: time-major within each batch block (row = t*Bb + b), zero-padded.
    xt = jnp.transpose(x, (1, 0, 2)).astype(jnp.float32)              # (T, B, V)
    xt = jnp.pad(xt, ((0, 0), (0, Bpad - B), (0, Vp - V)))
    xt = xt.reshape(T, nb, Bb, Vp).transpose(1, 0, 2, 3).reshape(nb, T * Bb, Vp)
    xt = xt.astype(jnp.bfloat16)

    h0p = jnp.pad(h0.astype(jnp.float32), ((0, 0), (0, Bpad - B), (0, Hp - H)))
    c0p = jnp.pad(c0.astype(jnp.float32), ((0, 0), (0, Bpad - B), (0, Hp - H)))

    weight_args = []
    in_specs = [
        pl.BlockSpec((None, T * Bb, Vp), lambda i: (i, 0, 0)),
        pl.BlockSpec((L, Bb, Hp), lambda i: (0, i, 0)),
        pl.BlockSpec((L, Bb, Hp), lambda i: (0, i, 0)),
    ]
    for (wih_t, whh_t, bias) in kparams["layers"]:
        weight_args += [wih_t, whh_t, bias]
        in_specs += [
            pl.BlockSpec(wih_t.shape, lambda i: (0, 0)),
            pl.BlockSpec(whh_t.shape, lambda i: (0, 0)),
            pl.BlockSpec(bias.shape, lambda i: (0, 0)),
        ]
    weight_args += [kparams["fc_w_t"], kparams["fc_b"]]
    in_specs += [
        pl.BlockSpec(kparams["fc_w_t"].shape, lambda i: (0, 0)),
        pl.BlockSpec(kparams["fc_b"].shape, lambda i: (0, 0)),
    ]

    out_shapes = (
        jax.ShapeDtypeStruct((nb, T * Bb, Vp), jnp.float32),
        jax.ShapeDtypeStruct((L, Bpad, Hp), jnp.float32),
        jax.ShapeDtypeStruct((L, Bpad, Hp), jnp.float32),
    )
    out_specs = [
        pl.BlockSpec((None, T * Bb, Vp), lambda i: (i, 0, 0)),
        pl.BlockSpec((L, Bb, Hp), lambda i: (0, i, 0)),
        pl.BlockSpec((L, Bb, Hp), lambda i: (0, i, 0)),
    ]

    kernel = functools.partial(_char_rnn_kernel, L, T, Bb, Hp, Tc, un)

    out_tm, h_n, c_n = pl.pallas_call(
        kernel,
        grid_spec=pltpu.PrefetchScalarGridSpec(
            num_scalar_prefetch=0,
            grid=(nb,),                                        # batch blocks (parallel)
            in_specs=in_specs,
            out_specs=out_specs,
            scratch_shapes=[
                pltpu.VMEM((Tc * Bb, 4 * Hp), jnp.float32),    # gate chunk ping
                pltpu.VMEM((Tc * Bb, 4 * Hp), jnp.float32),    # gate chunk pong
                pltpu.VMEM((T * Bb, Hp), jnp.bfloat16),        # layer output ping (bf16)
                pltpu.VMEM((T * Bb, Hp), jnp.bfloat16),        # layer output pong (bf16)
            ],
        ),
        out_shape=out_shapes,
        compiler_params=pltpu.CompilerParams(
            dimension_semantics=("parallel",),
            vmem_limit_bytes=64 * 1024 * 1024,
        ),
    )(xt, h0p, c0p, *weight_args)

    # Back to PyTorch's batch-major row order: out.contiguous().view(B*T, n_hidden) @ fc,
    # and strip all padding.
    out = out_tm.reshape(nb, T, Bb, Vp).transpose(0, 2, 1, 3).reshape(Bpad, T, Vp)
    out = out[:B, :, :V].reshape(B * T, V)
    h_n = h_n[:, :B, :H]
    c_n = c_n[:, :B, :H]
    return out, (h_n, c_n)


# ------------------------------ pure-JAX reference ----------------------------
# Mirrors the kernel's numerics (bf16 matmul operands, f32 accumulation, f32 elementwise).

def _reference_forward(x, hidden, params):
    h0, c0 = hidden
    B, T, V = x.shape
    L, _, H = h0.shape

    def q(a):  # bf16 operand, promoted back to f32 (f32 accumulation in the dot)
        return a.astype(jnp.bfloat16).astype(jnp.float32)

    layer_in = x.astype(jnp.float32)
    h_ns, c_ns = [], []
    for l in range(L):
        w_ih, w_hh, b_ih, b_hh = params["lstm"][l]
        wih, whh = q(w_ih), q(w_hh)
        b = (b_ih + b_hh).astype(jnp.float32)
        h, c = h0[l], c0[l]
        ys = []
        for t in range(T):
            g = q(layer_in[:, t, :]) @ wih.T + q(h) @ whh.T + b
            i = jax.nn.sigmoid(g[:, 0 * H:1 * H])
            f = jax.nn.sigmoid(g[:, 1 * H:2 * H])
            gg = jnp.tanh(g[:, 2 * H:3 * H])
            o = jax.nn.sigmoid(g[:, 3 * H:4 * H])
            c = f * c + i * gg
            h = o * jnp.tanh(c)
            ys.append(h)
        layer_in = jnp.stack(ys, axis=1)
        h_ns.append(h)
        c_ns.append(c)
    out = q(layer_in.reshape(B * T, H)) @ q(params["fc_w"]).T + params["fc_b"]
    return out, (jnp.stack(h_ns, 0), jnp.stack(c_ns, 0))


# ----------------------------------- main -------------------------------------

if __name__ == "__main__":
    # Small shapes consistent with the module's forward (vocab = len(tokens)).
    B, T, V, H, L = 2, 8, 16, 32, 2

    key = jax.random.PRNGKey(0)
    k_tok, k_p = jax.random.split(key)

    # One-hot encoded character input (B, T, V), like one_hot_encode output.
    toks = jax.random.randint(k_tok, (B, T), 0, V)
    x = jax.nn.one_hot(toks, V, dtype=jnp.float32)

    # init_hidden: zeros
    h0 = jnp.zeros((L, B, H), jnp.float32)
    c0 = jnp.zeros((L, B, H), jnp.float32)

    # Deterministic parameter init (uniform in [-1/sqrt(H), 1/sqrt(H)], like PyTorch).
    bound = 1.0 / jnp.sqrt(jnp.float32(H))
    params = {"lstm": []}
    keys = jax.random.split(k_p, 4 * L + 2)
    for l in range(L):
        din = V if l == 0 else H
        w_ih = jax.random.uniform(keys[4 * l + 0], (4 * H, din), jnp.float32, -bound, bound)
        w_hh = jax.random.uniform(keys[4 * l + 1], (4 * H, H), jnp.float32, -bound, bound)
        b_ih = jax.random.uniform(keys[4 * l + 2], (4 * H,), jnp.float32, -bound, bound)
        b_hh = jax.random.uniform(keys[4 * l + 3], (4 * H,), jnp.float32, -bound, bound)
        params["lstm"].append((w_ih, w_hh, b_ih, b_hh))
    params["fc_w"] = jax.random.uniform(keys[-2], (V, H), jnp.float32, -bound, bound)
    params["fc_b"] = jax.random.uniform(keys[-1], (V,), jnp.float32, -bound, bound)

    # Kernel-layout weights prepared ONCE (not inside the forward wrapper).
    kparams = prepare_params(params)

    forward = jax.jit(char_rnn_forward)
    out, (h_n, c_n) = forward(x, (h0, c0), kparams)
    out = jax.block_until_ready(out)
    h_n = jax.block_until_ready(h_n)
    c_n = jax.block_until_ready(c_n)

    # Correctness check against a numerics-matched pure-JAX reference.
    ref_out, (ref_h, ref_c) = _reference_forward(x, (h0, c0), params)
    assert out.shape == (B * T, V) and h_n.shape == (L, B, H) and c_n.shape == (L, B, H)
    assert jnp.allclose(out, ref_out, atol=2e-3, rtol=2e-3)
    assert jnp.allclose(h_n, ref_h, atol=2e-3, rtol=2e-3)
    assert jnp.allclose(c_n, ref_c, atol=2e-3, rtol=2e-3)

    print("KERNEL_OK")
</pallas_src>

<mosaic_0001>
module attributes {stable_mosaic.version = 11 : i64} {
  func.func @_char_rnn_kernel(%arg0: i32, %arg1: memref<1x128x128xbf16, #tpu.memory_space<vmem>>, %arg2: memref<2x16x128xf32, #tpu.memory_space<vmem>>, %arg3: memref<2x16x128xf32, #tpu.memory_space<vmem>>, %arg4: memref<128x512xbf16, #tpu.memory_space<vmem>>, %arg5: memref<128x512xbf16, #tpu.memory_space<vmem>>, %arg6: memref<1x512xf32, #tpu.memory_space<vmem>>, %arg7: memref<128x512xbf16, #tpu.memory_space<vmem>>, %arg8: memref<128x512xbf16, #tpu.memory_space<vmem>>, %arg9: memref<1x512xf32, #tpu.memory_space<vmem>>, %arg10: memref<128x128xbf16, #tpu.memory_space<vmem>>, %arg11: memref<1x128xf32, #tpu.memory_space<vmem>>, %arg12: memref<1x128x128xf32, #tpu.memory_space<vmem>>, %arg13: memref<2x16x128xf32, #tpu.memory_space<vmem>>, %arg14: memref<2x16x128xf32, #tpu.memory_space<vmem>>, %arg15: memref<128x512xf32, #tpu.memory_space<vmem>>, %arg16: memref<128x512xf32, #tpu.memory_space<vmem>>, %arg17: memref<128x128xbf16, #tpu.memory_space<vmem>>, %arg18: memref<128x128xbf16, #tpu.memory_space<vmem>>) attributes {dimension_semantics = [#tpu.dimension_semantics<parallel>], iteration_bounds = array<i64: 1>, scalar_prefetch = 0 : i64, scratch_operands = 4 : i64, tpu.core_type = #tpu.core_type<tc>, window_params = [{transform_indices = @transform_0, window_bounds = array<i64: 1, 128, 128>}, {transform_indices = @transform_1, window_bounds = array<i64: 2, 16, 128>}, {transform_indices = @transform_2, window_bounds = array<i64: 2, 16, 128>}, {pipeline_mode = #tpu.pipeline_mode<synchronous>, transform_indices = @transform_3, window_bounds = array<i64: 128, 512>}, {pipeline_mode = #tpu.pipeline_mode<synchronous>, transform_indices = @transform_4, window_bounds = array<i64: 128, 512>}, {pipeline_mode = #tpu.pipeline_mode<synchronous>, transform_indices = @transform_5, window_bounds = array<i64: 1, 512>}, {pipeline_mode = #tpu.pipeline_mode<synchronous>, transform_indices = @transform_6, window_bounds = array<i64: 128, 512>}, {pipeline_mode = #tpu.pipeline_mode<synchronous>, transform_indices = @transform_7, window_bounds = array<i64: 128, 512>}, {pipeline_mode = #tpu.pipeline_mode<synchronous>, transform_indices = @transform_8, window_bounds = array<i64: 1, 512>}, {pipeline_mode = #tpu.pipeline_mode<synchronous>, transform_indices = @transform_9, window_bounds = array<i64: 128, 128>}, {pipeline_mode = #tpu.pipeline_mode<synchronous>, transform_indices = @transform_10, window_bounds = array<i64: 1, 128>}, {transform_indices = @transform_11, window_bounds = array<i64: 1, 128, 128>}, {transform_indices = @transform_12, window_bounds = array<i64: 2, 16, 128>}, {transform_indices = @transform_13, window_bounds = array<i64: 2, 16, 128>}]} {
    %c0 = arith.constant 0 : index
    %c0_0 = arith.constant 0 : index
    %c0_1 = arith.constant 0 : index
    %0 = vector.load %arg1[%c0, %c0_0, %c0_1] : memref<1x128x128xbf16, #tpu.memory_space<vmem>>, vector<1x128x128xbf16>
    %1 = vector.shape_cast %0 : vector<1x128x128xbf16> to vector<128x128xbf16>
    %c0_2 = arith.constant 0 : index
    %c0_3 = arith.constant 0 : index
    %2 = vector.load %arg4[%c0_2, %c0_3] : memref<128x512xbf16, #tpu.memory_space<vmem>>, vector<128x512xbf16>
    %cst = arith.constant dense<0.000000e+00> : vector<128x512xf32>
    %3 = tpu.matmul %1, %2, %cst {dimension_numbers = #tpu.dot_dimension_numbers<[1], [0], [0], [1], [0, 0, 1, 1], [], []>} : vector<128x128xbf16>, vector<128x512xbf16>, vector<128x512xf32> -> vector<128x512xf32>
    %c0_4 = arith.constant 0 : index
    %c0_5 = arith.constant 0 : index
    %4 = vector.load %arg6[%c0_4, %c0_5] : memref<1x512xf32, #tpu.memory_space<vmem>>, vector<1x512xf32>
    %5 = vector.broadcast %4 : vector<1x512xf32> to vector<128x512xf32>
    %6 = arith.addf %3, %5 : vector<128x512xf32>
    %c0_6 = arith.constant 0 : index
    %c0_7 = arith.constant 0 : index
    %7 = vector.load %arg15[%c0_6, %c0_7] : memref<128x512xf32, #tpu.memory_space<vmem>>, vector<128x512xf32>
    tpu.vector_store %arg15[%c0_6, %c0_7], %6 {strides = array<i32>} : memref<128x512xf32, #tpu.memory_space<vmem>>, vector<128x512xf32>,
    %c0_8 = arith.constant 0 : index
    %c0_9 = arith.constant 0 : index
    %c0_10 = arith.constant 0 : index
    %8 = vector.load %arg2[%c0_8, %c0_9, %c0_10] : memref<2x16x128xf32, #tpu.memory_space<vmem>>, vector<1x16x128xf32>
    %9 = vector.shape_cast %8 : vector<1x16x128xf32> to vector<16x128xf32>
    %c0_11 = arith.constant 0 : index
    %c0_12 = arith.constant 0 : index
    %c0_13 = arith.constant 0 : index
    %10 = vector.load %arg3[%c0_11, %c0_12, %c0_13] : memref<2x16x128xf32, #tpu.memory_space<vmem>>, vector<1x16x128xf32>
    %11 = vector.shape_cast %10 : vector<1x16x128xf32> to vector<16x128xf32>
    %c0_i32 = arith.constant 0 : i32
    %c16_i32 = arith.constant 16 : i32
    %12 = arith.muli %c0_i32, %c16_i32 : i32
    %13 = tpu.assume_multiple %12, 16 : i32
    %14 = arith.index_cast %13 : i32 to index
    %c0_14 = arith.constant 0 : index
    %15 = vector.load %arg15[%14, %c0_14] : memref<128x512xf32, #tpu.memory_space<vmem>>, vector<16x512xf32>
    %16 = arith.truncf %9 : vector<16x128xf32> to vector<16x128xbf16>
    %c0_15 = arith.constant 0 : index
    %c0_16 = arith.constant 0 : index
    %17 = vector.load %arg5[%c0_15, %c0_16] : memref<128x512xbf16, #tpu.memory_space<vmem>>, vector<128x512xbf16>
    %cst_17 = arith.constant dense<0.000000e+00> : vector<16x512xf32>
    %18 = tpu.matmul %16, %17, %cst_17 {dimension_numbers = #tpu.dot_dimension_numbers<[1], [0], [0], [1], [0, 0, 1, 1], [], []>} : vector<16x128xbf16>, vector<128x512xbf16>, vector<16x512xf32> -> vector<16x512xf32>
    %19 = arith.addf %15, %18 : vector<16x512xf32>
    %20 = vector.extract_strided_slice %19 {offsets = [0, 0], sizes = [16, 128], strides = [1, 1]} : vector<16x512xf32> to vector<16x128xf32>
    %21 = arith.negf %20 : vector<16x128xf32>
    %22 = math.exp %21 : vector<16x128xf32>
    %cst_18 = arith.constant 1.000000e+00 : f32
    %23 = vector.broadcast %cst_18 : f32 to vector<16x128xf32>
    %24 = arith.addf %23, %22 : vector<16x128xf32>
    %25 = arith.divf %23, %24 : vector<16x128xf32>
    %26 = vector.extract_strided_slice %19 {offsets = [0, 128], sizes = [16, 128], strides = [1, 1]} : vector<16x512xf32> to vector<16x128xf32>
    %27 = arith.negf %26 : vector<16x128xf32>
    %28 = math.exp %27 : vector<16x128xf32>
    %cst_19 = arith.constant 1.000000e+00 : f32
    %29 = vector.broadcast %cst_19 : f32 to vector<16x128xf32>
    %30 = arith.addf %29, %28 : vector<16x128xf32>
    %31 = arith.divf %29, %30 : vector<16x128xf32>
    %32 = vector.extract_strided_slice %19 {offsets = [0, 256], sizes = [16, 128], strides = [1, 1]} : vector<16x512xf32> to vector<16x128xf32>
    %33 = math.tanh %32 : vector<16x128xf32>
    %34 = vector.extract_strided_slice %19 {offsets = [0, 384], sizes = [16, 128], strides = [1, 1]} : vector<16x512xf32> to vector<16x128xf32>
    %35 = arith.negf %34 : vector<16x128xf32>
    %36 = math.exp %35 : vector<16x128xf32>
    %cst_20 = arith.constant 1.000000e+00 : f32
    %37 = vector.broadcast %cst_20 : f32 to vector<16x128xf32>
    %38 = arith.addf %37, %36 : vector<16x128xf32>
    %39 = arith.divf %37, %38 : vector<16x128xf32>
    %40 = arith.mulf %31, %11 : vector<16x128xf32>
    %41 = arith.mulf %25, %33 : vector<16x128xf32>
    %42 = arith.addf %40, %41 : vector<16x128xf32>
    %43 = math.tanh %42 : vector<16x128xf32>
    %44 = arith.mulf %39, %43 : vector<16x128xf32>
    %c16_i32_21 = arith.constant 16 : i32
    %45 = arith.muli %c0_i32, %c16_i32_21 : i32
    %c0_i32_22 = arith.constant 0 : i32
    %46 = arith.addi %c0_i32_22, %45 : i32
    %47 = tpu.assume_multiple %46, 16 : i32
    %48 = arith.truncf %44 : vector<16x128xf32> to vector<16x128xbf16>
    %49 = arith.index_cast %47 : i32 to index
    %c0_23 = arith.constant 0 : index
    %50 = vector.load %arg17[%49, %c0_23] : memref<128x128xbf16, #tpu.memory_space<vmem>>, vector<16x128xbf16>
    tpu.vector_store %arg17[%49, %c0_23], %48 {strides = array<i32>} : memref<128x128xbf16, #tpu.memory_space<vmem>>, vector<16x128xbf16>,
    %c1_i32 = arith.constant 1 : i32
    %c16_i32_24 = arith.constant 16 : i32
    %51 = arith.muli %c1_i32, %c16_i32_24 : i32
    %52 = tpu.assume_multiple %51, 16 : i32
    %53 = arith.index_cast %52 : i32 to index
    %c0_25 = arith.constant 0 : index
    %54 = vector.load %arg15[%53, %c0_25] : memref<128x512xf32, #tpu.memory_space<vmem>>, vector<16x512xf32>
    %55 = arith.truncf %44 : vector<16x128xf32> to vector<16x128xbf16>
    %c0_26 = arith.constant 0 : index
    %c0_27 = arith.constant 0 : index
    %56 = vector.load %arg5[%c0_26, %c0_27] : memref<128x512xbf16, #tpu.memory_space<vmem>>, vector<128x512xbf16>
    %cst_28 = arith.constant dense<0.000000e+00> : vector<16x512xf32>
    %57 = tpu.matmul %55, %56, %cst_28 {dimension_numbers = #tpu.dot_dimension_numbers<[1], [0], [0], [1], [0, 0, 1, 1], [], []>} : vector<16x128xbf16>, vector<128x512xbf16>, vector<16x512xf32> -> vector<16x512xf32>
    %58 = arith.addf %54, %57 : vector<16x512xf32>
    %59 = vector.extract_strided_slice %58 {offsets = [0, 0], sizes = [16, 128], strides = [1, 1]} : vector<16x512xf32> to vector<16x128xf32>
    %60 = arith.negf %59 : vector<16x128xf32>
    %61 = math.exp %60 : vector<16x128xf32>
    %cst_29 = arith.constant 1.000000e+00 : f32
    %62 = vector.broadcast %cst_29 : f32 to vector<16x128xf32>
    %63 = arith.addf %62, %61 : vector<16x128xf32>
    %64 = arith.divf %62, %63 : vector<16x128xf32>
    %65 = vector.extract_strided_slice %58 {offsets = [0, 128], sizes = [16, 128], strides = [1, 1]} : vector<16x512xf32> to vector<16x128xf32>
    %66 = arith.negf %65 : vector<16x128xf32>
    %67 = math.exp %66 : vector<16x128xf32>
    %cst_30 = arith.constant 1.000000e+00 : f32
    %68 = vector.broadcast %cst_30 : f32 to vector<16x128xf32>
    %69 = arith.addf %68, %67 : vector<16x128xf32>
    %70 = arith.divf %68, %69 : vector<16x128xf32>
    %71 = vector.extract_strided_slice %58 {offsets = [0, 256], sizes = [16, 128], strides = [1, 1]} : vector<16x512xf32> to vector<16x128xf32>
    %72 = math.tanh %71 : vector<16x128xf32>
    %73 = vector.extract_strided_slice %58 {offsets = [0, 384], sizes = [16, 128], strides = [1, 1]} : vector<16x512xf32> to vector<16x128xf32>
    %74 = arith.negf %73 : vector<16x128xf32>
    %75 = math.exp %74 : vector<16x128xf32>
    %cst_31 = arith.constant 1.000000e+00 : f32
    %76 = vector.broadcast %cst_31 : f32 to vector<16x128xf32>
    %77 = arith.addf %76, %75 : vector<16x128xf32>
    %78 = arith.divf %76, %77 : vector<16x128xf32>
    %79 = arith.mulf %70, %42 : vector<16x128xf32>
    %80 = arith.mulf %64, %72 : vector<16x128xf32>
    %81 = arith.addf %79, %80 : vector<16x128xf32>
    %82 = math.tanh %81 : vector<16x128xf32>
    %83 = arith.mulf %78, %82 : vector<16x128xf32>
    %c16_i32_32 = arith.constant 16 : i32
    %84 = arith.muli %c1_i32, %c16_i32_32 : i32
    %c0_i32_33 = arith.constant 0 : i32
    %85 = arith.addi %c0_i32_33, %84 : i32
    %86 = tpu.assume_multiple %85, 16 : i32
    %87 = arith.truncf %83 : vector<16x128xf32> to vector<16x128xbf16>
    %88 = arith.index_cast %86 : i32 to index
    %c0_34 = arith.constant 0 : index
    %89 = vector.load %arg17[%88, %c0_34] : memref<128x128xbf16, #tpu.memory_space<vmem>>, vector<16x128xbf16>
    tpu.vector_store %arg17[%88, %c0_34], %87 {strides = array<i32>} : memref<128x128xbf16, #tpu.memory_space<vmem>>, vector<16x128xbf16>,
    %c2_i32 = arith.constant 2 : i32
    %c16_i32_35 = arith.constant 16 : i32
    %90 = arith.muli %c2_i32, %c16_i32_35 : i32
    %91 = tpu.assume_multiple %90, 16 : i32
    %92 = arith.index_cast %91 : i32 to index
    %c0_36 = arith.constant 0 : index
    %93 = vector.load %arg15[%92, %c0_36] : memref<128x512xf32, #tpu.memory_space<vmem>>, vector<16x512xf32>
    %94 = arith.truncf %83 : vector<16x128xf32> to vector<16x128xbf16>
    %c0_37 = arith.constant 0 : index
    %c0_38 = arith.constant 0 : index
    %95 = vector.load %arg5[%c0_37, %c0_38] : memref<128x512xbf16, #tpu.memory_space<vmem>>, vector<128x512xbf16>
    %cst_39 = arith.constant dense<0.000000e+00> : vector<16x512xf32>
    %96 = tpu.matmul %94, %95, %cst_39 {dimension_numbers = #tpu.dot_dimension_numbers<[1], [0], [0], [1], [0, 0, 1, 1], [], []>} : vector<16x128xbf16>, vector<128x512xbf16>, vector<16x512xf32> -> vector<16x512xf32>
    %97 = arith.addf %93, %96 : vector<16x512xf32>
    %98 = vector.extract_strided_slice %97 {offsets = [0, 0], sizes = [16, 128], strides = [1, 1]} : vector<16x512xf32> to vector<16x128xf32>
    %99 = arith.negf %98 : vector<16x128xf32>
    %100 = math.exp %99 : vector<16x128xf32>
    %cst_40 = arith.constant 1.000000e+00 : f32
    %101 = vector.broadcast %cst_40 : f32 to vector<16x128xf32>
    %102 = arith.addf %101, %100 : vector<16x128xf32>
    %103 = arith.divf %101, %102 : vector<16x128xf32>
    %104 = vector.extract_strided_slice %97 {offsets = [0, 128], sizes = [16, 128], strides = [1, 1]} : vector<16x512xf32> to vector<16x128xf32>
    %105 = arith.negf %104 : vector<16x128xf32>
    %106 = math.exp %105 : vector<16x128xf32>
    %cst_41 = arith.constant 1.000000e+00 : f32
    %107 = vector.broadcast %cst_41 : f32 to vector<16x128xf32>
    %108 = arith.addf %107, %106 : vector<16x128xf32>
    %109 = arith.divf %107, %108 : vector<16x128xf32>
    %110 = vector.extract_strided_slice %97 {offsets = [0, 256], sizes = [16, 128], strides = [1, 1]} : vector<16x512xf32> to vector<16x128xf32>
    %111 = math.tanh %110 : vector<16x128xf32>
    %112 = vector.extract_strided_slice %97 {offsets = [0, 384], sizes = [16, 128], strides = [1, 1]} : vector<16x512xf32> to vector<16x128xf32>
    %113 = arith.negf %112 : vector<16x128xf32>
    %114 = math.exp %113 : vector<16x128xf32>
    %cst_42 = arith.constant 1.000000e+00 : f32
    %115 = vector.broadcast %cst_42 : f32 to vector<16x128xf32>
    %116 = arith.addf %115, %114 : vector<16x128xf32>
    %117 = arith.divf %115, %116 : vector<16x128xf32>
    %118 = arith.mulf %109, %81 : vector<16x128xf32>
    %119 = arith.mulf %103, %111 : vector<16x128xf32>
    %120 = arith.addf %118, %119 : vector<16x128xf32>
    %121 = math.tanh %120 : vector<16x128xf32>
    %122 = arith.mulf %117, %121 : vector<16x128xf32>
    %c16_i32_43 = arith.constant 16 : i32
    %123 = arith.muli %c2_i32, %c16_i32_43 : i32
    %c0_i32_44 = arith.constant 0 : i32
    %124 = arith.addi %c0_i32_44, %123 : i32
    %125 = tpu.assume_multiple %124, 16 : i32
    %126 = arith.truncf %122 : vector<16x128xf32> to vector<16x128xbf16>
    %127 = arith.index_cast %125 : i32 to index
    %c0_45 = arith.constant 0 : index
    %128 = vector.load %arg17[%127, %c0_45] : memref<128x128xbf16, #tpu.memory_space<vmem>>, vector<16x128xbf16>
    tpu.vector_store %arg17[%127, %c0_45], %126 {strides = array<i32>} : memref<128x128xbf16, #tpu.memory_space<vmem>>, vector<16x128xbf16>,
    %c3_i32 = arith.constant 3 : i32
    %c16_i32_46 = arith.constant 16 : i32
    %129 = arith.muli %c3_i32, %c16_i32_46 : i32
    %130 = tpu.assume_multiple %129, 16 : i32
    %131 = arith.index_cast %130 : i32 to index
    %c0_47 = arith.constant 0 : index
    %132 = vector.load %arg15[%131, %c0_47] : memref<128x512xf32, #tpu.memory_space<vmem>>, vector<16x512xf32>
    %133 = arith.truncf %122 : vector<16x128xf32> to vector<16x128xbf16>
    %c0_48 = arith.constant 0 : index
    %c0_49 = arith.constant 0 : index
    %134 = vector.load %arg5[%c0_48, %c0_49] : memref<128x512xbf16, #tpu.memory_space<vmem>>, vector<128x512xbf16>
    %cst_50 = arith.constant dense<0.000000e+00> : vector<16x512xf32>
    %135 = tpu.matmul %133, %134, %cst_50 {dimension_numbers = #tpu.dot_dimension_numbers<[1], [0], [0], [1], [0, 0, 1, 1], [], []>} : vector<16x128xbf16>, vector<128x512xbf16>, vector<16x512xf32> -> vector<16x512xf32>
    %136 = arith.addf %132, %135 : vector<16x512xf32>
    %137 = vector.extract_strided_slice %136 {offsets = [0, 0], sizes = [16, 128], strides = [1, 1]} : vector<16x512xf32> to vector<16x128xf32>
    %138 = arith.negf %137 : vector<16x128xf32>
    %139 = math.exp %138 : vector<16x128xf32>
    %cst_51 = arith.constant 1.000000e+00 : f32
    %140 = vector.broadcast %cst_51 : f32 to vector<16x128xf32>
    %141 = arith.addf %140, %139 : vector<16x128xf32>
    %142 = arith.divf %140, %141 : vector<16x128xf32>
    %143 = vector.extract_strided_slice %136 {offsets = [0, 128], sizes = [16, 128], strides = [1, 1]} : vector<16x512xf32> to vector<16x128xf32>
    %144 = arith.negf %143 : vector<16x128xf32>
    %145 = math.exp %144 : vector<16x128xf32>
    %cst_52 = arith.constant 1.000000e+00 : f32
    %146 = vector.broadcast %cst_52 : f32 to vector<16x128xf32>
    %147 = arith.addf %146, %145 : vector<16x128xf32>
    %148 = arith.divf %146, %147 : vector<16x128xf32>
    %149 = vector.extract_strided_slice %136 {offsets = [0, 256], sizes = [16, 128], strides = [1, 1]} : vector<16x512xf32> to vector<16x128xf32>
    %150 = math.tanh %149 : vector<16x128xf32>
    %151 = vector.extract_strided_slice %136 {offsets = [0, 384], sizes = [16, 128], strides = [1, 1]} : vector<16x512xf32> to vector<16x128xf32>
    %152 = arith.negf %151 : vector<16x128xf32>
    %153 = math.exp %152 : vector<16x128xf32>
    %cst_53 = arith.constant 1.000000e+00 : f32
    %154 = vector.broadcast %cst_53 : f32 to vector<16x128xf32>
    %155 = arith.addf %154, %153 : vector<16x128xf32>
    %156 = arith.divf %154, %155 : vector<16x128xf32>
    %157 = arith.mulf %148, %120 : vector<16x128xf32>
    %158 = arith.mulf %142, %150 : vector<16x128xf32>
    %159 = arith.addf %157, %158 : vector<16x128xf32>
    %160 = math.tanh %159 : vector<16x128xf32>
    %161 = arith.mulf %156, %160 : vector<16x128xf32>
    %c16_i32_54 = arith.constant 16 : i32
    %162 = arith.muli %c3_i32, %c16_i32_54 : i32
    %c0_i32_55 = arith.constant 0 : i32
    %163 = arith.addi %c0_i32_55, %162 : i32
    %164 = tpu.assume_multiple %163, 16 : i32
    %165 = arith.truncf %161 : vector<16x128xf32> to vector<16x128xbf16>
    %166 = arith.index_cast %164 : i32 to index
    %c0_56 = arith.constant 0 : index
    %167 = vector.load %arg17[%166, %c0_56] : memref<128x128xbf16, #tpu.memory_space<vmem>>, vector<16x128xbf16>
    tpu.vector_store %arg17[%166, %c0_56], %165 {strides = array<i32>} : memref<128x128xbf16, #tpu.memory_space<vmem>>, vector<16x128xbf16>,
    %c4_i32 = arith.constant 4 : i32
    %c16_i32_57 = arith.constant 16 : i32
    %168 = arith.muli %c4_i32, %c16_i32_57 : i32
    %169 = tpu.assume_multiple %168, 16 : i32
    %170 = arith.index_cast %169 : i32 to index
    %c0_58 = arith.constant 0 : index
    %171 = vector.load %arg15[%170, %c0_58] : memref<128x512xf32, #tpu.memory_space<vmem>>, vector<16x512xf32>
    %172 = arith.truncf %161 : vector<16x128xf32> to vector<16x128xbf16>
    %c0_59 = arith.constant 0 : index
    %c0_60 = arith.constant 0 : index
    %173 = vector.load %arg5[%c0_59, %c0_60] : memref<128x512xbf16, #tpu.memory_space<vmem>>, vector<128x512xbf16>
    %cst_61 = arith.constant dense<0.000000e+00> : vector<16x512xf32>
    %174 = tpu.matmul %172, %173, %cst_61 {dimension_numbers = #tpu.dot_dimension_numbers<[1], [0], [0], [1], [0, 0, 1, 1], [], []>} : vector<16x128xbf16>, vector<128x512xbf16>, vector<16x512xf32> -> vector<16x512xf32>
    %175 = arith.addf %171, %174 : vector<16x512xf32>
    %176 = vector.extract_strided_slice %175 {offsets = [0, 0], sizes = [16, 128], strides = [1, 1]} : vector<16x512xf32> to vector<16x128xf32>
    %177 = arith.negf %176 : vector<16x128xf32>
    %178 = math.exp %177 : vector<16x128xf32>
    %cst_62 = arith.constant 1.000000e+00 : f32
    %179 = vector.broadcast %cst_62 : f32 to vector<16x128xf32>
    %180 = arith.addf %179, %178 : vector<16x128xf32>
    %181 = arith.divf %179, %180 : vector<16x128xf32>
    %182 = vector.extract_strided_slice %175 {offsets = [0, 128], sizes = [16, 128], strides = [1, 1]} : vector<16x512xf32> to vector<16x128xf32>
    %183 = arith.negf %182 : vector<16x128xf32>
    %184 = math.exp %183 : vector<16x128xf32>
    %cst_63 = arith.constant 1.000000e+00 : f32
    %185 = vector.broadcast %cst_63 : f32 to vector<16x128xf32>
    %186 = arith.addf %185, %184 : vector<16x128xf32>
    %187 = arith.divf %185, %186 : vector<16x128xf32>
    %188 = vector.extract_strided_slice %175 {offsets = [0, 256], sizes = [16, 128], strides = [1, 1]} : vector<16x512xf32> to vector<16x128xf32>
    %189 = math.tanh %188 : vector<16x128xf32>
    %190 = vector.extract_strided_slice %175 {offsets = [0, 384], sizes = [16, 128], strides = [1, 1]} : vector<16x512xf32> to vector<16x128xf32>
    %191 = arith.negf %190 : vector<16x128xf32>
    %192 = math.exp %191 : vector<16x128xf32>
    %cst_64 = arith.constant 1.000000e+00 : f32
    %193 = vector.broadcast %cst_64 : f32 to vector<16x128xf32>
    %194 = arith.addf %193, %192 : vector<16x128xf32>
    %195 = arith.divf %193, %194 : vector<16x128xf32>
    %196 = arith.mulf %187, %159 : vector<16x128xf32>
    %197 = arith.mulf %181, %189 : vector<16x128xf32>
    %198 = arith.addf %196, %197 : vector<16x128xf32>
    %199 = math.tanh %198 : vector<16x128xf32>
    %200 = arith.mulf %195, %199 : vector<16x128xf32>
    %c16_i32_65 = arith.constant 16 : i32
    %201 = arith.muli %c4_i32, %c16_i32_65 : i32
    %c0_i32_66 = arith.constant 0 : i32
    %202 = arith.addi %c0_i32_66, %201 : i32
    %203 = tpu.assume_multiple %202, 16 : i32
    %204 = arith.truncf %200 : vector<16x128xf32> to vector<16x128xbf16>
    %205 = arith.index_cast %203 : i32 to index
    %c0_67 = arith.constant 0 : index
    %206 = vector.load %arg17[%205, %c0_67] : memref<128x128xbf16, #tpu.memory_space<vmem>>, vector<16x128xbf16>
    tpu.vector_store %arg17[%205, %c0_67], %204 {strides = array<i32>} : memref<128x128xbf16, #tpu.memory_space<vmem>>, vector<16x128xbf16>,
    %c5_i32 = arith.constant 5 : i32
    %c16_i32_68 = arith.constant 16 : i32
    %207 = arith.muli %c5_i32, %c16_i32_68 : i32
    %208 = tpu.assume_multiple %207, 16 : i32
    %209 = arith.index_cast %208 : i32 to index
    %c0_69 = arith.constant 0 : index
    %210 = vector.load %arg15[%209, %c0_69] : memref<128x512xf32, #tpu.memory_space<vmem>>, vector<16x512xf32>
    %211 = arith.truncf %200 : vector<16x128xf32> to vector<16x128xbf16>
    %c0_70 = arith.constant 0 : index
    %c0_71 = arith.constant 0 : index
    %212 = vector.load %arg5[%c0_70, %c0_71] : memref<128x512xbf16, #tpu.memory_space<vmem>>, vector<128x512xbf16>
    %cst_72 = arith.constant dense<0.000000e+00> : vector<16x512xf32>
    %213 = tpu.matmul %211, %212, %cst_72 {dimension_numbers = #tpu.dot_dimension_numbers<[1], [0], [0], [1], [0, 0, 1, 1], [], []>} : vector<16x128xbf16>, vector<128x512xbf16>, vector<16x512xf32> -> vector<16x512xf32>
    %214 = arith.addf %210, %213 : vector<16x512xf32>
    %215 = vector.extract_strided_slice %214 {offsets = [0, 0], sizes = [16, 128], strides = [1, 1]} : vector<16x512xf32> to vector<16x128xf32>
    %216 = arith.negf %215 : vector<16x128xf32>
    %217 = math.exp %216 : vector<16x128xf32>
    %cst_73 = arith.constant 1.000000e+00 : f32
    %218 = vector.broadcast %cst_73 : f32 to vector<16x128xf32>
    %219 = arith.addf %218, %217 : vector<16x128xf32>
    %220 = arith.divf %218, %219 : vector<16x128xf32>
    %221 = vector.extract_strided_slice %214 {offsets = [0, 128], sizes = [16, 128], strides = [1, 1]} : vector<16x512xf32> to vector<16x128xf32>
    %222 = arith.negf %221 : vector<16x128xf32>
    %223 = math.exp %222 : vector<16x128xf32>
    %cst_74 = arith.constant 1.000000e+00 : f32
    %224 = vector.broadcast %cst_74 : f32 to vector<16x128xf32>
    %225 = arith.addf %224, %223 : vector<16x128xf32>
    %226 = arith.divf %224, %225 : vector<16x128xf32>
    %227 = vector.extract_strided_slice %214 {offsets = [0, 256], sizes = [16, 128], strides = [1, 1]} : vector<16x512xf32> to vector<16x128xf32>
    %228 = math.tanh %227 : vector<16x128xf32>
    %229 = vector.extract_strided_slice %214 {offsets = [0, 384], sizes = [16, 128], strides = [1, 1]} : vector<16x512xf32> to vector<16x128xf32>
    %230 = arith.negf %229 : vector<16x128xf32>
    %231 = math.exp %230 : vector<16x128xf32>
    %cst_75 = arith.constant 1.000000e+00 : f32
    %232 = vector.broadcast %cst_75 : f32 to vector<16x128xf32>
    %233 = arith.addf %232, %231 : vector<16x128xf32>
    %234 = arith.divf %232, %233 : vector<16x128xf32>
    %235 = arith.mulf %226, %198 : vector<16x128xf32>
    %236 = arith.mulf %220, %228 : vector<16x128xf32>
    %237 = arith.addf %235, %236 : vector<16x128xf32>
    %238 = math.tanh %237 : vector<16x128xf32>
    %239 = arith.mulf %234, %238 : vector<16x128xf32>
    %c16_i32_76 = arith.constant 16 : i32
    %240 = arith.muli %c5_i32, %c16_i32_76 : i32
    %c0_i32_77 = arith.constant 0 : i32
    %241 = arith.addi %c0_i32_77, %240 : i32
    %242 = tpu.assume_multiple %241, 16 : i32
    %243 = arith.truncf %239 : vector<16x128xf32> to vector<16x128xbf16>
    %244 = arith.index_cast %242 : i32 to index
    %c0_78 = arith.constant 0 : index
    %245 = vector.load %arg17[%244, %c0_78] : memref<128x128xbf16, #tpu.memory_space<vmem>>, vector<16x128xbf16>
    tpu.vector_store %arg17[%244, %c0_78], %243 {strides = array<i32>} : memref<128x128xbf16, #tpu.memory_space<vmem>>, vector<16x128xbf16>,
    %c6_i32 = arith.constant 6 : i32
    %c16_i32_79 = arith.constant 16 : i32
    %246 = arith.muli %c6_i32, %c16_i32_79 : i32
    %247 = tpu.assume_multiple %246, 16 : i32
    %248 = arith.index_cast %247 : i32 to index
    %c0_80 = arith.constant 0 : index
    %249 = vector.load %arg15[%248, %c0_80] : memref<128x512xf32, #tpu.memory_space<vmem>>, vector<16x512xf32>
    %250 = arith.truncf %239 : vector<16x128xf32> to vector<16x128xbf16>
    %c0_81 = arith.constant 0 : index
    %c0_82 = arith.constant 0 : index
    %251 = vector.load %arg5[%c0_81, %c0_82] : memref<128x512xbf16, #tpu.memory_space<vmem>>, vector<128x512xbf16>
    %cst_83 = arith.constant dense<0.000000e+00> : vector<16x512xf32>
    %252 = tpu.matmul %250, %251, %cst_83 {dimension_numbers = #tpu.dot_dimension_numbers<[1], [0], [0], [1], [0, 0, 1, 1], [], []>} : vector<16x128xbf16>, vector<128x512xbf16>, vector<16x512xf32> -> vector<16x512xf32>
    %253 = arith.addf %249, %252 : vector<16x512xf32>
    %254 = vector.extract_strided_slice %253 {offsets = [0, 0], sizes = [16, 128], strides = [1, 1]} : vector<16x512xf32> to vector<16x128xf32>
    %255 = arith.negf %254 : vector<16x128xf32>
    %256 = math.exp %255 : vector<16x128xf32>
    %cst_84 = arith.constant 1.000000e+00 : f32
    %257 = vector.broadcast %cst_84 : f32 to vector<16x128xf32>
    %258 = arith.addf %257, %256 : vector<16x128xf32>
    %259 = arith.divf %257, %258 : vector<16x128xf32>
    %260 = vector.extract_strided_slice %253 {offsets = [0, 128], sizes = [16, 128], strides = [1, 1]} : vector<16x512xf32> to vector<16x128xf32>
    %261 = arith.negf %260 : vector<16x128xf32>
    %262 = math.exp %261 : vector<16x128xf32>
    %cst_85 = arith.constant 1.000000e+00 : f32
    %263 = vector.broadcast %cst_85 : f32 to vector<16x128xf32>
    %264 = arith.addf %263, %262 : vector<16x128xf32>
    %265 = arith.divf %263, %264 : vector<16x128xf32>
    %266 = vector.extract_strided_slice %253 {offsets = [0, 256], sizes = [16, 128], strides = [1, 1]} : vector<16x512xf32> to vector<16x128xf32>
    %267 = math.tanh %266 : vector<16x128xf32>
    %268 = vector.extract_strided_slice %253 {offsets = [0, 384], sizes = [16, 128], strides = [1, 1]} : vector<16x512xf32> to vector<16x128xf32>
    %269 = arith.negf %268 : vector<16x128xf32>
    %270 = math.exp %269 : vector<16x128xf32>
    %cst_86 = arith.constant 1.000000e+00 : f32
    %271 = vector.broadcast %cst_86 : f32 to vector<16x128xf32>
    %272 = arith.addf %271, %270 : vector<16x128xf32>
    %273 = arith.divf %271, %272 : vector<16x128xf32>
    %274 = arith.mulf %265, %237 : vector<16x128xf32>
    %275 = arith.mulf %259, %267 : vector<16x128xf32>
    %276 = arith.addf %274, %275 : vector<16x128xf32>
    %277 = math.tanh %276 : vector<16x128xf32>
    %278 = arith.mulf %273, %277 : vector<16x128xf32>
    %c16_i32_87 = arith.constant 16 : i32
    %279 = arith.muli %c6_i32, %c16_i32_87 : i32
    %c0_i32_88 = arith.constant 0 : i32
    %280 = arith.addi %c0_i32_88, %279 : i32
    %281 = tpu.assume_multiple %280, 16 : i32
    %282 = arith.truncf %278 : vector<16x128xf32> to vector<16x128xbf16>
    %283 = arith.index_cast %281 : i32 to index
    %c0_89 = arith.constant 0 : index
    %284 = vector.load %arg17[%283, %c0_89] : memref<128x128xbf16, #tpu.memory_space<vmem>>, vector<16x128xbf16>
    tpu.vector_store %arg17[%283, %c0_89], %282 {strides = array<i32>} : memref<128x128xbf16, #tpu.memory_space<vmem>>, vector<16x128xbf16>,
    %c7_i32 = arith.constant 7 : i32
    %c16_i32_90 = arith.constant 16 : i32
    %285 = arith.muli %c7_i32, %c16_i32_90 : i32
    %286 = tpu.assume_multiple %285, 16 : i32
    %287 = arith.index_cast %286 : i32 to index
    %c0_91 = arith.constant 0 : index
    %288 = vector.load %arg15[%287, %c0_91] : memref<128x512xf32, #tpu.memory_space<vmem>>, vector<16x512xf32>
    %289 = arith.truncf %278 : vector<16x128xf32> to vector<16x128xbf16>
    %c0_92 = arith.constant 0 : index
    %c0_93 = arith.constant 0 : index
    %290 = vector.load %arg5[%c0_92, %c0_93] : memref<128x512xbf16, #tpu.memory_space<vmem>>, vector<128x512xbf16>
    %cst_94 = arith.constant dense<0.000000e+00> : vector<16x512xf32>
    %291 = tpu.matmul %289, %290, %cst_94 {dimension_numbers = #tpu.dot_dimension_numbers<[1], [0], [0], [1], [0, 0, 1, 1], [], []>} : vector<16x128xbf16>, vector<128x512xbf16>, vector<16x512xf32> -> vector<16x512xf32>
    %292 = arith.addf %288, %291 : vector<16x512xf32>
    %293 = vector.extract_strided_slice %292 {offsets = [0, 0], sizes = [16, 128], strides = [1, 1]} : vector<16x512xf32> to vector<16x128xf32>
    %294 = arith.negf %293 : vector<16x128xf32>
    %295 = math.exp %294 : vector<16x128xf32>
    %cst_95 = arith.constant 1.000000e+00 : f32
    %296 = vector.broadcast %cst_95 : f32 to vector<16x128xf32>
    %297 = arith.addf %296, %295 : vector<16x128xf32>
    %298 = arith.divf %296, %297 : vector<16x128xf32>
    %299 = vector.extract_strided_slice %292 {offsets = [0, 128], sizes = [16, 128], strides = [1, 1]} : vector<16x512xf32> to vector<16x128xf32>
    %300 = arith.negf %299 : vector<16x128xf32>
    %301 = math.exp %300 : vector<16x128xf32>
    %cst_96 = arith.constant 1.000000e+00 : f32
    %302 = vector.broadcast %cst_96 : f32 to vector<16x128xf32>
    %303 = arith.addf %302, %301 : vector<16x128xf32>
    %304 = arith.divf %302, %303 : vector<16x128xf32>
    %305 = vector.extract_strided_slice %292 {offsets = [0, 256], sizes = [16, 128], strides = [1, 1]} : vector<16x512xf32> to vector<16x128xf32>
    %306 = math.tanh %305 : vector<16x128xf32>
    %307 = vector.extract_strided_slice %292 {offsets = [0, 384], sizes = [16, 128], strides = [1, 1]} : vector<16x512xf32> to vector<16x128xf32>
    %308 = arith.negf %307 : vector<16x128xf32>
    %309 = math.exp %308 : vector<16x128xf32>
    %cst_97 = arith.constant 1.000000e+00 : f32
    %310 = vector.broadcast %cst_97 : f32 to vector<16x128xf32>
    %311 = arith.addf %310, %309 : vector<16x128xf32>
    %312 = arith.divf %310, %311 : vector<16x128xf32>
    %313 = arith.mulf %304, %276 : vector<16x128xf32>
    %314 = arith.mulf %298, %306 : vector<16x128xf32>
    %315 = arith.addf %313, %314 : vector<16x128xf32>
    %316 = math.tanh %315 : vector<16x128xf32>
    %317 = arith.mulf %312, %316 : vector<16x128xf32>
    %c16_i32_98 = arith.constant 16 : i32
    %318 = arith.muli %c7_i32, %c16_i32_98 : i32
    %c0_i32_99 = arith.constant 0 : i32
    %319 = arith.addi %c0_i32_99, %318 : i32
    %320 = tpu.assume_multiple %319, 16 : i32
    %321 = arith.truncf %317 : vector<16x128xf32> to vector<16x128xbf16>
    %322 = arith.index_cast %320 : i32 to index
    %c0_100 = arith.constant 0 : index
    %323 = vector.load %arg17[%322, %c0_100] : memref<128x128xbf16, #tpu.memory_space<vmem>>, vector<16x128xbf16>
    tpu.vector_store %arg17[%322, %c0_100], %321 {strides = array<i32>} : memref<128x128xbf16, #tpu.memory_space<vmem>>, vector<16x128xbf16>,
    %c8_i32 = arith.constant 8 : i32
    %c0_101 = arith.constant 0 : index
    %c0_102 = arith.constant 0 : index
    %c0_103 = arith.constant 0 : index
    %324 = vector.load %arg13[%c0_101, %c0_102, %c0_103] : memref<2x16x128xf32, #tpu.memory_space<vmem>>, vector<1x16x128xf32>
    %325 = vector.shape_cast %324 : vector<1x16x128xf32> to vector<16x128xf32>
    %326 = vector.shape_cast %317 : vector<16x128xf32> to vector<1x16x128xf32>
    tpu.vector_store %arg13[%c0_101, %c0_102, %c0_103], %326 {strides = array<i32>} : memref<2x16x128xf32, #tpu.memory_space<vmem>>, vector<1x16x128xf32>,
    %c0_104 = arith.constant 0 : index
    %c0_105 = arith.constant 0 : index
    %c0_106 = arith.constant 0 : index
    %327 = vector.load %arg14[%c0_104, %c0_105, %c0_106] : memref<2x16x128xf32, #tpu.memory_space<vmem>>, vector<1x16x128xf32>
    %328 = vector.shape_cast %327 : vector<1x16x128xf32> to vector<16x128xf32>
    %329 = vector.shape_cast %315 : vector<16x128xf32> to vector<1x16x128xf32>
    tpu.vector_store %arg14[%c0_104, %c0_105, %c0_106], %329 {strides = array<i32>} : memref<2x16x128xf32, #tpu.memory_space<vmem>>, vector<1x16x128xf32>,
    %c0_107 = arith.constant 0 : index
    %c0_108 = arith.constant 0 : index
    %330 = vector.load %arg17[%c0_107, %c0_108] : memref<128x128xbf16, #tpu.memory_space<vmem>>, vector<128x128xbf16>
    %c0_109 = arith.constant 0 : index
    %c0_110 = arith.constant 0 : index
    %331 = vector.load %arg7[%c0_109, %c0_110] : memref<128x512xbf16, #tpu.memory_space<vmem>>, vector<128x512xbf16>
    %cst_111 = arith.constant dense<0.000000e+00> : vector<128x512xf32>
    %332 = tpu.matmul %330, %331, %cst_111 {dimension_numbers = #tpu.dot_dimension_numbers<[1], [0], [0], [1], [0, 0, 1, 1], [], []>} : vector<128x128xbf16>, vector<128x512xbf16>, vector<128x512xf32> -> vector<128x512xf32>
    %c0_112 = arith.constant 0 : index
    %c0_113 = arith.constant 0 : index
    %333 = vector.load %arg9[%c0_112, %c0_113] : memref<1x512xf32, #tpu.memory_space<vmem>>, vector<1x512xf32>
    %334 = vector.broadcast %333 : vector<1x512xf32> to vector<128x512xf32>
    %335 = arith.addf %332, %334 : vector<128x512xf32>
    %c0_114 = arith.constant 0 : index
    %c0_115 = arith.constant 0 : index
    %336 = vector.load %arg15[%c0_114, %c0_115] : memref<128x512xf32, #tpu.memory_space<vmem>>, vector<128x512xf32>
    tpu.vector_store %arg15[%c0_114, %c0_115], %335 {strides = array<i32>} : memref<128x512xf32, #tpu.memory_space<vmem>>, vector<128x512xf32>,
    %c1 = arith.constant 1 : index
    %c0_116 = arith.constant 0 : index
    %c0_117 = arith.constant 0 : index
    %337 = vector.load %arg2[%c1, %c0_116, %c0_117] : memref<2x16x128xf32, #tpu.memory_space<vmem>>, vector<1x16x128xf32>
    %338 = vector.shape_cast %337 : vector<1x16x128xf32> to vector<16x128xf32>
    %c1_118 = arith.constant 1 : index
    %c0_119 = arith.constant 0 : index
    %c0_120 = arith.constant 0 : index
    %339 = vector.load %arg3[%c1_118, %c0_119, %c0_120] : memref<2x16x128xf32, #tpu.memory_space<vmem>>, vector<1x16x128xf32>
    %340 = vector.shape_cast %339 : vector<1x16x128xf32> to vector<16x128xf32>
    %c0_i32_121 = arith.constant 0 : i32
    %c16_i32_122 = arith.constant 16 : i32
    %341 = arith.muli %c0_i32_121, %c16_i32_122 : i32
    %342 = tpu.assume_multiple %341, 16 : i32
    %343 = arith.index_cast %342 : i32 to index
    %c0_123 = arith.constant 0 : index
    %344 = vector.load %arg15[%343, %c0_123] : memref<128x512xf32, #tpu.memory_space<vmem>>, vector<16x512xf32>
    %345 = arith.truncf %338 : vector<16x128xf32> to vector<16x128xbf16>
    %c0_124 = arith.constant 0 : index
    %c0_125 = arith.constant 0 : index
    %346 = vector.load %arg8[%c0_124, %c0_125] : memref<128x512xbf16, #tpu.memory_space<vmem>>, vector<128x512xbf16>
    %cst_126 = arith.constant dense<0.000000e+00> : vector<16x512xf32>
    %347 = tpu.matmul %345, %346, %cst_126 {dimension_numbers = #tpu.dot_dimension_numbers<[1], [0], [0], [1], [0, 0, 1, 1], [], []>} : vector<16x128xbf16>, vector<128x512xbf16>, vector<16x512xf32> -> vector<16x512xf32>
    %348 = arith.addf %344, %347 : vector<16x512xf32>
    %349 = vector.extract_strided_slice %348 {offsets = [0, 0], sizes = [16, 128], strides = [1, 1]} : vector<16x512xf32> to vector<16x128xf32>
    %350 = arith.negf %349 : vector<16x128xf32>
    %351 = math.exp %350 : vector<16x128xf32>
    %cst_127 = arith.constant 1.000000e+00 : f32
    %352 = vector.broadcast %cst_127 : f32 to vector<16x128xf32>
    %353 = arith.addf %352, %351 : vector<16x128xf32>
    %354 = arith.divf %352, %353 : vector<16x128xf32>
    %355 = vector.extract_strided_slice %348 {offsets = [0, 128], sizes = [16, 128], strides = [1, 1]} : vector<16x512xf32> to vector<16x128xf32>
    %356 = arith.negf %355 : vector<16x128xf32>
    %357 = math.exp %356 : vector<16x128xf32>
    %cst_128 = arith.constant 1.000000e+00 : f32
    %358 = vector.broadcast %cst_128 : f32 to vector<16x128xf32>
    %359 = arith.addf %358, %357 : vector<16x128xf32>
    %360 = arith.divf %358, %359 : vector<16x128xf32>
    %361 = vector.extract_strided_slice %348 {offsets = [0, 256], sizes = [16, 128], strides = [1, 1]} : vector<16x512xf32> to vector<16x128xf32>
    %362 = math.tanh %361 : vector<16x128xf32>
    %363 = vector.extract_strided_slice %348 {offsets = [0, 384], sizes = [16, 128], strides = [1, 1]} : vector<16x512xf32> to vector<16x128xf32>
    %364 = arith.negf %363 : vector<16x128xf32>
    %365 = math.exp %364 : vector<16x128xf32>
    %cst_129 = arith.constant 1.000000e+00 : f32
    %366 = vector.broadcast %cst_129 : f32 to vector<16x128xf32>
    %367 = arith.addf %366, %365 : vector<16x128xf32>
    %368 = arith.divf %366, %367 : vector<16x128xf32>
    %369 = arith.mulf %360, %340 : vector<16x128xf32>
    %370 = arith.mulf %354, %362 : vector<16x128xf32>
    %371 = arith.addf %369, %370 : vector<16x128xf32>
    %372 = math.tanh %371 : vector<16x128xf32>
    %373 = arith.mulf %368, %372 : vector<16x128xf32>
    %c16_i32_130 = arith.constant 16 : i32
    %374 = arith.muli %c0_i32_121, %c16_i32_130 : i32
    %c0_i32_131 = arith.constant 0 : i32
    %375 = arith.addi %c0_i32_131, %374 : i32
    %376 = tpu.assume_multiple %375, 16 : i32
    %377 = arith.truncf %373 : vector<16x128xf32> to vector<16x128xbf16>
    %378 = arith.index_cast %376 : i32 to index
    %c0_132 = arith.constant 0 : index
    %379 = vector.load %arg18[%378, %c0_132] : memref<128x128xbf16, #tpu.memory_space<vmem>>, vector<16x128xbf16>
    tpu.vector_store %arg18[%378, %c0_132], %377 {strides = array<i32>} : memref<128x128xbf16, #tpu.memory_space<vmem>>, vector<16x128xbf16>,
    %c1_i32_133 = arith.constant 1 : i32
    %c16_i32_134 = arith.constant 16 : i32
    %380 = arith.muli %c1_i32_133, %c16_i32_134 : i32
    %381 = tpu.assume_multiple %380, 16 : i32
    %382 = arith.index_cast %381 : i32 to index
    %c0_135 = arith.constant 0 : index
    %383 = vector.load %arg15[%382, %c0_135] : memref<128x512xf32, #tpu.memory_space<vmem>>, vector<16x512xf32>
    %384 = arith.truncf %373 : vector<16x128xf32> to vector<16x128xbf16>
    %c0_136 = arith.constant 0 : index
    %c0_137 = arith.constant 0 : index
    %385 = vector.load %arg8[%c0_136, %c0_137] : memref<128x512xbf16, #tpu.memory_space<vmem>>, vector<128x512xbf16>
    %cst_138 = arith.constant dense<0.000000e+00> : vector<16x512xf32>
    %386 = tpu.matmul %384, %385, %cst_138 {dimension_numbers = #tpu.dot_dimension_numbers<[1], [0], [0], [1], [0, 0, 1, 1], [], []>} : vector<16x128xbf16>, vector<128x512xbf16>, vector<16x512xf32> -> vector<16x512xf32>
    %387 = arith.addf %383, %386 : vector<16x512xf32>
    %388 = vector.extract_strided_slice %387 {offsets = [0, 0], sizes = [16, 128], strides = [1, 1]} : vector<16x512xf32> to vector<16x128xf32>
    %389 = arith.negf %388 : vector<16x128xf32>
    %390 = math.exp %389 : vector<16x128xf32>
    %cst_139 = arith.constant 1.000000e+00 : f32
    %391 = vector.broadcast %cst_139 : f32 to vector<16x128xf32>
    %392 = arith.addf %391, %390 : vector<16x128xf32>
    %393 = arith.divf %391, %392 : vector<16x128xf32>
    %394 = vector.extract_strided_slice %387 {offsets = [0, 128], sizes = [16, 128], strides = [1, 1]} : vector<16x512xf32> to vector<16x128xf32>
    %395 = arith.negf %394 : vector<16x128xf32>
    %396 = math.exp %395 : vector<16x128xf32>
    %cst_140 = arith.constant 1.000000e+00 : f32
    %397 = vector.broadcast %cst_140 : f32 to vector<16x128xf32>
    %398 = arith.addf %397, %396 : vector<16x128xf32>
    %399 = arith.divf %397, %398 : vector<16x128xf32>
    %400 = vector.extract_strided_slice %387 {offsets = [0, 256], sizes = [16, 128], strides = [1, 1]} : vector<16x512xf32> to vector<16x128xf32>
    %401 = math.tanh %400 : vector<16x128xf32>
    %402 = vector.extract_strided_slice %387 {offsets = [0, 384], sizes = [16, 128], strides = [1, 1]} : vector<16x512xf32> to vector<16x128xf32>
    %403 = arith.negf %402 : vector<16x128xf32>
    %404 = math.exp %403 : vector<16x128xf32>
    %cst_141 = arith.constant 1.000000e+00 : f32
    %405 = vector.broadcast %cst_141 : f32 to vector<16x128xf32>
    %406 = arith.addf %405, %404 : vector<16x128xf32>
    %407 = arith.divf %405, %406 : vector<16x128xf32>
    %408 = arith.mulf %399, %371 : vector<16x128xf32>
    %409 = arith.mulf %393, %401 : vector<16x128xf32>
    %410 = arith.addf %408, %409 : vector<16x128xf32>
    %411 = math.tanh %410 : vector<16x128xf32>
    %412 = arith.mulf %407, %411 : vector<16x128xf32>
    %c16_i32_142 = arith.constant 16 : i32
    %413 = arith.muli %c1_i32_133, %c16_i32_142 : i32
    %c0_i32_143 = arith.constant 0 : i32
    %414 = arith.addi %c0_i32_143, %413 : i32
    %415 = tpu.assume_multiple %414, 16 : i32
    %416 = arith.truncf %412 : vector<16x128xf32> to vector<16x128xbf16>
    %417 = arith.index_cast %415 : i32 to index
    %c0_144 = arith.constant 0 : index
    %418 = vector.load %arg18[%417, %c0_144] : memref<128x128xbf16, #tpu.memory_space<vmem>>, vector<16x128xbf16>
    tpu.vector_store %arg18[%417, %c0_144], %416 {strides = array<i32>} : memref<128x128xbf16, #tpu.memory_space<vmem>>, vector<16x128xbf16>,
    %c2_i32_145 = arith.constant 2 : i32
    %c16_i32_146 = arith.constant 16 : i32
    %419 = arith.muli %c2_i32_145, %c16_i32_146 : i32
    %420 = tpu.assume_multiple %419, 16 : i32
    %421 = arith.index_cast %420 : i32 to index
    %c0_147 = arith.constant 0 : index
    %422 = vector.load %arg15[%421, %c0_147] : memref<128x512xf32, #tpu.memory_space<vmem>>, vector<16x512xf32>
    %423 = arith.truncf %412 : vector<16x128xf32> to vector<16x128xbf16>
    %c0_148 = arith.constant 0 : index
    %c0_149 = arith.constant 0 : index
    %424 = vector.load %arg8[%c0_148, %c0_149] : memref<128x512xbf16, #tpu.memory_space<vmem>>, vector<128x512xbf16>
    %cst_150 = arith.constant dense<0.000000e+00> : vector<16x512xf32>
    %425 = tpu.matmul %423, %424, %cst_150 {dimension_numbers = #tpu.dot_dimension_numbers<[1], [0], [0], [1], [0, 0, 1, 1], [], []>} : vector<16x128xbf16>, vector<128x512xbf16>, vector<16x512xf32> -> vector<16x512xf32>
    %426 = arith.addf %422, %425 : vector<16x512xf32>
    %427 = vector.extract_strided_slice %426 {offsets = [0, 0], sizes = [16, 128], strides = [1, 1]} : vector<16x512xf32> to vector<16x128xf32>
    %428 = arith.negf %427 : vector<16x128xf32>
    %429 = math.exp %428 : vector<16x128xf32>
    %cst_151 = arith.constant 1.000000e+00 : f32
    %430 = vector.broadcast %cst_151 : f32 to vector<16x128xf32>
    %431 = arith.addf %430, %429 : vector<16x128xf32>
    %432 = arith.divf %430, %431 : vector<16x128xf32>
    %433 = vector.extract_strided_slice %426 {offsets = [0, 128], sizes = [16, 128], strides = [1, 1]} : vector<16x512xf32> to vector<16x128xf32>
    %434 = arith.negf %433 : vector<16x128xf32>
    %435 = math.exp %434 : vector<16x128xf32>
    %cst_152 = arith.constant 1.000000e+00 : f32
    %436 = vector.broadcast %cst_152 : f32 to vector<16x128xf32>
    %437 = arith.addf %436, %435 : vector<16x128xf32>
    %438 = arith.divf %436, %437 : vector<16x128xf32>
    %439 = vector.extract_strided_slice %426 {offsets = [0, 256], sizes = [16, 128], strides = [1, 1]} : vector<16x512xf32> to vector<16x128xf32>
    %440 = math.tanh %439 : vector<16x128xf32>
    %441 = vector.extract_strided_slice %426 {offsets = [0, 384], sizes = [16, 128], strides = [1, 1]} : vector<16x512xf32> to vector<16x128xf32>
    %442 = arith.negf %441 : vector<16x128xf32>
    %443 = math.exp %442 : vector<16x128xf32>
    %cst_153 = arith.constant 1.000000e+00 : f32
    %444 = vector.broadcast %cst_153 : f32 to vector<16x128xf32>
    %445 = arith.addf %444, %443 : vector<16x128xf32>
    %446 = arith.divf %444, %445 : vector<16x128xf32>
    %447 = arith.mulf %438, %410 : vector<16x128xf32>
    %448 = arith.mulf %432, %440 : vector<16x128xf32>
    %449 = arith.addf %447, %448 : vector<16x128xf32>
    %450 = math.tanh %449 : vector<16x128xf32>
    %451 = arith.mulf %446, %450 : vector<16x128xf32>
    %c16_i32_154 = arith.constant 16 : i32
    %452 = arith.muli %c2_i32_145, %c16_i32_154 : i32
    %c0_i32_155 = arith.constant 0 : i32
    %453 = arith.addi %c0_i32_155, %452 : i32
    %454 = tpu.assume_multiple %453, 16 : i32
    %455 = arith.truncf %451 : vector<16x128xf32> to vector<16x128xbf16>
    %456 = arith.index_cast %454 : i32 to index
    %c0_156 = arith.constant 0 : index
    %457 = vector.load %arg18[%456, %c0_156] : memref<128x128xbf16, #tpu.memory_space<vmem>>, vector<16x128xbf16>
    tpu.vector_store %arg18[%456, %c0_156], %455 {strides = array<i32>} : memref<128x128xbf16, #tpu.memory_space<vmem>>, vector<16x128xbf16>,
    %c3_i32_157 = arith.constant 3 : i32
    %c16_i32_158 = arith.constant 16 : i32
    %458 = arith.muli %c3_i32_157, %c16_i32_158 : i32
    %459 = tpu.assume_multiple %458, 16 : i32
    %460 = arith.index_cast %459 : i32 to index
    %c0_159 = arith.constant 0 : index
    %461 = vector.load %arg15[%460, %c0_159] : memref<128x512xf32, #tpu.memory_space<vmem>>, vector<16x512xf32>
    %462 = arith.truncf %451 : vector<16x128xf32> to vector<16x128xbf16>
    %c0_160 = arith.constant 0 : index
    %c0_161 = arith.constant 0 : index
    %463 = vector.load %arg8[%c0_160, %c0_161] : memref<128x512xbf16, #tpu.memory_space<vmem>>, vector<128x512xbf16>
    %cst_162 = arith.constant dense<0.000000e+00> : vector<16x512xf32>
    %464 = tpu.matmul %462, %463, %cst_162 {dimension_numbers = #tpu.dot_dimension_numbers<[1], [0], [0], [1], [0, 0, 1, 1], [], []>} : vector<16x128xbf16>, vector<128x512xbf16>, vector<16x512xf32> -> vector<16x512xf32>
    %465 = arith.addf %461, %464 : vector<16x512xf32>
    %466 = vector.extract_strided_slice %465 {offsets = [0, 0], sizes = [16, 128], strides = [1, 1]} : vector<16x512xf32> to vector<16x128xf32>
    %467 = arith.negf %466 : vector<16x128xf32>
    %468 = math.exp %467 : vector<16x128xf32>
    %cst_163 = arith.constant 1.000000e+00 : f32
    %469 = vector.broadcast %cst_163 : f32 to vector<16x128xf32>
    %470 = arith.addf %469, %468 : vector<16x128xf32>
    %471 = arith.divf %469, %470 : vector<16x128xf32>
    %472 = vector.extract_strided_slice %465 {offsets = [0, 128], sizes = [16, 128], strides = [1, 1]} : vector<16x512xf32> to vector<16x128xf32>
    %473 = arith.negf %472 : vector<16x128xf32>
    %474 = math.exp %473 : vector<16x128xf32>
    %cst_164 = arith.constant 1.000000e+00 : f32
    %475 = vector.broadcast %cst_164 : f32 to vector<16x128xf32>
    %476 = arith.addf %475, %474 : vector<16x128xf32>
    %477 = arith.divf %475, %476 : vector<16x128xf32>
    %478 = vector.extract_strided_slice %465 {offsets = [0, 256], sizes = [16, 128], strides = [1, 1]} : vector<16x512xf32> to vector<16x128xf32>
    %479 = math.tanh %478 : vector<16x128xf32>
    %480 = vector.extract_strided_slice %465 {offsets = [0, 384], sizes = [16, 128], strides = [1, 1]} : vector<16x512xf32> to vector<16x128xf32>
    %481 = arith.negf %480 : vector<16x128xf32>
    %482 = math.exp %481 : vector<16x128xf32>
    %cst_165 = arith.constant 1.000000e+00 : f32
    %483 = vector.broadcast %cst_165 : f32 to vector<16x128xf32>
    %484 = arith.addf %483, %482 : vector<16x128xf32>
    %485 = arith.divf %483, %484 : vector<16x128xf32>
    %486 = arith.mulf %477, %449 : vector<16x128xf32>
    %487 = arith.mulf %471, %479 : vector<16x128xf32>
    %488 = arith.addf %486, %487 : vector<16x128xf32>
    %489 = math.tanh %488 : vector<16x128xf32>
    %490 = arith.mulf %485, %489 : vector<16x128xf32>
    %c16_i32_166 = arith.constant 16 : i32
    %491 = arith.muli %c3_i32_157, %c16_i32_166 : i32
    %c0_i32_167 = arith.constant 0 : i32
    %492 = arith.addi %c0_i32_167, %491 : i32
    %493 = tpu.assume_multiple %492, 16 : i32
    %494 = arith.truncf %490 : vector<16x128xf32> to vector<16x128xbf16>
    %495 = arith.index_cast %493 : i32 to index
    %c0_168 = arith.constant 0 : index
    %496 = vector.load %arg18[%495, %c0_168] : memref<128x128xbf16, #tpu.memory_space<vmem>>, vector<16x128xbf16>
    tpu.vector_store %arg18[%495, %c0_168], %494 {strides = array<i32>} : memref<128x128xbf16, #tpu.memory_space<vmem>>, vector<16x128xbf16>,
    %c4_i32_169 = arith.constant 4 : i32
    %c16_i32_170 = arith.constant 16 : i32
    %497 = arith.muli %c4_i32_169, %c16_i32_170 : i32
    %498 = tpu.assume_multiple %497, 16 : i32
    %499 = arith.index_cast %498 : i32 to index
    %c0_171 = arith.constant 0 : index
    %500 = vector.load %arg15[%499, %c0_171] : memref<128x512xf32, #tpu.memory_space<vmem>>, vector<16x512xf32>
    %501 = arith.truncf %490 : vector<16x128xf32> to vector<16x128xbf16>
    %c0_172 = arith.constant 0 : index
    %c0_173 = arith.constant 0 : index
    %502 = vector.load %arg8[%c0_172, %c0_173] : memref<128x512xbf16, #tpu.memory_space<vmem>>, vector<128x512xbf16>
    %cst_174 = arith.constant dense<0.000000e+00> : vector<16x512xf32>
    %503 = tpu.matmul %501, %502, %cst_174 {dimension_numbers = #tpu.dot_dimension_numbers<[1], [0], [0], [1], [0, 0, 1, 1], [], []>} : vector<16x128xbf16>, vector<128x512xbf16>, vector<16x512xf32> -> vector<16x512xf32>
    %504 = arith.addf %500, %503 : vector<16x512xf32>
    %505 = vector.extract_strided_slice %504 {offsets = [0, 0], sizes = [16, 128], strides = [1, 1]} : vector<16x512xf32> to vector<16x128xf32>
    %506 = arith.negf %505 : vector<16x128xf32>
    %507 = math.exp %506 : vector<16x128xf32>
    %cst_175 = arith.constant 1.000000e+00 : f32
    %508 = vector.broadcast %cst_175 : f32 to vector<16x128xf32>
    %509 = arith.addf %508, %507 : vector<16x128xf32>
    %510 = arith.divf %508, %509 : vector<16x128xf32>
    %511 = vector.extract_strided_slice %504 {offsets = [0, 128], sizes = [16, 128], strides = [1, 1]} : vector<16x512xf32> to vector<16x128xf32>
    %512 = arith.negf %511 : vector<16x128xf32>
    %513 = math.exp %512 : vector<16x128xf32>
    %cst_176 = arith.constant 1.000000e+00 : f32
    %514 = vector.broadcast %cst_176 : f32 to vector<16x128xf32>
    %515 = arith.addf %514, %513 : vector<16x128xf32>
    %516 = arith.divf %514, %515 : vector<16x128xf32>
    %517 = vector.extract_strided_slice %504 {offsets = [0, 256], sizes = [16, 128], strides = [1, 1]} : vector<16x512xf32> to vector<16x128xf32>
    %518 = math.tanh %517 : vector<16x128xf32>
    %519 = vector.extract_strided_slice %504 {offsets = [0, 384], sizes = [16, 128], strides = [1, 1]} : vector<16x512xf32> to vector<16x128xf32>
    %520 = arith.negf %519 : vector<16x128xf32>
    %521 = math.exp %520 : vector<16x128xf32>
    %cst_177 = arith.constant 1.000000e+00 : f32
    %522 = vector.broadcast %cst_177 : f32 to vector<16x128xf32>
    %523 = arith.addf %522, %521 : vector<16x128xf32>
    %524 = arith.divf %522, %523 : vector<16x128xf32>
    %525 = arith.mulf %516, %488 : vector<16x128xf32>
    %526 = arith.mulf %510, %518 : vector<16x128xf32>
    %527 = arith.addf %525, %526 : vector<16x128xf32>
    %528 = math.tanh %527 : vector<16x128xf32>
    %529 = arith.mulf %524, %528 : vector<16x128xf32>
    %c16_i32_178 = arith.constant 16 : i32
    %530 = arith.muli %c4_i32_169, %c16_i32_178 : i32
    %c0_i32_179 = arith.constant 0 : i32
    %531 = arith.addi %c0_i32_179, %530 : i32
    %532 = tpu.assume_multiple %531, 16 : i32
    %533 = arith.truncf %529 : vector<16x128xf32> to vector<16x128xbf16>
    %534 = arith.index_cast %532 : i32 to index
    %c0_180 = arith.constant 0 : index
    %535 = vector.load %arg18[%534, %c0_180] : memref<128x128xbf16, #tpu.memory_space<vmem>>, vector<16x128xbf16>
    tpu.vector_store %arg18[%534, %c0_180], %533 {strides = array<i32>} : memref<128x128xbf16, #tpu.memory_space<vmem>>, vector<16x128xbf16>,
    %c5_i32_181 = arith.constant 5 : i32
    %c16_i32_182 = arith.constant 16 : i32
    %536 = arith.muli %c5_i32_181, %c16_i32_182 : i32
    %537 = tpu.assume_multiple %536, 16 : i32
    %538 = arith.index_cast %537 : i32 to index
    %c0_183 = arith.constant 0 : index
    %539 = vector.load %arg15[%538, %c0_183] : memref<128x512xf32, #tpu.memory_space<vmem>>, vector<16x512xf32>
    %540 = arith.truncf %529 : vector<16x128xf32> to vector<16x128xbf16>
    %c0_184 = arith.constant 0 : index
    %c0_185 = arith.constant 0 : index
    %541 = vector.load %arg8[%c0_184, %c0_185] : memref<128x512xbf16, #tpu.memory_space<vmem>>, vector<128x512xbf16>
    %cst_186 = arith.constant dense<0.000000e+00> : vector<16x512xf32>
    %542 = tpu.matmul %540, %541, %cst_186 {dimension_numbers = #tpu.dot_dimension_numbers<[1], [0], [0], [1], [0, 0, 1, 1], [], []>} : vector<16x128xbf16>, vector<128x512xbf16>, vector<16x512xf32> -> vector<16x512xf32>
    %543 = arith.addf %539, %542 : vector<16x512xf32>
    %544 = vector.extract_strided_slice %543 {offsets = [0, 0], sizes = [16, 128], strides = [1, 1]} : vector<16x512xf32> to vector<16x128xf32>
    %545 = arith.negf %544 : vector<16x128xf32>
    %546 = math.exp %545 : vector<16x128xf32>
    %cst_187 = arith.constant 1.000000e+00 : f32
    %547 = vector.broadcast %cst_187 : f32 to vector<16x128xf32>
    %548 = arith.addf %547, %546 : vector<16x128xf32>
    %549 = arith.divf %547, %548 : vector<16x128xf32>
    %550 = vector.extract_strided_slice %543 {offsets = [0, 128], sizes = [16, 128], strides = [1, 1]} : vector<16x512xf32> to vector<16x128xf32>
    %551 = arith.negf %550 : vector<16x128xf32>
    %552 = math.exp %551 : vector<16x128xf32>
    %cst_188 = arith.constant 1.000000e+00 : f32
    %553 = vector.broadcast %cst_188 : f32 to vector<16x128xf32>
    %554 = arith.addf %553, %552 : vector<16x128xf32>
    %555 = arith.divf %553, %554 : vector<16x128xf32>
    %556 = vector.extract_strided_slice %543 {offsets = [0, 256], sizes = [16, 128], strides = [1, 1]} : vector<16x512xf32> to vector<16x128xf32>
    %557 = math.tanh %556 : vector<16x128xf32>
    %558 = vector.extract_strided_slice %543 {offsets = [0, 384], sizes = [16, 128], strides = [1, 1]} : vector<16x512xf32> to vector<16x128xf32>
    %559 = arith.negf %558 : vector<16x128xf32>
    %560 = math.exp %559 : vector<16x128xf32>
    %cst_189 = arith.constant 1.000000e+00 : f32
    %561 = vector.broadcast %cst_189 : f32 to vector<16x128xf32>
    %562 = arith.addf %561, %560 : vector<16x128xf32>
    %563 = arith.divf %561, %562 : vector<16x128xf32>
    %564 = arith.mulf %555, %527 : vector<16x128xf32>
    %565 = arith.mulf %549, %557 : vector<16x128xf32>
    %566 = arith.addf %564, %565 : vector<16x128xf32>
    %567 = math.tanh %566 : vector<16x128xf32>
    %568 = arith.mulf %563, %567 : vector<16x128xf32>
    %c16_i32_190 = arith.constant 16 : i32
    %569 = arith.muli %c5_i32_181, %c16_i32_190 : i32
    %c0_i32_191 = arith.constant 0 : i32
    %570 = arith.addi %c0_i32_191, %569 : i32
    %571 = tpu.assume_multiple %570, 16 : i32
    %572 = arith.truncf %568 : vector<16x128xf32> to vector<16x128xbf16>
    %573 = arith.index_cast %571 : i32 to index
    %c0_192 = arith.constant 0 : index
    %574 = vector.load %arg18[%573, %c0_192] : memref<128x128xbf16, #tpu.memory_space<vmem>>, vector<16x128xbf16>
    tpu.vector_store %arg18[%573, %c0_192], %572 {strides = array<i32>} : memref<128x128xbf16, #tpu.memory_space<vmem>>, vector<16x128xbf16>,
    %c6_i32_193 = arith.constant 6 : i32
    %c16_i32_194 = arith.constant 16 : i32
    %575 = arith.muli %c6_i32_193, %c16_i32_194 : i32
    %576 = tpu.assume_multiple %575, 16 : i32
    %577 = arith.index_cast %576 : i32 to index
    %c0_195 = arith.constant 0 : index
    %578 = vector.load %arg15[%577, %c0_195] : memref<128x512xf32, #tpu.memory_space<vmem>>, vector<16x512xf32>
    %579 = arith.truncf %568 : vector<16x128xf32> to vector<16x128xbf16>
    %c0_196 = arith.constant 0 : index
    %c0_197 = arith.constant 0 : index
    %580 = vector.load %arg8[%c0_196, %c0_197] : memref<128x512xbf16, #tpu.memory_space<vmem>>, vector<128x512xbf16>
    %cst_198 = arith.constant dense<0.000000e+00> : vector<16x512xf32>
    %581 = tpu.matmul %579, %580, %cst_198 {dimension_numbers = #tpu.dot_dimension_numbers<[1], [0], [0], [1], [0, 0, 1, 1], [], []>} : vector<16x128xbf16>, vector<128x512xbf16>, vector<16x512xf32> -> vector<16x512xf32>
    %582 = arith.addf %578, %581 : vector<16x512xf32>
    %583 = vector.extract_strided_slice %582 {offsets = [0, 0], sizes = [16, 128], strides = [1, 1]} : vector<16x512xf32> to vector<16x128xf32>
    %584 = arith.negf %583 : vector<16x128xf32>
    %585 = math.exp %584 : vector<16x128xf32>
    %cst_199 = arith.constant 1.000000e+00 : f32
    %586 = vector.broadcast %cst_199 : f32 to vector<16x128xf32>
    %587 = arith.addf %586, %585 : vector<16x128xf32>
    %588 = arith.divf %586, %587 : vector<16x128xf32>
    %589 = vector.extract_strided_slice %582 {offsets = [0, 128], sizes = [16, 128], strides = [1, 1]} : vector<16x512xf32> to vector<16x128xf32>
    %590 = arith.negf %589 : vector<16x128xf32>
    %591 = math.exp %590 : vector<16x128xf32>
    %cst_200 = arith.constant 1.000000e+00 : f32
    %592 = vector.broadcast %cst_200 : f32 to vector<16x128xf32>
    %593 = arith.addf %592, %591 : vector<16x128xf32>
    %594 = arith.divf %592, %593 : vector<16x128xf32>
    %595 = vector.extract_strided_slice %582 {offsets = [0, 256], sizes = [16, 128], strides = [1, 1]} : vector<16x512xf32> to vector<16x128xf32>
    %596 = math.tanh %595 : vector<16x128xf32>
    %597 = vector.extract_strided_slice %582 {offsets = [0, 384], sizes = [16, 128], strides = [1, 1]} : vector<16x512xf32> to vector<16x128xf32>
    %598 = arith.negf %597 : vector<16x128xf32>
    %599 = math.exp %598 : vector<16x128xf32>
    %cst_201 = arith.constant 1.000000e+00 : f32
    %600 = vector.broadcast %cst_201 : f32 to vector<16x128xf32>
    %601 = arith.addf %600, %599 : vector<16x128xf32>
    %602 = arith.divf %600, %601 : vector<16x128xf32>
    %603 = arith.mulf %594, %566 : vector<16x128xf32>
    %604 = arith.mulf %588, %596 : vector<16x128xf32>
    %605 = arith.addf %603, %604 : vector<16x128xf32>
    %606 = math.tanh %605 : vector<16x128xf32>
    %607 = arith.mulf %602, %606 : vector<16x128xf32>
    %c16_i32_202 = arith.constant 16 : i32
    %608 = arith.muli %c6_i32_193, %c16_i32_202 : i32
    %c0_i32_203 = arith.constant 0 : i32
    %609 = arith.addi %c0_i32_203, %608 : i32
    %610 = tpu.assume_multiple %609, 16 : i32
    %611 = arith.truncf %607 : vector<16x128xf32> to vector<16x128xbf16>
    %612 = arith.index_cast %610 : i32 to index
    %c0_204 = arith.constant 0 : index
    %613 = vector.load %arg18[%612, %c0_204] : memref<128x128xbf16, #tpu.memory_space<vmem>>, vector<16x128xbf16>
    tpu.vector_store %arg18[%612, %c0_204], %611 {strides = array<i32>} : memref<128x128xbf16, #tpu.memory_space<vmem>>, vector<16x128xbf16>,
    %c7_i32_205 = arith.constant 7 : i32
    %c16_i32_206 = arith.constant 16 : i32
    %614 = arith.muli %c7_i32_205, %c16_i32_206 : i32
    %615 = tpu.assume_multiple %614, 16 : i32
    %616 = arith.index_cast %615 : i32 to index
    %c0_207 = arith.constant 0 : index
    %617 = vector.load %arg15[%616, %c0_207] : memref<128x512xf32, #tpu.memory_space<vmem>>, vector<16x512xf32>
    %618 = arith.truncf %607 : vector<16x128xf32> to vector<16x128xbf16>
    %c0_208 = arith.constant 0 : index
    %c0_209 = arith.constant 0 : index
    %619 = vector.load %arg8[%c0_208, %c0_209] : memref<128x512xbf16, #tpu.memory_space<vmem>>, vector<128x512xbf16>
    %cst_210 = arith.constant dense<0.000000e+00> : vector<16x512xf32>
    %620 = tpu.matmul %618, %619, %cst_210 {dimension_numbers = #tpu.dot_dimension_numbers<[1], [0], [0], [1], [0, 0, 1, 1], [], []>} : vector<16x128xbf16>, vector<128x512xbf16>, vector<16x512xf32> -> vector<16x512xf32>
    %621 = arith.addf %617, %620 : vector<16x512xf32>
    %622 = vector.extract_strided_slice %621 {offsets = [0, 0], sizes = [16, 128], strides = [1, 1]} : vector<16x512xf32> to vector<16x128xf32>
    %623 = arith.negf %622 : vector<16x128xf32>
    %624 = math.exp %623 : vector<16x128xf32>
    %cst_211 = arith.constant 1.000000e+00 : f32
    %625 = vector.broadcast %cst_211 : f32 to vector<16x128xf32>
    %626 = arith.addf %625, %624 : vector<16x128xf32>
    %627 = arith.divf %625, %626 : vector<16x128xf32>
    %628 = vector.extract_strided_slice %621 {offsets = [0, 128], sizes = [16, 128], strides = [1, 1]} : vector<16x512xf32> to vector<16x128xf32>
    %629 = arith.negf %628 : vector<16x128xf32>
    %630 = math.exp %629 : vector<16x128xf32>
    %cst_212 = arith.constant 1.000000e+00 : f32
    %631 = vector.broadcast %cst_212 : f32 to vector<16x128xf32>
    %632 = arith.addf %631, %630 : vector<16x128xf32>
    %633 = arith.divf %631, %632 : vector<16x128xf32>
    %634 = vector.extract_strided_slice %621 {offsets = [0, 256], sizes = [16, 128], strides = [1, 1]} : vector<16x512xf32> to vector<16x128xf32>
    %635 = math.tanh %634 : vector<16x128xf32>
    %636 = vector.extract_strided_slice %621 {offsets = [0, 384], sizes = [16, 128], strides = [1, 1]} : vector<16x512xf32> to vector<16x128xf32>
    %637 = arith.negf %636 : vector<16x128xf32>
    %638 = math.exp %637 : vector<16x128xf32>
    %cst_213 = arith.constant 1.000000e+00 : f32
    %639 = vector.broadcast %cst_213 : f32 to vector<16x128xf32>
    %640 = arith.addf %639, %638 : vector<16x128xf32>
    %641 = arith.divf %639, %640 : vector<16x128xf32>
    %642 = arith.mulf %633, %605 : vector<16x128xf32>
    %643 = arith.mulf %627, %635 : vector<16x128xf32>
    %644 = arith.addf %642, %643 : vector<16x128xf32>
    %645 = math.tanh %644 : vector<16x128xf32>
    %646 = arith.mulf %641, %645 : vector<16x128xf32>
    %c16_i32_214 = arith.constant 16 : i32
    %647 = arith.muli %c7_i32_205, %c16_i32_214 : i32
    %c0_i32_215 = arith.constant 0 : i32
    %648 = arith.addi %c0_i32_215, %647 : i32
    %649 = tpu.assume_multiple %648, 16 : i32
    %650 = arith.truncf %646 : vector<16x128xf32> to vector<16x128xbf16>
    %651 = arith.index_cast %649 : i32 to index
    %c0_216 = arith.constant 0 : index
    %652 = vector.load %arg18[%651, %c0_216] : memref<128x128xbf16, #tpu.memory_space<vmem>>, vector<16x128xbf16>
    tpu.vector_store %arg18[%651, %c0_216], %650 {strides = array<i32>} : memref<128x128xbf16, #tpu.memory_space<vmem>>, vector<16x128xbf16>,
    %c8_i32_217 = arith.constant 8 : i32
    %c1_218 = arith.constant 1 : index
    %c0_219 = arith.constant 0 : index
    %c0_220 = arith.constant 0 : index
    %653 = vector.load %arg13[%c1_218, %c0_219, %c0_220] : memref<2x16x128xf32, #tpu.memory_space<vmem>>, vector<1x16x128xf32>
    %654 = vector.shape_cast %653 : vector<1x16x128xf32> to vector<16x128xf32>
    %655 = vector.shape_cast %646 : vector<16x128xf32> to vector<1x16x128xf32>
    tpu.vector_store %arg13[%c1_218, %c0_219, %c0_220], %655 {strides = array<i32>} : memref<2x16x128xf32, #tpu.memory_space<vmem>>, vector<1x16x128xf32>,
    %c1_221 = arith.constant 1 : index
    %c0_222 = arith.constant 0 : index
    %c0_223 = arith.constant 0 : index
    %656 = vector.load %arg14[%c1_221, %c0_222, %c0_223] : memref<2x16x128xf32, #tpu.memory_space<vmem>>, vector<1x16x128xf32>
    %657 = vector.shape_cast %656 : vector<1x16x128xf32> to vector<16x128xf32>
    %658 = vector.shape_cast %644 : vector<16x128xf32> to vector<1x16x128xf32>
    tpu.vector_store %arg14[%c1_221, %c0_222, %c0_223], %658 {strides = array<i32>} : memref<2x16x128xf32, #tpu.memory_space<vmem>>, vector<1x16x128xf32>,
    %c0_224 = arith.constant 0 : index
    %c0_225 = arith.constant 0 : index
    %659 = vector.load %arg18[%c0_224, %c0_225] : memref<128x128xbf16, #tpu.memory_space<vmem>>, vector<128x128xbf16>
    %c0_226 = arith.constant 0 : index
    %c0_227 = arith.constant 0 : index
    %660 = vector.load %arg10[%c0_226, %c0_227] : memref<128x128xbf16, #tpu.memory_space<vmem>>, vector<128x128xbf16>
    %cst_228 = arith.constant dense<0.000000e+00> : vector<128x128xf32>
    %661 = tpu.matmul %659, %660, %cst_228 {dimension_numbers = #tpu.dot_dimension_numbers<[1], [0], [0], [1], [0, 0, 1, 1], [], []>} : vector<128x128xbf16>, vector<128x128xbf16>, vector<128x128xf32> -> vector<128x128xf32>
    %c0_229 = arith.constant 0 : index
    %c0_230 = arith.constant 0 : index
    %662 = vector.load %arg11[%c0_229, %c0_230] : memref<1x128xf32, #tpu.memory_space<vmem>>, vector<1x128xf32>
    %663 = vector.broadcast %662 : vector<1x128xf32> to vector<128x128xf32>
    %664 = arith.addf %661, %663 : vector<128x128xf32>
    %c0_231 = arith.constant 0 : index
    %c0_232 = arith.constant 0 : index
    %c0_233 = arith.constant 0 : index
    %665 = vector.load %arg12[%c0_231, %c0_232, %c0_233] : memref<1x128x128xf32, #tpu.memory_space<vmem>>, vector<1x128x128xf32>
    %666 = vector.shape_cast %665 : vector<1x128x128xf32> to vector<128x128xf32>
    %667 = vector.shape_cast %664 : vector<128x128xf32> to vector<1x128x128xf32>
    tpu.vector_store %arg12[%c0_231, %c0_232, %c0_233], %667 {strides = array<i32>} : memref<1x128x128xf32, #tpu.memory_space<vmem>>, vector<1x128x128xf32>,
    return
  }
  func.func @transform_0(%arg0: i32) -> (i32, i32, i32) {
    %c0_i32 = arith.constant 0 : i32
    %c0_i32_0 = arith.constant 0 : i32
    %c0_i32_1 = arith.constant 0 : i32
    return %arg0, %c0_i32, %c0_i32_0 : i32, i32, i32
  }
  func.func @transform_1(%arg0: i32) -> (i32, i32, i32) {
    %c0_i32 = arith.constant 0 : i32
    %c0_i32_0 = arith.constant 0 : i32
    %c0_i32_1 = arith.constant 0 : i32
    return %c0_i32, %arg0, %c0_i32_0 : i32, i32, i32
  }
  func.func @transform_2(%arg0: i32) -> (i32, i32, i32) {
    %c0_i32 = arith.constant 0 : i32
    %c0_i32_0 = arith.constant 0 : i32
    %c0_i32_1 = arith.constant 0 : i32
    return %c0_i32, %arg0, %c0_i32_0 : i32, i32, i32
  }
  func.func @transform_3(%arg0: i32) -> (i32, i32) {
    %c0_i32 = arith.constant 0 : i32
    %c0_i32_0 = arith.constant 0 : i32
    %c0_i32_1 = arith.constant 0 : i32
    return %c0_i32, %c0_i32_0 : i32, i32
  }
  func.func @transform_4(%arg0: i32) -> (i32, i32) {
    %c0_i32 = arith.constant 0 : i32
    %c0_i32_0 = arith.constant 0 : i32
    %c0_i32_1 = arith.constant 0 : i32
    return %c0_i32, %c0_i32_0 : i32, i32
  }
  func.func @transform_5(%arg0: i32) -> (i32, i32) {
    %c0_i32 = arith.constant 0 : i32
    %c0_i32_0 = arith.constant 0 : i32
    %c0_i32_1 = arith.constant 0 : i32
    return %c0_i32, %c0_i32_0 : i32, i32
  }
  func.func @transform_6(%arg0: i32) -> (i32, i32) {
    %c0_i32 = arith.constant 0 : i32
    %c0_i32_0 = arith.constant 0 : i32
    %c0_i32_1 = arith.constant 0 : i32
    return %c0_i32, %c0_i32_0 : i32, i32
  }
  func.func @transform_7(%arg0: i32) -> (i32, i32) {
    %c0_i32 = arith.constant 0 : i32
    %c0_i32_0 = arith.constant 0 : i32
    %c0_i32_1 = arith.constant 0 : i32
    return %c0_i32, %c0_i32_0 : i32, i32
  }
  func.func @transform_8(%arg0: i32) -> (i32, i32) {
    %c0_i32 = arith.constant 0 : i32
    %c0_i32_0 = arith.constant 0 : i32
    %c0_i32_1 = arith.constant 0 : i32
    return %c0_i32, %c0_i32_0 : i32, i32
  }
  func.func @transform_9(%arg0: i32) -> (i32, i32) {
    %c0_i32 = arith.constant 0 : i32
    %c0_i32_0 = arith.constant 0 : i32
    %c0_i32_1 = arith.constant 0 : i32
    return %c0_i32, %c0_i32_0 : i32, i32
  }
  func.func @transform_10(%arg0: i32) -> (i32, i32) {
    %c0_i32 = arith.constant 0 : i32
    %c0_i32_0 = arith.constant 0 : i32
    %c0_i32_1 = arith.constant 0 : i32
    return %c0_i32, %c0_i32_0 : i32, i32
  }
  func.func @transform_11(%arg0: i32) -> (i32, i32, i32) {
    %c0_i32 = arith.constant 0 : i32
    %c0_i32_0 = arith.constant 0 : i32
    %c0_i32_1 = arith.constant 0 : i32
    return %arg0, %c0_i32, %c0_i32_0 : i32, i32, i32
  }
  func.func @transform_12(%arg0: i32) -> (i32, i32, i32) {
    %c0_i32 = arith.constant 0 : i32
    %c0_i32_0 = arith.constant 0 : i32
    %c0_i32_1 = arith.constant 0 : i32
    return %c0_i32, %arg0, %c0_i32_0 : i32, i32, i32
  }
  func.func @transform_13(%arg0: i32) -> (i32, i32, i32) {
    %c0_i32 = arith.constant 0 : i32
    %c0_i32_0 = arith.constant 0 : i32
    %c0_i32_1 = arith.constant 0 : i32
    return %c0_i32, %arg0, %c0_i32_0 : i32, i32, i32
  }
}

</mosaic_0001>

<llo_original>
// kernel: char_rnn_forward.1
$region0: #{char_rnn_forward.1}
  #allocation0 [shape = 'u32[]', space=smem, size = 0x4, offset = 0x4, fixed_abs, tag = 'smem constant byte address 0x4 - core index']
  #allocation1 [shape = 'u32[144,128]{1,0:T(1,128)}', space=vmem, size = 0x12000, scoped, tag = 'internal scratch']
  #allocation2 [shape = 'f32[128,512]{1,0:T(8,128)}', space=vmem, size = 0x40000, scoped, tag = 'scratch operand']
  #allocation3 [shape = 'f32[128,512]{1,0:T(8,128)}', space=vmem, size = 0x40000, scoped, tag = 'scratch operand']
  #allocation4 [shape = 'bf16[128,128]{1,0:T(8,128)(2,1)}', space=vmem, size = 0x8000, scoped, tag = 'scratch operand']
  #allocation5 [shape = 'bf16[128,128]{1,0:T(8,128)(2,1)}', space=vmem, size = 0x8000, scoped, tag = 'scratch operand']
  %s0 = inlined_call_operand.vmem [shape: bf16[1,128,128], index: 0, kind: input, shape index: {}]
  %s1 = inlined_call_operand.vmem [shape: f32[2,16,128], index: 1, kind: input, shape index: {}]
  %s2 = inlined_call_operand.vmem [shape: f32[2,16,128], index: 2, kind: input, shape index: {}]
  %s3 = inlined_call_operand.hbm [shape: bf16[128,512], index: 3, kind: input, shape index: {}]
  %s4 = inlined_call_operand.hbm [shape: bf16[128,512], index: 4, kind: input, shape index: {}]
  %s5 = inlined_call_operand.vmem [shape: f32[1,512], index: 5, kind: input, shape index: {}]
  %s6 = inlined_call_operand.hbm [shape: bf16[128,512], index: 6, kind: input, shape index: {}]
  %s7 = inlined_call_operand.hbm [shape: bf16[128,512], index: 7, kind: input, shape index: {}]
  %s8 = inlined_call_operand.vmem [shape: f32[1,512], index: 8, kind: input, shape index: {}]
  %s9 = inlined_call_operand.vmem [shape: bf16[128,128], index: 9, kind: input, shape index: {}]
  %s10 = inlined_call_operand.vmem [shape: f32[1,128], index: 10, kind: input, shape index: {}]
  %s11 = inlined_call_operand.vmem [shape: f32[1,128,128], index: 11, kind: output, shape index: {0}]
  %s12 = inlined_call_operand.vmem [shape: f32[2,16,128], index: 12, kind: output, shape index: {1}]
  %s13 = inlined_call_operand.vmem [shape: f32[2,16,128], index: 13, kind: output, shape index: {2}]
  %14 = xla_tuple %s11, %s12, %s13
  %s15 = sld [smem:[#allocation0]]
  $region86: #{char_rnn_forward.1} parent=0
    _
  %s17 = ssub.s32 1, %s15
  %s18 = scalar_select 0, %s17, %s15
  $region1: #{char_rnn_forward.1} parent=0
    #allocation6 [shape = 'u8[131072]{0}', space=vmem, size = 0x20000, scoped, tag = 'input window, operand 3, single buffered']
    #allocation7 [shape = 's32[1]{0}', space=sflag, size = 0x4, scoped, tag = 'scoped memory for char_rnn_forward.1']
    #allocation8 [shape = 'u8[131072]{0}', space=vmem, size = 0x20000, scoped, tag = 'input window, operand 4, single buffered']
    #allocation9 [shape = 's32[1]{0}', space=sflag, size = 0x4, scoped, tag = 'scoped memory for char_rnn_forward.1']
    #allocation10 [shape = 'u8[131072]{0}', space=vmem, size = 0x20000, scoped, tag = 'input window, operand 6, single buffered']
    #allocation11 [shape = 'u8[131072]{0}', space=vmem, size = 0x20000, scoped, tag = 'input window, operand 7, single buffered']
    #allocation12 [shape = 's32[1]{0}', space=sflag, size = 0x4, scoped, tag = 'scoped memory for char_rnn_forward.1']
    %19 = vsyncpa [#allocation7], 0
    %20 = vsyncpa [#allocation9], 0
    %21 = vsyncpa [#allocation12], 0
    // Predicated region
    $region2: #{char_rnn_forward.1} parent=1 // pred_check
      _
    $region3: #{char_rnn_forward.1} parent=1 // pred_check_branch
      %23 = sbr.rel (0) target = $region5
    $region4: #{char_rnn_forward.1} parent=1 // pred_region
      _
    $region5: #{char_rnn_forward.1} parent=1 // pred_fallthru
      _
    // Predicated region
    $region6: #{char_rnn_forward.1} parent=1 // pred_check
      _
    $region7: #{char_rnn_forward.1} parent=1 // pred_check_branch
      %25 = sbr.rel (0) target = $region9
    $region8: #{char_rnn_forward.1} parent=1 // pred_region
      _
    $region9: #{char_rnn_forward.1} parent=1 // pred_fallthru
      _
    // Predicated region
    $region10: #{char_rnn_forward.1} parent=1 // pred_check
      _
    $region11: #{char_rnn_forward.1} parent=1 // pred_check_branch
      %27 = sbr.rel (0) target = $region13
    $region12: #{char_rnn_forward.1} parent=1 // pred_region
      _
    $region13: #{char_rnn_forward.1} parent=1 // pred_fallthru
      _
    // Predicated region
    $region14: #{char_rnn_forward.1} parent=1 // pred_check
      _
    $region15: #{char_rnn_forward.1} parent=1 // pred_check_branch
      %29 = sbr.rel (0) target = $region17
    $region16: #{char_rnn_forward.1} parent=1 // pred_region
      %s31 = ssub.s32 4096, 4096
      %32 = vsyncadd [#allocation7], %s31
      %s33 = sshll.u32 [#allocation6], 4
      %s34 = int_to_ptr.vmem [resolvable:$true] %s33
      %39 = dma.hbm_to_vmem [thread:$0]  %s3, 4096, %s34, [#allocation7], 256, 256, 16
    $region17: #{char_rnn_forward.1} parent=1 // pred_fallthru
      _
    // Predicated region
    $region18: #{char_rnn_forward.1} parent=1 // pred_check
      _
    $region19: #{char_rnn_forward.1} parent=1 // pred_check_branch
      %41 = sbr.rel (0) target = $region21
    $region20: #{char_rnn_forward.1} parent=1 // pred_region
      %s43 = ssub.s32 4096, 4096
      %44 = vsyncadd [#allocation9], %s43
      %s45 = sshll.u32 [#allocation8], 4
      %s46 = int_to_ptr.vmem [resolvable:$true] %s45
      %51 = dma.hbm_to_vmem [thread:$0]  %s4, 4096, %s46, [#allocation9], 256, 256, 16
    $region21: #{char_rnn_forward.1} parent=1 // pred_fallthru
      _
    // Predicated region
    $region22: #{char_rnn_forward.1} parent=1 // pred_check
      _
    $region23: #{char_rnn_forward.1} parent=1 // pred_check_branch
      %53 = sbr.rel (0) target = $region25
    $region24: #{char_rnn_forward.1} parent=1 // pred_region
      _
    $region25: #{char_rnn_forward.1} parent=1 // pred_fallthru
      _
    // Predicated region
    $region26: #{char_rnn_forward.1} parent=1 // pred_check
      _
    $region27: #{char_rnn_forward.1} parent=1 // pred_check_branch
      %55 = sbr.rel (0) target = $region29
    $region28: #{char_rnn_forward.1} parent=1 // pred_region
      %s57 = ssub.s32 4096, 4096
      %58 = vsyncadd [#allocation9], %s57
      %s59 = sshll.u32 [#allocation10], 4
      %s60 = int_to_ptr.vmem [resolvable:$true] %s59
      %65 = dma.hbm_to_vmem [thread:$0]  %s6, 4096, %s60, [#allocation9], 256, 256, 16
    $region29: #{char_rnn_forward.1} parent=1 // pred_fallthru
      _
    // Predicated region
    $region30: #{char_rnn_forward.1} parent=1 // pred_check
      _
    $region31: #{char_rnn_forward.1} parent=1 // pred_check_branch
      %67 = sbr.rel (0) target = $region33
    $region32: #{char_rnn_forward.1} parent=1 // pred_region
      %s69 = ssub.s32 4096, 4096
      %70 = vsyncadd [#allocation12], %s69
      %s71 = sshll.u32 [#allocation11], 4
      %s72 = int_to_ptr.vmem [resolvable:$true] %s71
      %77 = dma.hbm_to_vmem [thread:$0]  %s7, 4096, %s72, [#allocation12], 256, 256, 16
    $region33: #{char_rnn_forward.1} parent=1 // pred_fallthru
      _
    // Predicated region
    $region34: #{char_rnn_forward.1} parent=1 // pred_check
      _
    $region35: #{char_rnn_forward.1} parent=1 // pred_check_branch
      %79 = sbr.rel (0) target = $region37
    $region36: #{char_rnn_forward.1} parent=1 // pred_region
      _
    $region37: #{char_rnn_forward.1} parent=1 // pred_fallthru
      _
    // Predicated region
    $region38: #{char_rnn_forward.1} parent=1 // pred_check
      _
    $region39: #{char_rnn_forward.1} parent=1 // pred_check_branch
      %81 = sbr.rel (0) target = $region41
    $region40: #{char_rnn_forward.1} parent=1 // pred_region
      _
    $region41: #{char_rnn_forward.1} parent=1 // pred_fallthru
      _
    // Predicated region
    $region42: #{char_rnn_forward.1} parent=1 // pred_check
      _
    $region43: #{char_rnn_forward.1} parent=1 // pred_check_branch
      %83 = sbr.rel (0) target = $region45
    $region44: #{char_rnn_forward.1} parent=1 // pred_region
      _
    $region45: #{char_rnn_forward.1} parent=1 // pred_fallthru
      _
    // Predicated region
    $region46: #{char_rnn_forward.1} parent=1 // pred_check
      _
    $region47: #{char_rnn_forward.1} parent=1 // pred_check_branch
      %85 = sbr.rel (0) target = $region49
    $region48: #{char_rnn_forward.1} parent=1 // pred_region
      %86 = dma.done [#allocation7], 4096
    $region49: #{char_rnn_forward.1} parent=1 // pred_fallthru
      _
    // Predicated region
    $region50: #{char_rnn_forward.1} parent=1 // pred_check
      _
    $region51: #{char_rnn_forward.1} parent=1 // pred_check_branch
      %88 = sbr.rel (0) target = $region53
    $region52: #{char_rnn_forward.1} parent=1 // pred_region
      %89 = dma.done [#allocation9], 4096
    $region53: #{char_rnn_forward.1} parent=1 // pred_fallthru
      _
    // Predicated region
    $region54: #{char_rnn_forward.1} parent=1 // pred_check
      _
    $region55: #{char_rnn_forward.1} parent=1 // pred_check_branch
      %91 = sbr.rel (0) target = $region57
    $region56: #{char_rnn_forward.1} parent=1 // pred_region
      %92 = dma.done [#allocation9], 4096
    $region57: #{char_rnn_forward.1} parent=1 // pred_fallthru
      _
    // Predicated region
    $region58: #{char_rnn_forward.1} parent=1 // pred_check
      _
    $region59: #{char_rnn_forward.1} parent=1 // pred_check_branch
      %94 = sbr.rel (0) target = $region61
    $region60: #{char_rnn_forward.1} parent=1 // pred_region
      %95 = dma.done [#allocation12], 4096
    $region61: #{char_rnn_forward.1} parent=1 // pred_fallthru
      _
    %v97 = vld [vmem:[%s0] sm:$0xf]
    %v98 = vld [vmem:[%s0 + $0x4] sm:$0xf]
    %v99 = vld [vmem:[%s0 + $0x8] sm:$0xf]
    %v100 = vld [vmem:[%s0 + $0xc] sm:$0xf]
    %v101 = vld [vmem:[%s0 + $0x10] sm:$0xf]
    %v102 = vld [vmem:[%s0 + $0x14] sm:$0xf]
    %v103 = vld [vmem:[%s0 + $0x18] sm:$0xf]
    %v104 = vld [vmem:[%s0 + $0x1c] sm:$0xf]
    %v105 = vld [vmem:[%s0 + $0x20] sm:$0xf]
    %v106 = vld [vmem:[%s0 + $0x24] sm:$0xf]
    %v107 = vld [vmem:[%s0 + $0x28] sm:$0xf]
    %v108 = vld [vmem:[%s0 + $0x2c] sm:$0xf]
    %v109 = vld [vmem:[%s0 + $0x30] sm:$0xf]
    %v110 = vld [vmem:[%s0 + $0x34] sm:$0xf]
    %v111 = vld [vmem:[%s0 + $0x38] sm:$0xf]
    %v112 = vld [vmem:[%s0 + $0x3c] sm:$0xf]
    %v113 = vld [vmem:[#allocation6] sm:$0xff]
    %v114 = vld [vmem:[#allocation6 + $0x8] sm:$0xff]
    %v115 = vld [vmem:[#allocation6 + $0x10] sm:$0xff]
    %v116 = vld [vmem:[#allocation6 + $0x18] sm:$0xff]
    %v117 = vld [vmem:[#allocation6 + $0x20] sm:$0xff]
    %v118 = vld [vmem:[#allocation6 + $0x28] sm:$0xff]
    %v119 = vld [vmem:[#allocation6 + $0x30] sm:$0xff]
    %v120 = vld [vmem:[#allocation6 + $0x38] sm:$0xff]
    %v121 = vld [vmem:[#allocation6 + $0x40] sm:$0xff]
    %v122 = vld [vmem:[#allocation6 + $0x48] sm:$0xff]
    %v123 = vld [vmem:[#allocation6 + $0x50] sm:$0xff]
    %v124 = vld [vmem:[#allocation6 + $0x58] sm:$0xff]
    %v125 = vld [vmem:[#allocation6 + $0x60] sm:$0xff]
    %v126 = vld [vmem:[#allocation6 + $0x68] sm:$0xff]
    %v127 = vld [vmem:[#allocation6 + $0x70] sm:$0xff]
    %v128 = vld [vmem:[#allocation6 + $0x78] sm:$0xff]
    %v129 = vld [vmem:[#allocation6 + $0x80] sm:$0xff]
    %v130 = vld [vmem:[#allocation6 + $0x88] sm:$0xff]
    %v131 = vld [vmem:[#allocation6 + $0x90] sm:$0xff]
    %v132 = vld [vmem:[#allocation6 + $0x98] sm:$0xff]
    %v133 = vld [vmem:[#allocation6 + $0xa0] sm:$0xff]
    %v134 = vld [vmem:[#allocation6 + $0xa8] sm:$0xff]
    %v135 = vld [vmem:[#allocation6 + $0xb0] sm:$0xff]
    %v136 = vld [vmem:[#allocation6 + $0xb8] sm:$0xff]
    %v137 = vld [vmem:[#allocation6 + $0xc0] sm:$0xff]
    %v138 = vld [vmem:[#allocation6 + $0xc8] sm:$0xff]
    %v139 = vld [vmem:[#allocation6 + $0xd0] sm:$0xff]
    %v140 = vld [vmem:[#allocation6 + $0xd8] sm:$0xff]
    %v141 = vld [vmem:[#allocation6 + $0xe0] sm:$0xff]
    %v142 = vld [vmem:[#allocation6 + $0xe8] sm:$0xff]
    %v143 = vld [vmem:[#allocation6 + $0xf0] sm:$0xff]
    %v144 = vld [vmem:[#allocation6 + $0xf8] sm:$0xff]
    %v145 = vld [vmem:[%s5] sm:$0xf]
    %v147 = vlaneseq
    %v148 = vshrl.u32 %v147, 7
    %v149 = vsub.s32 0, %v148
    %v150 = vrot.slane %v145, %v149
    %v151 = vlaneseq
    %v152 = vshrl.u32 %v151, 7
    %v153 = vsub.s32 1, %v152
    %v154 = vrot.slane %v145, %v153
    %v155 = vlaneseq
    %v156 = vshrl.u32 %v155, 7
    %v157 = vsub.s32 2, %v156
    %v158 = vrot.slane %v145, %v157
    %v159 = vlaneseq
    %v160 = vshrl.u32 %v159, 7
    %v161 = vsub.s32 3, %v160
    %v162 = vrot.slane %v145, %v161
    %v183 = vunpack.c.l.b16 %v97
    %v184 = vunpack.c.l.b16 %v98
    %v185 = vunpack.c.l.b16 %v99
    %v186 = vunpack.c.l.b16 %v100
    %v187 = vunpack.c.l.b16 %v101
    %v188 = vunpack.c.l.b16 %v102
    %v189 = vunpack.c.l.b16 %v103
    %v190 = vunpack.c.l.b16 %v104
    %v191 = vunpack.c.l.b16 %v105
    %v192 = vunpack.c.l.b16 %v106
    %v193 = vunpack.c.l.b16 %v107
    %v194 = vunpack.c.l.b16 %v108
    %v195 = vunpack.c.l.b16 %v109
    %v196 = vunpack.c.l.b16 %v110
    %v197 = vunpack.c.l.b16 %v111
    %v198 = vunpack.c.l.b16 %v112
    %v199 = vpack.c.b16 %v184, %v183
    %v200 = vpack.c.b16 %v186, %v185
    %v201 = vpack.c.b16 %v188, %v187
    %v202 = vpack.c.b16 %v190, %v189
    %v203 = vpack.c.b16 %v192, %v191
    %v204 = vpack.c.b16 %v194, %v193
    %v205 = vpack.c.b16 %v196, %v195
    %v206 = vpack.c.b16 %v198, %v197
    %v247 = vunpack.c.l.b16 %v113
    %v248 = vunpack.c.h.b16 %v113
    %v249 = vunpack.c.l.b16 %v114
    %v250 = vunpack.c.h.b16 %v114
    %v251 = vunpack.c.l.b16 %v115
    %v252 = vunpack.c.h.b16 %v115
    %v253 = vunpack.c.l.b16 %v116
    %v254 = vunpack.c.h.b16 %v116
    %v255 = vunpack.c.l.b16 %v117
    %v256 = vunpack.c.h.b16 %v117
    %v257 = vunpack.c.l.b16 %v118
    %v258 = vunpack.c.h.b16 %v118
    %v259 = vunpack.c.l.b16 %v119
    %v260 = vunpack.c.h.b16 %v119
    %v261 = vunpack.c.l.b16 %v120
    %v262 = vunpack.c.h.b16 %v120
    %v263 = vunpack.c.l.b16 %v121
    %v264 = vunpack.c.h.b16 %v121
    %v265 = vunpack.c.l.b16 %v122
    %v266 = vunpack.c.h.b16 %v122
    %v267 = vunpack.c.l.b16 %v123
    %v268 = vunpack.c.h.b16 %v123
    %v269 = vunpack.c.l.b16 %v124
    %v270 = vunpack.c.h.b16 %v124
    %v271 = vunpack.c.l.b16 %v125
    %v272 = vunpack.c.h.b16 %v125
    %v273 = vunpack.c.l.b16 %v126
    %v274 = vunpack.c.h.b16 %v126
    %v275 = vunpack.c.l.b16 %v127
    %v276 = vunpack.c.h.b16 %v127
    %v277 = vunpack.c.l.b16 %v128
    %v278 = vunpack.c.h.b16 %v128
    %v279 = vunpack.c.l.b16 %v129
    %v280 = vunpack.c.h.b16 %v129
    %v281 = vunpack.c.l.b16 %v130
    %v282 = vunpack.c.h.b16 %v130
    %v283 = vunpack.c.l.b16 %v131
    %v284 = vunpack.c.h.b16 %v131
    %v285 = vunpack.c.l.b16 %v132
    %v286 = vunpack.c.h.b16 %v132
    %v287 = vunpack.c.l.b16 %v133
    %v288 = vunpack.c.h.b16 %v133
    %v289 = vunpack.c.l.b16 %v134
    %v290 = vunpack.c.h.b16 %v134
    %v291 = vunpack.c.l.b16 %v135
    %v292 = vunpack.c.h.b16 %v135
    %v293 = vunpack.c.l.b16 %v136
    %v294 = vunpack.c.h.b16 %v136
    %v295 = vunpack.c.l.b16 %v137
    %v296 = vunpack.c.h.b16 %v137
    %v297 = vunpack.c.l.b16 %v138
    %v298 = vunpack.c.h.b16 %v138
    %v299 = vunpack.c.l.b16 %v139
    %v300 = vunpack.c.h.b16 %v139
    %v301 = vunpack.c.l.b16 %v140
    %v302 = vunpack.c.h.b16 %v140
    %v303 = vunpack.c.l.b16 %v141
    %v304 = vunpack.c.h.b16 %v141
    %v305 = vunpack.c.l.b16 %v142
    %v306 = vunpack.c.h.b16 %v142
    %v307 = vunpack.c.l.b16 %v143
    %v308 = vunpack.c.h.b16 %v143
    %v309 = vunpack.c.l.b16 %v144
    %v310 = vunpack.c.h.b16 %v144
    %v311 = vpack.c.b16 %v251, %v247
    %v312 = vpack.c.b16 %v252, %v248
    %v313 = vpack.c.b16 %v253, %v249
    %v314 = vpack.c.b16 %v254, %v250
    %v315 = vpack.c.b16 %v259, %v255
    %v316 = vpack.c.b16 %v260, %v256
    %v317 = vpack.c.b16 %v261, %v257
    %v318 = vpack.c.b16 %v262, %v258
    %v319 = vpack.c.b16 %v267, %v263
    %v320 = vpack.c.b16 %v268, %v264
    %v321 = vpack.c.b16 %v269, %v265
    %v322 = vpack.c.b16 %v270, %v266
    %v323 = vpack.c.b16 %v275, %v271
    %v324 = vpack.c.b16 %v276, %v272
    %v325 = vpack.c.b16 %v277, %v273
    %v326 = vpack.c.b16 %v278, %v274
    %v327 = vpack.c.b16 %v283, %v279
    %v328 = vpack.c.b16 %v284, %v280
    %v329 = vpack.c.b16 %v285, %v281
    %v330 = vpack.c.b16 %v286, %v282
    %v331 = vpack.c.b16 %v291, %v287
    %v332 = vpack.c.b16 %v292, %v288
    %v333 = vpack.c.b16 %v293, %v289
    %v334 = vpack.c.b16 %v294, %v290
    %v335 = vpack.c.b16 %v299, %v295
    %v336 = vpack.c.b16 %v300, %v296
    %v337 = vpack.c.b16 %v301, %v297
    %v338 = vpack.c.b16 %v302, %v298
    %v339 = vpack.c.b16 %v307, %v303
    %v340 = vpack.c.b16 %v308, %v304
    %v341 = vpack.c.b16 %v309, %v305
    %v342 = vpack.c.b16 %v310, %v306
    %375 = vmatprep.subr.bf16.mxu0 %v340
    %376 = vmatpush1.bf16.msra.mxu0 %v339
    %377 = vmatprep.subr.bf16.mxu0 %v336
    %378 = vmatpush1.bf16.msra.mxu0 %v335
    %379 = vmatprep.subr.bf16.mxu0 %v332
    %380 = vmatpush1.bf16.msra.mxu0 %v331
    %381 = vmatprep.subr.bf16.mxu0 %v328
    %382 = vmatpush1.bf16.msra.mxu0 %v327
    %383 = vmatprep.subr.bf16.mxu0 %v324
    %384 = vmatpush1.bf16.msra.mxu0 %v323
    %385 = vmatprep.subr.bf16.mxu0 %v320
    %386 = vmatpush1.bf16.msra.mxu0 %v319
    %387 = vmatprep.subr.bf16.mxu0 %v316
    %388 = vmatpush1.bf16.msra.mxu0 %v315
    %389 = vmatprep.subr.bf16.mxu0 %v312
    %390 = vmatpush1.bf16.msra.mxu0 %v311
    %391 = vmatprep.subr.bf16.mxu0 0
    %392 = vmatpush2.bf16.msra.mxu0 0
    %393 = vmatprep.subr.bf16.mxu0 0
    %394 = vmatpush2.bf16.msra.mxu0 0
    %395 = vmatprep.subr.bf16.mxu0 0
    %396 = vmatpush2.bf16.msra.mxu0 0
    %397 = vmatprep.subr.bf16.mxu0 0
    %398 = vmatpush2.bf16.msra.mxu0 0
    %399 = vmatprep.subr.bf16.mxu0 0
    %400 = vmatpush2.bf16.msra.mxu0 0
    %401 = vmatprep.subr.bf16.mxu0 0
    %402 = vmatpush2.bf16.msra.mxu0 0
    %403 = vmatprep.subr.bf16.mxu0 0
    %404 = vmatpush2.bf16.msra.mxu0 0
    %405 = vmatprep.subr.bf16.mxu0 0
    %406 = vmatpush2.bf16.msra.mxu0 0
    %407 = vmatprep.mubr.bf16.mxu0 0
    %408 = vmatmul.mubr.bf16.gmra.mxu0 %v199
    %v409 = vpop.f32.mrf.mxu0
    %v410 = vadd.f32 %v150, %v409
    %v411 = vpop.f32.mrf.mxu0
    %v412 = vadd.f32 %v154, %v411
    %v413 = vpop.f32.mrf.mxu0
    %v414 = vadd.f32 %v150, %v413
    %v415 = vpop.f32.mrf.mxu0
    %v416 = vadd.f32 %v154, %v415
    %417 = vmatprep.mubr.bf16.mxu0 0
    %418 = vmatmul.mubr.bf16.gmra.mxu0 %v200
    %v419 = vpop.f32.mrf.mxu0
    %v420 = vadd.f32 %v150, %v419
    %v421 = vpop.f32.mrf.mxu0
    %v422 = vadd.f32 %v154, %v421
    %v423 = vpop.f32.mrf.mxu0
    %v424 = vadd.f32 %v150, %v423
    %v425 = vpop.f32.mrf.mxu0
    %v426 = vadd.f32 %v154, %v425
    %427 = vmatprep.mubr.bf16.mxu0 0
    %428 = vmatmul.mubr.bf16.gmra.mxu0 %v201
    %v429 = vpop.f32.mrf.mxu0
    %v430 = vadd.f32 %v150, %v429
    %v431 = vpop.f32.mrf.mxu0
    %v432 = vadd.f32 %v154, %v431
    %v433 = vpop.f32.mrf.mxu0
    %v434 = vadd.f32 %v150, %v433
    %v435 = vpop.f32.mrf.mxu0
    %v436 = vadd.f32 %v154, %v435
    %437 = vmatprep.mubr.bf16.mxu0 0
    %438 = vmatmul.mubr.bf16.gmra.mxu0 %v202
    %v439 = vpop.f32.mrf.mxu0
    %v440 = vadd.f32 %v150, %v439
    %v441 = vpop.f32.mrf.mxu0
    %v442 = vadd.f32 %v154, %v441
    %v443 = vpop.f32.mrf.mxu0
    %v444 = vadd.f32 %v150, %v443
    %v445 = vpop.f32.mrf.mxu0
    %v446 = vadd.f32 %v154, %v445
    %447 = vmatprep.mubr.bf16.mxu0 0
    %448 = vmatmul.mubr.bf16.gmra.mxu0 %v203
    %v449 = vpop.f32.mrf.mxu0
    %v450 = vadd.f32 %v150, %v449
    %v451 = vpop.f32.mrf.mxu0
    %v452 = vadd.f32 %v154, %v451
    %v453 = vpop.f32.mrf.mxu0
    %v454 = vadd.f32 %v150, %v453
    %v455 = vpop.f32.mrf.mxu0
    %v456 = vadd.f32 %v154, %v455
    %457 = vmatprep.mubr.bf16.mxu0 0
    %458 = vmatmul.mubr.bf16.gmra.mxu0 %v204
    %v459 = vpop.f32.mrf.mxu0
    %v460 = vadd.f32 %v150, %v459
    %v461 = vpop.f32.mrf.mxu0
    %v462 = vadd.f32 %v154, %v461
    %v463 = vpop.f32.mrf.mxu0
    %v464 = vadd.f32 %v150, %v463
    %v465 = vpop.f32.mrf.mxu0
    %v466 = vadd.f32 %v154, %v465
    %467 = vmatprep.mubr.bf16.mxu0 0
    %468 = vmatmul.mubr.bf16.gmra.mxu0 %v205
    %v469 = vpop.f32.mrf.mxu0
    %v470 = vadd.f32 %v150, %v469
    %v471 = vpop.f32.mrf.mxu0
    %v472 = vadd.f32 %v154, %v471
    %v473 = vpop.f32.mrf.mxu0
    %v474 = vadd.f32 %v150, %v473
    %v475 = vpop.f32.mrf.mxu0
    %v476 = vadd.f32 %v154, %v475
    %477 = vmatprep.mubr.bf16.mxu0 0
    %478 = vmatmul.mubr.bf16.gmra.mxu0 %v206
    %v479 = vpop.f32.mrf.mxu0
    %v480 = vadd.f32 %v150, %v479
    %v481 = vpop.f32.mrf.mxu0
    %v482 = vadd.f32 %v154, %v481
    %v483 = vpop.f32.mrf.mxu0
    %v484 = vadd.f32 %v150, %v483
    %v485 = vpop.f32.mrf.mxu0
    %v486 = vadd.f32 %v154, %v485
    %487 = vdwg.mxu0
    %488 = vmatprep.subr.bf16.mxu0 %v342
    %489 = vmatpush1.bf16.msra.mxu0 %v341
    %490 = vmatprep.subr.bf16.mxu0 %v338
    %491 = vmatpush1.bf16.msra.mxu0 %v337
    %492 = vmatprep.subr.bf16.mxu0 %v334
    %493 = vmatpush1.bf16.msra.mxu0 %v333
    %494 = vmatprep.subr.bf16.mxu0 %v330
    %495 = vmatpush1.bf16.msra.mxu0 %v329
    %496 = vmatprep.subr.bf16.mxu0 %v326
    %497 = vmatpush1.bf16.msra.mxu0 %v325
    %498 = vmatprep.subr.bf16.mxu0 %v322
    %499 = vmatpush1.bf16.msra.mxu0 %v321
    %500 = vmatprep.subr.bf16.mxu0 %v318
    %501 = vmatpush1.bf16.msra.mxu0 %v317
    %502 = vmatprep.subr.bf16.mxu0 %v314
    %503 = vmatpush1.bf16.msra.mxu0 %v313
    %504 = vmatprep.subr.bf16.mxu0 0
    %505 = vmatpush2.bf16.msra.mxu0 0
    %506 = vmatprep.subr.bf16.mxu0 0
    %507 = vmatpush2.bf16.msra.mxu0 0
    %508 = vmatprep.subr.bf16.mxu0 0
    %509 = vmatpush2.bf16.msra.mxu0 0
    %510 = vmatprep.subr.bf16.mxu0 0
    %511 = vmatpush2.bf16.msra.mxu0 0
    %512 = vmatprep.subr.bf16.mxu0 0
    %513 = vmatpush2.bf16.msra.mxu0 0
    %514 = vmatprep.subr.bf16.mxu0 0
    %515 = vmatpush2.bf16.msra.mxu0 0
    %516 = vmatprep.subr.bf16.mxu0 0
    %517 = vmatpush2.bf16.msra.mxu0 0
    %518 = vmatprep.subr.bf16.mxu0 0
    %519 = vmatpush2.bf16.msra.mxu0 0
    %520 = vmatprep.mubr.bf16.mxu0 0
    %521 = vmatmul.mubr.bf16.gmra.mxu0 %v199
    %v522 = vpop.f32.mrf.mxu0
    %v523 = vadd.f32 %v158, %v522
    %v524 = vpop.f32.mrf.mxu0
    %v525 = vadd.f32 %v162, %v524
    %v526 = vpop.f32.mrf.mxu0
    %v527 = vadd.f32 %v158, %v526
    %v528 = vpop.f32.mrf.mxu0
    %v529 = vadd.f32 %v162, %v528
    %530 = vmatprep.mubr.bf16.mxu0 0
    %531 = vmatmul.mubr.bf16.gmra.mxu0 %v200
    %v532 = vpop.f32.mrf.mxu0
    %v533 = vadd.f32 %v158, %v532
    %v534 = vpop.f32.mrf.mxu0
    %v535 = vadd.f32 %v162, %v534
    %v536 = vpop.f32.mrf.mxu0
    %v537 = vadd.f32 %v158, %v536
    %v538 = vpop.f32.mrf.mxu0
    %v539 = vadd.f32 %v162, %v538
    %540 = vmatprep.mubr.bf16.mxu0 0
    %541 = vmatmul.mubr.bf16.gmra.mxu0 %v201
    %v542 = vpop.f32.mrf.mxu0
    %v543 = vadd.f32 %v158, %v542
    %v544 = vpop.f32.mrf.mxu0
    %v545 = vadd.f32 %v162, %v544
    %v546 = vpop.f32.mrf.mxu0
    %v547 = vadd.f32 %v158, %v546
    %v548 = vpop.f32.mrf.mxu0
    %v549 = vadd.f32 %v162, %v548
    %550 = vmatprep.mubr.bf16.mxu0 0
    %551 = vmatmul.mubr.bf16.gmra.mxu0 %v202
    %v552 = vpop.f32.mrf.mxu0
    %v553 = vadd.f32 %v158, %v552
    %v554 = vpop.f32.mrf.mxu0
    %v555 = vadd.f32 %v162, %v554
    %v556 = vpop.f32.mrf.mxu0
    %v557 = vadd.f32 %v158, %v556
    %v558 = vpop.f32.mrf.mxu0
    %v559 = vadd.f32 %v162, %v558
    %560 = vmatprep.mubr.bf16.mxu0 0
    %561 = vmatmul.mubr.bf16.gmra.mxu0 %v203
    %v562 = vpop.f32.mrf.mxu0
    %v563 = vadd.f32 %v158, %v562
    %v564 = vpop.f32.mrf.mxu0
    %v565 = vadd.f32 %v162, %v564
    %v566 = vpop.f32.mrf.mxu0
    %v567 = vadd.f32 %v158, %v566
    %v568 = vpop.f32.mrf.mxu0
    %v569 = vadd.f32 %v162, %v568
    %570 = vmatprep.mubr.bf16.mxu0 0
    %571 = vmatmul.mubr.bf16.gmra.mxu0 %v204
    %v572 = vpop.f32.mrf.mxu0
    %v573 = vadd.f32 %v158, %v572
    %v574 = vpop.f32.mrf.mxu0
    %v575 = vadd.f32 %v162, %v574
    %v576 = vpop.f32.mrf.mxu0
    %v577 = vadd.f32 %v158, %v576
    %v578 = vpop.f32.mrf.mxu0
    %v579 = vadd.f32 %v162, %v578
    %580 = vmatprep.mubr.bf16.mxu0 0
    %581 = vmatmul.mubr.bf16.gmra.mxu0 %v205
    %v582 = vpop.f32.mrf.mxu0
    %v583 = vadd.f32 %v158, %v582
    %v584 = vpop.f32.mrf.mxu0
    %v585 = vadd.f32 %v162, %v584
    %v586 = vpop.f32.mrf.mxu0
    %v587 = vadd.f32 %v158, %v586
    %v588 = vpop.f32.mrf.mxu0
    %v589 = vadd.f32 %v162, %v588
    %590 = vmatprep.mubr.bf16.mxu0 0
    %591 = vmatmul.mubr.bf16.gmra.mxu0 %v206
    %v592 = vpop.f32.mrf.mxu0
    %v593 = vadd.f32 %v158, %v592
    %v594 = vpop.f32.mrf.mxu0
    %v595 = vadd.f32 %v162, %v594
    %v596 = vpop.f32.mrf.mxu0
    %v597 = vadd.f32 %v158, %v596
    %v598 = vpop.f32.mrf.mxu0
    %v599 = vadd.f32 %v162, %v598
    %600 = vdwg.mxu0
    %601 = vst [vmem:[#allocation2] sm:$0xff] %v410
    %602 = vst [vmem:[#allocation2 + $0x8] sm:$0xff] %v412
    %603 = vst [vmem:[#allocation2 + $0x10] sm:$0xff] %v523
    %604 = vst [vmem:[#allocation2 + $0x18] sm:$0xff] %v525
    %605 = vst [vmem:[#allocation2 + $0x20] sm:$0xff] %v414
    %606 = vst [vmem:[#allocation2 + $0x28] sm:$0xff] %v416
    %607 = vst [vmem:[#allocation2 + $0x30] sm:$0xff] %v527
    %608 = vst [vmem:[#allocation2 + $0x38] sm:$0xff] %v529
    %609 = vst [vmem:[#allocation2 + $0x40] sm:$0xff] %v420
    %610 = vst [vmem:[#allocation2 + $0x48] sm:$0xff] %v422
    %611 = vst [vmem:[#allocation2 + $0x50] sm:$0xff] %v533
    %612 = vst [vmem:[#allocation2 + $0x58] sm:$0xff] %v535
    %613 = vst [vmem:[#allocation2 + $0x60] sm:$0xff] %v424
    %614 = vst [vmem:[#allocation2 + $0x68] sm:$0xff] %v426
    %615 = vst [vmem:[#allocation2 + $0x70] sm:$0xff] %v537
    %616 = vst [vmem:[#allocation2 + $0x78] sm:$0xff] %v539
    %617 = vst [vmem:[#allocation2 + $0x80] sm:$0xff] %v430
    %618 = vst [vmem:[#allocation2 + $0x88] sm:$0xff] %v432
    %619 = vst [vmem:[#allocation2 + $0x90] sm:$0xff] %v543
    %620 = vst [vmem:[#allocation2 + $0x98] sm:$0xff] %v545
    %621 = vst [vmem:[#allocation2 + $0xa0] sm:$0xff] %v434
    %622 = vst [vmem:[#allocation2 + $0xa8] sm:$0xff] %v436
    %623 = vst [vmem:[#allocation2 + $0xb0] sm:$0xff] %v547
    %624 = vst [vmem:[#allocation2 + $0xb8] sm:$0xff] %v549
    %625 = vst [vmem:[#allocation2 + $0xc0] sm:$0xff] %v440
    %626 = vst [vmem:[#allocation2 + $0xc8] sm:$0xff] %v442
    %627 = vst [vmem:[#allocation2 + $0xd0] sm:$0xff] %v553
    %628 = vst [vmem:[#allocation2 + $0xd8] sm:$0xff] %v555
    %629 = vst [vmem:[#allocation2 + $0xe0] sm:$0xff] %v444
    %630 = vst [vmem:[#allocation2 + $0xe8] sm:$0xff] %v446
    %631 = vst [vmem:[#allocation2 + $0xf0] sm:$0xff] %v557
    %632 = vst [vmem:[#allocation2 + $0xf8] sm:$0xff] %v559
    %633 = vst [vmem:[#allocation2 + $0x100] sm:$0xff] %v450
    %634 = vst [vmem:[#allocation2 + $0x108] sm:$0xff] %v452
    %635 = vst [vmem:[#allocation2 + $0x110] sm:$0xff] %v563
    %636 = vst [vmem:[#allocation2 + $0x118] sm:$0xff] %v565
    %637 = vst [vmem:[#allocation2 + $0x120] sm:$0xff] %v454
    %638 = vst [vmem:[#allocation2 + $0x128] sm:$0xff] %v456
    %639 = vst [vmem:[#allocation2 + $0x130] sm:$0xff] %v567
    %640 = vst [vmem:[#allocation2 + $0x138] sm:$0xff] %v569
    %641 = vst [vmem:[#allocation2 + $0x140] sm:$0xff] %v460
    %642 = vst [vmem:[#allocation2 + $0x148] sm:$0xff] %v462
    %643 = vst [vmem:[#allocation2 + $0x150] sm:$0xff] %v573
    %644 = vst [vmem:[#allocation2 + $0x158] sm:$0xff] %v575
    %645 = vst [vmem:[#allocation2 + $0x160] sm:$0xff] %v464
    %646 = vst [vmem:[#allocation2 + $0x168] sm:$0xff] %v466
    %647 = vst [vmem:[#allocation2 + $0x170] sm:$0xff] %v577
    %648 = vst [vmem:[#allocation2 + $0x178] sm:$0xff] %v579
    %649 = vst [vmem:[#allocation2 + $0x180] sm:$0xff] %v470
    %650 = vst [vmem:[#allocation2 + $0x188] sm:$0xff] %v472
    %651 = vst [vmem:[#allocation2 + $0x190] sm:$0xff] %v583
    %652 = vst [vmem:[#allocation2 + $0x198] sm:$0xff] %v585
    %653 = vst [vmem:[#allocation2 + $0x1a0] sm:$0xff] %v474
    %654 = vst [vmem:[#allocation2 + $0x1a8] sm:$0xff] %v476
    %655 = vst [vmem:[#allocation2 + $0x1b0] sm:$0xff] %v587
    %656 = vst [vmem:[#allocation2 + $0x1b8] sm:$0xff] %v589
    %657 = vst [vmem:[#allocation2 + $0x1c0] sm:$0xff] %v480
    %658 = vst [vmem:[#allocation2 + $0x1c8] sm:$0xff] %v482
    %659 = vst [vmem:[#allocation2 + $0x1d0] sm:$0xff] %v593
    %660 = vst [vmem:[#allocation2 + $0x1d8] sm:$0xff] %v595
    %661 = vst [vmem:[#allocation2 + $0x1e0] sm:$0xff] %v484
    %662 = vst [vmem:[#allocation2 + $0x1e8] sm:$0xff] %v486
    %663 = vst [vmem:[#allocation2 + $0x1f0] sm:$0xff] %v597
    %664 = vst [vmem:[#allocation2 + $0x1f8] sm:$0xff] %v599
    %v665 = vld [vmem:[%s1] sm:$0xff]
    %v666 = vld [vmem:[%s1 + $0x8] sm:$0xff]
    %v667 = vld [vmem:[%s2] sm:$0xff]
    %v668 = vld [vmem:[%s2 + $0x8] sm:$0xff]
    %s669 = smul.u32 0, 4
    %s670 = smul.addr %s669, 8
    %s671 = scalar_lea.vmem [#allocation2], %s670
    %v672 = vld [vmem:[%s671] sm:$0xff]
    %v673 = vld [vmem:[%s671 + $0x8] sm:$0xff]
    %v674 = vld [vmem:[%s671 + $0x10] sm:$0xff]
    %v675 = vld [vmem:[%s671 + $0x18] sm:$0xff]
    %v676 = vld [vmem:[%s671 + $0x20] sm:$0xff]
    %v677 = vld [vmem:[%s671 + $0x28] sm:$0xff]
    %v678 = vld [vmem:[%s671 + $0x30] sm:$0xff]
    %v679 = vld [vmem:[%s671 + $0x38] sm:$0xff]
    %v680 = vpack.c.bf16 %v666, %v665
    %v681 = vld [vmem:[#allocation8] sm:$0xff]
    %v682 = vld [vmem:[#allocation8 + $0x8] sm:$0xff]
    %v683 = vld [vmem:[#allocation8 + $0x10] sm:$0xff]
    %v684 = vld [vmem:[#allocation8 + $0x18] sm:$0xff]
    %v685 = vld [vmem:[#allocation8 + $0x20] sm:$0xff]
    %v686 = vld [vmem:[#allocation8 + $0x28] sm:$0xff]
    %v687 = vld [vmem:[#allocation8 + $0x30] sm:$0xff]
    %v688 = vld [vmem:[#allocation8 + $0x38] sm:$0xff]
    %v689 = vld [vmem:[#allocation8 + $0x40] sm:$0xff]
    %v690 = vld [vmem:[#allocation8 + $0x48] sm:$0xff]
    %v691 = vld [vmem:[#allocation8 + $0x50] sm:$0xff]
    %v692 = vld [vmem:[#allocation8 + $0x58] sm:$0xff]
    %v693 = vld [vmem:[#allocation8 + $0x60] sm:$0xff]
    %v694 = vld [vmem:[#allocation8 + $0x68] sm:$0xff]
    %v695 = vld [vmem:[#allocation8 + $0x70] sm:$0xff]
    %v696 = vld [vmem:[#allocation8 + $0x78] sm:$0xff]
    %v697 = vld [vmem:[#allocation8 + $0x80] sm:$0xff]
    %v698 = vld [vmem:[#allocation8 + $0x88] sm:$0xff]
    %v699 = vld [vmem:[#allocation8 + $0x90] sm:$0xff]
    %v700 = vld [vmem:[#allocation8 + $0x98] sm:$0xff]
    %v701 = vld [vmem:[#allocation8 + $0xa0] sm:$0xff]
    %v702 = vld [vmem:[#allocation8 + $0xa8] sm:$0xff]
    %v703 = vld [vmem:[#allocation8 + $0xb0] sm:$0xff]
    %v704 = vld [vmem:[#allocation8 + $0xb8] sm:$0xff]
    %v705 = vld [vmem:[#allocation8 + $0xc0] sm:$0xff]
    %v706 = vld [vmem:[#allocation8 + $0xc8] sm:$0xff]
    %v707 = vld [vmem:[#allocation8 + $0xd0] sm:$0xff]
    %v708 = vld [vmem:[#allocation8 + $0xd8] sm:$0xff]
    %v709 = vld [vmem:[#allocation8 + $0xe0] sm:$0xff]
    %v710 = vld [vmem:[#allocation8 + $0xe8] sm:$0xff]
    %v711 = vld [vmem:[#allocation8 + $0xf0] sm:$0xff]
    %v712 = vld [vmem:[#allocation8 + $0xf8] sm:$0xff]
    %v745 = vunpack.c.l.b16 %v681
    %v746 = vunpack.c.h.b16 %v681
    %v747 = vunpack.c.l.b16 %v682
    %v748 = vunpack.c.h.b16 %v682
    %v749 = vunpack.c.l.b16 %v683
    %v750 = vunpack.c.h.b16 %v683
    %v751 = vunpack.c.l.b16 %v684
    %v752 = vunpack.c.h.b16 %v684
    %v753 = vunpack.c.l.b16 %v685
    %v754 = vunpack.c.h.b16 %v685
    %v755 = vunpack.c.l.b16 %v686
    %v756 = vunpack.c.h.b16 %v686
    %v757 = vunpack.c.l.b16 %v687
    %v758 = vunpack.c.h.b16 %v687
    %v759 = vunpack.c.l.b16 %v688
    %v760 = vunpack.c.h.b16 %v688
    %v761 = vunpack.c.l.b16 %v689
    %v762 = vunpack.c.h.b16 %v689
    %v763 = vunpack.c.l.b16 %v690
    %v764 = vunpack.c.h.b16 %v690
    %v765 = vunpack.c.l.b16 %v691
    %v766 = vunpack.c.h.b16 %v691
    %v767 = vunpack.c.l.b16 %v692
    %v768 = vunpack.c.h.b16 %v692
    %v769 = vunpack.c.l.b16 %v693
    %v770 = vunpack.c.h.b16 %v693
    %v771 = vunpack.c.l.b16 %v694
    %v772 = vunpack.c.h.b16 %v694
    %v773 = vunpack.c.l.b16 %v695
    %v774 = vunpack.c.h.b16 %v695
    %v775 = vunpack.c.l.b16 %v696
    %v776 = vunpack.c.h.b16 %v696
    %v777 = vunpack.c.l.b16 %v697
    %v778 = vunpack.c.h.b16 %v697
    %v779 = vunpack.c.l.b16 %v698
    %v780 = vunpack.c.h.b16 %v698
    %v781 = vunpack.c.l.b16 %v699
    %v782 = vunpack.c.h.b16 %v699
    %v783 = vunpack.c.l.b16 %v700
    %v784 = vunpack.c.h.b16 %v700
    %v785 = vunpack.c.l.b16 %v701
    %v786 = vunpack.c.h.b16 %v701
    %v787 = vunpack.c.l.b16 %v702
    %v788 = vunpack.c.h.b16 %v702
    %v789 = vunpack.c.l.b16 %v703
    %v790 = vunpack.c.h.b16 %v703
    %v791 = vunpack.c.l.b16 %v704
    %v792 = vunpack.c.h.b16 %v704
    %v793 = vunpack.c.l.b16 %v705
    %v794 = vunpack.c.h.b16 %v705
    %v795 = vunpack.c.l.b16 %v706
    %v796 = vunpack.c.h.b16 %v706
    %v797 = vunpack.c.l.b16 %v707
    %v798 = vunpack.c.h.b16 %v707
    %v799 = vunpack.c.l.b16 %v708
    %v800 = vunpack.c.h.b16 %v708
    %v801 = vunpack.c.l.b16 %v709
    %v802 = vunpack.c.h.b16 %v709
    %v803 = vunpack.c.l.b16 %v710
    %v804 = vunpack.c.h.b16 %v710
    %v805 = vunpack.c.l.b16 %v711
    %v806 = vunpack.c.h.b16 %v711
    %v807 = vunpack.c.l.b16 %v712
    %v808 = vunpack.c.h.b16 %v712
    %v809 = vpack.c.b16 %v749, %v745
    %v810 = vpack.c.b16 %v750, %v746
    %v811 = vpack.c.b16 %v751, %v747
    %v812 = vpack.c.b16 %v752, %v748
    %v813 = vpack.c.b16 %v757, %v753
    %v814 = vpack.c.b16 %v758, %v754
    %v815 = vpack.c.b16 %v759, %v755
    %v816 = vpack.c.b16 %v760, %v756
    %v817 = vpack.c.b16 %v765, %v761
    %v818 = vpack.c.b16 %v766, %v762
    %v819 = vpack.c.b16 %v767, %v763
    %v820 = vpack.c.b16 %v768, %v764
    %v821 = vpack.c.b16 %v773, %v769
    %v822 = vpack.c.b16 %v774, %v770
    %v823 = vpack.c.b16 %v775, %v771
    %v824 = vpack.c.b16 %v776, %v772
    %v825 = vpack.c.b16 %v781, %v777
    %v826 = vpack.c.b16 %v782, %v778
    %v827 = vpack.c.b16 %v783, %v779
    %v828 = vpack.c.b16 %v784, %v780
    %v829 = vpack.c.b16 %v789, %v785
    %v830 = vpack.c.b16 %v790, %v786
    %v831 = vpack.c.b16 %v791, %v787
    %v832 = vpack.c.b16 %v792, %v788
    %v833 = vpack.c.b16 %v797, %v793
    %v834 = vpack.c.b16 %v798, %v794
    %v835 = vpack.c.b16 %v799, %v795
    %v836 = vpack.c.b16 %v800, %v796
    %v837 = vpack.c.b16 %v805, %v801
    %v838 = vpack.c.b16 %v806, %v802
    %v839 = vpack.c.b16 %v807, %v803
    %v840 = vpack.c.b16 %v808, %v804
    %873 = vmatprep.subr.bf16.mxu0 %v838
    %874 = vmatpush1.bf16.msra.mxu0 %v837
    %875 = vmatprep.subr.bf16.mxu0 %v834
    %876 = vmatpush1.bf16.msra.mxu0 %v833
    %877 = vmatprep.subr.bf16.mxu0 %v830
    %878 = vmatpush1.bf16.msra.mxu0 %v829
    %879 = vmatprep.subr.bf16.mxu0 %v826
    %880 = vmatpush1.bf16.msra.mxu0 %v825
    %881 = vmatprep.subr.bf16.mxu0 %v822
    %882 = vmatpush1.bf16.msra.mxu0 %v821
    %883 = vmatprep.subr.bf16.mxu0 %v818
    %884 = vmatpush1.bf16.msra.mxu0 %v817
    %885 = vmatprep.subr.bf16.mxu0 %v814
    %886 = vmatpush1.bf16.msra.mxu0 %v813
    %887 = vmatprep.subr.bf16.mxu0 %v810
    %888 = vmatpush1.bf16.msra.mxu0 %v809
    %889 = vmatprep.subr.bf16.mxu0 0
    %890 = vmatpush2.bf16.msra.mxu0 0
    %891 = vmatprep.subr.bf16.mxu0 0
    %892 = vmatpush2.bf16.msra.mxu0 0
    %893 = vmatprep.subr.bf16.mxu0 0
    %894 = vmatpush2.bf16.msra.mxu0 0
    %895 = vmatprep.subr.bf16.mxu0 0
    %896 = vmatpush2.bf16.msra.mxu0 0
    %897 = vmatprep.subr.bf16.mxu0 0
    %898 = vmatpush2.bf16.msra.mxu0 0
    %899 = vmatprep.subr.bf16.mxu0 0
    %900 = vmatpush2.bf16.msra.mxu0 0
    %901 = vmatprep.subr.bf16.mxu0 0
    %902 = vmatpush2.bf16.msra.mxu0 0
    %903 = vmatprep.subr.bf16.mxu0 0
    %904 = vmatpush2.bf16.msra.mxu0 0
    %905 = vmatprep.mubr.bf16.mxu0 0
    %906 = vmatmul.mubr.bf16.gmra.mxu0 %v680
    %v907 = vpop.f32.mrf.mxu0
    %v908 = vadd.f32 0.0, %v907
    %v909 = vpop.f32.mrf.mxu0
    %v910 = vadd.f32 0.0, %v909
    %v911 = vpop.f32.mrf.mxu0
    %v912 = vadd.f32 0.0, %v911
    %v913 = vpop.f32.mrf.mxu0
    %v914 = vadd.f32 0.0, %v913
    %915 = vdwg.mxu0
    %916 = vmatprep.subr.bf16.mxu0 %v840
    %917 = vmatpush1.bf16.msra.mxu0 %v839
    %918 = vmatprep.subr.bf16.mxu0 %v836
    %919 = vmatpush1.bf16.msra.mxu0 %v835
    %920 = vmatprep.subr.bf16.mxu0 %v832
    %921 = vmatpush1.bf16.msra.mxu0 %v831
    %922 = vmatprep.subr.bf16.mxu0 %v828
    %923 = vmatpush1.bf16.msra.mxu0 %v827
    %924 = vmatprep.subr.bf16.mxu0 %v824
    %925 = vmatpush1.bf16.msra.mxu0 %v823
    %926 = vmatprep.subr.bf16.mxu0 %v820
    %927 = vmatpush1.bf16.msra.mxu0 %v819
    %928 = vmatprep.subr.bf16.mxu0 %v816
    %929 = vmatpush1.bf16.msra.mxu0 %v815
    %930 = vmatprep.subr.bf16.mxu0 %v812
    %931 = vmatpush1.bf16.msra.mxu0 %v811
    %932 = vmatprep.subr.bf16.mxu0 0
    %933 = vmatpush2.bf16.msra.mxu0 0
    %934 = vmatprep.subr.bf16.mxu0 0
    %935 = vmatpush2.bf16.msra.mxu0 0
    %936 = vmatprep.subr.bf16.mxu0 0
    %937 = vmatpush2.bf16.msra.mxu0 0
    %938 = vmatprep.subr.bf16.mxu0 0
    %939 = vmatpush2.bf16.msra.mxu0 0
    %940 = vmatprep.subr.bf16.mxu0 0
    %941 = vmatpush2.bf16.msra.mxu0 0
    %942 = vmatprep.subr.bf16.mxu0 0
    %943 = vmatpush2.bf16.msra.mxu0 0
    %944 = vmatprep.subr.bf16.mxu0 0
    %945 = vmatpush2.bf16.msra.mxu0 0
    %946 = vmatprep.subr.bf16.mxu0 0
    %947 = vmatpush2.bf16.msra.mxu0 0
    %948 = vmatprep.mubr.bf16.mxu0 0
    %949 = vmatmul.mubr.bf16.gmra.mxu0 %v680
    %v950 = vpop.f32.mrf.mxu0
    %v951 = vadd.f32 0.0, %v950
    %v952 = vpop.f32.mrf.mxu0
    %v953 = vadd.f32 0.0, %v952
    %v954 = vpop.f32.mrf.mxu0
    %v955 = vadd.f32 0.0, %v954
    %v956 = vpop.f32.mrf.mxu0
    %v957 = vadd.f32 0.0, %v956
    %958 = vdwg.mxu0
    %v959 = vadd.f32 %v672, %v908
    %v960 = vadd.f32 %v673, %v910
    %v961 = vadd.f32 %v674, %v951
    %v962 = vadd.f32 %v675, %v953
    %v963 = vadd.f32 %v676, %v912
    %v964 = vadd.f32 %v677, %v914
    %v965 = vadd.f32 %v678, %v955
    %v966 = vadd.f32 %v679, %v957
    %v967 = vxor.u32 %v959, 2147483648
    %v968 = vxor.u32 %v963, 2147483648
    %v969 = vmul.f32 %v967, 1.442695
    %v970 = vpow.pop %v969
    %v971 = vmul.f32 %v968, 1.442695
    %v972 = vpow.pop %v971
    %v973 = vadd.f32 %v970, 1.0
    %v974 = vadd.f32 %v972, 1.0
    %v975 = vrcp.pop %v973
    %v976 = vmul.f32 1.0, %v975
    %v977 = vrcp.pop %v974
    %v978 = vmul.f32 1.0, %v977
    %v979 = vxor.u32 %v960, 2147483648
    %v980 = vxor.u32 %v964, 2147483648
    %v981 = vmul.f32 %v979, 1.442695
    %v982 = vpow.pop %v981
    %v983 = vmul.f32 %v980, 1.442695
    %v984 = vpow.pop %v983
    %v985 = vadd.f32 %v982, 1.0
    %v986 = vadd.f32 %v984, 1.0
    %v987 = vrcp.pop %v985
    %v988 = vmul.f32 1.0, %v987
    %v989 = vrcp.pop %v986
    %v990 = vmul.f32 1.0, %v989
    %v991 = vtanh.pop %v961
    %v992 = vtanh.pop %v965
    %v993 = vxor.u32 %v962, 2147483648
    %v994 = vxor.u32 %v966, 2147483648
    %v995 = vmul.f32 %v993, 1.442695
    %v996 = vpow.pop %v995
    %v997 = vmul.f32 %v994, 1.442695
    %v998 = vpow.pop %v997
    %v999 = vadd.f32 %v996, 1.0
    %v1000 = vadd.f32 %v998, 1.0
    %v1001 = vrcp.pop %v999
    %v1002 = vmul.f32 1.0, %v1001
    %v1003 = vrcp.pop %v1000
    %v1004 = vmul.f32 1.0, %v1003
    %v1005 = vmul.f32 %v988, %v667
    %v1006 = vmul.f32 %v990, %v668
    %v1007 = vmul.f32 %v976, %v991
    %v1008 = vmul.f32 %v978, %v992
    %v1009 = vadd.f32 %v1005, %v1007
    %v1010 = vadd.f32 %v1006, %v1008
    %v1011 = vtanh.pop %v1009
    %v1012 = vtanh.pop %v1010
    %v1013 = vmul.f32 %v1002, %v1011
    %v1014 = vmul.f32 %v1004, %v1012
    %v1015 = vpack.c.bf16 %v1014, %v1013
    %v1017 = vunpack.c.l.b16 %v1015
    %v1018 = vunpack.c.h.b16 %v1015
    %v1019 = vpack.c.b16 %v1017, %v1017
    %v1020 = vpack.c.b16 %v1018, %v1018
    %1023 = vst [vmem:[#allocation4] sm:$0xf] %v1019
    %1024 = vst [vmem:[#allocation4 + $0x4] sm:$0xf] %v1020
    %s1025 = smul.u32 2, 4
    %s1026 = smul.addr %s1025, 8
    %s1027 = scalar_lea.vmem [#allocation2], %s1026
    %v1028 = vld [vmem:[%s1027] sm:$0xff]
    %v1029 = vld [vmem:[%s1027 + $0x8] sm:$0xff]
    %v1030 = vld [vmem:[%s1027 + $0x10] sm:$0xff]
    %v1031 = vld [vmem:[%s1027 + $0x18] sm:$0xff]
    %v1032 = vld [vmem:[%s1027 + $0x20] sm:$0xff]
    %v1033 = vld [vmem:[%s1027 + $0x28] sm:$0xff]
    %v1034 = vld [vmem:[%s1027 + $0x30] sm:$0xff]
    %v1035 = vld [vmem:[%s1027 + $0x38] sm:$0xff]
    %v1036 = vld [vmem:[#allocation8] sm:$0xff]
    %v1037 = vld [vmem:[#allocation8 + $0x8] sm:$0xff]
    %v1038 = vld [vmem:[#allocation8 + $0x10] sm:$0xff]
    %v1039 = vld [vmem:[#allocation8 + $0x18] sm:$0xff]
    %v1040 = vld [vmem:[#allocation8 + $0x20] sm:$0xff]
    %v1041 = vld [vmem:[#allocation8 + $0x28] sm:$0xff]
    %v1042 = vld [vmem:[#allocation8 + $0x30] sm:$0xff]
    %v1043 = vld [vmem:[#allocation8 + $0x38] sm:$0xff]
    %v1044 = vld [vmem:[#allocation8 + $0x40] sm:$0xff]
    %v1045 = vld [vmem:[#allocation8 + $0x48] sm:$0xff]
    %v1046 = vld [vmem:[#allocation8 + $0x50] sm:$0xff]
    %v1047 = vld [vmem:[#allocation8 + $0x58] sm:$0xff]
    %v1048 = vld [vmem:[#allocation8 + $0x60] sm:$0xff]
    %v1049 = vld [vmem:[#allocation8 + $0x68] sm:$0xff]
    %v1050 = vld [vmem:[#allocation8 + $0x70] sm:$0xff]
    %v1051 = vld [vmem:[#allocation8 + $0x78] sm:$0xff]
    %v1052 = vld [vmem:[#allocation8 + $0x80] sm:$0xff]
    %v1053 = vld [vmem:[#allocation8 + $0x88] sm:$0xff]
    %v1054 = vld [vmem:[#allocation8 + $0x90] sm:$0xff]
    %v1055 = vld [vmem:[#allocation8 + $0x98] sm:$0xff]
    %v1056 = vld [vmem:[#allocation8 + $0xa0] sm:$0xff]
    %v1057 = vld [vmem:[#allocation8 + $0xa8] sm:$0xff]
    %v1058 = vld [vmem:[#allocation8 + $0xb0] sm:$0xff]
    %v1059 = vld [vmem:[#allocation8 + $0xb8] sm:$0xff]
    %v1060 = vld [vmem:[#allocation8 + $0xc0] sm:$0xff]
    %v1061 = vld [vmem:[#allocation8 + $0xc8] sm:$0xff]
    %v1062 = vld [vmem:[#allocation8 + $0xd0] sm:$0xff]
    %v1063 = vld [vmem:[#allocation8 + $0xd8] sm:$0xff]
    %v1064 = vld [vmem:[#allocation8 + $0xe0] sm:$0xff]
    %v1065 = vld [vmem:[#allocation8 + $0xe8] sm:$0xff]
    %v1066 = vld [vmem:[#allocation8 + $0xf0] sm:$0xff]
    %v1067 = vld [vmem:[#allocation8 + $0xf8] sm:$0xff]
    %v1100 = vunpack.c.l.b16 %v1036
    %v1101 = vunpack.c.h.b16 %v1036
    %v1102 = vunpack.c.l.b16 %v1037
    %v1103 = vunpack.c.h.b16 %v1037
    %v1104 = vunpack.c.l.b16 %v1038
    %v1105 = vunpack.c.h.b16 %v1038
    %v1106 = vunpack.c.l.b16 %v1039
    %v1107 = vunpack.c.h.b16 %v1039
    %v1108 = vunpack.c.l.b16 %v1040
    %v1109 = vunpack.c.h.b16 %v1040
    %v1110 = vunpack.c.l.b16 %v1041
    %v1111 = vunpack.c.h.b16 %v1041
    %v1112 = vunpack.c.l.b16 %v1042
    %v1113 = vunpack.c.h.b16 %v1042
    %v1114 = vunpack.c.l.b16 %v1043
    %v1115 = vunpack.c.h.b16 %v1043
    %v1116 = vunpack.c.l.b16 %v1044
    %v1117 = vunpack.c.h.b16 %v1044
    %v1118 = vunpack.c.l.b16 %v1045
    %v1119 = vunpack.c.h.b16 %v1045
    %v1120 = vunpack.c.l.b16 %v1046
    %v1121 = vunpack.c.h.b16 %v1046
    %v1122 = vunpack.c.l.b16 %v1047
    %v1123 = vunpack.c.h.b16 %v1047
    %v1124 = vunpack.c.l.b16 %v1048
    %v1125 = vunpack.c.h.b16 %v1048
    %v1126 = vunpack.c.l.b16 %v1049
    %v1127 = vunpack.c.h.b16 %v1049
    %v1128 = vunpack.c.l.b16 %v1050
    %v1129 = vunpack.c.h.b16 %v1050
    %v1130 = vunpack.c.l.b16 %v1051
    %v1131 = vunpack.c.h.b16 %v1051
    %v1132 = vunpack.c.l.b16 %v1052
    %v1133 = vunpack.c.h.b16 %v1052
    %v1134 = vunpack.c.l.b16 %v1053
    %v1135 = vunpack.c.h.b16 %v1053
    %v1136 = vunpack.c.l.b16 %v1054
    %v1137 = vunpack.c.h.b16 %v1054
    %v1138 = vunpack.c.l.b16 %v1055
    %v1139 = vunpack.c.h.b16 %v1055
    %v1140 = vunpack.c.l.b16 %v1056
    %v1141 = vunpack.c.h.b16 %v1056
    %v1142 = vunpack.c.l.b16 %v1057
    %v1143 = vunpack.c.h.b16 %v1057
    %v1144 = vunpack.c.l.b16 %v1058
    %v1145 = vunpack.c.h.b16 %v1058
    %v1146 = vunpack.c.l.b16 %v1059
    %v1147 = vunpack.c.h.b16 %v1059
    %v1148 = vunpack.c.l.b16 %v1060
    %v1149 = vunpack.c.h.b16 %v1060
    %v1150 = vunpack.c.l.b16 %v1061
    %v1151 = vunpack.c.h.b16 %v1061
    %v1152 = vunpack.c.l.b16 %v1062
    %v1153 = vunpack.c.h.b16 %v1062
    %v1154 = vunpack.c.l.b16 %v1063
    %v1155 = vunpack.c.h.b16 %v1063
    %v1156 = vunpack.c.l.b16 %v1064
    %v1157 = vunpack.c.h.b16 %v1064
    %v1158 = vunpack.c.l.b16 %v1065
    %v1159 = vunpack.c.h.b16 %v1065
    %v1160 = vunpack.c.l.b16 %v1066
    %v1161 = vunpack.c.h.b16 %v1066
    %v1162 = vunpack.c.l.b16 %v1067
    %v1163 = vunpack.c.h.b16 %v1067
    %v1164 = vpack.c.b16 %v1104, %v1100
    %v1165 = vpack.c.b16 %v1105, %v1101
    %v1166 = vpack.c.b16 %v1106, %v1102
    %v1167 = vpack.c.b16 %v1107, %v1103
    %v1168 = vpack.c.b16 %v1112, %v1108
    %v1169 = vpack.c.b16 %v1113, %v1109
    %v1170 = vpack.c.b16 %v1114, %v1110
    %v1171 = vpack.c.b16 %v1115, %v1111
    %v1172 = vpack.c.b16 %v1120, %v1116
    %v1173 = vpack.c.b16 %v1121, %v1117
    %v1174 = vpack.c.b16 %v1122, %v1118
    %v1175 = vpack.c.b16 %v1123, %v1119
    %v1176 = vpack.c.b16 %v1128, %v1124
    %v1177 = vpack.c.b16 %v1129, %v1125
    %v1178 = vpack.c.b16 %v1130, %v1126
    %v1179 = vpack.c.b16 %v1131, %v1127
    %v1180 = vpack.c.b16 %v1136, %v1132
    %v1181 = vpack.c.b16 %v1137, %v1133
    %v1182 = vpack.c.b16 %v1138, %v1134
    %v1183 = vpack.c.b16 %v1139, %v1135
    %v1184 = vpack.c.b16 %v1144, %v1140
    %v1185 = vpack.c.b16 %v1145, %v1141
    %v1186 = vpack.c.b16 %v1146, %v1142
    %v1187 = vpack.c.b16 %v1147, %v1143
    %v1188 = vpack.c.b16 %v1152, %v1148
    %v1189 = vpack.c.b16 %v1153, %v1149
    %v1190 = vpack.c.b16 %v1154, %v1150
    %v1191 = vpack.c.b16 %v1155, %v1151
    %v1192 = vpack.c.b16 %v1160, %v1156
    %v1193 = vpack.c.b16 %v1161, %v1157
    %v1194 = vpack.c.b16 %v1162, %v1158
    %v1195 = vpack.c.b16 %v1163, %v1159
    %1228 = vmatprep.subr.bf16.mxu0 %v1193
    %1229 = vmatpush1.bf16.msra.mxu0 %v1192
    %1230 = vmatprep.subr.bf16.mxu0 %v1189
    %1231 = vmatpush1.bf16.msra.mxu0 %v1188
    %1232 = vmatprep.subr.bf16.mxu0 %v1185
    %1233 = vmatpush1.bf16.msra.mxu0 %v1184
    %1234 = vmatprep.subr.bf16.mxu0 %v1181
    %1235 = vmatpush1.bf16.msra.mxu0 %v1180
    %1236 = vmatprep.subr.bf16.mxu0 %v1177
    %1237 = vmatpush1.bf16.msra.mxu0 %v1176
    %1238 = vmatprep.subr.bf16.mxu0 %v1173
    %1239 = vmatpush1.bf16.msra.mxu0 %v1172
    %1240 = vmatprep.subr.bf16.mxu0 %v1169
    %1241 = vmatpush1.bf16.msra.mxu0 %v1168
    %1242 = vmatprep.subr.bf16.mxu0 %v1165
    %1243 = vmatpush1.bf16.msra.mxu0 %v1164
    %1244 = vmatprep.subr.bf16.mxu0 0
    %1245 = vmatpush2.bf16.msra.mxu0 0
    %1246 = vmatprep.subr.bf16.mxu0 0
    %1247 = vmatpush2.bf16.msra.mxu0 0
    %1248 = vmatprep.subr.bf16.mxu0 0
    %1249 = vmatpush2.bf16.msra.mxu0 0
    %1250 = vmatprep.subr.bf16.mxu0 0
    %1251 = vmatpush2.bf16.msra.mxu0 0
    %1252 = vmatprep.subr.bf16.mxu0 0
    %1253 = vmatpush2.bf16.msra.mxu0 0
    %1254 = vmatprep.subr.bf16.mxu0 0
    %1255 = vmatpush2.bf16.msra.mxu0 0
    %1256 = vmatprep.subr.bf16.mxu0 0
    %1257 = vmatpush2.bf16.msra.mxu0 0
    %1258 = vmatprep.subr.bf16.mxu0 0
    %1259 = vmatpush2.bf16.msra.mxu0 0
    %1260 = vmatprep.mubr.bf16.mxu0 0
    %1261 = vmatmul.mubr.bf16.gmra.mxu0 %v1015
    %v1262 = vpop.f32.mrf.mxu0
    %v1263 = vadd.f32 0.0, %v1262
    %v1264 = vpop.f32.mrf.mxu0
    %v1265 = vadd.f32 0.0, %v1264
    %v1266 = vpop.f32.mrf.mxu0
    %v1267 = vadd.f32 0.0, %v1266
    %v1268 = vpop.f32.mrf.mxu0
    %v1269 = vadd.f32 0.0, %v1268
    %1270 = vdwg.mxu0
    %1271 = vmatprep.subr.bf16.mxu0 %v1195
    %1272 = vmatpush1.bf16.msra.mxu0 %v1194
    %1273 = vmatprep.subr.bf16.mxu0 %v1191
    %1274 = vmatpush1.bf16.msra.mxu0 %v1190
    %1275 = vmatprep.subr.bf16.mxu0 %v1187
    %1276 = vmatpush1.bf16.msra.mxu0 %v1186
    %1277 = vmatprep.subr.bf16.mxu0 %v1183
    %1278 = vmatpush1.bf16.msra.mxu0 %v1182
    %1279 = vmatprep.subr.bf16.mxu0 %v1179
    %1280 = vmatpush1.bf16.msra.mxu0 %v1178
    %1281 = vmatprep.subr.bf16.mxu0 %v1175
    %1282 = vmatpush1.bf16.msra.mxu0 %v1174
    %1283 = vmatprep.subr.bf16.mxu0 %v1171
    %1284 = vmatpush1.bf16.msra.mxu0 %v1170
    %1285 = vmatprep.subr.bf16.mxu0 %v1167
    %1286 = vmatpush1.bf16.msra.mxu0 %v1166
    %1287 = vmatprep.subr.bf16.mxu0 0
    %1288 = vmatpush2.bf16.msra.mxu0 0
    %1289 = vmatprep.subr.bf16.mxu0 0
    %1290 = vmatpush2.bf16.msra.mxu0 0
    %1291 = vmatprep.subr.bf16.mxu0 0
    %1292 = vmatpush2.bf16.msra.mxu0 0
    %1293 = vmatprep.subr.bf16.mxu0 0
    %1294 = vmatpush2.bf16.msra.mxu0 0
    %1295 = vmatprep.subr.bf16.mxu0 0
    %1296 = vmatpush2.bf16.msra.mxu0 0
    %1297 = vmatprep.subr.bf16.mxu0 0
    %1298 = vmatpush2.bf16.msra.mxu0 0
    %1299 = vmatprep.subr.bf16.mxu0 0
    %1300 = vmatpush2.bf16.msra.mxu0 0
    %1301 = vmatprep.subr.bf16.mxu0 0
    %1302 = vmatpush2.bf16.msra.mxu0 0
    %1303 = vmatprep.mubr.bf16.mxu0 0
    %1304 = vmatmul.mubr.bf16.gmra.mxu0 %v1015
    %v1305 = vpop.f32.mrf.mxu0
    %v1306 = vadd.f32 0.0, %v1305
    %v1307 = vpop.f32.mrf.mxu0
    %v1308 = vadd.f32 0.0, %v1307
    %v1309 = vpop.f32.mrf.mxu0
    %v1310 = vadd.f32 0.0, %v1309
    %v1311 = vpop.f32.mrf.mxu0
    %v1312 = vadd.f32 0.0, %v1311
    %1313 = vdwg.mxu0
    %v1314 = vadd.f32 %v1028, %v1263
    %v1315 = vadd.f32 %v1029, %v1265
    %v1316 = vadd.f32 %v1030, %v1306
    %v1317 = vadd.f32 %v1031, %v1308
    %v1318 = vadd.f32 %v1032, %v1267
    %v1319 = vadd.f32 %v1033, %v1269
    %v1320 = vadd.f32 %v1034, %v1310
    %v1321 = vadd.f32 %v1035, %v1312
    %v1322 = vxor.u32 %v1314, 2147483648
    %v1323 = vxor.u32 %v1318, 2147483648
    %v1324 = vmul.f32 %v1322, 1.442695
    %v1325 = vpow.pop %v1324
    %v1326 = vmul.f32 %v1323, 1.442695
    %v1327 = vpow.pop %v1326
    %v1328 = vadd.f32 %v1325, 1.0
    %v1329 = vadd.f32 %v1327, 1.0
    %v1330 = vrcp.pop %v1328
    %v1331 = vmul.f32 1.0, %v1330
    %v1332 = vrcp.pop %v1329
    %v1333 = vmul.f32 1.0, %v1332
    %v1334 = vxor.u32 %v1315, 2147483648
    %v1335 = vxor.u32 %v1319, 2147483648
    %v1336 = vmul.f32 %v1334, 1.442695
    %v1337 = vpow.pop %v1336
    %v1338 = vmul.f32 %v1335, 1.442695
    %v1339 = vpow.pop %v1338
    %v1340 = vadd.f32 %v1337, 1.0
    %v1341 = vadd.f32 %v1339, 1.0
    %v1342 = vrcp.pop %v1340
    %v1343 = vmul.f32 1.0, %v1342
    %v1344 = vrcp.pop %v1341
    %v1345 = vmul.f32 1.0, %v1344
    %v1346 = vtanh.pop %v1316
    %v1347 = vtanh.pop %v1320
    %v1348 = vxor.u32 %v1317, 2147483648
    %v1349 = vxor.u32 %v1321, 2147483648
    %v1350 = vmul.f32 %v1348, 1.442695
    %v1351 = vpow.pop %v1350
    %v1352 = vmul.f32 %v1349, 1.442695
    %v1353 = vpow.pop %v1352
    %v1354 = vadd.f32 %v1351, 1.0
    %v1355 = vadd.f32 %v1353, 1.0
    %v1356 = vrcp.pop %v1354
    %v1357 = vmul.f32 1.0, %v1356
    %v1358 = vrcp.pop %v1355
    %v1359 = vmul.f32 1.0, %v1358
    %v1360 = vmul.f32 %v1343, %v1009
    %v1361 = vmul.f32 %v1345, %v1010
    %v1362 = vmul.f32 %v1331, %v1346
    %v1363 = vmul.f32 %v1333, %v1347
    %v1364 = vadd.f32 %v1360, %v1362
    %v1365 = vadd.f32 %v1361, %v1363
    %v1366 = vtanh.pop %v1364
    %v1367 = vtanh.pop %v1365
    %v1368 = vmul.f32 %v1357, %v1366
    %v1369 = vmul.f32 %v1359, %v1367
    %v1370 = vpack.c.bf16 %v1369, %v1368
    %v1372 = vunpack.c.l.b16 %v1370
    %v1373 = vunpack.c.h.b16 %v1370
    %v1374 = vpack.c.b16 %v1372, %v1372
    %v1375 = vpack.c.b16 %v1373, %v1373
    %s1378 = scalar_lea.vmem [#allocation4], 8
    %1379 = vst [vmem:[%s1378] sm:$0xf] %v1374
    %1380 = vst [vmem:[%s1378 + $0x4] sm:$0xf] %v1375
    %s1381 = smul.u32 4, 4
    %s1382 = smul.addr %s1381, 8
    %s1383 = scalar_lea.vmem [#allocation2], %s1382
    %v1384 = vld [vmem:[%s1383] sm:$0xff]
    %v1385 = vld [vmem:[%s1383 + $0x8] sm:$0xff]
    %v1386 = vld [vmem:[%s1383 + $0x10] sm:$0xff]
    %v1387 = vld [vmem:[%s1383 + $0x18] sm:$0xff]
    %v1388 = vld [vmem:[%s1383 + $0x20] sm:$0xff]
    %v1389 = vld [vmem:[%s1383 + $0x28] sm:$0xff]
    %v1390 = vld [vmem:[%s1383 + $0x30] sm:$0xff]
    %v1391 = vld [vmem:[%s1383 + $0x38] sm:$0xff]
    %v1392 = vld [vmem:[#allocation8] sm:$0xff]
    %v1393 = vld [vmem:[#allocation8 + $0x8] sm:$0xff]
    %v1394 = vld [vmem:[#allocation8 + $0x10] sm:$0xff]
    %v1395 = vld [vmem:[#allocation8 + $0x18] sm:$0xff]
    %v1396 = vld [vmem:[#allocation8 + $0x20] sm:$0xff]
    %v1397 = vld [vmem:[#allocation8 + $0x28] sm:$0xff]
    %v1398 = vld [vmem:[#allocation8 + $0x30] sm:$0xff]
    %v1399 = vld [vmem:[#allocation8 + $0x38] sm:$0xff]
    %v1400 = vld [vmem:[#allocation8 + $0x40] sm:$0xff]
    %v1401 = vld [vmem:[#allocation8 + $0x48] sm:$0xff]
    %v1402 = vld [vmem:[#allocation8 + $0x50] sm:$0xff]
    %v1403 = vld [vmem:[#allocation8 + $0x58] sm:$0xff]
    %v1404 = vld [vmem:[#allocation8 + $0x60] sm:$0xff]
    %v1405 = vld [vmem:[#allocation8 + $0x68] sm:$0xff]
    %v1406 = vld [vmem:[#allocation8 + $0x70] sm:$0xff]
    %v1407 = vld [vmem:[#allocation8 + $0x78] sm:$0xff]
    %v1408 = vld [vmem:[#allocation8 + $0x80] sm:$0xff]
    %v1409 = vld [vmem:[#allocation8 + $0x88] sm:$0xff]
    %v1410 = vld [vmem:[#allocation8 + $0x90] sm:$0xff]
    %v1411 = vld [vmem:[#allocation8 + $0x98] sm:$0xff]
    %v1412 = vld [vmem:[#allocation8 + $0xa0] sm:$0xff]
    %v1413 = vld [vmem:[#allocation8 + $0xa8] sm:$0xff]
    %v1414 = vld [vmem:[#allocation8 + $0xb0] sm:$0xff]
    %v1415 = vld [vmem:[#allocation8 + $0xb8] sm:$0xff]
    %v1416 = vld [vmem:[#allocation8 + $0xc0] sm:$0xff]
    %v1417 = vld [vmem:[#allocation8 + $0xc8] sm:$0xff]
    %v1418 = vld [vmem:[#allocation8 + $0xd0] sm:$0xff]
    %v1419 = vld [vmem:[#allocation8 + $0xd8] sm:$0xff]
    %v1420 = vld [vmem:[#allocation8 + $0xe0] sm:$0xff]
    %v1421 = vld [vmem:[#allocation8 + $0xe8] sm:$0xff]
    %v1422 = vld [vmem:[#allocation8 + $0xf0] sm:$0xff]
    %v1423 = vld [vmem:[#allocation8 + $0xf8] sm:$0xff]
    %v1456 = vunpack.c.l.b16 %v1392
    %v1457 = vunpack.c.h.b16 %v1392
    %v1458 = vunpack.c.l.b16 %v1393
    %v1459 = vunpack.c.h.b16 %v1393
    %v1460 = vunpack.c.l.b16 %v1394
    %v1461 = vunpack.c.h.b16 %v1394
    %v1462 = vunpack.c.l.b16 %v1395
    %v1463 = vunpack.c.h.b16 %v1395
    %v1464 = vunpack.c.l.b16 %v1396
    %v1465 = vunpack.c.h.b16 %v1396
    %v1466 = vunpack.c.l.b16 %v1397
    %v1467 = vunpack.c.h.b16 %v1397
    %v1468 = vunpack.c.l.b16 %v1398
    %v1469 = vunpack.c.h.b16 %v1398
    %v1470 = vunpack.c.l.b16 %v1399
    %v1471 = vunpack.c.h.b16 %v1399
    %v1472 = vunpack.c.l.b16 %v1400
    %v1473 = vunpack.c.h.b16 %v1400
    %v1474 = vunpack.c.l.b16 %v1401
    %v1475 = vunpack.c.h.b16 %v1401
    %v1476 = vunpack.c.l.b16 %v1402
    %v1477 = vunpack.c.h.b16 %v1402
    %v1478 = vunpack.c.l.b16 %v1403
    %v1479 = vunpack.c.h.b16 %v1403
    %v1480 = vunpack.c.l.b16 %v1404
    %v1481 = vunpack.c.h.b16 %v1404
    %v1482 = vunpack.c.l.b16 %v1405
    %v1483 = vunpack.c.h.b16 %v1405
    %v1484 = vunpack.c.l.b16 %v1406
    %v1485 = vunpack.c.h.b16 %v1406
    %v1486 = vunpack.c.l.b16 %v1407
    %v1487 = vunpack.c.h.b16 %v1407
    %v1488 = vunpack.c.l.b16 %v1408
    %v1489 = vunpack.c.h.b16 %v1408
    %v1490 = vunpack.c.l.b16 %v1409
    %v1491 = vunpack.c.h.b16 %v1409
    %v1492 = vunpack.c.l.b16 %v1410
    %v1493 = vunpack.c.h.b16 %v1410
    %v1494 = vunpack.c.l.b16 %v1411
    %v1495 = vunpack.c.h.b16 %v1411
    %v1496 = vunpack.c.l.b16 %v1412
    %v1497 = vunpack.c.h.b16 %v1412
    %v1498 = vunpack.c.l.b16 %v1413
    %v1499 = vunpack.c.h.b16 %v1413
    %v1500 = vunpack.c.l.b16 %v1414
    %v1501 = vunpack.c.h.b16 %v1414
    %v1502 = vunpack.c.l.b16 %v1415
    %v1503 = vunpack.c.h.b16 %v1415
    %v1504 = vunpack.c.l.b16 %v1416
    %v1505 = vunpack.c.h.b16 %v1416
    %v1506 = vunpack.c.l.b16 %v1417
    %v1507 = vunpack.c.h.b16 %v1417
    %v1508 = vunpack.c.l.b16 %v1418
    %v1509 = vunpack.c.h.b16 %v1418
    %v1510 = vunpack.c.l.b16 %v1419
    %v1511 = vunpack.c.h.b16 %v1419
    %v1512 = vunpack.c.l.b16 %v1420
    %v1513 = vunpack.c.h.b16 %v1420
    %v1514 = vunpack.c.l.b16 %v1421
    %v1515 = vunpack.c.h.b16 %v1421
    %v1516 = vunpack.c.l.b16 %v1422
    %v1517 = vunpack.c.h.b16 %v1422
    %v1518 = vunpack.c.l.b16 %v1423
    %v1519 = vunpack.c.h.b16 %v1423
    %v1520 = vpack.c.b16 %v1460, %v1456
    %v1521 = vpack.c.b16 %v1461, %v1457
    %v1522 = vpack.c.b16 %v1462, %v1458
    %v1523 = vpack.c.b16 %v1463, %v1459
    %v1524 = vpack.c.b16 %v1468, %v1464
    %v1525 = vpack.c.b16 %v1469, %v1465
    %v1526 = vpack.c.b16 %v1470, %v1466
    %v1527 = vpack.c.b16 %v1471, %v1467
    %v1528 = vpack.c.b16 %v1476, %v1472
    %v1529 = vpack.c.b16 %v1477, %v1473
    %v1530 = vpack.c.b16 %v1478, %v1474
    %v1531 = vpack.c.b16 %v1479, %v1475
    %v1532 = vpack.c.b16 %v1484, %v1480
    %v1533 = vpack.c.b16 %v1485, %v1481
    %v1534 = vpack.c.b16 %v1486, %v1482
    %v1535 = vpack.c.b16 %v1487, %v1483
    %v1536 = vpack.c.b16 %v1492, %v1488
    %v1537 = vpack.c.b16 %v1493, %v1489
    %v1538 = vpack.c.b16 %v1494, %v1490
    %v1539 = vpack.c.b16 %v1495, %v1491
    %v1540 = vpack.c.b16 %v1500, %v1496
    %v1541 = vpack.c.b16 %v1501, %v1497
    %v1542 = vpack.c.b16 %v1502, %v1498
    %v1543 = vpack.c.b16 %v1503, %v1499
    %v1544 = vpack.c.b16 %v1508, %v1504
    %v1545 = vpack.c.b16 %v1509, %v1505
    %v1546 = vpack.c.b16 %v1510, %v1506
    %v1547 = vpack.c.b16 %v1511, %v1507
    %v1548 = vpack.c.b16 %v1516, %v1512
    %v1549 = vpack.c.b16 %v1517, %v1513
    %v1550 = vpack.c.b16 %v1518, %v1514
    %v1551 = vpack.c.b16 %v1519, %v1515
    %1584 = vmatprep.subr.bf16.mxu0 %v1549
    %1585 = vmatpush1.bf16.msra.mxu0 %v1548
    %1586 = vmatprep.subr.bf16.mxu0 %v1545
    %1587 = vmatpush1.bf16.msra.mxu0 %v1544
    %1588 = vmatprep.subr.bf16.mxu0 %v1541
    %1589 = vmatpush1.bf16.msra.mxu0 %v1540
    %1590 = vmatprep.subr.bf16.mxu0 %v1537
    %1591 = vmatpush1.bf16.msra.mxu0 %v1536
    %1592 = vmatprep.subr.bf16.mxu0 %v1533
    %1593 = vmatpush1.bf16.msra.mxu0 %v1532
    %1594 = vmatprep.subr.bf16.mxu0 %v1529
    %1595 = vmatpush1.bf16.msra.mxu0 %v1528
    %1596 = vmatprep.subr.bf16.mxu0 %v1525
    %1597 = vmatpush1.bf16.msra.mxu0 %v1524
    %1598 = vmatprep.subr.bf16.mxu0 %v1521
    %1599 = vmatpush1.bf16.msra.mxu0 %v1520
    %1600 = vmatprep.subr.bf16.mxu0 0
    %1601 = vmatpush2.bf16.msra.mxu0 0
    %1602 = vmatprep.subr.bf16.mxu0 0
    %1603 = vmatpush2.bf16.msra.mxu0 0
    %1604 = vmatprep.subr.bf16.mxu0 0
    %1605 = vmatpush2.bf16.msra.mxu0 0
    %1606 = vmatprep.subr.bf16.mxu0 0
    %1607 = vmatpush2.bf16.msra.mxu0 0
    %1608 = vmatprep.subr.bf16.mxu0 0
    %1609 = vmatpush2.bf16.msra.mxu0 0
    %1610 = vmatprep.subr.bf16.mxu0 0
    %1611 = vmatpush2.bf16.msra.mxu0 0
    %1612 = vmatprep.subr.bf16.mxu0 0
    %1613 = vmatpush2.bf16.msra.mxu0 0
    %1614 = vmatprep.subr.bf16.mxu0 0
    %1615 = vmatpush2.bf16.msra.mxu0 0
    %1616 = vmatprep.mubr.bf16.mxu0 0
    %1617 = vmatmul.mubr.bf16.gmra.mxu0 %v1370
    %v1618 = vpop.f32.mrf.mxu0
    %v1619 = vadd.f32 0.0, %v1618
    %v1620 = vpop.f32.mrf.mxu0
    %v1621 = vadd.f32 0.0, %v1620
    %v1622 = vpop.f32.mrf.mxu0
    %v1623 = vadd.f32 0.0, %v1622
    %v1624 = vpop.f32.mrf.mxu0
    %v1625 = vadd.f32 0.0, %v1624
    %1626 = vdwg.mxu0
    %1627 = vmatprep.subr.bf16.mxu0 %v1551
    %1628 = vmatpush1.bf16.msra.mxu0 %v1550
    %1629 = vmatprep.subr.bf16.mxu0 %v1547
    %1630 = vmatpush1.bf16.msra.mxu0 %v1546
    %1631 = vmatprep.subr.bf16.mxu0 %v1543
    %1632 = vmatpush1.bf16.msra.mxu0 %v1542
    %1633 = vmatprep.subr.bf16.mxu0 %v1539
    %1634 = vmatpush1.bf16.msra.mxu0 %v1538
    %1635 = vmatprep.subr.bf16.mxu0 %v1535
    %1636 = vmatpush1.bf16.msra.mxu0 %v1534
    %1637 = vmatprep.subr.bf16.mxu0 %v1531
    %1638 = vmatpush1.bf16.msra.mxu0 %v1530
    %1639 = vmatprep.subr.bf16.mxu0 %v1527
    %1640 = vmatpush1.bf16.msra.mxu0 %v1526
    %1641 = vmatprep.subr.bf16.mxu0 %v1523
    %1642 = vmatpush1.bf16.msra.mxu0 %v1522
    %1643 = vmatprep.subr.bf16.mxu0 0
    %1644 = vmatpush2.bf16.msra.mxu0 0
    %1645 = vmatprep.subr.bf16.mxu0 0
    %1646 = vmatpush2.bf16.msra.mxu0 0
    %1647 = vmatprep.subr.bf16.mxu0 0
    %1648 = vmatpush2.bf16.msra.mxu0 0
    %1649 = vmatprep.subr.bf16.mxu0 0
    %1650 = vmatpush2.bf16.msra.mxu0 0
    %1651 = vmatprep.subr.bf16.mxu0 0
    %1652 = vmatpush2.bf16.msra.mxu0 0
    %1653 = vmatprep.subr.bf16.mxu0 0
    %1654 = vmatpush2.bf16.msra.mxu0 0
    %1655 = vmatprep.subr.bf16.mxu0 0
    %1656 = vmatpush2.bf16.msra.mxu0 0
    %1657 = vmatprep.subr.bf16.mxu0 0
    %1658 = vmatpush2.bf16.msra.mxu0 0
    %1659 = vmatprep.mubr.bf16.mxu0 0
    %1660 = vmatmul.mubr.bf16.gmra.mxu0 %v1370
    %v1661 = vpop.f32.mrf.mxu0
    %v1662 = vadd.f32 0.0, %v1661
    %v1663 = vpop.f32.mrf.mxu0
    %v1664 = vadd.f32 0.0, %v1663
    %v1665 = vpop.f32.mrf.mxu0
    %v1666 = vadd.f32 0.0, %v1665
    %v1667 = vpop.f32.mrf.mxu0
    %v1668 = vadd.f32 0.0, %v1667
    %1669 = vdwg.mxu0
    %v1670 = vadd.f32 %v1384, %v1619
    %v1671 = vadd.f32 %v1385, %v1621
    %v1672 = vadd.f32 %v1386, %v1662
    %v1673 = vadd.f32 %v1387, %v1664
    %v1674 = vadd.f32 %v1388, %v1623
    %v1675 = vadd.f32 %v1389, %v1625
    %v1676 = vadd.f32 %v1390, %v1666
    %v1677 = vadd.f32 %v1391, %v1668
    %v1678 = vxor.u32 %v1670, 2147483648
    %v1679 = vxor.u32 %v1674, 2147483648
    %v1680 = vmul.f32 %v1678, 1.442695
    %v1681 = vpow.pop %v1680
    %v1682 = vmul.f32 %v1679, 1.442695
    %v1683 = vpow.pop %v1682
    %v1684 = vadd.f32 %v1681, 1.0
    %v1685 = vadd.f32 %v1683, 1.0
    %v1686 = vrcp.pop %v1684
    %v1687 = vmul.f32 1.0, %v1686
    %v1688 = vrcp.pop %v1685
    %v1689 = vmul.f32 1.0, %v1688
    %v1690 = vxor.u32 %v1671, 2147483648
    %v1691 = vxor.u32 %v1675, 2147483648
    %v1692 = vmul.f32 %v1690, 1.442695
    %v1693 = vpow.pop %v1692
    %v1694 = vmul.f32 %v1691, 1.442695
    %v1695 = vpow.pop %v1694
    %v1696 = vadd.f32 %v1693, 1.0
    %v1697 = vadd.f32 %v1695, 1.0
    %v1698 = vrcp.pop %v1696
    %v1699 = vmul.f32 1.0, %v1698
    %v1700 = vrcp.pop %v1697
    %v1701 = vmul.f32 1.0, %v1700
    %v1702 = vtanh.pop %v1672
    %v1703 = vtanh.pop %v1676
    %v1704 = vxor.u32 %v1673, 2147483648
    %v1705 = vxor.u32 %v1677, 2147483648
    %v1706 = vmul.f32 %v1704, 1.442695
    %v1707 = vpow.pop %v1706
    %v1708 = vmul.f32 %v1705, 1.442695
    %v1709 = vpow.pop %v1708
    %v1710 = vadd.f32 %v1707, 1.0
    %v1711 = vadd.f32 %v1709, 1.0
    %v1712 = vrcp.pop %v1710
    %v1713 = vmul.f32 1.0, %v1712
    %v1714 = vrcp.pop %v1711
    %v1715 = vmul.f32 1.0, %v1714
    %v1716 = vmul.f32 %v1699, %v1364
    %v1717 = vmul.f32 %v1701, %v1365
    %v1718 = vmul.f32 %v1687, %v1702
    %v1719 = vmul.f32 %v1689, %v1703
    %v1720 = vadd.f32 %v1716, %v1718
    %v1721 = vadd.f32 %v1717, %v1719
    %v1722 = vtanh.pop %v1720
    %v1723 = vtanh.pop %v1721
    %v1724 = vmul.f32 %v1713, %v1722
    %v1725 = vmul.f32 %v1715, %v1723
    %v1726 = vpack.c.bf16 %v1725, %v1724
    %v1728 = vunpack.c.l.b16 %v1726
    %v1729 = vunpack.c.h.b16 %v1726
    %v1730 = vpack.c.b16 %v1728, %v1728
    %v1731 = vpack.c.b16 %v1729, %v1729
    %s1734 = scalar_lea.vmem [#allocation4], 16
    %1735 = vst [vmem:[%s1734] sm:$0xf] %v1730
    %1736 = vst [vmem:[%s1734 + $0x4] sm:$0xf] %v1731
    %s1737 = smul.u32 6, 4
    %s1738 = smul.addr %s1737, 8
    %s1739 = scalar_lea.vmem [#allocation2], %s1738
    %v1740 = vld [vmem:[%s1739] sm:$0xff]
    %v1741 = vld [vmem:[%s1739 + $0x8] sm:$0xff]
    %v1742 = vld [vmem:[%s1739 + $0x10] sm:$0xff]
    %v1743 = vld [vmem:[%s1739 + $0x18] sm:$0xff]
    %v1744 = vld [vmem:[%s1739 + $0x20] sm:$0xff]
    %v1745 = vld [vmem:[%s1739 + $0x28] sm:$0xff]
    %v1746 = vld [vmem:[%s1739 + $0x30] sm:$0xff]
    %v1747 = vld [vmem:[%s1739 + $0x38] sm:$0xff]
    %v1748 = vld [vmem:[#allocation8] sm:$0xff]
    %v1749 = vld [vmem:[#allocation8 + $0x8] sm:$0xff]
    %v1750 = vld [vmem:[#allocation8 + $0x10] sm:$0xff]
    %v1751 = vld [vmem:[#allocation8 + $0x18] sm:$0xff]
    %v1752 = vld [vmem:[#allocation8 + $0x20] sm:$0xff]
    %v1753 = vld [vmem:[#allocation8 + $0x28] sm:$0xff]
    %v1754 = vld [vmem:[#allocation8 + $0x30] sm:$0xff]
    %v1755 = vld [vmem:[#allocation8 + $0x38] sm:$0xff]
    %v1756 = vld [vmem:[#allocation8 + $0x40] sm:$0xff]
    %v1757 = vld [vmem:[#allocation8 + $0x48] sm:$0xff]
    %v1758 = vld [vmem:[#allocation8 + $0x50] sm:$0xff]
    %v1759 = vld [vmem:[#allocation8 + $0x58] sm:$0xff]
    %v1760 = vld [vmem:[#allocation8 + $0x60] sm:$0xff]
    %v1761 = vld [vmem:[#allocation8 + $0x68] sm:$0xff]
    %v1762 = vld [vmem:[#allocation8 + $0x70] sm:$0xff]
    %v1763 = vld [vmem:[#allocation8 + $0x78] sm:$0xff]
    %v1764 = vld [vmem:[#allocation8 + $0x80] sm:$0xff]
    %v1765 = vld [vmem:[#allocation8 + $0x88] sm:$0xff]
    %v1766 = vld [vmem:[#allocation8 + $0x90] sm:$0xff]
    %v1767 = vld [vmem:[#allocation8 + $0x98] sm:$0xff]
    %v1768 = vld [vmem:[#allocation8 + $0xa0] sm:$0xff]
    %v1769 = vld [vmem:[#allocation8 + $0xa8] sm:$0xff]
    %v1770 = vld [vmem:[#allocation8 + $0xb0] sm:$0xff]
    %v1771 = vld [vmem:[#allocation8 + $0xb8] sm:$0xff]
    %v1772 = vld [vmem:[#allocation8 + $0xc0] sm:$0xff]
    %v1773 = vld [vmem:[#allocation8 + $0xc8] sm:$0xff]
    %v1774 = vld [vmem:[#allocation8 + $0xd0] sm:$0xff]
    %v1775 = vld [vmem:[#allocation8 + $0xd8] sm:$0xff]
    %v1776 = vld [vmem:[#allocation8 + $0xe0] sm:$0xff]
    %v1777 = vld [vmem:[#allocation8 + $0xe8] sm:$0xff]
    %v1778 = vld [vmem:[#allocation8 + $0xf0] sm:$0xff]
    %v1779 = vld [vmem:[#allocation8 + $0xf8] sm:$0xff]
    %v1812 = vunpack.c.l.b16 %v1748
    %v1813 = vunpack.c.h.b16 %v1748
    %v1814 = vunpack.c.l.b16 %v1749
    %v1815 = vunpack.c.h.b16 %v1749
    %v1816 = vunpack.c.l.b16 %v1750
    %v1817 = vunpack.c.h.b16 %v1750
    %v1818 = vunpack.c.l.b16 %v1751
    %v1819 = vunpack.c.h.b16 %v1751
    %v1820 = vunpack.c.l.b16 %v1752
    %v1821 = vunpack.c.h.b16 %v1752
    %v1822 = vunpack.c.l.b16 %v1753
    %v1823 = vunpack.c.h.b16 %v1753
    %v1824 = vunpack.c.l.b16 %v1754
    %v1825 = vunpack.c.h.b16 %v1754
    %v1826 = vunpack.c.l.b16 %v1755
    %v1827 = vunpack.c.h.b16 %v1755
    %v1828 = vunpack.c.l.b16 %v1756
    %v1829 = vunpack.c.h.b16 %v1756
    %v1830 = vunpack.c.l.b16 %v1757
    %v1831 = vunpack.c.h.b16 %v1757
    %v1832 = vunpack.c.l.b16 %v1758
    %v1833 = vunpack.c.h.b16 %v1758
    %v1834 = vunpack.c.l.b16 %v1759
    %v1835 = vunpack.c.h.b16 %v1759
    %v1836 = vunpack.c.l.b16 %v1760
    %v1837 = vunpack.c.h.b16 %v1760
    %v1838 = vunpack.c.l.b16 %v1761
    %v1839 = vunpack.c.h.b16 %v1761
    %v1840 = vunpack.c.l.b16 %v1762
    %v1841 = vunpack.c.h.b16 %v1762
    %v1842 = vunpack.c.l.b16 %v1763
    %v1843 = vunpack.c.h.b16 %v1763
    %v1844 = vunpack.c.l.b16 %v1764
    %v1845 = vunpack.c.h.b16 %v1764
    %v1846 = vunpack.c.l.b16 %v1765
    %v1847 = vunpack.c.h.b16 %v1765
    %v1848 = vunpack.c.l.b16 %v1766
    %v1849 = vunpack.c.h.b16 %v1766
    %v1850 = vunpack.c.l.b16 %v1767
    %v1851 = vunpack.c.h.b16 %v1767
    %v1852 = vunpack.c.l.b16 %v1768
    %v1853 = vunpack.c.h.b16 %v1768
    %v1854 = vunpack.c.l.b16 %v1769
    %v1855 = vunpack.c.h.b16 %v1769
    %v1856 = vunpack.c.l.b16 %v1770
    %v1857 = vunpack.c.h.b16 %v1770
    %v1858 = vunpack.c.l.b16 %v1771
    %v1859 = vunpack.c.h.b16 %v1771
    %v1860 = vunpack.c.l.b16 %v1772
    %v1861 = vunpack.c.h.b16 %v1772
    %v1862 = vunpack.c.l.b16 %v1773
    %v1863 = vunpack.c.h.b16 %v1773
    %v1864 = vunpack.c.l.b16 %v1774
    %v1865 = vunpack.c.h.b16 %v1774
    %v1866 = vunpack.c.l.b16 %v1775
    %v1867 = vunpack.c.h.b16 %v1775
    %v1868 = vunpack.c.l.b16 %v1776
    %v1869 = vunpack.c.h.b16 %v1776
    %v1870 = vunpack.c.l.b16 %v1777
    %v1871 = vunpack.c.h.b16 %v1777
    %v1872 = vunpack.c.l.b16 %v1778
    %v1873 = vunpack.c.h.b16 %v1778
    %v1874 = vunpack.c.l.b16 %v1779
    %v1875 = vunpack.c.h.b16 %v1779
    %v1876 = vpack.c.b16 %v1816, %v1812
    %v1877 = vpack.c.b16 %v1817, %v1813
    %v1878 = vpack.c.b16 %v1818, %v1814
    %v1879 = vpack.c.b16 %v1819, %v1815
    %v1880 = vpack.c.b16 %v1824, %v1820
    %v1881 = vpack.c.b16 %v1825, %v1821
    %v1882 = vpack.c.b16 %v1826, %v1822
    %v1883 = vpack.c.b16 %v1827, %v1823
    %v1884 = vpack.c.b16 %v1832, %v1828
    %v1885 = vpack.c.b16 %v1833, %v1829
    %v1886 = vpack.c.b16 %v1834, %v1830
    %v1887 = vpack.c.b16 %v1835, %v1831
    %v1888 = vpack.c.b16 %v1840, %v1836
    %v1889 = vpack.c.b16 %v1841, %v1837
    %v1890 = vpack.c.b16 %v1842, %v1838
    %v1891 = vpack.c.b16 %v1843, %v1839
    %v1892 = vpack.c.b16 %v1848, %v1844
    %v1893 = vpack.c.b16 %v1849, %v1845
    %v1894 = vpack.c.b16 %v1850, %v1846
    %v1895 = vpack.c.b16 %v1851, %v1847
    %v1896 = vpack.c.b16 %v1856, %v1852
    %v1897 = vpack.c.b16 %v1857, %v1853
    %v1898 = vpack.c.b16 %v1858, %v1854
    %v1899 = vpack.c.b16 %v1859, %v1855
    %v1900 = vpack.c.b16 %v1864, %v1860
    %v1901 = vpack.c.b16 %v1865, %v1861
    %v1902 = vpack.c.b16 %v1866, %v1862
    %v1903 = vpack.c.b16 %v1867, %v1863
    %v1904 = vpack.c.b16 %v1872, %v1868
    %v1905 = vpack.c.b16 %v1873, %v1869
    %v1906 = vpack.c.b16 %v1874, %v1870
    %v1907 = vpack.c.b16 %v1875, %v1871
    %1940 = vmatprep.subr.bf16.mxu0 %v1905
    %1941 = vmatpush1.bf16.msra.mxu0 %v1904
    %1942 = vmatprep.subr.bf16.mxu0 %v1901
    %1943 = vmatpush1.bf16.msra.mxu0 %v1900
    %1944 = vmatprep.subr.bf16.mxu0 %v1897
    %1945 = vmatpush1.bf16.msra.mxu0 %v1896
    %1946 = vmatprep.subr.bf16.mxu0 %v1893
    %1947 = vmatpush1.bf16.msra.mxu0 %v1892
    %1948 = vmatprep.subr.bf16.mxu0 %v1889
    %1949 = vmatpush1.bf16.msra.mxu0 %v1888
    %1950 = vmatprep.subr.bf16.mxu0 %v1885
    %1951 = vmatpush1.bf16.msra.mxu0 %v1884
    %1952 = vmatprep.subr.bf16.mxu0 %v1881
    %1953 = vmatpush1.bf16.msra.mxu0 %v1880
    %1954 = vmatprep.subr.bf16.mxu0 %v1877
    %1955 = vmatpush1.bf16.msra.mxu0 %v1876
    %1956 = vmatprep.subr.bf16.mxu0 0
    %1957 = vmatpush2.bf16.msra.mxu0 0
    %1958 = vmatprep.subr.bf16.mxu0 0
    %1959 = vmatpush2.bf16.msra.mxu0 0
    %1960 = vmatprep.subr.bf16.mxu0 0
    %1961 = vmatpush2.bf16.msra.mxu0 0
    %1962 = vmatprep.subr.bf16.mxu0 0
    %1963 = vmatpush2.bf16.msra.mxu0 0
    %1964 = vmatprep.subr.bf16.mxu0 0
    %1965 = vmatpush2.bf16.msra.mxu0 0
    %1966 = vmatprep.subr.bf16.mxu0 0
    %1967 = vmatpush2.bf16.msra.mxu0 0
    %1968 = vmatprep.subr.bf16.mxu0 0
    %1969 = vmatpush2.bf16.msra.mxu0 0
    %1970 = vmatprep.subr.bf16.mxu0 0
    %1971 = vmatpush2.bf16.msra.mxu0 0
    %1972 = vmatprep.mubr.bf16.mxu0 0
    %1973 = vmatmul.mubr.bf16.gmra.mxu0 %v1726
    %v1974 = vpop.f32.mrf.mxu0
    %v1975 = vadd.f32 0.0, %v1974
    %v1976 = vpop.f32.mrf.mxu0
    %v1977 = vadd.f32 0.0, %v1976
    %v1978 = vpop.f32.mrf.mxu0
    %v1979 = vadd.f32 0.0, %v1978
    %v1980 = vpop.f32.mrf.mxu0
    %v1981 = vadd.f32 0.0, %v1980
    %1982 = vdwg.mxu0
    %1983 = vmatprep.subr.bf16.mxu0 %v1907
    %1984 = vmatpush1.bf16.msra.mxu0 %v1906
    %1985 = vmatprep.subr.bf16.mxu0 %v1903
    %1986 = vmatpush1.bf16.msra.mxu0 %v1902
    %1987 = vmatprep.subr.bf16.mxu0 %v1899
    %1988 = vmatpush1.bf16.msra.mxu0 %v1898
    %1989 = vmatprep.subr.bf16.mxu0 %v1895
    %1990 = vmatpush1.bf16.msra.mxu0 %v1894
    %1991 = vmatprep.subr.bf16.mxu0 %v1891
    %1992 = vmatpush1.bf16.msra.mxu0 %v1890
    %1993 = vmatprep.subr.bf16.mxu0 %v1887
    %1994 = vmatpush1.bf16.msra.mxu0 %v1886
    %1995 = vmatprep.subr.bf16.mxu0 %v1883
    %1996 = vmatpush1.bf16.msra.mxu0 %v1882
    %1997 = vmatprep.subr.bf16.mxu0 %v1879
    %1998 = vmatpush1.bf16.msra.mxu0 %v1878
    %1999 = vmatprep.subr.bf16.mxu0 0
    %2000 = vmatpush2.bf16.msra.mxu0 0
    %2001 = vmatprep.subr.bf16.mxu0 0
    %2002 = vmatpush2.bf16.msra.mxu0 0
    %2003 = vmatprep.subr.bf16.mxu0 0
    %2004 = vmatpush2.bf16.msra.mxu0 0
    %2005 = vmatprep.subr.bf16.mxu0 0
    %2006 = vmatpush2.bf16.msra.mxu0 0
    %2007 = vmatprep.subr.bf16.mxu0 0
    %2008 = vmatpush2.bf16.msra.mxu0 0
    %2009 = vmatprep.subr.bf16.mxu0 0
    %2010 = vmatpush2.bf16.msra.mxu0 0
    %2011 = vmatprep.subr.bf16.mxu0 0
    %2012 = vmatpush2.bf16.msra.mxu0 0
    %2013 = vmatprep.subr.bf16.mxu0 0
    %2014 = vmatpush2.bf16.msra.mxu0 0
    %2015 = vmatprep.mubr.bf16.mxu0 0
    %2016 = vmatmul.mubr.bf16.gmra.mxu0 %v1726
    %v2017 = vpop.f32.mrf.mxu0
    %v2018 = vadd.f32 0.0, %v2017
    %v2019 = vpop.f32.mrf.mxu0
    %v2020 = vadd.f32 0.0, %v2019
    %v2021 = vpop.f32.mrf.mxu0
    %v2022 = vadd.f32 0.0, %v2021
    %v2023 = vpop.f32.mrf.mxu0
    %v2024 = vadd.f32 0.0, %v2023
    %2025 = vdwg.mxu0
    %v2026 = vadd.f32 %v1740, %v1975
    %v2027 = vadd.f32 %v1741, %v1977
    %v2028 = vadd.f32 %v1742, %v2018
    %v2029 = vadd.f32 %v1743, %v2020
    %v2030 = vadd.f32 %v1744, %v1979
    %v2031 = vadd.f32 %v1745, %v1981
    %v2032 = vadd.f32 %v1746, %v2022
    %v2033 = vadd.f32 %v1747, %v2024
    %v2034 = vxor.u32 %v2026, 2147483648
    %v2035 = vxor.u32 %v2030, 2147483648
    %v2036 = vmul.f32 %v2034, 1.442695
    %v2037 = vpow.pop %v2036
    %v2038 = vmul.f32 %v2035, 1.442695
    %v2039 = vpow.pop %v2038
    %v2040 = vadd.f32 %v2037, 1.0
    %v2041 = vadd.f32 %v2039, 1.0
    %v2042 = vrcp.pop %v2040
    %v2043 = vmul.f32 1.0, %v2042
    %v2044 = vrcp.pop %v2041
    %v2045 = vmul.f32 1.0, %v2044
    %v2046 = vxor.u32 %v2027, 2147483648
    %v2047 = vxor.u32 %v2031, 2147483648
    %v2048 = vmul.f32 %v2046, 1.442695
    %v2049 = vpow.pop %v2048
    %v2050 = vmul.f32 %v2047, 1.442695
    %v2051 = vpow.pop %v2050
    %v2052 = vadd.f32 %v2049, 1.0
    %v2053 = vadd.f32 %v2051, 1.0
    %v2054 = vrcp.pop %v2052
    %v2055 = vmul.f32 1.0, %v2054
    %v2056 = vrcp.pop %v2053
    %v2057 = vmul.f32 1.0, %v2056
    %v2058 = vtanh.pop %v2028
    %v2059 = vtanh.pop %v2032
    %v2060 = vxor.u32 %v2029, 2147483648
    %v2061 = vxor.u32 %v2033, 2147483648
    %v2062 = vmul.f32 %v2060, 1.442695
    %v2063 = vpow.pop %v2062
    %v2064 = vmul.f32 %v2061, 1.442695
    %v2065 = vpow.pop %v2064
    %v2066 = vadd.f32 %v2063, 1.0
    %v2067 = vadd.f32 %v2065, 1.0
    %v2068 = vrcp.pop %v2066
    %v2069 = vmul.f32 1.0, %v2068
    %v2070 = vrcp.pop %v2067
    %v2071 = vmul.f32 1.0, %v2070
    %v2072 = vmul.f32 %v2055, %v1720
    %v2073 = vmul.f32 %v2057, %v1721
    %v2074 = vmul.f32 %v2043, %v2058
    %v2075 = vmul.f32 %v2045, %v2059
    %v2076 = vadd.f32 %v2072, %v2074
    %v2077 = vadd.f32 %v2073, %v2075
    %v2078 = vtanh.pop %v2076
    %v2079 = vtanh.pop %v2077
    %v2080 = vmul.f32 %v2069, %v2078
    %v2081 = vmul.f32 %v2071, %v2079
    %v2082 = vpack.c.bf16 %v2081, %v2080
    %v2084 = vunpack.c.l.b16 %v2082
    %v2085 = vunpack.c.h.b16 %v2082
    %v2086 = vpack.c.b16 %v2084, %v2084
    %v2087 = vpack.c.b16 %v2085, %v2085
    %s2090 = scalar_lea.vmem [#allocation4], 24
    %2091 = vst [vmem:[%s2090] sm:$0xf] %v2086
    %2092 = vst [vmem:[%s2090 + $0x4] sm:$0xf] %v2087
    %s2093 = smul.u32 8, 4
    %s2094 = smul.addr %s2093, 8
    %s2095 = scalar_lea.vmem [#allocation2], %s2094
    %v2096 = vld [vmem:[%s2095] sm:$0xff]
    %v2097 = vld [vmem:[%s2095 + $0x8] sm:$0xff]
    %v2098 = vld [vmem:[%s2095 + $0x10] sm:$0xff]
    %v2099 = vld [vmem:[%s2095 + $0x18] sm:$0xff]
    %v2100 = vld [vmem:[%s2095 + $0x20] sm:$0xff]
    %v2101 = vld [vmem:[%s2095 + $0x28] sm:$0xff]
    %v2102 = vld [vmem:[%s2095 + $0x30] sm:$0xff]
    %v2103 = vld [vmem:[%s2095 + $0x38] sm:$0xff]
    %v2104 = vld [vmem:[#allocation8] sm:$0xff]
    %v2105 = vld [vmem:[#allocation8 + $0x8] sm:$0xff]
    %v2106 = vld [vmem:[#allocation8 + $0x10] sm:$0xff]
    %v2107 = vld [vmem:[#allocation8 + $0x18] sm:$0xff]
    %v2108 = vld [vmem:[#allocation8 + $0x20] sm:$0xff]
    %v2109 = vld [vmem:[#allocation8 + $0x28] sm:$0xff]
    %v2110 = vld [vmem:[#allocation8 + $0x30] sm:$0xff]
    %v2111 = vld [vmem:[#allocation8 + $0x38] sm:$0xff]
    %v2112 = vld [vmem:[#allocation8 + $0x40] sm:$0xff]
    %v2113 = vld [vmem:[#allocation8 + $0x48] sm:$0xff]
    %v2114 = vld [vmem:[#allocation8 + $0x50] sm:$0xff]
    %v2115 = vld [vmem:[#allocation8 + $0x58] sm:$0xff]
    %v2116 = vld [vmem:[#allocation8 + $0x60] sm:$0xff]
    %v2117 = vld [vmem:[#allocation8 + $0x68] sm:$0xff]
    %v2118 = vld [vmem:[#allocation8 + $0x70] sm:$0xff]
    %v2119 = vld [vmem:[#allocation8 + $0x78] sm:$0xff]
    %v2120 = vld [vmem:[#allocation8 + $0x80] sm:$0xff]
    %v2121 = vld [vmem:[#allocation8 + $0x88] sm:$0xff]
    %v2122 = vld [vmem:[#allocation8 + $0x90] sm:$0xff]
    %v2123 = vld [vmem:[#allocation8 + $0x98] sm:$0xff]
    %v2124 = vld [vmem:[#allocation8 + $0xa0] sm:$0xff]
    %v2125 = vld [vmem:[#allocation8 + $0xa8] sm:$0xff]
    %v2126 = vld [vmem:[#allocation8 + $0xb0] sm:$0xff]
    %v2127 = vld [vmem:[#allocation8 + $0xb8] sm:$0xff]
    %v2128 = vld [vmem:[#allocation8 + $0xc0] sm:$0xff]
    %v2129 = vld [vmem:[#allocation8 + $0xc8] sm:$0xff]
    %v2130 = vld [vmem:[#allocation8 + $0xd0] sm:$0xff]
    %v2131 = vld [vmem:[#allocation8 + $0xd8] sm:$0xff]
    %v2132 = vld [vmem:[#allocation8 + $0xe0] sm:$0xff]
    %v2133 = vld [vmem:[#allocation8 + $0xe8] sm:$0xff]
    %v2134 = vld [vmem:[#allocation8 + $0xf0] sm:$0xff]
    %v2135 = vld [vmem:[#allocation8 + $0xf8] sm:$0xff]
    %v2168 = vunpack.c.l.b16 %v2104
    %v2169 = vunpack.c.h.b16 %v2104
    %v2170 = vunpack.c.l.b16 %v2105
    %v2171 = vunpack.c.h.b16 %v2105
    %v2172 = vunpack.c.l.b16 %v2106
    %v2173 = vunpack.c.h.b16 %v2106
    %v2174 = vunpack.c.l.b16 %v2107
    %v2175 = vunpack.c.h.b16 %v2107
    %v2176 = vunpack.c.l.b16 %v2108
    %v2177 = vunpack.c.h.b16 %v2108
    %v2178 = vunpack.c.l.b16 %v2109
    %v2179 = vunpack.c.h.b16 %v2109
    %v2180 = vunpack.c.l.b16 %v2110
    %v2181 = vunpack.c.h.b16 %v2110
    %v2182 = vunpack.c.l.b16 %v2111
    %v2183 = vunpack.c.h.b16 %v2111
    %v2184 = vunpack.c.l.b16 %v2112
    %v2185 = vunpack.c.h.b16 %v2112
    %v2186 = vunpack.c.l.b16 %v2113
    %v2187 = vunpack.c.h.b16 %v2113
    %v2188 = vunpack.c.l.b16 %v2114
    %v2189 = vunpack.c.h.b16 %v2114
    %v2190 = vunpack.c.l.b16 %v2115
    %v2191 = vunpack.c.h.b16 %v2115
    %v2192 = vunpack.c.l.b16 %v2116
    %v2193 = vunpack.c.h.b16 %v2116
    %v2194 = vunpack.c.l.b16 %v2117
    %v2195 = vunpack.c.h.b16 %v2117
    %v2196 = vunpack.c.l.b16 %v2118
    %v2197 = vunpack.c.h.b16 %v2118
    %v2198 = vunpack.c.l.b16 %v2119
    %v2199 = vunpack.c.h.b16 %v2119
    %v2200 = vunpack.c.l.b16 %v2120
    %v2201 = vunpack.c.h.b16 %v2120
    %v2202 = vunpack.c.l.b16 %v2121
    %v2203 = vunpack.c.h.b16 %v2121
    %v2204 = vunpack.c.l.b16 %v2122
    %v2205 = vunpack.c.h.b16 %v2122
    %v2206 = vunpack.c.l.b16 %v2123
    %v2207 = vunpack.c.h.b16 %v2123
    %v2208 = vunpack.c.l.b16 %v2124
    %v2209 = vunpack.c.h.b16 %v2124
    %v2210 = vunpack.c.l.b16 %v2125
    %v2211 = vunpack.c.h.b16 %v2125
    %v2212 = vunpack.c.l.b16 %v2126
    %v2213 = vunpack.c.h.b16 %v2126
    %v2214 = vunpack.c.l.b16 %v2127
    %v2215 = vunpack.c.h.b16 %v2127
    %v2216 = vunpack.c.l.b16 %v2128
    %v2217 = vunpack.c.h.b16 %v2128
    %v2218 = vunpack.c.l.b16 %v2129
    %v2219 = vunpack.c.h.b16 %v2129
    %v2220 = vunpack.c.l.b16 %v2130
    %v2221 = vunpack.c.h.b16 %v2130
    %v2222 = vunpack.c.l.b16 %v2131
    %v2223 = vunpack.c.h.b16 %v2131
    %v2224 = vunpack.c.l.b16 %v2132
    %v2225 = vunpack.c.h.b16 %v2132
    %v2226 = vunpack.c.l.b16 %v2133
    %v2227 = vunpack.c.h.b16 %v2133
    %v2228 = vunpack.c.l.b16 %v2134
    %v2229 = vunpack.c.h.b16 %v2134
    %v2230 = vunpack.c.l.b16 %v2135
    %v2231 = vunpack.c.h.b16 %v2135
    %v2232 = vpack.c.b16 %v2172, %v2168
    %v2233 = vpack.c.b16 %v2173, %v2169
    %v2234 = vpack.c.b16 %v2174, %v2170
    %v2235 = vpack.c.b16 %v2175, %v2171
    %v2236 = vpack.c.b16 %v2180, %v2176
    %v2237 = vpack.c.b16 %v2181, %v2177
    %v2238 = vpack.c.b16 %v2182, %v2178
    %v2239 = vpack.c.b16 %v2183, %v2179
    %v2240 = vpack.c.b16 %v2188, %v2184
    %v2241 = vpack.c.b16 %v2189, %v2185
    %v2242 = vpack.c.b16 %v2190, %v2186
    %v2243 = vpack.c.b16 %v2191, %v2187
    %v2244 = vpack.c.b16 %v2196, %v2192
    %v2245 = vpack.c.b16 %v2197, %v2193
    %v2246 = vpack.c.b16 %v2198, %v2194
    %v2247 = vpack.c.b16 %v2199, %v2195
    %v2248 = vpack.c.b16 %v2204, %v2200
    %v2249 = vpack.c.b16 %v2205, %v2201
    %v2250 = vpack.c.b16 %v2206, %v2202
    %v2251 = vpack.c.b16 %v2207, %v2203
    %v2252 = vpack.c.b16 %v2212, %v2208
    %v2253 = vpack.c.b16 %v2213, %v2209
    %v2254 = vpack.c.b16 %v2214, %v2210
    %v2255 = vpack.c.b16 %v2215, %v2211
    %v2256 = vpack.c.b16 %v2220, %v2216
    %v2257 = vpack.c.b16 %v2221, %v2217
    %v2258 = vpack.c.b16 %v2222, %v2218
    %v2259 = vpack.c.b16 %v2223, %v2219
    %v2260 = vpack.c.b16 %v2228, %v2224
    %v2261 = vpack.c.b16 %v2229, %v2225
    %v2262 = vpack.c.b16 %v2230, %v2226
    %v2263 = vpack.c.b16 %v2231, %v2227
    %2296 = vmatprep.subr.bf16.mxu0 %v2261
    %2297 = vmatpush1.bf16.msra.mxu0 %v2260
    %2298 = vmatprep.subr.bf16.mxu0 %v2257
    %2299 = vmatpush1.bf16.msra.mxu0 %v2256
    %2300 = vmatprep.subr.bf16.mxu0 %v2253
    %2301 = vmatpush1.bf16.msra.mxu0 %v2252
    %2302 = vmatprep.subr.bf16.mxu0 %v2249
    %2303 = vmatpush1.bf16.msra.mxu0 %v2248
    %2304 = vmatprep.subr.bf16.mxu0 %v2245
    %2305 = vmatpush1.bf16.msra.mxu0 %v2244
    %2306 = vmatprep.subr.bf16.mxu0 %v2241
    %2307 = vmatpush1.bf16.msra.mxu0 %v2240
    %2308 = vmatprep.subr.bf16.mxu0 %v2237
    %2309 = vmatpush1.bf16.msra.mxu0 %v2236
    %2310 = vmatprep.subr.bf16.mxu0 %v2233
    %2311 = vmatpush1.bf16.msra.mxu0 %v2232
    %2312 = vmatprep.subr.bf16.mxu0 0
    %2313 = vmatpush2.bf16.msra.mxu0 0
    %2314 = vmatprep.subr.bf16.mxu0 0
    %2315 = vmatpush2.bf16.msra.mxu0 0
    %2316 = vmatprep.subr.bf16.mxu0 0
    %2317 = vmatpush2.bf16.msra.mxu0 0
    %2318 = vmatprep.subr.bf16.mxu0 0
    %2319 = vmatpush2.bf16.msra.mxu0 0
    %2320 = vmatprep.subr.bf16.mxu0 0
    %2321 = vmatpush2.bf16.msra.mxu0 0
    %2322 = vmatprep.subr.bf16.mxu0 0
    %2323 = vmatpush2.bf16.msra.mxu0 0
    %2324 = vmatprep.subr.bf16.mxu0 0
    %2325 = vmatpush2.bf16.msra.mxu0 0
    %2326 = vmatprep.subr.bf16.mxu0 0
    %2327 = vmatpush2.bf16.msra.mxu0 0
    %2328 = vmatprep.mubr.bf16.mxu0 0
    %2329 = vmatmul.mubr.bf16.gmra.mxu0 %v2082
    %v2330 = vpop.f32.mrf.mxu0
    %v2331 = vadd.f32 0.0, %v2330
    %v2332 = vpop.f32.mrf.mxu0
    %v2333 = vadd.f32 0.0, %v2332
    %v2334 = vpop.f32.mrf.mxu0
    %v2335 = vadd.f32 0.0, %v2334
    %v2336 = vpop.f32.mrf.mxu0
    %v2337 = vadd.f32 0.0, %v2336
    %2338 = vdwg.mxu0
    %2339 = vmatprep.subr.bf16.mxu0 %v2263
    %2340 = vmatpush1.bf16.msra.mxu0 %v2262
    %2341 = vmatprep.subr.bf16.mxu0 %v2259
    %2342 = vmatpush1.bf16.msra.mxu0 %v2258
    %2343 = vmatprep.subr.bf16.mxu0 %v2255
    %2344 = vmatpush1.bf16.msra.mxu0 %v2254
    %2345 = vmatprep.subr.bf16.mxu0 %v2251
    %2346 = vmatpush1.bf16.msra.mxu0 %v2250
    %2347 = vmatprep.subr.bf16.mxu0 %v2247
    %2348 = vmatpush1.bf16.msra.mxu0 %v2246
    %2349 = vmatprep.subr.bf16.mxu0 %v2243
    %2350 = vmatpush1.bf16.msra.mxu0 %v2242
    %2351 = vmatprep.subr.bf16.mxu0 %v2239
    %2352 = vmatpush1.bf16.msra.mxu0 %v2238
    %2353 = vmatprep.subr.bf16.mxu0 %v2235
    %2354 = vmatpush1.bf16.msra.mxu0 %v2234
    %2355 = vmatprep.subr.bf16.mxu0 0
    %2356 = vmatpush2.bf16.msra.mxu0 0
    %2357 = vmatprep.subr.bf16.mxu0 0
    %2358 = vmatpush2.bf16.msra.mxu0 0
    %2359 = vmatprep.subr.bf16.mxu0 0
    %2360 = vmatpush2.bf16.msra.mxu0 0
    %2361 = vmatprep.subr.bf16.mxu0 0
    %2362 = vmatpush2.bf16.msra.mxu0 0
    %2363 = vmatprep.subr.bf16.mxu0 0
    %2364 = vmatpush2.bf16.msra.mxu0 0
    %2365 = vmatprep.subr.bf16.mxu0 0
    %2366 = vmatpush2.bf16.msra.mxu0 0
    %2367 = vmatprep.subr.bf16.mxu0 0
    %2368 = vmatpush2.bf16.msra.mxu0 0
    %2369 = vmatprep.subr.bf16.mxu0 0
    %2370 = vmatpush2.bf16.msra.mxu0 0
    %2371 = vmatprep.mubr.bf16.mxu0 0
    %2372 = vmatmul.mubr.bf16.gmra.mxu0 %v2082
    %v2373 = vpop.f32.mrf.mxu0
    %v2374 = vadd.f32 0.0, %v2373
    %v2375 = vpop.f32.mrf.mxu0
    %v2376 = vadd.f32 0.0, %v2375
    %v2377 = vpop.f32.mrf.mxu0
    %v2378 = vadd.f32 0.0, %v2377
    %v2379 = vpop.f32.mrf.mxu0
    %v2380 = vadd.f32 0.0, %v2379
    %2381 = vdwg.mxu0
    %v2382 = vadd.f32 %v2096, %v2331
    %v2383 = vadd.f32 %v2097, %v2333
    %v2384 = vadd.f32 %v2098, %v2374
    %v2385 = vadd.f32 %v2099, %v2376
    %v2386 = vadd.f32 %v2100, %v2335
    %v2387 = vadd.f32 %v2101, %v2337
    %v2388 = vadd.f32 %v2102, %v2378
    %v2389 = vadd.f32 %v2103, %v2380
    %v2390 = vxor.u32 %v2382, 2147483648
    %v2391 = vxor.u32 %v2386, 2147483648
    %v2392 = vmul.f32 %v2390, 1.442695
    %v2393 = vpow.pop %v2392
    %v2394 = vmul.f32 %v2391, 1.442695
    %v2395 = vpow.pop %v2394
    %v2396 = vadd.f32 %v2393, 1.0
    %v2397 = vadd.f32 %v2395, 1.0
    %v2398 = vrcp.pop %v2396
    %v2399 = vmul.f32 1.0, %v2398
    %v2400 = vrcp.pop %v2397
    %v2401 = vmul.f32 1.0, %v2400
    %v2402 = vxor.u32 %v2383, 2147483648
    %v2403 = vxor.u32 %v2387, 2147483648
    %v2404 = vmul.f32 %v2402, 1.442695
    %v2405 = vpow.pop %v2404
    %v2406 = vmul.f32 %v2403, 1.442695
    %v2407 = vpow.pop %v2406
    %v2408 = vadd.f32 %v2405, 1.0
    %v2409 = vadd.f32 %v2407, 1.0
    %v2410 = vrcp.pop %v2408
    %v2411 = vmul.f32 1.0, %v2410
    %v2412 = vrcp.pop %v2409
    %v2413 = vmul.f32 1.0, %v2412
    %v2414 = vtanh.pop %v2384
    %v2415 = vtanh.pop %v2388
    %v2416 = vxor.u32 %v2385, 2147483648
    %v2417 = vxor.u32 %v2389, 2147483648
    %v2418 = vmul.f32 %v2416, 1.442695
    %v2419 = vpow.pop %v2418
    %v2420 = vmul.f32 %v2417, 1.442695
    %v2421 = vpow.pop %v2420
    %v2422 = vadd.f32 %v2419, 1.0
    %v2423 = vadd.f32 %v2421, 1.0
    %v2424 = vrcp.pop %v2422
    %v2425 = vmul.f32 1.0, %v2424
    %v2426 = vrcp.pop %v2423
    %v2427 = vmul.f32 1.0, %v2426
    %v2428 = vmul.f32 %v2411, %v2076
    %v2429 = vmul.f32 %v2413, %v2077
    %v2430 = vmul.f32 %v2399, %v2414
    %v2431 = vmul.f32 %v2401, %v2415
    %v2432 = vadd.f32 %v2428, %v2430
    %v2433 = vadd.f32 %v2429, %v2431
    %v2434 = vtanh.pop %v2432
    %v2435 = vtanh.pop %v2433
    %v2436 = vmul.f32 %v2425, %v2434
    %v2437 = vmul.f32 %v2427, %v2435
    %v2438 = vpack.c.bf16 %v2437, %v2436
    %v2440 = vunpack.c.l.b16 %v2438
    %v2441 = vunpack.c.h.b16 %v2438
    %v2442 = vpack.c.b16 %v2440, %v2440
    %v2443 = vpack.c.b16 %v2441, %v2441
    %s2446 = scalar_lea.vmem [#allocation4], 32
    %2447 = vst [vmem:[%s2446] sm:$0xf] %v2442
    %2448 = vst [vmem:[%s2446 + $0x4] sm:$0xf] %v2443
    %s2449 = smul.u32 10, 4
    %s2450 = smul.addr %s2449, 8
    %s2451 = scalar_lea.vmem [#allocation2], %s2450
    %v2452 = vld [vmem:[%s2451] sm:$0xff]
    %v2453 = vld [vmem:[%s2451 + $0x8] sm:$0xff]
    %v2454 = vld [vmem:[%s2451 + $0x10] sm:$0xff]
    %v2455 = vld [vmem:[%s2451 + $0x18] sm:$0xff]
    %v2456 = vld [vmem:[%s2451 + $0x20] sm:$0xff]
    %v2457 = vld [vmem:[%s2451 + $0x28] sm:$0xff]
    %v2458 = vld [vmem:[%s2451 + $0x30] sm:$0xff]
    %v2459 = vld [vmem:[%s2451 + $0x38] sm:$0xff]
    %v2460 = vld [vmem:[#allocation8] sm:$0xff]
    %v2461 = vld [vmem:[#allocation8 + $0x8] sm:$0xff]
    %v2462 = vld [vmem:[#allocation8 + $0x10] sm:$0xff]
    %v2463 = vld [vmem:[#allocation8 + $0x18] sm:$0xff]
    %v2464 = vld [vmem:[#allocation8 + $0x20] sm:$0xff]
    %v2465 = vld [vmem:[#allocation8 + $0x28] sm:$0xff]
    %v2466 = vld [vmem:[#allocation8 + $0x30] sm:$0xff]
    %v2467 = vld [vmem:[#allocation8 + $0x38] sm:$0xff]
    %v2468 = vld [vmem:[#allocation8 + $0x40] sm:$0xff]
    %v2469 = vld [vmem:[#allocation8 + $0x48] sm:$0xff]
    %v2470 = vld [vmem:[#allocation8 + $0x50] sm:$0xff]
    %v2471 = vld [vmem:[#allocation8 + $0x58] sm:$0xff]
    %v2472 = vld [vmem:[#allocation8 + $0x60] sm:$0xff]
    %v2473 = vld [vmem:[#allocation8 + $0x68] sm:$0xff]
    %v2474 = vld [vmem:[#allocation8 + $0x70] sm:$0xff]
    %v2475 = vld [vmem:[#allocation8 + $0x78] sm:$0xff]
    %v2476 = vld [vmem:[#allocation8 + $0x80] sm:$0xff]
    %v2477 = vld [vmem:[#allocation8 + $0x88] sm:$0xff]
    %v2478 = vld [vmem:[#allocation8 + $0x90] sm:$0xff]
    %v2479 = vld [vmem:[#allocation8 + $0x98] sm:$0xff]
    %v2480 = vld [vmem:[#allocation8 + $0xa0] sm:$0xff]
    %v2481 = vld [vmem:[#allocation8 + $0xa8] sm:$0xff]
    %v2482 = vld [vmem:[#allocation8 + $0xb0] sm:$0xff]
    %v2483 = vld [vmem:[#allocation8 + $0xb8] sm:$0xff]
    %v2484 = vld [vmem:[#allocation8 + $0xc0] sm:$0xff]
    %v2485 = vld [vmem:[#allocation8 + $0xc8] sm:$0xff]
    %v2486 = vld [vmem:[#allocation8 + $0xd0] sm:$0xff]
    %v2487 = vld [vmem:[#allocation8 + $0xd8] sm:$0xff]
    %v2488 = vld [vmem:[#allocation8 + $0xe0] sm:$0xff]
    %v2489 = vld [vmem:[#allocation8 + $0xe8] sm:$0xff]
    %v2490 = vld [vmem:[#allocation8 + $0xf0] sm:$0xff]
    %v2491 = vld [vmem:[#allocation8 + $0xf8] sm:$0xff]
    %v2524 = vunpack.c.l.b16 %v2460
    %v2525 = vunpack.c.h.b16 %v2460
    %v2526 = vunpack.c.l.b16 %v2461
    %v2527 = vunpack.c.h.b16 %v2461
    %v2528 = vunpack.c.l.b16 %v2462
    %v2529 = vunpack.c.h.b16 %v2462
    %v2530 = vunpack.c.l.b16 %v2463
    %v2531 = vunpack.c.h.b16 %v2463
    %v2532 = vunpack.c.l.b16 %v2464
    %v2533 = vunpack.c.h.b16 %v2464
    %v2534 = vunpack.c.l.b16 %v2465
    %v2535 = vunpack.c.h.b16 %v2465
    %v2536 = vunpack.c.l.b16 %v2466
    %v2537 = vunpack.c.h.b16 %v2466
    %v2538 = vunpack.c.l.b16 %v2467
    %v2539 = vunpack.c.h.b16 %v2467
    %v2540 = vunpack.c.l.b16 %v2468
    %v2541 = vunpack.c.h.b16 %v2468
    %v2542 = vunpack.c.l.b16 %v2469
    %v2543 = vunpack.c.h.b16 %v2469
    %v2544 = vunpack.c.l.b16 %v2470
    %v2545 = vunpack.c.h.b16 %v2470
    %v2546 = vunpack.c.l.b16 %v2471
    %v2547 = vunpack.c.h.b16 %v2471
    %v2548 = vunpack.c.l.b16 %v2472
    %v2549 = vunpack.c.h.b16 %v2472
    %v2550 = vunpack.c.l.b16 %v2473
    %v2551 = vunpack.c.h.b16 %v2473
    %v2552 = vunpack.c.l.b16 %v2474
    %v2553 = vunpack.c.h.b16 %v2474
    %v2554 = vunpack.c.l.b16 %v2475
    %v2555 = vunpack.c.h.b16 %v2475
    %v2556 = vunpack.c.l.b16 %v2476
    %v2557 = vunpack.c.h.b16 %v2476
    %v2558 = vunpack.c.l.b16 %v2477
    %v2559 = vunpack.c.h.b16 %v2477
    %v2560 = vunpack.c.l.b16 %v2478
    %v2561 = vunpack.c.h.b16 %v2478
    %v2562 = vunpack.c.l.b16 %v2479
    %v2563 = vunpack.c.h.b16 %v2479
    %v2564 = vunpack.c.l.b16 %v2480
    %v2565 = vunpack.c.h.b16 %v2480
    %v2566 = vunpack.c.l.b16 %v2481
    %v2567 = vunpack.c.h.b16 %v2481
    %v2568 = vunpack.c.l.b16 %v2482
    %v2569 = vunpack.c.h.b16 %v2482
    %v2570 = vunpack.c.l.b16 %v2483
    %v2571 = vunpack.c.h.b16 %v2483
    %v2572 = vunpack.c.l.b16 %v2484
    %v2573 = vunpack.c.h.b16 %v2484
    %v2574 = vunpack.c.l.b16 %v2485
    %v2575 = vunpack.c.h.b16 %v2485
    %v2576 = vunpack.c.l.b16 %v2486
    %v2577 = vunpack.c.h.b16 %v2486
    %v2578 = vunpack.c.l.b16 %v2487
    %v2579 = vunpack.c.h.b16 %v2487
    %v2580 = vunpack.c.l.b16 %v2488
    %v2581 = vunpack.c.h.b16 %v2488
    %v2582 = vunpack.c.l.b16 %v2489
    %v2583 = vunpack.c.h.b16 %v2489
    %v2584 = vunpack.c.l.b16 %v2490
    %v2585 = vunpack.c.h.b16 %v2490
    %v2586 = vunpack.c.l.b16 %v2491
    %v2587 = vunpack.c.h.b16 %v2491
    %v2588 = vpack.c.b16 %v2528, %v2524
    %v2589 = vpack.c.b16 %v2529, %v2525
    %v2590 = vpack.c.b16 %v2530, %v2526
    %v2591 = vpack.c.b16 %v2531, %v2527
    %v2592 = vpack.c.b16 %v2536, %v2532
    %v2593 = vpack.c.b16 %v2537, %v2533
    %v2594 = vpack.c.b16 %v2538, %v2534
    %v2595 = vpack.c.b16 %v2539, %v2535
    %v2596 = vpack.c.b16 %v2544, %v2540
    %v2597 = vpack.c.b16 %v2545, %v2541
    %v2598 = vpack.c.b16 %v2546, %v2542
    %v2599 = vpack.c.b16 %v2547, %v2543
    %v2600 = vpack.c.b16 %v2552, %v2548
    %v2601 = vpack.c.b16 %v2553, %v2549
    %v2602 = vpack.c.b16 %v2554, %v2550
    %v2603 = vpack.c.b16 %v2555, %v2551
    %v2604 = vpack.c.b16 %v2560, %v2556
    %v2605 = vpack.c.b16 %v2561, %v2557
    %v2606 = vpack.c.b16 %v2562, %v2558
    %v2607 = vpack.c.b16 %v2563, %v2559
    %v2608 = vpack.c.b16 %v2568, %v2564
    %v2609 = vpack.c.b16 %v2569, %v2565
    %v2610 = vpack.c.b16 %v2570, %v2566
    %v2611 = vpack.c.b16 %v2571, %v2567
    %v2612 = vpack.c.b16 %v2576, %v2572
    %v2613 = vpack.c.b16 %v2577, %v2573
    %v2614 = vpack.c.b16 %v2578, %v2574
    %v2615 = vpack.c.b16 %v2579, %v2575
    %v2616 = vpack.c.b16 %v2584, %v2580
    %v2617 = vpack.c.b16 %v2585, %v2581
    %v2618 = vpack.c.b16 %v2586, %v2582
    %v2619 = vpack.c.b16 %v2587, %v2583
    %2652 = vmatprep.subr.bf16.mxu0 %v2617
    %2653 = vmatpush1.bf16.msra.mxu0 %v2616
    %2654 = vmatprep.subr.bf16.mxu0 %v2613
    %2655 = vmatpush1.bf16.msra.mxu0 %v2612
    %2656 = vmatprep.subr.bf16.mxu0 %v2609
    %2657 = vmatpush1.bf16.msra.mxu0 %v2608
    %2658 = vmatprep.subr.bf16.mxu0 %v2605
    %2659 = vmatpush1.bf16.msra.mxu0 %v2604
    %2660 = vmatprep.subr.bf16.mxu0 %v2601
    %2661 = vmatpush1.bf16.msra.mxu0 %v2600
    %2662 = vmatprep.subr.bf16.mxu0 %v2597
    %2663 = vmatpush1.bf16.msra.mxu0 %v2596
    %2664 = vmatprep.subr.bf16.mxu0 %v2593
    %2665 = vmatpush1.bf16.msra.mxu0 %v2592
    %2666 = vmatprep.subr.bf16.mxu0 %v2589
    %2667 = vmatpush1.bf16.msra.mxu0 %v2588
    %2668 = vmatprep.subr.bf16.mxu0 0
    %2669 = vmatpush2.bf16.msra.mxu0 0
    %2670 = vmatprep.subr.bf16.mxu0 0
    %2671 = vmatpush2.bf16.msra.mxu0 0
    %2672 = vmatprep.subr.bf16.mxu0 0
    %2673 = vmatpush2.bf16.msra.mxu0 0
    %2674 = vmatprep.subr.bf16.mxu0 0
    %2675 = vmatpush2.bf16.msra.mxu0 0
    %2676 = vmatprep.subr.bf16.mxu0 0
    %2677 = vmatpush2.bf16.msra.mxu0 0
    %2678 = vmatprep.subr.bf16.mxu0 0
    %2679 = vmatpush2.bf16.msra.mxu0 0
    %2680 = vmatprep.subr.bf16.mxu0 0
    %2681 = vmatpush2.bf16.msra.mxu0 0
    %2682 = vmatprep.subr.bf16.mxu0 0
    %2683 = vmatpush2.bf16.msra.mxu0 0
    %2684 = vmatprep.mubr.bf16.mxu0 0
    %2685 = vmatmul.mubr.bf16.gmra.mxu0 %v2438
    %v2686 = vpop.f32.mrf.mxu0
    %v2687 = vadd.f32 0.0, %v2686
    %v2688 = vpop.f32.mrf.mxu0
    %v2689 = vadd.f32 0.0, %v2688
    %v2690 = vpop.f32.mrf.mxu0
    %v2691 = vadd.f32 0.0, %v2690
    %v2692 = vpop.f32.mrf.mxu0
    %v2693 = vadd.f32 0.0, %v2692
    %2694 = vdwg.mxu0
    %2695 = vmatprep.subr.bf16.mxu0 %v2619
    %2696 = vmatpush1.bf16.msra.mxu0 %v2618
    %2697 = vmatprep.subr.bf16.mxu0 %v2615
    %2698 = vmatpush1.bf16.msra.mxu0 %v2614
    %2699 = vmatprep.subr.bf16.mxu0 %v2611
    %2700 = vmatpush1.bf16.msra.mxu0 %v2610
    %2701 = vmatprep.subr.bf16.mxu0 %v2607
    %2702 = vmatpush1.bf16.msra.mxu0 %v2606
    %2703 = vmatprep.subr.bf16.mxu0 %v2603
    %2704 = vmatpush1.bf16.msra.mxu0 %v2602
    %2705 = vmatprep.subr.bf16.mxu0 %v2599
    %2706 = vmatpush1.bf16.msra.mxu0 %v2598
    %2707 = vmatprep.subr.bf16.mxu0 %v2595
    %2708 = vmatpush1.bf16.msra.mxu0 %v2594
    %2709 = vmatprep.subr.bf16.mxu0 %v2591
    %2710 = vmatpush1.bf16.msra.mxu0 %v2590
    %2711 = vmatprep.subr.bf16.mxu0 0
    %2712 = vmatpush2.bf16.msra.mxu0 0
    %2713 = vmatprep.subr.bf16.mxu0 0
    %2714 = vmatpush2.bf16.msra.mxu0 0
    %2715 = vmatprep.subr.bf16.mxu0 0
    %2716 = vmatpush2.bf16.msra.mxu0 0
    %2717 = vmatprep.subr.bf16.mxu0 0
    %2718 = vmatpush2.bf16.msra.mxu0 0
    %2719 = vmatprep.subr.bf16.mxu0 0
    %2720 = vmatpush2.bf16.msra.mxu0 0
    %2721 = vmatprep.subr.bf16.mxu0 0
    %2722 = vmatpush2.bf16.msra.mxu0 0
    %2723 = vmatprep.subr.bf16.mxu0 0
    %2724 = vmatpush2.bf16.msra.mxu0 0
    %2725 = vmatprep.subr.bf16.mxu0 0
    %2726 = vmatpush2.bf16.msra.mxu0 0
    %2727 = vmatprep.mubr.bf16.mxu0 0
    %2728 = vmatmul.mubr.bf16.gmra.mxu0 %v2438
    %v2729 = vpop.f32.mrf.mxu0
    %v2730 = vadd.f32 0.0, %v2729
    %v2731 = vpop.f32.mrf.mxu0
    %v2732 = vadd.f32 0.0, %v2731
    %v2733 = vpop.f32.mrf.mxu0
    %v2734 = vadd.f32 0.0, %v2733
    %v2735 = vpop.f32.mrf.mxu0
    %v2736 = vadd.f32 0.0, %v2735
    %2737 = vdwg.mxu0
    %v2738 = vadd.f32 %v2452, %v2687
    %v2739 = vadd.f32 %v2453, %v2689
    %v2740 = vadd.f32 %v2454, %v2730
    %v2741 = vadd.f32 %v2455, %v2732
    %v2742 = vadd.f32 %v2456, %v2691
    %v2743 = vadd.f32 %v2457, %v2693
    %v2744 = vadd.f32 %v2458, %v2734
    %v2745 = vadd.f32 %v2459, %v2736
    %v2746 = vxor.u32 %v2738, 2147483648
    %v2747 = vxor.u32 %v2742, 2147483648
    %v2748 = vmul.f32 %v2746, 1.442695
    %v2749 = vpow.pop %v2748
    %v2750 = vmul.f32 %v2747, 1.442695
    %v2751 = vpow.pop %v2750
    %v2752 = vadd.f32 %v2749, 1.0
    %v2753 = vadd.f32 %v2751, 1.0
    %v2754 = vrcp.pop %v2752
    %v2755 = vmul.f32 1.0, %v2754
    %v2756 = vrcp.pop %v2753
    %v2757 = vmul.f32 1.0, %v2756
    %v2758 = vxor.u32 %v2739, 2147483648
    %v2759 = vxor.u32 %v2743, 2147483648
    %v2760 = vmul.f32 %v2758, 1.442695
    %v2761 = vpow.pop %v2760
    %v2762 = vmul.f32 %v2759, 1.442695
    %v2763 = vpow.pop %v2762
    %v2764 = vadd.f32 %v2761, 1.0
    %v2765 = vadd.f32 %v2763, 1.0
    %v2766 = vrcp.pop %v2764
    %v2767 = vmul.f32 1.0, %v2766
    %v2768 = vrcp.pop %v2765
    %v2769 = vmul.f32 1.0, %v2768
    %v2770 = vtanh.pop %v2740
    %v2771 = vtanh.pop %v2744
    %v2772 = vxor.u32 %v2741, 2147483648
    %v2773 = vxor.u32 %v2745, 2147483648
    %v2774 = vmul.f32 %v2772, 1.442695
    %v2775 = vpow.pop %v2774
    %v2776 = vmul.f32 %v2773, 1.442695
    %v2777 = vpow.pop %v2776
    %v2778 = vadd.f32 %v2775, 1.0
    %v2779 = vadd.f32 %v2777, 1.0
    %v2780 = vrcp.pop %v2778
    %v2781 = vmul.f32 1.0, %v2780
    %v2782 = vrcp.pop %v2779
    %v2783 = vmul.f32 1.0, %v2782
    %v2784 = vmul.f32 %v2767, %v2432
    %v2785 = vmul.f32 %v2769, %v2433
    %v2786 = vmul.f32 %v2755, %v2770
    %v2787 = vmul.f32 %v2757, %v2771
    %v2788 = vadd.f32 %v2784, %v2786
    %v2789 = vadd.f32 %v2785, %v2787
    %v2790 = vtanh.pop %v2788
    %v2791 = vtanh.pop %v2789
    %v2792 = vmul.f32 %v2781, %v2790
    %v2793 = vmul.f32 %v2783, %v2791
    %v2794 = vpack.c.bf16 %v2793, %v2792
    %v2796 = vunpack.c.l.b16 %v2794
    %v2797 = vunpack.c.h.b16 %v2794
    %v2798 = vpack.c.b16 %v2796, %v2796
    %v2799 = vpack.c.b16 %v2797, %v2797
    %s2802 = scalar_lea.vmem [#allocation4], 40
    %2803 = vst [vmem:[%s2802] sm:$0xf] %v2798
    %2804 = vst [vmem:[%s2802 + $0x4] sm:$0xf] %v2799
    %s2805 = smul.u32 12, 4
    %s2806 = smul.addr %s2805, 8
    %s2807 = scalar_lea.vmem [#allocation2], %s2806
    %v2808 = vld [vmem:[%s2807] sm:$0xff]
    %v2809 = vld [vmem:[%s2807 + $0x8] sm:$0xff]
    %v2810 = vld [vmem:[%s2807 + $0x10] sm:$0xff]
    %v2811 = vld [vmem:[%s2807 + $0x18] sm:$0xff]
    %v2812 = vld [vmem:[%s2807 + $0x20] sm:$0xff]
    %v2813 = vld [vmem:[%s2807 + $0x28] sm:$0xff]
    %v2814 = vld [vmem:[%s2807 + $0x30] sm:$0xff]
    %v2815 = vld [vmem:[%s2807 + $0x38] sm:$0xff]
    %v2816 = vld [vmem:[#allocation8] sm:$0xff]
    %v2817 = vld [vmem:[#allocation8 + $0x8] sm:$0xff]
    %v2818 = vld [vmem:[#allocation8 + $0x10] sm:$0xff]
    %v2819 = vld [vmem:[#allocation8 + $0x18] sm:$0xff]
    %v2820 = vld [vmem:[#allocation8 + $0x20] sm:$0xff]
    %v2821 = vld [vmem:[#allocation8 + $0x28] sm:$0xff]
    %v2822 = vld [vmem:[#allocation8 + $0x30] sm:$0xff]
    %v2823 = vld [vmem:[#allocation8 + $0x38] sm:$0xff]
    %v2824 = vld [vmem:[#allocation8 + $0x40] sm:$0xff]
    %v2825 = vld [vmem:[#allocation8 + $0x48] sm:$0xff]
    %v2826 = vld [vmem:[#allocation8 + $0x50] sm:$0xff]
    %v2827 = vld [vmem:[#allocation8 + $0x58] sm:$0xff]
    %v2828 = vld [vmem:[#allocation8 + $0x60] sm:$0xff]
    %v2829 = vld [vmem:[#allocation8 + $0x68] sm:$0xff]
    %v2830 = vld [vmem:[#allocation8 + $0x70] sm:$0xff]
    %v2831 = vld [vmem:[#allocation8 + $0x78] sm:$0xff]
    %v2832 = vld [vmem:[#allocation8 + $0x80] sm:$0xff]
    %v2833 = vld [vmem:[#allocation8 + $0x88] sm:$0xff]
    %v2834 = vld [vmem:[#allocation8 + $0x90] sm:$0xff]
    %v2835 = vld [vmem:[#allocation8 + $0x98] sm:$0xff]
    %v2836 = vld [vmem:[#allocation8 + $0xa0] sm:$0xff]
    %v2837 = vld [vmem:[#allocation8 + $0xa8] sm:$0xff]
    %v2838 = vld [vmem:[#allocation8 + $0xb0] sm:$0xff]
    %v2839 = vld [vmem:[#allocation8 + $0xb8] sm:$0xff]
    %v2840 = vld [vmem:[#allocation8 + $0xc0] sm:$0xff]
    %v2841 = vld [vmem:[#allocation8 + $0xc8] sm:$0xff]
    %v2842 = vld [vmem:[#allocation8 + $0xd0] sm:$0xff]
    %v2843 = vld [vmem:[#allocation8 + $0xd8] sm:$0xff]
    %v2844 = vld [vmem:[#allocation8 + $0xe0] sm:$0xff]
    %v2845 = vld [vmem:[#allocation8 + $0xe8] sm:$0xff]
    %v2846 = vld [vmem:[#allocation8 + $0xf0] sm:$0xff]
    %v2847 = vld [vmem:[#allocation8 + $0xf8] sm:$0xff]
    %v2880 = vunpack.c.l.b16 %v2816
    %v2881 = vunpack.c.h.b16 %v2816
    %v2882 = vunpack.c.l.b16 %v2817
    %v2883 = vunpack.c.h.b16 %v2817
    %v2884 = vunpack.c.l.b16 %v2818
    %v2885 = vunpack.c.h.b16 %v2818
    %v2886 = vunpack.c.l.b16 %v2819
    %v2887 = vunpack.c.h.b16 %v2819
    %v2888 = vunpack.c.l.b16 %v2820
    %v2889 = vunpack.c.h.b16 %v2820
    %v2890 = vunpack.c.l.b16 %v2821
    %v2891 = vunpack.c.h.b16 %v2821
    %v2892 = vunpack.c.l.b16 %v2822
    %v2893 = vunpack.c.h.b16 %v2822
    %v2894 = vunpack.c.l.b16 %v2823
    %v2895 = vunpack.c.h.b16 %v2823
    %v2896 = vunpack.c.l.b16 %v2824
    %v2897 = vunpack.c.h.b16 %v2824
    %v2898 = vunpack.c.l.b16 %v2825
    %v2899 = vunpack.c.h.b16 %v2825
    %v2900 = vunpack.c.l.b16 %v2826
    %v2901 = vunpack.c.h.b16 %v2826
    %v2902 = vunpack.c.l.b16 %v2827
    %v2903 = vunpack.c.h.b16 %v2827
    %v2904 = vunpack.c.l.b16 %v2828
    %v2905 = vunpack.c.h.b16 %v2828
    %v2906 = vunpack.c.l.b16 %v2829
    %v2907 = vunpack.c.h.b16 %v2829
    %v2908 = vunpack.c.l.b16 %v2830
    %v2909 = vunpack.c.h.b16 %v2830
    %v2910 = vunpack.c.l.b16 %v2831
    %v2911 = vunpack.c.h.b16 %v2831
    %v2912 = vunpack.c.l.b16 %v2832
    %v2913 = vunpack.c.h.b16 %v2832
    %v2914 = vunpack.c.l.b16 %v2833
    %v2915 = vunpack.c.h.b16 %v2833
    %v2916 = vunpack.c.l.b16 %v2834
    %v2917 = vunpack.c.h.b16 %v2834
    %v2918 = vunpack.c.l.b16 %v2835
    %v2919 = vunpack.c.h.b16 %v2835
    %v2920 = vunpack.c.l.b16 %v2836
    %v2921 = vunpack.c.h.b16 %v2836
    %v2922 = vunpack.c.l.b16 %v2837
    %v2923 = vunpack.c.h.b16 %v2837
    %v2924 = vunpack.c.l.b16 %v2838
    %v2925 = vunpack.c.h.b16 %v2838
    %v2926 = vunpack.c.l.b16 %v2839
    %v2927 = vunpack.c.h.b16 %v2839
    %v2928 = vunpack.c.l.b16 %v2840
    %v2929 = vunpack.c.h.b16 %v2840
    %v2930 = vunpack.c.l.b16 %v2841
    %v2931 = vunpack.c.h.b16 %v2841
    %v2932 = vunpack.c.l.b16 %v2842
    %v2933 = vunpack.c.h.b16 %v2842
    %v2934 = vunpack.c.l.b16 %v2843
    %v2935 = vunpack.c.h.b16 %v2843
    %v2936 = vunpack.c.l.b16 %v2844
    %v2937 = vunpack.c.h.b16 %v2844
    %v2938 = vunpack.c.l.b16 %v2845
    %v2939 = vunpack.c.h.b16 %v2845
    %v2940 = vunpack.c.l.b16 %v2846
    %v2941 = vunpack.c.h.b16 %v2846
    %v2942 = vunpack.c.l.b16 %v2847
    %v2943 = vunpack.c.h.b16 %v2847
    %v2944 = vpack.c.b16 %v2884, %v2880
    %v2945 = vpack.c.b16 %v2885, %v2881
    %v2946 = vpack.c.b16 %v2886, %v2882
    %v2947 = vpack.c.b16 %v2887, %v2883
    %v2948 = vpack.c.b16 %v2892, %v2888
    %v2949 = vpack.c.b16 %v2893, %v2889
    %v2950 = vpack.c.b16 %v2894, %v2890
    %v2951 = vpack.c.b16 %v2895, %v2891
    %v2952 = vpack.c.b16 %v2900, %v2896
    %v2953 = vpack.c.b16 %v2901, %v2897
    %v2954 = vpack.c.b16 %v2902, %v2898
    %v2955 = vpack.c.b16 %v2903, %v2899
    %v2956 = vpack.c.b16 %v2908, %v2904
    %v2957 = vpack.c.b16 %v2909, %v2905
    %v2958 = vpack.c.b16 %v2910, %v2906
    %v2959 = vpack.c.b16 %v2911, %v2907
    %v2960 = vpack.c.b16 %v2916, %v2912
    %v2961 = vpack.c.b16 %v2917, %v2913
    %v2962 = vpack.c.b16 %v2918, %v2914
    %v2963 = vpack.c.b16 %v2919, %v2915
    %v2964 = vpack.c.b16 %v2924, %v2920
    %v2965 = vpack.c.b16 %v2925, %v2921
    %v2966 = vpack.c.b16 %v2926, %v2922
    %v2967 = vpack.c.b16 %v2927, %v2923
    %v2968 = vpack.c.b16 %v2932, %v2928
    %v2969 = vpack.c.b16 %v2933, %v2929
    %v2970 = vpack.c.b16 %v2934, %v2930
    %v2971 = vpack.c.b16 %v2935, %v2931
    %v2972 = vpack.c.b16 %v2940, %v2936
    %v2973 = vpack.c.b16 %v2941, %v2937
    %v2974 = vpack.c.b16 %v2942, %v2938
    %v2975 = vpack.c.b16 %v2943, %v2939
    %3008 = vmatprep.subr.bf16.mxu0 %v2973
    %3009 = vmatpush1.bf16.msra.mxu0 %v2972
    %3010 = vmatprep.subr.bf16.mxu0 %v2969
    %3011 = vmatpush1.bf16.msra.mxu0 %v2968
    %3012 = vmatprep.subr.bf16.mxu0 %v2965
    %3013 = vmatpush1.bf16.msra.mxu0 %v2964
    %3014 = vmatprep.subr.bf16.mxu0 %v2961
    %3015 = vmatpush1.bf16.msra.mxu0 %v2960
    %3016 = vmatprep.subr.bf16.mxu0 %v2957
    %3017 = vmatpush1.bf16.msra.mxu0 %v2956
    %3018 = vmatprep.subr.bf16.mxu0 %v2953
    %3019 = vmatpush1.bf16.msra.mxu0 %v2952
    %3020 = vmatprep.subr.bf16.mxu0 %v2949
    %3021 = vmatpush1.bf16.msra.mxu0 %v2948
    %3022 = vmatprep.subr.bf16.mxu0 %v2945
    %3023 = vmatpush1.bf16.msra.mxu0 %v2944
    %3024 = vmatprep.subr.bf16.mxu0 0
    %3025 = vmatpush2.bf16.msra.mxu0 0
    %3026 = vmatprep.subr.bf16.mxu0 0
    %3027 = vmatpush2.bf16.msra.mxu0 0
    %3028 = vmatprep.subr.bf16.mxu0 0
    %3029 = vmatpush2.bf16.msra.mxu0 0
    %3030 = vmatprep.subr.bf16.mxu0 0
    %3031 = vmatpush2.bf16.msra.mxu0 0
    %3032 = vmatprep.subr.bf16.mxu0 0
    %3033 = vmatpush2.bf16.msra.mxu0 0
    %3034 = vmatprep.subr.bf16.mxu0 0
    %3035 = vmatpush2.bf16.msra.mxu0 0
    %3036 = vmatprep.subr.bf16.mxu0 0
    %3037 = vmatpush2.bf16.msra.mxu0 0
    %3038 = vmatprep.subr.bf16.mxu0 0
    %3039 = vmatpush2.bf16.msra.mxu0 0
    %3040 = vmatprep.mubr.bf16.mxu0 0
    %3041 = vmatmul.mubr.bf16.gmra.mxu0 %v2794
    %v3042 = vpop.f32.mrf.mxu0
    %v3043 = vadd.f32 0.0, %v3042
    %v3044 = vpop.f32.mrf.mxu0
    %v3045 = vadd.f32 0.0, %v3044
    %v3046 = vpop.f32.mrf.mxu0
    %v3047 = vadd.f32 0.0, %v3046
    %v3048 = vpop.f32.mrf.mxu0
    %v3049 = vadd.f32 0.0, %v3048
    %3050 = vdwg.mxu0
    %3051 = vmatprep.subr.bf16.mxu0 %v2975
    %3052 = vmatpush1.bf16.msra.mxu0 %v2974
    %3053 = vmatprep.subr.bf16.mxu0 %v2971
    %3054 = vmatpush1.bf16.msra.mxu0 %v2970
    %3055 = vmatprep.subr.bf16.mxu0 %v2967
    %3056 = vmatpush1.bf16.msra.mxu0 %v2966
    %3057 = vmatprep.subr.bf16.mxu0 %v2963
    %3058 = vmatpush1.bf16.msra.mxu0 %v2962
    %3059 = vmatprep.subr.bf16.mxu0 %v2959
    %3060 = vmatpush1.bf16.msra.mxu0 %v2958
    %3061 = vmatprep.subr.bf16.mxu0 %v2955
    %3062 = vmatpush1.bf16.msra.mxu0 %v2954
    %3063 = vmatprep.subr.bf16.mxu0 %v2951
    %3064 = vmatpush1.bf16.msra.mxu0 %v2950
    %3065 = vmatprep.subr.bf16.mxu0 %v2947
    %3066 = vmatpush1.bf16.msra.mxu0 %v2946
    %3067 = vmatprep.subr.bf16.mxu0 0
    %3068 = vmatpush2.bf16.msra.mxu0 0
    %3069 = vmatprep.subr.bf16.mxu0 0
    %3070 = vmatpush2.bf16.msra.mxu0 0
    %3071 = vmatprep.subr.bf16.mxu0 0
    %3072 = vmatpush2.bf16.msra.mxu0 0
    %3073 = vmatprep.subr.bf16.mxu0 0
    %3074 = vmatpush2.bf16.msra.mxu0 0
    %3075 = vmatprep.subr.bf16.mxu0 0
    %3076 = vmatpush2.bf16.msra.mxu0 0
    %3077 = vmatprep.subr.bf16.mxu0 0
    %3078 = vmatpush2.bf16.msra.mxu0 0
    %3079 = vmatprep.subr.bf16.mxu0 0
    %3080 = vmatpush2.bf16.msra.mxu0 0
    %3081 = vmatprep.subr.bf16.mxu0 0
    %3082 = vmatpush2.bf16.msra.mxu0 0
    %3083 = vmatprep.mubr.bf16.mxu0 0
    %3084 = vmatmul.mubr.bf16.gmra.mxu0 %v2794
    %v3085 = vpop.f32.mrf.mxu0
    %v3086 = vadd.f32 0.0, %v3085
    %v3087 = vpop.f32.mrf.mxu0
    %v3088 = vadd.f32 0.0, %v3087
    %v3089 = vpop.f32.mrf.mxu0
    %v3090 = vadd.f32 0.0, %v3089
    %v3091 = vpop.f32.mrf.mxu0
    %v3092 = vadd.f32 0.0, %v3091
    %3093 = vdwg.mxu0
    %v3094 = vadd.f32 %v2808, %v3043
    %v3095 = vadd.f32 %v2809, %v3045
    %v3096 = vadd.f32 %v2810, %v3086
    %v3097 = vadd.f32 %v2811, %v3088
    %v3098 = vadd.f32 %v2812, %v3047
    %v3099 = vadd.f32 %v2813, %v3049
    %v3100 = vadd.f32 %v2814, %v3090
    %v3101 = vadd.f32 %v2815, %v3092
    %v3102 = vxor.u32 %v3094, 2147483648
    %v3103 = vxor.u32 %v3098, 2147483648
    %v3104 = vmul.f32 %v3102, 1.442695
    %v3105 = vpow.pop %v3104
    %v3106 = vmul.f32 %v3103, 1.442695
    %v3107 = vpow.pop %v3106
    %v3108 = vadd.f32 %v3105, 1.0
    %v3109 = vadd.f32 %v3107, 1.0
    %v3110 = vrcp.pop %v3108
    %v3111 = vmul.f32 1.0, %v3110
    %v3112 = vrcp.pop %v3109
    %v3113 = vmul.f32 1.0, %v3112
    %v3114 = vxor.u32 %v3095, 2147483648
    %v3115 = vxor.u32 %v3099, 2147483648
    %v3116 = vmul.f32 %v3114, 1.442695
    %v3117 = vpow.pop %v3116
    %v3118 = vmul.f32 %v3115, 1.442695
    %v3119 = vpow.pop %v3118
    %v3120 = vadd.f32 %v3117, 1.0
    %v3121 = vadd.f32 %v3119, 1.0
    %v3122 = vrcp.pop %v3120
    %v3123 = vmul.f32 1.0, %v3122
    %v3124 = vrcp.pop %v3121
    %v3125 = vmul.f32 1.0, %v3124
    %v3126 = vtanh.pop %v3096
    %v3127 = vtanh.pop %v3100
    %v3128 = vxor.u32 %v3097, 2147483648
    %v3129 = vxor.u32 %v3101, 2147483648
    %v3130 = vmul.f32 %v3128, 1.442695
    %v3131 = vpow.pop %v3130
    %v3132 = vmul.f32 %v3129, 1.442695
    %v3133 = vpow.pop %v3132
    %v3134 = vadd.f32 %v3131, 1.0
    %v3135 = vadd.f32 %v3133, 1.0
    %v3136 = vrcp.pop %v3134
    %v3137 = vmul.f32 1.0, %v3136
    %v3138 = vrcp.pop %v3135
    %v3139 = vmul.f32 1.0, %v3138
    %v3140 = vmul.f32 %v3123, %v2788
    %v3141 = vmul.f32 %v3125, %v2789
    %v3142 = vmul.f32 %v3111, %v3126
    %v3143 = vmul.f32 %v3113, %v3127
    %v3144 = vadd.f32 %v3140, %v3142
    %v3145 = vadd.f32 %v3141, %v3143
    %v3146 = vtanh.pop %v3144
    %v3147 = vtanh.pop %v3145
    %v3148 = vmul.f32 %v3137, %v3146
    %v3149 = vmul.f32 %v3139, %v3147
    %v3150 = vpack.c.bf16 %v3149, %v3148
    %v3152 = vunpack.c.l.b16 %v3150
    %v3153 = vunpack.c.h.b16 %v3150
    %v3154 = vpack.c.b16 %v3152, %v3152
    %v3155 = vpack.c.b16 %v3153, %v3153
    %s3158 = scalar_lea.vmem [#allocation4], 48
    %3159 = vst [vmem:[%s3158] sm:$0xf] %v3154
    %3160 = vst [vmem:[%s3158 + $0x4] sm:$0xf] %v3155
    %s3161 = smul.u32 14, 4
    %s3162 = smul.addr %s3161, 8
    %s3163 = scalar_lea.vmem [#allocation2], %s3162
    %v3164 = vld [vmem:[%s3163] sm:$0xff]
    %v3165 = vld [vmem:[%s3163 + $0x8] sm:$0xff]
    %v3166 = vld [vmem:[%s3163 + $0x10] sm:$0xff]
    %v3167 = vld [vmem:[%s3163 + $0x18] sm:$0xff]
    %v3168 = vld [vmem:[%s3163 + $0x20] sm:$0xff]
    %v3169 = vld [vmem:[%s3163 + $0x28] sm:$0xff]
    %v3170 = vld [vmem:[%s3163 + $0x30] sm:$0xff]
    %v3171 = vld [vmem:[%s3163 + $0x38] sm:$0xff]
    %v3172 = vld [vmem:[#allocation8] sm:$0xff]
    %v3173 = vld [vmem:[#allocation8 + $0x8] sm:$0xff]
    %v3174 = vld [vmem:[#allocation8 + $0x10] sm:$0xff]
    %v3175 = vld [vmem:[#allocation8 + $0x18] sm:$0xff]
    %v3176 = vld [vmem:[#allocation8 + $0x20] sm:$0xff]
    %v3177 = vld [vmem:[#allocation8 + $0x28] sm:$0xff]
    %v3178 = vld [vmem:[#allocation8 + $0x30] sm:$0xff]
    %v3179 = vld [vmem:[#allocation8 + $0x38] sm:$0xff]
    %v3180 = vld [vmem:[#allocation8 + $0x40] sm:$0xff]
    %v3181 = vld [vmem:[#allocation8 + $0x48] sm:$0xff]
    %v3182 = vld [vmem:[#allocation8 + $0x50] sm:$0xff]
    %v3183 = vld [vmem:[#allocation8 + $0x58] sm:$0xff]
    %v3184 = vld [vmem:[#allocation8 + $0x60] sm:$0xff]
    %v3185 = vld [vmem:[#allocation8 + $0x68] sm:$0xff]
    %v3186 = vld [vmem:[#allocation8 + $0x70] sm:$0xff]
    %v3187 = vld [vmem:[#allocation8 + $0x78] sm:$0xff]
    %v3188 = vld [vmem:[#allocation8 + $0x80] sm:$0xff]
    %v3189 = vld [vmem:[#allocation8 + $0x88] sm:$0xff]
    %v3190 = vld [vmem:[#allocation8 + $0x90] sm:$0xff]
    %v3191 = vld [vmem:[#allocation8 + $0x98] sm:$0xff]
    %v3192 = vld [vmem:[#allocation8 + $0xa0] sm:$0xff]
    %v3193 = vld [vmem:[#allocation8 + $0xa8] sm:$0xff]
    %v3194 = vld [vmem:[#allocation8 + $0xb0] sm:$0xff]
    %v3195 = vld [vmem:[#allocation8 + $0xb8] sm:$0xff]
    %v3196 = vld [vmem:[#allocation8 + $0xc0] sm:$0xff]
    %v3197 = vld [vmem:[#allocation8 + $0xc8] sm:$0xff]
    %v3198 = vld [vmem:[#allocation8 + $0xd0] sm:$0xff]
    %v3199 = vld [vmem:[#allocation8 + $0xd8] sm:$0xff]
    %v3200 = vld [vmem:[#allocation8 + $0xe0] sm:$0xff]
    %v3201 = vld [vmem:[#allocation8 + $0xe8] sm:$0xff]
    %v3202 = vld [vmem:[#allocation8 + $0xf0] sm:$0xff]
    %v3203 = vld [vmem:[#allocation8 + $0xf8] sm:$0xff]
    %v3236 = vunpack.c.l.b16 %v3172
    %v3237 = vunpack.c.h.b16 %v3172
    %v3238 = vunpack.c.l.b16 %v3173
    %v3239 = vunpack.c.h.b16 %v3173
    %v3240 = vunpack.c.l.b16 %v3174
    %v3241 = vunpack.c.h.b16 %v3174
    %v3242 = vunpack.c.l.b16 %v3175
    %v3243 = vunpack.c.h.b16 %v3175
    %v3244 = vunpack.c.l.b16 %v3176
    %v3245 = vunpack.c.h.b16 %v3176
    %v3246 = vunpack.c.l.b16 %v3177
    %v3247 = vunpack.c.h.b16 %v3177
    %v3248 = vunpack.c.l.b16 %v3178
    %v3249 = vunpack.c.h.b16 %v3178
    %v3250 = vunpack.c.l.b16 %v3179
    %v3251 = vunpack.c.h.b16 %v3179
    %v3252 = vunpack.c.l.b16 %v3180
    %v3253 = vunpack.c.h.b16 %v3180
    %v3254 = vunpack.c.l.b16 %v3181
    %v3255 = vunpack.c.h.b16 %v3181
    %v3256 = vunpack.c.l.b16 %v3182
    %v3257 = vunpack.c.h.b16 %v3182
    %v3258 = vunpack.c.l.b16 %v3183
    %v3259 = vunpack.c.h.b16 %v3183
    %v3260 = vunpack.c.l.b16 %v3184
    %v3261 = vunpack.c.h.b16 %v3184
    %v3262 = vunpack.c.l.b16 %v3185
    %v3263 = vunpack.c.h.b16 %v3185
    %v3264 = vunpack.c.l.b16 %v3186
    %v3265 = vunpack.c.h.b16 %v3186
    %v3266 = vunpack.c.l.b16 %v3187
    %v3267 = vunpack.c.h.b16 %v3187
    %v3268 = vunpack.c.l.b16 %v3188
    %v3269 = vunpack.c.h.b16 %v3188
    %v3270 = vunpack.c.l.b16 %v3189
    %v3271 = vunpack.c.h.b16 %v3189
    %v3272 = vunpack.c.l.b16 %v3190
    %v3273 = vunpack.c.h.b16 %v3190
    %v3274 = vunpack.c.l.b16 %v3191
    %v3275 = vunpack.c.h.b16 %v3191
    %v3276 = vunpack.c.l.b16 %v3192
    %v3277 = vunpack.c.h.b16 %v3192
    %v3278 = vunpack.c.l.b16 %v3193
    %v3279 = vunpack.c.h.b16 %v3193
    %v3280 = vunpack.c.l.b16 %v3194
    %v3281 = vunpack.c.h.b16 %v3194
    %v3282 = vunpack.c.l.b16 %v3195
    %v3283 = vunpack.c.h.b16 %v3195
    %v3284 = vunpack.c.l.b16 %v3196
    %v3285 = vunpack.c.h.b16 %v3196
    %v3286 = vunpack.c.l.b16 %v3197
    %v3287 = vunpack.c.h.b16 %v3197
    %v3288 = vunpack.c.l.b16 %v3198
    %v3289 = vunpack.c.h.b16 %v3198
    %v3290 = vunpack.c.l.b16 %v3199
    %v3291 = vunpack.c.h.b16 %v3199
    %v3292 = vunpack.c.l.b16 %v3200
    %v3293 = vunpack.c.h.b16 %v3200
    %v3294 = vunpack.c.l.b16 %v3201
    %v3295 = vunpack.c.h.b16 %v3201
    %v3296 = vunpack.c.l.b16 %v3202
    %v3297 = vunpack.c.h.b16 %v3202
    %v3298 = vunpack.c.l.b16 %v3203
    %v3299 = vunpack.c.h.b16 %v3203
    %v3300 = vpack.c.b16 %v3240, %v3236
    %v3301 = vpack.c.b16 %v3241, %v3237
    %v3302 = vpack.c.b16 %v3242, %v3238
    %v3303 = vpack.c.b16 %v3243, %v3239
    %v3304 = vpack.c.b16 %v3248, %v3244
    %v3305 = vpack.c.b16 %v3249, %v3245
    %v3306 = vpack.c.b16 %v3250, %v3246
    %v3307 = vpack.c.b16 %v3251, %v3247
    %v3308 = vpack.c.b16 %v3256, %v3252
    %v3309 = vpack.c.b16 %v3257, %v3253
    %v3310 = vpack.c.b16 %v3258, %v3254
    %v3311 = vpack.c.b16 %v3259, %v3255
    %v3312 = vpack.c.b16 %v3264, %v3260
    %v3313 = vpack.c.b16 %v3265, %v3261
    %v3314 = vpack.c.b16 %v3266, %v3262
    %v3315 = vpack.c.b16 %v3267, %v3263
    %v3316 = vpack.c.b16 %v3272, %v3268
    %v3317 = vpack.c.b16 %v3273, %v3269
    %v3318 = vpack.c.b16 %v3274, %v3270
    %v3319 = vpack.c.b16 %v3275, %v3271
    %v3320 = vpack.c.b16 %v3280, %v3276
    %v3321 = vpack.c.b16 %v3281, %v3277
    %v3322 = vpack.c.b16 %v3282, %v3278
    %v3323 = vpack.c.b16 %v3283, %v3279
    %v3324 = vpack.c.b16 %v3288, %v3284
    %v3325 = vpack.c.b16 %v3289, %v3285
    %v3326 = vpack.c.b16 %v3290, %v3286
    %v3327 = vpack.c.b16 %v3291, %v3287
    %v3328 = vpack.c.b16 %v3296, %v3292
    %v3329 = vpack.c.b16 %v3297, %v3293
    %v3330 = vpack.c.b16 %v3298, %v3294
    %v3331 = vpack.c.b16 %v3299, %v3295
    %3364 = vmatprep.subr.bf16.mxu0 %v3329
    %3365 = vmatpush1.bf16.msra.mxu0 %v3328
    %3366 = vmatprep.subr.bf16.mxu0 %v3325
    %3367 = vmatpush1.bf16.msra.mxu0 %v3324
    %3368 = vmatprep.subr.bf16.mxu0 %v3321
    %3369 = vmatpush1.bf16.msra.mxu0 %v3320
    %3370 = vmatprep.subr.bf16.mxu0 %v3317
    %3371 = vmatpush1.bf16.msra.mxu0 %v3316
    %3372 = vmatprep.subr.bf16.mxu0 %v3313
    %3373 = vmatpush1.bf16.msra.mxu0 %v3312
    %3374 = vmatprep.subr.bf16.mxu0 %v3309
    %3375 = vmatpush1.bf16.msra.mxu0 %v3308
    %3376 = vmatprep.subr.bf16.mxu0 %v3305
    %3377 = vmatpush1.bf16.msra.mxu0 %v3304
    %3378 = vmatprep.subr.bf16.mxu0 %v3301
    %3379 = vmatpush1.bf16.msra.mxu0 %v3300
    %3380 = vmatprep.subr.bf16.mxu0 0
    %3381 = vmatpush2.bf16.msra.mxu0 0
    %3382 = vmatprep.subr.bf16.mxu0 0
    %3383 = vmatpush2.bf16.msra.mxu0 0
    %3384 = vmatprep.subr.bf16.mxu0 0
    %3385 = vmatpush2.bf16.msra.mxu0 0
    %3386 = vmatprep.subr.bf16.mxu0 0
    %3387 = vmatpush2.bf16.msra.mxu0 0
    %3388 = vmatprep.subr.bf16.mxu0 0
    %3389 = vmatpush2.bf16.msra.mxu0 0
    %3390 = vmatprep.subr.bf16.mxu0 0
    %3391 = vmatpush2.bf16.msra.mxu0 0
    %3392 = vmatprep.subr.bf16.mxu0 0
    %3393 = vmatpush2.bf16.msra.mxu0 0
    %3394 = vmatprep.subr.bf16.mxu0 0
    %3395 = vmatpush2.bf16.msra.mxu0 0
    %3396 = vmatprep.mubr.bf16.mxu0 0
    %3397 = vmatmul.mubr.bf16.gmra.mxu0 %v3150
    %v3398 = vpop.f32.mrf.mxu0
    %v3399 = vadd.f32 0.0, %v3398
    %v3400 = vpop.f32.mrf.mxu0
    %v3401 = vadd.f32 0.0, %v3400
    %v3402 = vpop.f32.mrf.mxu0
    %v3403 = vadd.f32 0.0, %v3402
    %v3404 = vpop.f32.mrf.mxu0
    %v3405 = vadd.f32 0.0, %v3404
    %3406 = vdwg.mxu0
    %3407 = vmatprep.subr.bf16.mxu0 %v3331
    %3408 = vmatpush1.bf16.msra.mxu0 %v3330
    %3409 = vmatprep.subr.bf16.mxu0 %v3327
    %3410 = vmatpush1.bf16.msra.mxu0 %v3326
    %3411 = vmatprep.subr.bf16.mxu0 %v3323
    %3412 = vmatpush1.bf16.msra.mxu0 %v3322
    %3413 = vmatprep.subr.bf16.mxu0 %v3319
    %3414 = vmatpush1.bf16.msra.mxu0 %v3318
    %3415 = vmatprep.subr.bf16.mxu0 %v3315
    %3416 = vmatpush1.bf16.msra.mxu0 %v3314
    %3417 = vmatprep.subr.bf16.mxu0 %v3311
    %3418 = vmatpush1.bf16.msra.mxu0 %v3310
    %3419 = vmatprep.subr.bf16.mxu0 %v3307
    %3420 = vmatpush1.bf16.msra.mxu0 %v3306
    %3421 = vmatprep.subr.bf16.mxu0 %v3303
    %3422 = vmatpush1.bf16.msra.mxu0 %v3302
    %3423 = vmatprep.subr.bf16.mxu0 0
    %3424 = vmatpush2.bf16.msra.mxu0 0
    %3425 = vmatprep.subr.bf16.mxu0 0
    %3426 = vmatpush2.bf16.msra.mxu0 0
    %3427 = vmatprep.subr.bf16.mxu0 0
    %3428 = vmatpush2.bf16.msra.mxu0 0
    %3429 = vmatprep.subr.bf16.mxu0 0
    %3430 = vmatpush2.bf16.msra.mxu0 0
    %3431 = vmatprep.subr.bf16.mxu0 0
    %3432 = vmatpush2.bf16.msra.mxu0 0
    %3433 = vmatprep.subr.bf16.mxu0 0
    %3434 = vmatpush2.bf16.msra.mxu0 0
    %3435 = vmatprep.subr.bf16.mxu0 0
    %3436 = vmatpush2.bf16.msra.mxu0 0
    %3437 = vmatprep.subr.bf16.mxu0 0
    %3438 = vmatpush2.bf16.msra.mxu0 0
    %3439 = vmatprep.mubr.bf16.mxu0 0
    %3440 = vmatmul.mubr.bf16.gmra.mxu0 %v3150
    %v3441 = vpop.f32.mrf.mxu0
    %v3442 = vadd.f32 0.0, %v3441
    %v3443 = vpop.f32.mrf.mxu0
    %v3444 = vadd.f32 0.0, %v3443
    %v3445 = vpop.f32.mrf.mxu0
    %v3446 = vadd.f32 0.0, %v3445
    %v3447 = vpop.f32.mrf.mxu0
    %v3448 = vadd.f32 0.0, %v3447
    %3449 = vdwg.mxu0
    %v3450 = vadd.f32 %v3164, %v3399
    %v3451 = vadd.f32 %v3165, %v3401
    %v3452 = vadd.f32 %v3166, %v3442
    %v3453 = vadd.f32 %v3167, %v3444
    %v3454 = vadd.f32 %v3168, %v3403
    %v3455 = vadd.f32 %v3169, %v3405
    %v3456 = vadd.f32 %v3170, %v3446
    %v3457 = vadd.f32 %v3171, %v3448
    %v3458 = vxor.u32 %v3450, 2147483648
    %v3459 = vxor.u32 %v3454, 2147483648
    %v3460 = vmul.f32 %v3458, 1.442695
    %v3461 = vpow.pop %v3460
    %v3462 = vmul.f32 %v3459, 1.442695
    %v3463 = vpow.pop %v3462
    %v3464 = vadd.f32 %v3461, 1.0
    %v3465 = vadd.f32 %v3463, 1.0
    %v3466 = vrcp.pop %v3464
    %v3467 = vmul.f32 1.0, %v3466
    %v3468 = vrcp.pop %v3465
    %v3469 = vmul.f32 1.0, %v3468
    %v3470 = vxor.u32 %v3451, 2147483648
    %v3471 = vxor.u32 %v3455, 2147483648
    %v3472 = vmul.f32 %v3470, 1.442695
    %v3473 = vpow.pop %v3472
    %v3474 = vmul.f32 %v3471, 1.442695
    %v3475 = vpow.pop %v3474
    %v3476 = vadd.f32 %v3473, 1.0
    %v3477 = vadd.f32 %v3475, 1.0
    %v3478 = vrcp.pop %v3476
    %v3479 = vmul.f32 1.0, %v3478
    %v3480 = vrcp.pop %v3477
    %v3481 = vmul.f32 1.0, %v3480
    %v3482 = vtanh.pop %v3452
    %v3483 = vtanh.pop %v3456
    %v3484 = vxor.u32 %v3453, 2147483648
    %v3485 = vxor.u32 %v3457, 2147483648
    %v3486 = vmul.f32 %v3484, 1.442695
    %v3487 = vpow.pop %v3486
    %v3488 = vmul.f32 %v3485, 1.442695
    %v3489 = vpow.pop %v3488
    %v3490 = vadd.f32 %v3487, 1.0
    %v3491 = vadd.f32 %v3489, 1.0
    %v3492 = vrcp.pop %v3490
    %v3493 = vmul.f32 1.0, %v3492
    %v3494 = vrcp.pop %v3491
    %v3495 = vmul.f32 1.0, %v3494
    %v3496 = vmul.f32 %v3479, %v3144
    %v3497 = vmul.f32 %v3481, %v3145
    %v3498 = vmul.f32 %v3467, %v3482
    %v3499 = vmul.f32 %v3469, %v3483
    %v3500 = vadd.f32 %v3496, %v3498
    %v3501 = vadd.f32 %v3497, %v3499
    %v3502 = vtanh.pop %v3500
    %v3503 = vtanh.pop %v3501
    %v3504 = vmul.f32 %v3493, %v3502
    %v3505 = vmul.f32 %v3495, %v3503
    %v3506 = vpack.c.bf16 %v3505, %v3504
    %v3508 = vunpack.c.l.b16 %v3506
    %v3509 = vunpack.c.h.b16 %v3506
    %v3510 = vpack.c.b16 %v3508, %v3508
    %v3511 = vpack.c.b16 %v3509, %v3509
    %s3514 = scalar_lea.vmem [#allocation4], 56
    %3515 = vst [vmem:[%s3514] sm:$0xf] %v3510
    %3516 = vst [vmem:[%s3514 + $0x4] sm:$0xf] %v3511
    %3517 = vst [vmem:[%s12] sm:$0xff] %v3504
    %3518 = vst [vmem:[%s12 + $0x8] sm:$0xff] %v3505
    %3519 = vst [vmem:[%s13] sm:$0xff] %v3500
    %3520 = vst [vmem:[%s13 + $0x8] sm:$0xff] %v3501
    %v3521 = vld [vmem:[#allocation4] sm:$0xf]
    %v3522 = vld [vmem:[#allocation4 + $0x4] sm:$0xf]
    %v3523 = vld [vmem:[#allocation4 + $0x8] sm:$0xf]
    %v3524 = vld [vmem:[#allocation4 + $0xc] sm:$0xf]
    %v3525 = vld [vmem:[#allocation4 + $0x10] sm:$0xf]
    %v3526 = vld [vmem:[#allocation4 + $0x14] sm:$0xf]
    %v3527 = vld [vmem:[#allocation4 + $0x18] sm:$0xf]
    %v3528 = vld [vmem:[#allocation4 + $0x1c] sm:$0xf]
    %v3529 = vld [vmem:[#allocation4 + $0x20] sm:$0xf]
    %v3530 = vld [vmem:[#allocation4 + $0x24] sm:$0xf]
    %v3531 = vld [vmem:[#allocation4 + $0x28] sm:$0xf]
    %v3532 = vld [vmem:[#allocation4 + $0x2c] sm:$0xf]
    %v3533 = vld [vmem:[#allocation4 + $0x30] sm:$0xf]
    %v3534 = vld [vmem:[#allocation4 + $0x34] sm:$0xf]
    %v3535 = vld [vmem:[#allocation4 + $0x38] sm:$0xf]
    %v3536 = vld [vmem:[#allocation4 + $0x3c] sm:$0xf]
    %v3537 = vld [vmem:[#allocation10] sm:$0xff]
    %v3538 = vld [vmem:[#allocation10 + $0x8] sm:$0xff]
    %v3539 = vld [vmem:[#allocation10 + $0x10] sm:$0xff]
    %v3540 = vld [vmem:[#allocation10 + $0x18] sm:$0xff]
    %v3541 = vld [vmem:[#allocation10 + $0x20] sm:$0xff]
    %v3542 = vld [vmem:[#allocation10 + $0x28] sm:$0xff]
    %v3543 = vld [vmem:[#allocation10 + $0x30] sm:$0xff]
    %v3544 = vld [vmem:[#allocation10 + $0x38] sm:$0xff]
    %v3545 = vld [vmem:[#allocation10 + $0x40] sm:$0xff]
    %v3546 = vld [vmem:[#allocation10 + $0x48] sm:$0xff]
    %v3547 = vld [vmem:[#allocation10 + $0x50] sm:$0xff]
    %v3548 = vld [vmem:[#allocation10 + $0x58] sm:$0xff]
    %v3549 = vld [vmem:[#allocation10 + $0x60] sm:$0xff]
    %v3550 = vld [vmem:[#allocation10 + $0x68] sm:$0xff]
    %v3551 = vld [vmem:[#allocation10 + $0x70] sm:$0xff]
    %v3552 = vld [vmem:[#allocation10 + $0x78] sm:$0xff]
    %v3553 = vld [vmem:[#allocation10 + $0x80] sm:$0xff]
    %v3554 = vld [vmem:[#allocation10 + $0x88] sm:$0xff]
    %v3555 = vld [vmem:[#allocation10 + $0x90] sm:$0xff]
    %v3556 = vld [vmem:[#allocation10 + $0x98] sm:$0xff]
    %v3557 = vld [vmem:[#allocation10 + $0xa0] sm:$0xff]
    %v3558 = vld [vmem:[#allocation10 + $0xa8] sm:$0xff]
    %v3559 = vld [vmem:[#allocation10 + $0xb0] sm:$0xff]
    %v3560 = vld [vmem:[#allocation10 + $0xb8] sm:$0xff]
    %v3561 = vld [vmem:[#allocation10 + $0xc0] sm:$0xff]
    %v3562 = vld [vmem:[#allocation10 + $0xc8] sm:$0xff]
    %v3563 = vld [vmem:[#allocation10 + $0xd0] sm:$0xff]
    %v3564 = vld [vmem:[#allocation10 + $0xd8] sm:$0xff]
    %v3565 = vld [vmem:[#allocation10 + $0xe0] sm:$0xff]
    %v3566 = vld [vmem:[#allocation10 + $0xe8] sm:$0xff]
    %v3567 = vld [vmem:[#allocation10 + $0xf0] sm:$0xff]
    %v3568 = vld [vmem:[#allocation10 + $0xf8] sm:$0xff]
    %v3569 = vld [vmem:[%s8] sm:$0xf]
    %v3571 = vlaneseq
    %v3572 = vshrl.u32 %v3571, 7
    %v3573 = vsub.s32 0, %v3572
    %v3574 = vrot.slane %v3569, %v3573
    %v3575 = vlaneseq
    %v3576 = vshrl.u32 %v3575, 7
    %v3577 = vsub.s32 1, %v3576
    %v3578 = vrot.slane %v3569, %v3577
    %v3579 = vlaneseq
    %v3580 = vshrl.u32 %v3579, 7
    %v3581 = vsub.s32 2, %v3580
    %v3582 = vrot.slane %v3569, %v3581
    %v3583 = vlaneseq
    %v3584 = vshrl.u32 %v3583, 7
    %v3585 = vsub.s32 3, %v3584
    %v3586 = vrot.slane %v3569, %v3585
    %v3607 = vunpack.c.l.b16 %v3521
    %v3608 = vunpack.c.l.b16 %v3522
    %v3609 = vunpack.c.l.b16 %v3523
    %v3610 = vunpack.c.l.b16 %v3524
    %v3611 = vunpack.c.l.b16 %v3525
    %v3612 = vunpack.c.l.b16 %v3526
    %v3613 = vunpack.c.l.b16 %v3527
    %v3614 = vunpack.c.l.b16 %v3528
    %v3615 = vunpack.c.l.b16 %v3529
    %v3616 = vunpack.c.l.b16 %v3530
    %v3617 = vunpack.c.l.b16 %v3531
    %v3618 = vunpack.c.l.b16 %v3532
    %v3619 = vunpack.c.l.b16 %v3533
    %v3620 = vunpack.c.l.b16 %v3534
    %v3621 = vunpack.c.l.b16 %v3535
    %v3622 = vunpack.c.l.b16 %v3536
    %v3623 = vpack.c.b16 %v3608, %v3607
    %v3624 = vpack.c.b16 %v3610, %v3609
    %v3625 = vpack.c.b16 %v3612, %v3611
    %v3626 = vpack.c.b16 %v3614, %v3613
    %v3627 = vpack.c.b16 %v3616, %v3615
    %v3628 = vpack.c.b16 %v3618, %v3617
    %v3629 = vpack.c.b16 %v3620, %v3619
    %v3630 = vpack.c.b16 %v3622, %v3621
    %v3671 = vunpack.c.l.b16 %v3537
    %v3672 = vunpack.c.h.b16 %v3537
    %v3673 = vunpack.c.l.b16 %v3538
    %v3674 = vunpack.c.h.b16 %v3538
    %v3675 = vunpack.c.l.b16 %v3539
    %v3676 = vunpack.c.h.b16 %v3539
    %v3677 = vunpack.c.l.b16 %v3540
    %v3678 = vunpack.c.h.b16 %v3540
    %v3679 = vunpack.c.l.b16 %v3541
    %v3680 = vunpack.c.h.b16 %v3541
    %v3681 = vunpack.c.l.b16 %v3542
    %v3682 = vunpack.c.h.b16 %v3542
    %v3683 = vunpack.c.l.b16 %v3543
    %v3684 = vunpack.c.h.b16 %v3543
    %v3685 = vunpack.c.l.b16 %v3544
    %v3686 = vunpack.c.h.b16 %v3544
    %v3687 = vunpack.c.l.b16 %v3545
    %v3688 = vunpack.c.h.b16 %v3545
    %v3689 = vunpack.c.l.b16 %v3546
    %v3690 = vunpack.c.h.b16 %v3546
    %v3691 = vunpack.c.l.b16 %v3547
    %v3692 = vunpack.c.h.b16 %v3547
    %v3693 = vunpack.c.l.b16 %v3548
    %v3694 = vunpack.c.h.b16 %v3548
    %v3695 = vunpack.c.l.b16 %v3549
    %v3696 = vunpack.c.h.b16 %v3549
    %v3697 = vunpack.c.l.b16 %v3550
    %v3698 = vunpack.c.h.b16 %v3550
    %v3699 = vunpack.c.l.b16 %v3551
    %v3700 = vunpack.c.h.b16 %v3551
    %v3701 = vunpack.c.l.b16 %v3552
    %v3702 = vunpack.c.h.b16 %v3552
    %v3703 = vunpack.c.l.b16 %v3553
    %v3704 = vunpack.c.h.b16 %v3553
    %v3705 = vunpack.c.l.b16 %v3554
    %v3706 = vunpack.c.h.b16 %v3554
    %v3707 = vunpack.c.l.b16 %v3555
    %v3708 = vunpack.c.h.b16 %v3555
    %v3709 = vunpack.c.l.b16 %v3556
    %v3710 = vunpack.c.h.b16 %v3556
    %v3711 = vunpack.c.l.b16 %v3557
    %v3712 = vunpack.c.h.b16 %v3557
    %v3713 = vunpack.c.l.b16 %v3558
    %v3714 = vunpack.c.h.b16 %v3558
    %v3715 = vunpack.c.l.b16 %v3559
    %v3716 = vunpack.c.h.b16 %v3559
    %v3717 = vunpack.c.l.b16 %v3560
    %v3718 = vunpack.c.h.b16 %v3560
    %v3719 = vunpack.c.l.b16 %v3561
    %v3720 = vunpack.c.h.b16 %v3561
    %v3721 = vunpack.c.l.b16 %v3562
    %v3722 = vunpack.c.h.b16 %v3562
    %v3723 = vunpack.c.l.b16 %v3563
    %v3724 = vunpack.c.h.b16 %v3563
    %v3725 = vunpack.c.l.b16 %v3564
    %v3726 = vunpack.c.h.b16 %v3564
    %v3727 = vunpack.c.l.b16 %v3565
    %v3728 = vunpack.c.h.b16 %v3565
    %v3729 = vunpack.c.l.b16 %v3566
    %v3730 = vunpack.c.h.b16 %v3566
    %v3731 = vunpack.c.l.b16 %v3567
    %v3732 = vunpack.c.h.b16 %v3567
    %v3733 = vunpack.c.l.b16 %v3568
    %v3734 = vunpack.c.h.b16 %v3568
    %v3735 = vpack.c.b16 %v3675, %v3671
    %v3736 = vpack.c.b16 %v3676, %v3672
    %v3737 = vpack.c.b16 %v3677, %v3673
    %v3738 = vpack.c.b16 %v3678, %v3674
    %v3739 = vpack.c.b16 %v3683, %v3679
    %v3740 = vpack.c.b16 %v3684, %v3680
    %v3741 = vpack.c.b16 %v3685, %v3681
    %v3742 = vpack.c.b16 %v3686, %v3682
    %v3743 = vpack.c.b16 %v3691, %v3687
    %v3744 = vpack.c.b16 %v3692, %v3688
    %v3745 = vpack.c.b16 %v3693, %v3689
    %v3746 = vpack.c.b16 %v3694, %v3690
    %v3747 = vpack.c.b16 %v3699, %v3695
    %v3748 = vpack.c.b16 %v3700, %v3696
    %v3749 = vpack.c.b16 %v3701, %v3697
    %v3750 = vpack.c.b16 %v3702, %v3698
    %v3751 = vpack.c.b16 %v3707, %v3703
    %v3752 = vpack.c.b16 %v3708, %v3704
    %v3753 = vpack.c.b16 %v3709, %v3705
    %v3754 = vpack.c.b16 %v3710, %v3706
    %v3755 = vpack.c.b16 %v3715, %v3711
    %v3756 = vpack.c.b16 %v3716, %v3712
    %v3757 = vpack.c.b16 %v3717, %v3713
    %v3758 = vpack.c.b16 %v3718, %v3714
    %v3759 = vpack.c.b16 %v3723, %v3719
    %v3760 = vpack.c.b16 %v3724, %v3720
    %v3761 = vpack.c.b16 %v3725, %v3721
    %v3762 = vpack.c.b16 %v3726, %v3722
    %v3763 = vpack.c.b16 %v3731, %v3727
    %v3764 = vpack.c.b16 %v3732, %v3728
    %v3765 = vpack.c.b16 %v3733, %v3729
    %v3766 = vpack.c.b16 %v3734, %v3730
    %3799 = vmatprep.subr.bf16.mxu0 %v3764
    %3800 = vmatpush1.bf16.msra.mxu0 %v3763
    %3801 = vmatprep.subr.bf16.mxu0 %v3760
    %3802 = vmatpush1.bf16.msra.mxu0 %v3759
    %3803 = vmatprep.subr.bf16.mxu0 %v3756
    %3804 = vmatpush1.bf16.msra.mxu0 %v3755
    %3805 = vmatprep.subr.bf16.mxu0 %v3752
    %3806 = vmatpush1.bf16.msra.mxu0 %v3751
    %3807 = vmatprep.subr.bf16.mxu0 %v3748
    %3808 = vmatpush1.bf16.msra.mxu0 %v3747
    %3809 = vmatprep.subr.bf16.mxu0 %v3744
    %3810 = vmatpush1.bf16.msra.mxu0 %v3743
    %3811 = vmatprep.subr.bf16.mxu0 %v3740
    %3812 = vmatpush1.bf16.msra.mxu0 %v3739
    %3813 = vmatprep.subr.bf16.mxu0 %v3736
    %3814 = vmatpush1.bf16.msra.mxu0 %v3735
    %3815 = vmatprep.subr.bf16.mxu0 0
    %3816 = vmatpush2.bf16.msra.mxu0 0
    %3817 = vmatprep.subr.bf16.mxu0 0
    %3818 = vmatpush2.bf16.msra.mxu0 0
    %3819 = vmatprep.subr.bf16.mxu0 0
    %3820 = vmatpush2.bf16.msra.mxu0 0
    %3821 = vmatprep.subr.bf16.mxu0 0
    %3822 = vmatpush2.bf16.msra.mxu0 0
    %3823 = vmatprep.subr.bf16.mxu0 0
    %3824 = vmatpush2.bf16.msra.mxu0 0
    %3825 = vmatprep.subr.bf16.mxu0 0
    %3826 = vmatpush2.bf16.msra.mxu0 0
    %3827 = vmatprep.subr.bf16.mxu0 0
    %3828 = vmatpush2.bf16.msra.mxu0 0
    %3829 = vmatprep.subr.bf16.mxu0 0
    %3830 = vmatpush2.bf16.msra.mxu0 0
    %3831 = vmatprep.mubr.bf16.mxu0 0
    %3832 = vmatmul.mubr.bf16.gmra.mxu0 %v3623
    %v3833 = vpop.f32.mrf.mxu0
    %v3834 = vadd.f32 %v3574, %v3833
    %v3835 = vpop.f32.mrf.mxu0
    %v3836 = vadd.f32 %v3578, %v3835
    %v3837 = vpop.f32.mrf.mxu0
    %v3838 = vadd.f32 %v3574, %v3837
    %v3839 = vpop.f32.mrf.mxu0
    %v3840 = vadd.f32 %v3578, %v3839
    %3841 = vmatprep.mubr.bf16.mxu0 0
    %3842 = vmatmul.mubr.bf16.gmra.mxu0 %v3624
    %v3843 = vpop.f32.mrf.mxu0
    %v3844 = vadd.f32 %v3574, %v3843
    %v3845 = vpop.f32.mrf.mxu0
    %v3846 = vadd.f32 %v3578, %v3845
    %v3847 = vpop.f32.mrf.mxu0
    %v3848 = vadd.f32 %v3574, %v3847
    %v3849 = vpop.f32.mrf.mxu0
    %v3850 = vadd.f32 %v3578, %v3849
    %3851 = vmatprep.mubr.bf16.mxu0 0
    %3852 = vmatmul.mubr.bf16.gmra.mxu0 %v3625
    %v3853 = vpop.f32.mrf.mxu0
    %v3854 = vadd.f32 %v3574, %v3853
    %v3855 = vpop.f32.mrf.mxu0
    %v3856 = vadd.f32 %v3578, %v3855
    %v3857 = vpop.f32.mrf.mxu0
    %v3858 = vadd.f32 %v3574, %v3857
    %v3859 = vpop.f32.mrf.mxu0
    %v3860 = vadd.f32 %v3578, %v3859
    %3861 = vmatprep.mubr.bf16.mxu0 0
    %3862 = vmatmul.mubr.bf16.gmra.mxu0 %v3626
    %v3863 = vpop.f32.mrf.mxu0
    %v3864 = vadd.f32 %v3574, %v3863
    %v3865 = vpop.f32.mrf.mxu0
    %v3866 = vadd.f32 %v3578, %v3865
    %v3867 = vpop.f32.mrf.mxu0
    %v3868 = vadd.f32 %v3574, %v3867
    %v3869 = vpop.f32.mrf.mxu0
    %v3870 = vadd.f32 %v3578, %v3869
    %3871 = vmatprep.mubr.bf16.mxu0 0
    %3872 = vmatmul.mubr.bf16.gmra.mxu0 %v3627
    %v3873 = vpop.f32.mrf.mxu0
    %v3874 = vadd.f32 %v3574, %v3873
    %v3875 = vpop.f32.mrf.mxu0
    %v3876 = vadd.f32 %v3578, %v3875
    %v3877 = vpop.f32.mrf.mxu0
    %v3878 = vadd.f32 %v3574, %v3877
    %v3879 = vpop.f32.mrf.mxu0
    %v3880 = vadd.f32 %v3578, %v3879
    %3881 = vmatprep.mubr.bf16.mxu0 0
    %3882 = vmatmul.mubr.bf16.gmra.mxu0 %v3628
    %v3883 = vpop.f32.mrf.mxu0
    %v3884 = vadd.f32 %v3574, %v3883
    %v3885 = vpop.f32.mrf.mxu0
    %v3886 = vadd.f32 %v3578, %v3885
    %v3887 = vpop.f32.mrf.mxu0
    %v3888 = vadd.f32 %v3574, %v3887
    %v3889 = vpop.f32.mrf.mxu0
    %v3890 = vadd.f32 %v3578, %v3889
    %3891 = vmatprep.mubr.bf16.mxu0 0
    %3892 = vmatmul.mubr.bf16.gmra.mxu0 %v3629
    %v3893 = vpop.f32.mrf.mxu0
    %v3894 = vadd.f32 %v3574, %v3893
    %v3895 = vpop.f32.mrf.mxu0
    %v3896 = vadd.f32 %v3578, %v3895
    %v3897 = vpop.f32.mrf.mxu0
    %v3898 = vadd.f32 %v3574, %v3897
    %v3899 = vpop.f32.mrf.mxu0
    %v3900 = vadd.f32 %v3578, %v3899
    %3901 = vmatprep.mubr.bf16.mxu0 0
    %3902 = vmatmul.mubr.bf16.gmra.mxu0 %v3630
    %v3903 = vpop.f32.mrf.mxu0
    %v3904 = vadd.f32 %v3574, %v3903
    %v3905 = vpop.f32.mrf.mxu0
    %v3906 = vadd.f32 %v3578, %v3905
    %v3907 = vpop.f32.mrf.mxu0
    %v3908 = vadd.f32 %v3574, %v3907
    %v3909 = vpop.f32.mrf.mxu0
    %v3910 = vadd.f32 %v3578, %v3909
    %3911 = vdwg.mxu0
    %3912 = vmatprep.subr.bf16.mxu0 %v3766
    %3913 = vmatpush1.bf16.msra.mxu0 %v3765
    %3914 = vmatprep.subr.bf16.mxu0 %v3762
    %3915 = vmatpush1.bf16.msra.mxu0 %v3761
    %3916 = vmatprep.subr.bf16.mxu0 %v3758
    %3917 = vmatpush1.bf16.msra.mxu0 %v3757
    %3918 = vmatprep.subr.bf16.mxu0 %v3754
    %3919 = vmatpush1.bf16.msra.mxu0 %v3753
    %3920 = vmatprep.subr.bf16.mxu0 %v3750
    %3921 = vmatpush1.bf16.msra.mxu0 %v3749
    %3922 = vmatprep.subr.bf16.mxu0 %v3746
    %3923 = vmatpush1.bf16.msra.mxu0 %v3745
    %3924 = vmatprep.subr.bf16.mxu0 %v3742
    %3925 = vmatpush1.bf16.msra.mxu0 %v3741
    %3926 = vmatprep.subr.bf16.mxu0 %v3738
    %3927 = vmatpush1.bf16.msra.mxu0 %v3737
    %3928 = vmatprep.subr.bf16.mxu0 0
    %3929 = vmatpush2.bf16.msra.mxu0 0
    %3930 = vmatprep.subr.bf16.mxu0 0
    %3931 = vmatpush2.bf16.msra.mxu0 0
    %3932 = vmatprep.subr.bf16.mxu0 0
    %3933 = vmatpush2.bf16.msra.mxu0 0
    %3934 = vmatprep.subr.bf16.mxu0 0
    %3935 = vmatpush2.bf16.msra.mxu0 0
    %3936 = vmatprep.subr.bf16.mxu0 0
    %3937 = vmatpush2.bf16.msra.mxu0 0
    %3938 = vmatprep.subr.bf16.mxu0 0
    %3939 = vmatpush2.bf16.msra.mxu0 0
    %3940 = vmatprep.subr.bf16.mxu0 0
    %3941 = vmatpush2.bf16.msra.mxu0 0
    %3942 = vmatprep.subr.bf16.mxu0 0
    %3943 = vmatpush2.bf16.msra.mxu0 0
    %3944 = vmatprep.mubr.bf16.mxu0 0
    %3945 = vmatmul.mubr.bf16.gmra.mxu0 %v3623
    %v3946 = vpop.f32.mrf.mxu0
    %v3947 = vadd.f32 %v3582, %v3946
    %v3948 = vpop.f32.mrf.mxu0
    %v3949 = vadd.f32 %v3586, %v3948
    %v3950 = vpop.f32.mrf.mxu0
    %v3951 = vadd.f32 %v3582, %v3950
    %v3952 = vpop.f32.mrf.mxu0
    %v3953 = vadd.f32 %v3586, %v3952
    %3954 = vmatprep.mubr.bf16.mxu0 0
    %3955 = vmatmul.mubr.bf16.gmra.mxu0 %v3624
    %v3956 = vpop.f32.mrf.mxu0
    %v3957 = vadd.f32 %v3582, %v3956
    %v3958 = vpop.f32.mrf.mxu0
    %v3959 = vadd.f32 %v3586, %v3958
    %v3960 = vpop.f32.mrf.mxu0
    %v3961 = vadd.f32 %v3582, %v3960
    %v3962 = vpop.f32.mrf.mxu0
    %v3963 = vadd.f32 %v3586, %v3962
    %3964 = vmatprep.mubr.bf16.mxu0 0
    %3965 = vmatmul.mubr.bf16.gmra.mxu0 %v3625
    %v3966 = vpop.f32.mrf.mxu0
    %v3967 = vadd.f32 %v3582, %v3966
    %v3968 = vpop.f32.mrf.mxu0
    %v3969 = vadd.f32 %v3586, %v3968
    %v3970 = vpop.f32.mrf.mxu0
    %v3971 = vadd.f32 %v3582, %v3970
    %v3972 = vpop.f32.mrf.mxu0
    %v3973 = vadd.f32 %v3586, %v3972
    %3974 = vmatprep.mubr.bf16.mxu0 0
    %3975 = vmatmul.mubr.bf16.gmra.mxu0 %v3626
    %v3976 = vpop.f32.mrf.mxu0
    %v3977 = vadd.f32 %v3582, %v3976
    %v3978 = vpop.f32.mrf.mxu0
    %v3979 = vadd.f32 %v3586, %v3978
    %v3980 = vpop.f32.mrf.mxu0
    %v3981 = vadd.f32 %v3582, %v3980
    %v3982 = vpop.f32.mrf.mxu0
    %v3983 = vadd.f32 %v3586, %v3982
    %3984 = vmatprep.mubr.bf16.mxu0 0
    %3985 = vmatmul.mubr.bf16.gmra.mxu0 %v3627
    %v3986 = vpop.f32.mrf.mxu0
    %v3987 = vadd.f32 %v3582, %v3986
    %v3988 = vpop.f32.mrf.mxu0
    %v3989 = vadd.f32 %v3586, %v3988
    %v3990 = vpop.f32.mrf.mxu0
    %v3991 = vadd.f32 %v3582, %v3990
    %v3992 = vpop.f32.mrf.mxu0
    %v3993 = vadd.f32 %v3586, %v3992
    %3994 = vmatprep.mubr.bf16.mxu0 0
    %3995 = vmatmul.mubr.bf16.gmra.mxu0 %v3628
    %v3996 = vpop.f32.mrf.mxu0
    %v3997 = vadd.f32 %v3582, %v3996
    %v3998 = vpop.f32.mrf.mxu0
    %v3999 = vadd.f32 %v3586, %v3998
    %v4000 = vpop.f32.mrf.mxu0
    %v4001 = vadd.f32 %v3582, %v4000
    %v4002 = vpop.f32.mrf.mxu0
    %v4003 = vadd.f32 %v3586, %v4002
    %4004 = vmatprep.mubr.bf16.mxu0 0
    %4005 = vmatmul.mubr.bf16.gmra.mxu0 %v3629
    %v4006 = vpop.f32.mrf.mxu0
    %v4007 = vadd.f32 %v3582, %v4006
    %v4008 = vpop.f32.mrf.mxu0
    %v4009 = vadd.f32 %v3586, %v4008
    %v4010 = vpop.f32.mrf.mxu0
    %v4011 = vadd.f32 %v3582, %v4010
    %v4012 = vpop.f32.mrf.mxu0
    %v4013 = vadd.f32 %v3586, %v4012
    %4014 = vmatprep.mubr.bf16.mxu0 0
    %4015 = vmatmul.mubr.bf16.gmra.mxu0 %v3630
    %v4016 = vpop.f32.mrf.mxu0
    %v4017 = vadd.f32 %v3582, %v4016
    %v4018 = vpop.f32.mrf.mxu0
    %v4019 = vadd.f32 %v3586, %v4018
    %v4020 = vpop.f32.mrf.mxu0
    %v4021 = vadd.f32 %v3582, %v4020
    %v4022 = vpop.f32.mrf.mxu0
    %v4023 = vadd.f32 %v3586, %v4022
    %4024 = vdwg.mxu0
    %4025 = vst [vmem:[#allocation2] sm:$0xff] %v3834
    %4026 = vst [vmem:[#allocation2 + $0x8] sm:$0xff] %v3836
    %4027 = vst [vmem:[#allocation2 + $0x10] sm:$0xff] %v3947
    %4028 = vst [vmem:[#allocation2 + $0x18] sm:$0xff] %v3949
    %4029 = vst [vmem:[#allocation2 + $0x20] sm:$0xff] %v3838
    %4030 = vst [vmem:[#allocation2 + $0x28] sm:$0xff] %v3840
    %4031 = vst [vmem:[#allocation2 + $0x30] sm:$0xff] %v3951
    %4032 = vst [vmem:[#allocation2 + $0x38] sm:$0xff] %v3953
    %4033 = vst [vmem:[#allocation2 + $0x40] sm:$0xff] %v3844
    %4034 = vst [vmem:[#allocation2 + $0x48] sm:$0xff] %v3846
    %4035 = vst [vmem:[#allocation2 + $0x50] sm:$0xff] %v3957
    %4036 = vst [vmem:[#allocation2 + $0x58] sm:$0xff] %v3959
    %4037 = vst [vmem:[#allocation2 + $0x60] sm:$0xff] %v3848
    %4038 = vst [vmem:[#allocation2 + $0x68] sm:$0xff] %v3850
    %4039 = vst [vmem:[#allocation2 + $0x70] sm:$0xff] %v3961
    %4040 = vst [vmem:[#allocation2 + $0x78] sm:$0xff] %v3963
    %4041 = vst [vmem:[#allocation2 + $0x80] sm:$0xff] %v3854
    %4042 = vst [vmem:[#allocation2 + $0x88] sm:$0xff] %v3856
    %4043 = vst [vmem:[#allocation2 + $0x90] sm:$0xff] %v3967
    %4044 = vst [vmem:[#allocation2 + $0x98] sm:$0xff] %v3969
    %4045 = vst [vmem:[#allocation2 + $0xa0] sm:$0xff] %v3858
    %4046 = vst [vmem:[#allocation2 + $0xa8] sm:$0xff] %v3860
    %4047 = vst [vmem:[#allocation2 + $0xb0] sm:$0xff] %v3971
    %4048 = vst [vmem:[#allocation2 + $0xb8] sm:$0xff] %v3973
    %4049 = vst [vmem:[#allocation2 + $0xc0] sm:$0xff] %v3864
    %4050 = vst [vmem:[#allocation2 + $0xc8] sm:$0xff] %v3866
    %4051 = vst [vmem:[#allocation2 + $0xd0] sm:$0xff] %v3977
    %4052 = vst [vmem:[#allocation2 + $0xd8] sm:$0xff] %v3979
    %4053 = vst [vmem:[#allocation2 + $0xe0] sm:$0xff] %v3868
    %4054 = vst [vmem:[#allocation2 + $0xe8] sm:$0xff] %v3870
    %4055 = vst [vmem:[#allocation2 + $0xf0] sm:$0xff] %v3981
    %4056 = vst [vmem:[#allocation2 + $0xf8] sm:$0xff] %v3983
    %4057 = vst [vmem:[#allocation2 + $0x100] sm:$0xff] %v3874
    %4058 = vst [vmem:[#allocation2 + $0x108] sm:$0xff] %v3876
    %4059 = vst [vmem:[#allocation2 + $0x110] sm:$0xff] %v3987
    %4060 = vst [vmem:[#allocation2 + $0x118] sm:$0xff] %v3989
    %4061 = vst [vmem:[#allocation2 + $0x120] sm:$0xff] %v3878
    %4062 = vst [vmem:[#allocation2 + $0x128] sm:$0xff] %v3880
    %4063 = vst [vmem:[#allocation2 + $0x130] sm:$0xff] %v3991
    %4064 = vst [vmem:[#allocation2 + $0x138] sm:$0xff] %v3993
    %4065 = vst [vmem:[#allocation2 + $0x140] sm:$0xff] %v3884
    %4066 = vst [vmem:[#allocation2 + $0x148] sm:$0xff] %v3886
    %4067 = vst [vmem:[#allocation2 + $0x150] sm:$0xff] %v3997
    %4068 = vst [vmem:[#allocation2 + $0x158] sm:$0xff] %v3999
    %4069 = vst [vmem:[#allocation2 + $0x160] sm:$0xff] %v3888
    %4070 = vst [vmem:[#allocation2 + $0x168] sm:$0xff] %v3890
    %4071 = vst [vmem:[#allocation2 + $0x170] sm:$0xff] %v4001
    %4072 = vst [vmem:[#allocation2 + $0x178] sm:$0xff] %v4003
    %4073 = vst [vmem:[#allocation2 + $0x180] sm:$0xff] %v3894
    %4074 = vst [vmem:[#allocation2 + $0x188] sm:$0xff] %v3896
    %4075 = vst [vmem:[#allocation2 + $0x190] sm:$0xff] %v4007
    %4076 = vst [vmem:[#allocation2 + $0x198] sm:$0xff] %v4009
    %4077 = vst [vmem:[#allocation2 + $0x1a0] sm:$0xff] %v3898
    %4078 = vst [vmem:[#allocation2 + $0x1a8] sm:$0xff] %v3900
    %4079 = vst [vmem:[#allocation2 + $0x1b0] sm:$0xff] %v4011
    %4080 = vst [vmem:[#allocation2 + $0x1b8] sm:$0xff] %v4013
    %4081 = vst [vmem:[#allocation2 + $0x1c0] sm:$0xff] %v3904
    %4082 = vst [vmem:[#allocation2 + $0x1c8] sm:$0xff] %v3906
    %4083 = vst [vmem:[#allocation2 + $0x1d0] sm:$0xff] %v4017
    %4084 = vst [vmem:[#allocation2 + $0x1d8] sm:$0xff] %v4019
    %4085 = vst [vmem:[#allocation2 + $0x1e0] sm:$0xff] %v3908
    %4086 = vst [vmem:[#allocation2 + $0x1e8] sm:$0xff] %v3910
    %4087 = vst [vmem:[#allocation2 + $0x1f0] sm:$0xff] %v4021
    %4088 = vst [vmem:[#allocation2 + $0x1f8] sm:$0xff] %v4023
    %s4089 = scalar_lea.vmem %s1, 16
    %v4090 = vld [vmem:[%s4089] sm:$0xff]
    %v4091 = vld [vmem:[%s4089 + $0x8] sm:$0xff]
    %s4092 = scalar_lea.vmem %s2, 16
    %v4093 = vld [vmem:[%s4092] sm:$0xff]
    %v4094 = vld [vmem:[%s4092 + $0x8] sm:$0xff]
    %v4095 = vld [vmem:[%s671] sm:$0xff]
    %v4096 = vld [vmem:[%s671 + $0x8] sm:$0xff]
    %v4097 = vld [vmem:[%s671 + $0x10] sm:$0xff]
    %v4098 = vld [vmem:[%s671 + $0x18] sm:$0xff]
    %v4099 = vld [vmem:[%s671 + $0x20] sm:$0xff]
    %v4100 = vld [vmem:[%s671 + $0x28] sm:$0xff]
    %v4101 = vld [vmem:[%s671 + $0x30] sm:$0xff]
    %v4102 = vld [vmem:[%s671 + $0x38] sm:$0xff]
    %v4103 = vpack.c.bf16 %v4091, %v4090
    %v4104 = vld [vmem:[#allocation11] sm:$0xff]
    %v4105 = vld [vmem:[#allocation11 + $0x8] sm:$0xff]
    %v4106 = vld [vmem:[#allocation11 + $0x10] sm:$0xff]
    %v4107 = vld [vmem:[#allocation11 + $0x18] sm:$0xff]
    %v4108 = vld [vmem:[#allocation11 + $0x20] sm:$0xff]
    %v4109 = vld [vmem:[#allocation11 + $0x28] sm:$0xff]
    %v4110 = vld [vmem:[#allocation11 + $0x30] sm:$0xff]
    %v4111 = vld [vmem:[#allocation11 + $0x38] sm:$0xff]
    %v4112 = vld [vmem:[#allocation11 + $0x40] sm:$0xff]
    %v4113 = vld [vmem:[#allocation11 + $0x48] sm:$0xff]
    %v4114 = vld [vmem:[#allocation11 + $0x50] sm:$0xff]
    %v4115 = vld [vmem:[#allocation11 + $0x58] sm:$0xff]
    %v4116 = vld [vmem:[#allocation11 + $0x60] sm:$0xff]
    %v4117 = vld [vmem:[#allocation11 + $0x68] sm:$0xff]
    %v4118 = vld [vmem:[#allocation11 + $0x70] sm:$0xff]
    %v4119 = vld [vmem:[#allocation11 + $0x78] sm:$0xff]
    %v4120 = vld [vmem:[#allocation11 + $0x80] sm:$0xff]
    %v4121 = vld [vmem:[#allocation11 + $0x88] sm:$0xff]
    %v4122 = vld [vmem:[#allocation11 + $0x90] sm:$0xff]
    %v4123 = vld [vmem:[#allocation11 + $0x98] sm:$0xff]
    %v4124 = vld [vmem:[#allocation11 + $0xa0] sm:$0xff]
    %v4125 = vld [vmem:[#allocation11 + $0xa8] sm:$0xff]
    %v4126 = vld [vmem:[#allocation11 + $0xb0] sm:$0xff]
    %v4127 = vld [vmem:[#allocation11 + $0xb8] sm:$0xff]
    %v4128 = vld [vmem:[#allocation11 + $0xc0] sm:$0xff]
    %v4129 = vld [vmem:[#allocation11 + $0xc8] sm:$0xff]
    %v4130 = vld [vmem:[#allocation11 + $0xd0] sm:$0xff]
    %v4131 = vld [vmem:[#allocation11 + $0xd8] sm:$0xff]
    %v4132 = vld [vmem:[#allocation11 + $0xe0] sm:$0xff]
    %v4133 = vld [vmem:[#allocation11 + $0xe8] sm:$0xff]
    %v4134 = vld [vmem:[#allocation11 + $0xf0] sm:$0xff]
    %v4135 = vld [vmem:[#allocation11 + $0xf8] sm:$0xff]
    %v4168 = vunpack.c.l.b16 %v4104
    %v4169 = vunpack.c.h.b16 %v4104
    %v4170 = vunpack.c.l.b16 %v4105
    %v4171 = vunpack.c.h.b16 %v4105
    %v4172 = vunpack.c.l.b16 %v4106
    %v4173 = vunpack.c.h.b16 %v4106
    %v4174 = vunpack.c.l.b16 %v4107
    %v4175 = vunpack.c.h.b16 %v4107
    %v4176 = vunpack.c.l.b16 %v4108
    %v4177 = vunpack.c.h.b16 %v4108
    %v4178 = vunpack.c.l.b16 %v4109
    %v4179 = vunpack.c.h.b16 %v4109
    %v4180 = vunpack.c.l.b16 %v4110
    %v4181 = vunpack.c.h.b16 %v4110
    %v4182 = vunpack.c.l.b16 %v4111
    %v4183 = vunpack.c.h.b16 %v4111
    %v4184 = vunpack.c.l.b16 %v4112
    %v4185 = vunpack.c.h.b16 %v4112
    %v4186 = vunpack.c.l.b16 %v4113
    %v4187 = vunpack.c.h.b16 %v4113
    %v4188 = vunpack.c.l.b16 %v4114
    %v4189 = vunpack.c.h.b16 %v4114
    %v4190 = vunpack.c.l.b16 %v4115
    %v4191 = vunpack.c.h.b16 %v4115
    %v4192 = vunpack.c.l.b16 %v4116
    %v4193 = vunpack.c.h.b16 %v4116
    %v4194 = vunpack.c.l.b16 %v4117
    %v4195 = vunpack.c.h.b16 %v4117
    %v4196 = vunpack.c.l.b16 %v4118
    %v4197 = vunpack.c.h.b16 %v4118
    %v4198 = vunpack.c.l.b16 %v4119
    %v4199 = vunpack.c.h.b16 %v4119
    %v4200 = vunpack.c.l.b16 %v4120
    %v4201 = vunpack.c.h.b16 %v4120
    %v4202 = vunpack.c.l.b16 %v4121
    %v4203 = vunpack.c.h.b16 %v4121
    %v4204 = vunpack.c.l.b16 %v4122
    %v4205 = vunpack.c.h.b16 %v4122
    %v4206 = vunpack.c.l.b16 %v4123
    %v4207 = vunpack.c.h.b16 %v4123
    %v4208 = vunpack.c.l.b16 %v4124
    %v4209 = vunpack.c.h.b16 %v4124
    %v4210 = vunpack.c.l.b16 %v4125
    %v4211 = vunpack.c.h.b16 %v4125
    %v4212 = vunpack.c.l.b16 %v4126
    %v4213 = vunpack.c.h.b16 %v4126
    %v4214 = vunpack.c.l.b16 %v4127
    %v4215 = vunpack.c.h.b16 %v4127
    %v4216 = vunpack.c.l.b16 %v4128
    %v4217 = vunpack.c.h.b16 %v4128
    %v4218 = vunpack.c.l.b16 %v4129
    %v4219 = vunpack.c.h.b16 %v4129
    %v4220 = vunpack.c.l.b16 %v4130
    %v4221 = vunpack.c.h.b16 %v4130
    %v4222 = vunpack.c.l.b16 %v4131
    %v4223 = vunpack.c.h.b16 %v4131
    %v4224 = vunpack.c.l.b16 %v4132
    %v4225 = vunpack.c.h.b16 %v4132
    %v4226 = vunpack.c.l.b16 %v4133
    %v4227 = vunpack.c.h.b16 %v4133
    %v4228 = vunpack.c.l.b16 %v4134
    %v4229 = vunpack.c.h.b16 %v4134
    %v4230 = vunpack.c.l.b16 %v4135
    %v4231 = vunpack.c.h.b16 %v4135
    %v4232 = vpack.c.b16 %v4172, %v4168
    %v4233 = vpack.c.b16 %v4173, %v4169
    %v4234 = vpack.c.b16 %v4174, %v4170
    %v4235 = vpack.c.b16 %v4175, %v4171
    %v4236 = vpack.c.b16 %v4180, %v4176
    %v4237 = vpack.c.b16 %v4181, %v4177
    %v4238 = vpack.c.b16 %v4182, %v4178
    %v4239 = vpack.c.b16 %v4183, %v4179
    %v4240 = vpack.c.b16 %v4188, %v4184
    %v4241 = vpack.c.b16 %v4189, %v4185
    %v4242 = vpack.c.b16 %v4190, %v4186
    %v4243 = vpack.c.b16 %v4191, %v4187
    %v4244 = vpack.c.b16 %v4196, %v4192
    %v4245 = vpack.c.b16 %v4197, %v4193
    %v4246 = vpack.c.b16 %v4198, %v4194
    %v4247 = vpack.c.b16 %v4199, %v4195
    %v4248 = vpack.c.b16 %v4204, %v4200
    %v4249 = vpack.c.b16 %v4205, %v4201
    %v4250 = vpack.c.b16 %v4206, %v4202
    %v4251 = vpack.c.b16 %v4207, %v4203
    %v4252 = vpack.c.b16 %v4212, %v4208
    %v4253 = vpack.c.b16 %v4213, %v4209
    %v4254 = vpack.c.b16 %v4214, %v4210
    %v4255 = vpack.c.b16 %v4215, %v4211
    %v4256 = vpack.c.b16 %v4220, %v4216
    %v4257 = vpack.c.b16 %v4221, %v4217
    %v4258 = vpack.c.b16 %v4222, %v4218
    %v4259 = vpack.c.b16 %v4223, %v4219
    %v4260 = vpack.c.b16 %v4228, %v4224
    %v4261 = vpack.c.b16 %v4229, %v4225
    %v4262 = vpack.c.b16 %v4230, %v4226
    %v4263 = vpack.c.b16 %v4231, %v4227
    %4296 = vmatprep.subr.bf16.mxu0 %v4261
    %4297 = vmatpush1.bf16.msra.mxu0 %v4260
    %4298 = vmatprep.subr.bf16.mxu0 %v4257
    %4299 = vmatpush1.bf16.msra.mxu0 %v4256
    %4300 = vmatprep.subr.bf16.mxu0 %v4253
    %4301 = vmatpush1.bf16.msra.mxu0 %v4252
    %4302 = vmatprep.subr.bf16.mxu0 %v4249
    %4303 = vmatpush1.bf16.msra.mxu0 %v4248
    %4304 = vmatprep.subr.bf16.mxu0 %v4245
    %4305 = vmatpush1.bf16.msra.mxu0 %v4244
    %4306 = vmatprep.subr.bf16.mxu0 %v4241
    %4307 = vmatpush1.bf16.msra.mxu0 %v4240
    %4308 = vmatprep.subr.bf16.mxu0 %v4237
    %4309 = vmatpush1.bf16.msra.mxu0 %v4236
    %4310 = vmatprep.subr.bf16.mxu0 %v4233
    %4311 = vmatpush1.bf16.msra.mxu0 %v4232
    %4312 = vmatprep.subr.bf16.mxu0 0
    %4313 = vmatpush2.bf16.msra.mxu0 0
    %4314 = vmatprep.subr.bf16.mxu0 0
    %4315 = vmatpush2.bf16.msra.mxu0 0
    %4316 = vmatprep.subr.bf16.mxu0 0
    %4317 = vmatpush2.bf16.msra.mxu0 0
    %4318 = vmatprep.subr.bf16.mxu0 0
    %4319 = vmatpush2.bf16.msra.mxu0 0
    %4320 = vmatprep.subr.bf16.mxu0 0
    %4321 = vmatpush2.bf16.msra.mxu0 0
    %4322 = vmatprep.subr.bf16.mxu0 0
    %4323 = vmatpush2.bf16.msra.mxu0 0
    %4324 = vmatprep.subr.bf16.mxu0 0
    %4325 = vmatpush2.bf16.msra.mxu0 0
    %4326 = vmatprep.subr.bf16.mxu0 0
    %4327 = vmatpush2.bf16.msra.mxu0 0
    %4328 = vmatprep.mubr.bf16.mxu0 0
    %4329 = vmatmul.mubr.bf16.gmra.mxu0 %v4103
    %v4330 = vpop.f32.mrf.mxu0
    %v4331 = vadd.f32 0.0, %v4330
    %v4332 = vpop.f32.mrf.mxu0
    %v4333 = vadd.f32 0.0, %v4332
    %v4334 = vpop.f32.mrf.mxu0
    %v4335 = vadd.f32 0.0, %v4334
    %v4336 = vpop.f32.mrf.mxu0
    %v4337 = vadd.f32 0.0, %v4336
    %4338 = vdwg.mxu0
    %4339 = vmatprep.subr.bf16.mxu0 %v4263
    %4340 = vmatpush1.bf16.msra.mxu0 %v4262
    %4341 = vmatprep.subr.bf16.mxu0 %v4259
    %4342 = vmatpush1.bf16.msra.mxu0 %v4258
    %4343 = vmatprep.subr.bf16.mxu0 %v4255
    %4344 = vmatpush1.bf16.msra.mxu0 %v4254
    %4345 = vmatprep.subr.bf16.mxu0 %v4251
    %4346 = vmatpush1.bf16.msra.mxu0 %v4250
    %4347 = vmatprep.subr.bf16.mxu0 %v4247
    %4348 = vmatpush1.bf16.msra.mxu0 %v4246
    %4349 = vmatprep.subr.bf16.mxu0 %v4243
    %4350 = vmatpush1.bf16.msra.mxu0 %v4242
    %4351 = vmatprep.subr.bf16.mxu0 %v4239
    %4352 = vmatpush1.bf16.msra.mxu0 %v4238
    %4353 = vmatprep.subr.bf16.mxu0 %v4235
    %4354 = vmatpush1.bf16.msra.mxu0 %v4234
    %4355 = vmatprep.subr.bf16.mxu0 0
    %4356 = vmatpush2.bf16.msra.mxu0 0
    %4357 = vmatprep.subr.bf16.mxu0 0
    %4358 = vmatpush2.bf16.msra.mxu0 0
    %4359 = vmatprep.subr.bf16.mxu0 0
    %4360 = vmatpush2.bf16.msra.mxu0 0
    %4361 = vmatprep.subr.bf16.mxu0 0
    %4362 = vmatpush2.bf16.msra.mxu0 0
    %4363 = vmatprep.subr.bf16.mxu0 0
    %4364 = vmatpush2.bf16.msra.mxu0 0
    %4365 = vmatprep.subr.bf16.mxu0 0
    %4366 = vmatpush2.bf16.msra.mxu0 0
    %4367 = vmatprep.subr.bf16.mxu0 0
    %4368 = vmatpush2.bf16.msra.mxu0 0
    %4369 = vmatprep.subr.bf16.mxu0 0
    %4370 = vmatpush2.bf16.msra.mxu0 0
    %4371 = vmatprep.mubr.bf16.mxu0 0
    %4372 = vmatmul.mubr.bf16.gmra.mxu0 %v4103
    %v4373 = vpop.f32.mrf.mxu0
    %v4374 = vadd.f32 0.0, %v4373
    %v4375 = vpop.f32.mrf.mxu0
    %v4376 = vadd.f32 0.0, %v4375
    %v4377 = vpop.f32.mrf.mxu0
    %v4378 = vadd.f32 0.0, %v4377
    %v4379 = vpop.f32.mrf.mxu0
    %v4380 = vadd.f32 0.0, %v4379
    %4381 = vdwg.mxu0
    %v4382 = vadd.f32 %v4095, %v4331
    %v4383 = vadd.f32 %v4096, %v4333
    %v4384 = vadd.f32 %v4097, %v4374
    %v4385 = vadd.f32 %v4098, %v4376
    %v4386 = vadd.f32 %v4099, %v4335
    %v4387 = vadd.f32 %v4100, %v4337
    %v4388 = vadd.f32 %v4101, %v4378
    %v4389 = vadd.f32 %v4102, %v4380
    %v4390 = vxor.u32 %v4382, 2147483648
    %v4391 = vxor.u32 %v4386, 2147483648
    %v4392 = vmul.f32 %v4390, 1.442695
    %v4393 = vpow.pop %v4392
    %v4394 = vmul.f32 %v4391, 1.442695
    %v4395 = vpow.pop %v4394
    %v4396 = vadd.f32 %v4393, 1.0
    %v4397 = vadd.f32 %v4395, 1.0
    %v4398 = vrcp.pop %v4396
    %v4399 = vmul.f32 1.0, %v4398
    %v4400 = vrcp.pop %v4397
    %v4401 = vmul.f32 1.0, %v4400
    %v4402 = vxor.u32 %v4383, 2147483648
    %v4403 = vxor.u32 %v4387, 2147483648
    %v4404 = vmul.f32 %v4402, 1.442695
    %v4405 = vpow.pop %v4404
    %v4406 = vmul.f32 %v4403, 1.442695
    %v4407 = vpow.pop %v4406
    %v4408 = vadd.f32 %v4405, 1.0
    %v4409 = vadd.f32 %v4407, 1.0
    %v4410 = vrcp.pop %v4408
    %v4411 = vmul.f32 1.0, %v4410
    %v4412 = vrcp.pop %v4409
    %v4413 = vmul.f32 1.0, %v4412
    %v4414 = vtanh.pop %v4384
    %v4415 = vtanh.pop %v4388
    %v4416 = vxor.u32 %v4385, 2147483648
    %v4417 = vxor.u32 %v4389, 2147483648
    %v4418 = vmul.f32 %v4416, 1.442695
    %v4419 = vpow.pop %v4418
    %v4420 = vmul.f32 %v4417, 1.442695
    %v4421 = vpow.pop %v4420
    %v4422 = vadd.f32 %v4419, 1.0
    %v4423 = vadd.f32 %v4421, 1.0
    %v4424 = vrcp.pop %v4422
    %v4425 = vmul.f32 1.0, %v4424
    %v4426 = vrcp.pop %v4423
    %v4427 = vmul.f32 1.0, %v4426
    %v4428 = vmul.f32 %v4411, %v4093
    %v4429 = vmul.f32 %v4413, %v4094
    %v4430 = vmul.f32 %v4399, %v4414
    %v4431 = vmul.f32 %v4401, %v4415
    %v4432 = vadd.f32 %v4428, %v4430
    %v4433 = vadd.f32 %v4429, %v4431
    %v4434 = vtanh.pop %v4432
    %v4435 = vtanh.pop %v4433
    %v4436 = vmul.f32 %v4425, %v4434
    %v4437 = vmul.f32 %v4427, %v4435
    %v4438 = vpack.c.bf16 %v4437, %v4436
    %v4440 = vunpack.c.l.b16 %v4438
    %v4441 = vunpack.c.h.b16 %v4438
    %v4442 = vpack.c.b16 %v4440, %v4440
    %v4443 = vpack.c.b16 %v4441, %v4441
    %4446 = vst [vmem:[#allocation5] sm:$0xf] %v4442
    %4447 = vst [vmem:[#allocation5 + $0x4] sm:$0xf] %v4443
    %v4448 = vld [vmem:[%s1027] sm:$0xff]
    %v4449 = vld [vmem:[%s1027 + $0x8] sm:$0xff]
    %v4450 = vld [vmem:[%s1027 + $0x10] sm:$0xff]
    %v4451 = vld [vmem:[%s1027 + $0x18] sm:$0xff]
    %v4452 = vld [vmem:[%s1027 + $0x20] sm:$0xff]
    %v4453 = vld [vmem:[%s1027 + $0x28] sm:$0xff]
    %v4454 = vld [vmem:[%s1027 + $0x30] sm:$0xff]
    %v4455 = vld [vmem:[%s1027 + $0x38] sm:$0xff]
    %v4456 = vld [vmem:[#allocation11] sm:$0xff]
    %v4457 = vld [vmem:[#allocation11 + $0x8] sm:$0xff]
    %v4458 = vld [vmem:[#allocation11 + $0x10] sm:$0xff]
    %v4459 = vld [vmem:[#allocation11 + $0x18] sm:$0xff]
    %v4460 = vld [vmem:[#allocation11 + $0x20] sm:$0xff]
    %v4461 = vld [vmem:[#allocation11 + $0x28] sm:$0xff]
    %v4462 = vld [vmem:[#allocation11 + $0x30] sm:$0xff]
    %v4463 = vld [vmem:[#allocation11 + $0x38] sm:$0xff]
    %v4464 = vld [vmem:[#allocation11 + $0x40] sm:$0xff]
    %v4465 = vld [vmem:[#allocation11 + $0x48] sm:$0xff]
    %v4466 = vld [vmem:[#allocation11 + $0x50] sm:$0xff]
    %v4467 = vld [vmem:[#allocation11 + $0x58] sm:$0xff]
    %v4468 = vld [vmem:[#allocation11 + $0x60] sm:$0xff]
    %v4469 = vld [vmem:[#allocation11 + $0x68] sm:$0xff]
    %v4470 = vld [vmem:[#allocation11 + $0x70] sm:$0xff]
    %v4471 = vld [vmem:[#allocation11 + $0x78] sm:$0xff]
    %v4472 = vld [vmem:[#allocation11 + $0x80] sm:$0xff]
    %v4473 = vld [vmem:[#allocation11 + $0x88] sm:$0xff]
    %v4474 = vld [vmem:[#allocation11 + $0x90] sm:$0xff]
    %v4475 = vld [vmem:[#allocation11 + $0x98] sm:$0xff]
    %v4476 = vld [vmem:[#allocation11 + $0xa0] sm:$0xff]
    %v4477 = vld [vmem:[#allocation11 + $0xa8] sm:$0xff]
    %v4478 = vld [vmem:[#allocation11 + $0xb0] sm:$0xff]
    %v4479 = vld [vmem:[#allocation11 + $0xb8] sm:$0xff]
    %v4480 = vld [vmem:[#allocation11 + $0xc0] sm:$0xff]
    %v4481 = vld [vmem:[#allocation11 + $0xc8] sm:$0xff]
    %v4482 = vld [vmem:[#allocation11 + $0xd0] sm:$0xff]
    %v4483 = vld [vmem:[#allocation11 + $0xd8] sm:$0xff]
    %v4484 = vld [vmem:[#allocation11 + $0xe0] sm:$0xff]
    %v4485 = vld [vmem:[#allocation11 + $0xe8] sm:$0xff]
    %v4486 = vld [vmem:[#allocation11 + $0xf0] sm:$0xff]
    %v4487 = vld [vmem:[#allocation11 + $0xf8] sm:$0xff]
    %v4520 = vunpack.c.l.b16 %v4456
    %v4521 = vunpack.c.h.b16 %v4456
    %v4522 = vunpack.c.l.b16 %v4457
    %v4523 = vunpack.c.h.b16 %v4457
    %v4524 = vunpack.c.l.b16 %v4458
    %v4525 = vunpack.c.h.b16 %v4458
    %v4526 = vunpack.c.l.b16 %v4459
    %v4527 = vunpack.c.h.b16 %v4459
    %v4528 = vunpack.c.l.b16 %v4460
    %v4529 = vunpack.c.h.b16 %v4460
    %v4530 = vunpack.c.l.b16 %v4461
    %v4531 = vunpack.c.h.b16 %v4461
    %v4532 = vunpack.c.l.b16 %v4462
    %v4533 = vunpack.c.h.b16 %v4462
    %v4534 = vunpack.c.l.b16 %v4463
    %v4535 = vunpack.c.h.b16 %v4463
    %v4536 = vunpack.c.l.b16 %v4464
    %v4537 = vunpack.c.h.b16 %v4464
    %v4538 = vunpack.c.l.b16 %v4465
    %v4539 = vunpack.c.h.b16 %v4465
    %v4540 = vunpack.c.l.b16 %v4466
    %v4541 = vunpack.c.h.b16 %v4466
    %v4542 = vunpack.c.l.b16 %v4467
    %v4543 = vunpack.c.h.b16 %v4467
    %v4544 = vunpack.c.l.b16 %v4468
    %v4545 = vunpack.c.h.b16 %v4468
    %v4546 = vunpack.c.l.b16 %v4469
    %v4547 = vunpack.c.h.b16 %v4469
    %v4548 = vunpack.c.l.b16 %v4470
    %v4549 = vunpack.c.h.b16 %v4470
    %v4550 = vunpack.c.l.b16 %v4471
    %v4551 = vunpack.c.h.b16 %v4471
    %v4552 = vunpack.c.l.b16 %v4472
    %v4553 = vunpack.c.h.b16 %v4472
    %v4554 = vunpack.c.l.b16 %v4473
    %v4555 = vunpack.c.h.b16 %v4473
    %v4556 = vunpack.c.l.b16 %v4474
    %v4557 = vunpack.c.h.b16 %v4474
    %v4558 = vunpack.c.l.b16 %v4475
    %v4559 = vunpack.c.h.b16 %v4475
    %v4560 = vunpack.c.l.b16 %v4476
    %v4561 = vunpack.c.h.b16 %v4476
    %v4562 = vunpack.c.l.b16 %v4477
    %v4563 = vunpack.c.h.b16 %v4477
    %v4564 = vunpack.c.l.b16 %v4478
    %v4565 = vunpack.c.h.b16 %v4478
    %v4566 = vunpack.c.l.b16 %v4479
    %v4567 = vunpack.c.h.b16 %v4479
    %v4568 = vunpack.c.l.b16 %v4480
    %v4569 = vunpack.c.h.b16 %v4480
    %v4570 = vunpack.c.l.b16 %v4481
    %v4571 = vunpack.c.h.b16 %v4481
    %v4572 = vunpack.c.l.b16 %v4482
    %v4573 = vunpack.c.h.b16 %v4482
    %v4574 = vunpack.c.l.b16 %v4483
    %v4575 = vunpack.c.h.b16 %v4483
    %v4576 = vunpack.c.l.b16 %v4484
    %v4577 = vunpack.c.h.b16 %v4484
    %v4578 = vunpack.c.l.b16 %v4485
    %v4579 = vunpack.c.h.b16 %v4485
    %v4580 = vunpack.c.l.b16 %v4486
    %v4581 = vunpack.c.h.b16 %v4486
    %v4582 = vunpack.c.l.b16 %v4487
    %v4583 = vunpack.c.h.b16 %v4487
    %v4584 = vpack.c.b16 %v4524, %v4520
    %v4585 = vpack.c.b16 %v4525, %v4521
    %v4586 = vpack.c.b16 %v4526, %v4522
    %v4587 = vpack.c.b16 %v4527, %v4523
    %v4588 = vpack.c.b16 %v4532, %v4528
    %v4589 = vpack.c.b16 %v4533, %v4529
    %v4590 = vpack.c.b16 %v4534, %v4530
    %v4591 = vpack.c.b16 %v4535, %v4531
    %v4592 = vpack.c.b16 %v4540, %v4536
    %v4593 = vpack.c.b16 %v4541, %v4537
    %v4594 = vpack.c.b16 %v4542, %v4538
    %v4595 = vpack.c.b16 %v4543, %v4539
    %v4596 = vpack.c.b16 %v4548, %v4544
    %v4597 = vpack.c.b16 %v4549, %v4545
    %v4598 = vpack.c.b16 %v4550, %v4546
    %v4599 = vpack.c.b16 %v4551, %v4547
    %v4600 = vpack.c.b16 %v4556, %v4552
    %v4601 = vpack.c.b16 %v4557, %v4553
    %v4602 = vpack.c.b16 %v4558, %v4554
    %v4603 = vpack.c.b16 %v4559, %v4555
    %v4604 = vpack.c.b16 %v4564, %v4560
    %v4605 = vpack.c.b16 %v4565, %v4561
    %v4606 = vpack.c.b16 %v4566, %v4562
    %v4607 = vpack.c.b16 %v4567, %v4563
    %v4608 = vpack.c.b16 %v4572, %v4568
    %v4609 = vpack.c.b16 %v4573, %v4569
    %v4610 = vpack.c.b16 %v4574, %v4570
    %v4611 = vpack.c.b16 %v4575, %v4571
    %v4612 = vpack.c.b16 %v4580, %v4576
    %v4613 = vpack.c.b16 %v4581, %v4577
    %v4614 = vpack.c.b16 %v4582, %v4578
    %v4615 = vpack.c.b16 %v4583, %v4579
    %4648 = vmatprep.subr.bf16.mxu0 %v4613
    %4649 = vmatpush1.bf16.msra.mxu0 %v4612
    %4650 = vmatprep.subr.bf16.mxu0 %v4609
    %4651 = vmatpush1.bf16.msra.mxu0 %v4608
    %4652 = vmatprep.subr.bf16.mxu0 %v4605
    %4653 = vmatpush1.bf16.msra.mxu0 %v4604
    %4654 = vmatprep.subr.bf16.mxu0 %v4601
    %4655 = vmatpush1.bf16.msra.mxu0 %v4600
    %4656 = vmatprep.subr.bf16.mxu0 %v4597
    %4657 = vmatpush1.bf16.msra.mxu0 %v4596
    %4658 = vmatprep.subr.bf16.mxu0 %v4593
    %4659 = vmatpush1.bf16.msra.mxu0 %v4592
    %4660 = vmatprep.subr.bf16.mxu0 %v4589
    %4661 = vmatpush1.bf16.msra.mxu0 %v4588
    %4662 = vmatprep.subr.bf16.mxu0 %v4585
    %4663 = vmatpush1.bf16.msra.mxu0 %v4584
    %4664 = vmatprep.subr.bf16.mxu0 0
    %4665 = vmatpush2.bf16.msra.mxu0 0
    %4666 = vmatprep.subr.bf16.mxu0 0
    %4667 = vmatpush2.bf16.msra.mxu0 0
    %4668 = vmatprep.subr.bf16.mxu0 0
    %4669 = vmatpush2.bf16.msra.mxu0 0
    %4670 = vmatprep.subr.bf16.mxu0 0
    %4671 = vmatpush2.bf16.msra.mxu0 0
    %4672 = vmatprep.subr.bf16.mxu0 0
    %4673 = vmatpush2.bf16.msra.mxu0 0
    %4674 = vmatprep.subr.bf16.mxu0 0
    %4675 = vmatpush2.bf16.msra.mxu0 0
    %4676 = vmatprep.subr.bf16.mxu0 0
    %4677 = vmatpush2.bf16.msra.mxu0 0
    %4678 = vmatprep.subr.bf16.mxu0 0
    %4679 = vmatpush2.bf16.msra.mxu0 0
    %4680 = vmatprep.mubr.bf16.mxu0 0
    %4681 = vmatmul.mubr.bf16.gmra.mxu0 %v4438
    %v4682 = vpop.f32.mrf.mxu0
    %v4683 = vadd.f32 0.0, %v4682
    %v4684 = vpop.f32.mrf.mxu0
    %v4685 = vadd.f32 0.0, %v4684
    %v4686 = vpop.f32.mrf.mxu0
    %v4687 = vadd.f32 0.0, %v4686
    %v4688 = vpop.f32.mrf.mxu0
    %v4689 = vadd.f32 0.0, %v4688
    %4690 = vdwg.mxu0
    %4691 = vmatprep.subr.bf16.mxu0 %v4615
    %4692 = vmatpush1.bf16.msra.mxu0 %v4614
    %4693 = vmatprep.subr.bf16.mxu0 %v4611
    %4694 = vmatpush1.bf16.msra.mxu0 %v4610
    %4695 = vmatprep.subr.bf16.mxu0 %v4607
    %4696 = vmatpush1.bf16.msra.mxu0 %v4606
    %4697 = vmatprep.subr.bf16.mxu0 %v4603
    %4698 = vmatpush1.bf16.msra.mxu0 %v4602
    %4699 = vmatprep.subr.bf16.mxu0 %v4599
    %4700 = vmatpush1.bf16.msra.mxu0 %v4598
    %4701 = vmatprep.subr.bf16.mxu0 %v4595
    %4702 = vmatpush1.bf16.msra.mxu0 %v4594
    %4703 = vmatprep.subr.bf16.mxu0 %v4591
    %4704 = vmatpush1.bf16.msra.mxu0 %v4590
    %4705 = vmatprep.subr.bf16.mxu0 %v4587
    %4706 = vmatpush1.bf16.msra.mxu0 %v4586
    %4707 = vmatprep.subr.bf16.mxu0 0
    %4708 = vmatpush2.bf16.msra.mxu0 0
    %4709 = vmatprep.subr.bf16.mxu0 0
    %4710 = vmatpush2.bf16.msra.mxu0 0
    %4711 = vmatprep.subr.bf16.mxu0 0
    %4712 = vmatpush2.bf16.msra.mxu0 0
    %4713 = vmatprep.subr.bf16.mxu0 0
    %4714 = vmatpush2.bf16.msra.mxu0 0
    %4715 = vmatprep.subr.bf16.mxu0 0
    %4716 = vmatpush2.bf16.msra.mxu0 0
    %4717 = vmatprep.subr.bf16.mxu0 0
    %4718 = vmatpush2.bf16.msra.mxu0 0
    %4719 = vmatprep.subr.bf16.mxu0 0
    %4720 = vmatpush2.bf16.msra.mxu0 0
    %4721 = vmatprep.subr.bf16.mxu0 0
    %4722 = vmatpush2.bf16.msra.mxu0 0
    %4723 = vmatprep.mubr.bf16.mxu0 0
    %4724 = vmatmul.mubr.bf16.gmra.mxu0 %v4438
    %v4725 = vpop.f32.mrf.mxu0
    %v4726 = vadd.f32 0.0, %v4725
    %v4727 = vpop.f32.mrf.mxu0
    %v4728 = vadd.f32 0.0, %v4727
    %v4729 = vpop.f32.mrf.mxu0
    %v4730 = vadd.f32 0.0, %v4729
    %v4731 = vpop.f32.mrf.mxu0
    %v4732 = vadd.f32 0.0, %v4731
    %4733 = vdwg.mxu0
    %v4734 = vadd.f32 %v4448, %v4683
    %v4735 = vadd.f32 %v4449, %v4685
    %v4736 = vadd.f32 %v4450, %v4726
    %v4737 = vadd.f32 %v4451, %v4728
    %v4738 = vadd.f32 %v4452, %v4687
    %v4739 = vadd.f32 %v4453, %v4689
    %v4740 = vadd.f32 %v4454, %v4730
    %v4741 = vadd.f32 %v4455, %v4732
    %v4742 = vxor.u32 %v4734, 2147483648
    %v4743 = vxor.u32 %v4738, 2147483648
    %v4744 = vmul.f32 %v4742, 1.442695
    %v4745 = vpow.pop %v4744
    %v4746 = vmul.f32 %v4743, 1.442695
    %v4747 = vpow.pop %v4746
    %v4748 = vadd.f32 %v4745, 1.0
    %v4749 = vadd.f32 %v4747, 1.0
    %v4750 = vrcp.pop %v4748
    %v4751 = vmul.f32 1.0, %v4750
    %v4752 = vrcp.pop %v4749
    %v4753 = vmul.f32 1.0, %v4752
    %v4754 = vxor.u32 %v4735, 2147483648
    %v4755 = vxor.u32 %v4739, 2147483648
    %v4756 = vmul.f32 %v4754, 1.442695
    %v4757 = vpow.pop %v4756
    %v4758 = vmul.f32 %v4755, 1.442695
    %v4759 = vpow.pop %v4758
    %v4760 = vadd.f32 %v4757, 1.0
    %v4761 = vadd.f32 %v4759, 1.0
    %v4762 = vrcp.pop %v4760
    %v4763 = vmul.f32 1.0, %v4762
    %v4764 = vrcp.pop %v4761
    %v4765 = vmul.f32 1.0, %v4764
    %v4766 = vtanh.pop %v4736
    %v4767 = vtanh.pop %v4740
    %v4768 = vxor.u32 %v4737, 2147483648
    %v4769 = vxor.u32 %v4741, 2147483648
    %v4770 = vmul.f32 %v4768, 1.442695
    %v4771 = vpow.pop %v4770
    %v4772 = vmul.f32 %v4769, 1.442695
    %v4773 = vpow.pop %v4772
    %v4774 = vadd.f32 %v4771, 1.0
    %v4775 = vadd.f32 %v4773, 1.0
    %v4776 = vrcp.pop %v4774
    %v4777 = vmul.f32 1.0, %v4776
    %v4778 = vrcp.pop %v4775
    %v4779 = vmul.f32 1.0, %v4778
    %v4780 = vmul.f32 %v4763, %v4432
    %v4781 = vmul.f32 %v4765, %v4433
    %v4782 = vmul.f32 %v4751, %v4766
    %v4783 = vmul.f32 %v4753, %v4767
    %v4784 = vadd.f32 %v4780, %v4782
    %v4785 = vadd.f32 %v4781, %v4783
    %v4786 = vtanh.pop %v4784
    %v4787 = vtanh.pop %v4785
    %v4788 = vmul.f32 %v4777, %v4786
    %v4789 = vmul.f32 %v4779, %v4787
    %v4790 = vpack.c.bf16 %v4789, %v4788
    %v4792 = vunpack.c.l.b16 %v4790
    %v4793 = vunpack.c.h.b16 %v4790
    %v4794 = vpack.c.b16 %v4792, %v4792
    %v4795 = vpack.c.b16 %v4793, %v4793
    %s4798 = scalar_lea.vmem [#allocation5], 8
    %4799 = vst [vmem:[%s4798] sm:$0xf] %v4794
    %4800 = vst [vmem:[%s4798 + $0x4] sm:$0xf] %v4795
    %v4801 = vld [vmem:[%s1383] sm:$0xff]
    %v4802 = vld [vmem:[%s1383 + $0x8] sm:$0xff]
    %v4803 = vld [vmem:[%s1383 + $0x10] sm:$0xff]
    %v4804 = vld [vmem:[%s1383 + $0x18] sm:$0xff]
    %v4805 = vld [vmem:[%s1383 + $0x20] sm:$0xff]
    %v4806 = vld [vmem:[%s1383 + $0x28] sm:$0xff]
    %v4807 = vld [vmem:[%s1383 + $0x30] sm:$0xff]
    %v4808 = vld [vmem:[%s1383 + $0x38] sm:$0xff]
    %v4809 = vld [vmem:[#allocation11] sm:$0xff]
    %v4810 = vld [vmem:[#allocation11 + $0x8] sm:$0xff]
    %v4811 = vld [vmem:[#allocation11 + $0x10] sm:$0xff]
    %v4812 = vld [vmem:[#allocation11 + $0x18] sm:$0xff]
    %v4813 = vld [vmem:[#allocation11 + $0x20] sm:$0xff]
    %v4814 = vld [vmem:[#allocation11 + $0x28] sm:$0xff]
    %v4815 = vld [vmem:[#allocation11 + $0x30] sm:$0xff]
    %v4816 = vld [vmem:[#allocation11 + $0x38] sm:$0xff]
    %v4817 = vld [vmem:[#allocation11 + $0x40] sm:$0xff]
    %v4818 = vld [vmem:[#allocation11 + $0x48] sm:$0xff]
    %v4819 = vld [vmem:[#allocation11 + $0x50] sm:$0xff]
    %v4820 = vld [vmem:[#allocation11 + $0x58] sm:$0xff]
    %v4821 = vld [vmem:[#allocation11 + $0x60] sm:$0xff]
    %v4822 = vld [vmem:[#allocation11 + $0x68] sm:$0xff]
    %v4823 = vld [vmem:[#allocation11 + $0x70] sm:$0xff]
    %v4824 = vld [vmem:[#allocation11 + $0x78] sm:$0xff]
    %v4825 = vld [vmem:[#allocation11 + $0x80] sm:$0xff]
    %v4826 = vld [vmem:[#allocation11 + $0x88] sm:$0xff]
    %v4827 = vld [vmem:[#allocation11 + $0x90] sm:$0xff]
    %v4828 = vld [vmem:[#allocation11 + $0x98] sm:$0xff]
    %v4829 = vld [vmem:[#allocation11 + $0xa0] sm:$0xff]
    %v4830 = vld [vmem:[#allocation11 + $0xa8] sm:$0xff]
    %v4831 = vld [vmem:[#allocation11 + $0xb0] sm:$0xff]
    %v4832 = vld [vmem:[#allocation11 + $0xb8] sm:$0xff]
    %v4833 = vld [vmem:[#allocation11 + $0xc0] sm:$0xff]
    %v4834 = vld [vmem:[#allocation11 + $0xc8] sm:$0xff]
    %v4835 = vld [vmem:[#allocation11 + $0xd0] sm:$0xff]
    %v4836 = vld [vmem:[#allocation11 + $0xd8] sm:$0xff]
    %v4837 = vld [vmem:[#allocation11 + $0xe0] sm:$0xff]
    %v4838 = vld [vmem:[#allocation11 + $0xe8] sm:$0xff]
    %v4839 = vld [vmem:[#allocation11 + $0xf0] sm:$0xff]
    %v4840 = vld [vmem:[#allocation11 + $0xf8] sm:$0xff]
    %v4873 = vunpack.c.l.b16 %v4809
    %v4874 = vunpack.c.h.b16 %v4809
    %v4875 = vunpack.c.l.b16 %v4810
    %v4876 = vunpack.c.h.b16 %v4810
    %v4877 = vunpack.c.l.b16 %v4811
    %v4878 = vunpack.c.h.b16 %v4811
    %v4879 = vunpack.c.l.b16 %v4812
    %v4880 = vunpack.c.h.b16 %v4812
    %v4881 = vunpack.c.l.b16 %v4813
    %v4882 = vunpack.c.h.b16 %v4813
    %v4883 = vunpack.c.l.b16 %v4814
    %v4884 = vunpack.c.h.b16 %v4814
    %v4885 = vunpack.c.l.b16 %v4815
    %v4886 = vunpack.c.h.b16 %v4815
    %v4887 = vunpack.c.l.b16 %v4816
    %v4888 = vunpack.c.h.b16 %v4816
    %v4889 = vunpack.c.l.b16 %v4817
    %v4890 = vunpack.c.h.b16 %v4817
    %v4891 = vunpack.c.l.b16 %v4818
    %v4892 = vunpack.c.h.b16 %v4818
    %v4893 = vunpack.c.l.b16 %v4819
    %v4894 = vunpack.c.h.b16 %v4819
    %v4895 = vunpack.c.l.b16 %v4820
    %v4896 = vunpack.c.h.b16 %v4820
    %v4897 = vunpack.c.l.b16 %v4821
    %v4898 = vunpack.c.h.b16 %v4821
    %v4899 = vunpack.c.l.b16 %v4822
    %v4900 = vunpack.c.h.b16 %v4822
    %v4901 = vunpack.c.l.b16 %v4823
    %v4902 = vunpack.c.h.b16 %v4823
    %v4903 = vunpack.c.l.b16 %v4824
    %v4904 = vunpack.c.h.b16 %v4824
    %v4905 = vunpack.c.l.b16 %v4825
    %v4906 = vunpack.c.h.b16 %v4825
    %v4907 = vunpack.c.l.b16 %v4826
    %v4908 = vunpack.c.h.b16 %v4826
    %v4909 = vunpack.c.l.b16 %v4827
    %v4910 = vunpack.c.h.b16 %v4827
    %v4911 = vunpack.c.l.b16 %v4828
    %v4912 = vunpack.c.h.b16 %v4828
    %v4913 = vunpack.c.l.b16 %v4829
    %v4914 = vunpack.c.h.b16 %v4829
    %v4915 = vunpack.c.l.b16 %v4830
    %v4916 = vunpack.c.h.b16 %v4830
    %v4917 = vunpack.c.l.b16 %v4831
    %v4918 = vunpack.c.h.b16 %v4831
    %v4919 = vunpack.c.l.b16 %v4832
    %v4920 = vunpack.c.h.b16 %v4832
    %v4921 = vunpack.c.l.b16 %v4833
    %v4922 = vunpack.c.h.b16 %v4833
    %v4923 = vunpack.c.l.b16 %v4834
    %v4924 = vunpack.c.h.b16 %v4834
    %v4925 = vunpack.c.l.b16 %v4835
    %v4926 = vunpack.c.h.b16 %v4835
    %v4927 = vunpack.c.l.b16 %v4836
    %v4928 = vunpack.c.h.b16 %v4836
    %v4929 = vunpack.c.l.b16 %v4837
    %v4930 = vunpack.c.h.b16 %v4837
    %v4931 = vunpack.c.l.b16 %v4838
    %v4932 = vunpack.c.h.b16 %v4838
    %v4933 = vunpack.c.l.b16 %v4839
    %v4934 = vunpack.c.h.b16 %v4839
    %v4935 = vunpack.c.l.b16 %v4840
    %v4936 = vunpack.c.h.b16 %v4840
    %v4937 = vpack.c.b16 %v4877, %v4873
    %v4938 = vpack.c.b16 %v4878, %v4874
    %v4939 = vpack.c.b16 %v4879, %v4875
    %v4940 = vpack.c.b16 %v4880, %v4876
    %v4941 = vpack.c.b16 %v4885, %v4881
    %v4942 = vpack.c.b16 %v4886, %v4882
    %v4943 = vpack.c.b16 %v4887, %v4883
    %v4944 = vpack.c.b16 %v4888, %v4884
    %v4945 = vpack.c.b16 %v4893, %v4889
    %v4946 = vpack.c.b16 %v4894, %v4890
    %v4947 = vpack.c.b16 %v4895, %v4891
    %v4948 = vpack.c.b16 %v4896, %v4892
    %v4949 = vpack.c.b16 %v4901, %v4897
    %v4950 = vpack.c.b16 %v4902, %v4898
    %v4951 = vpack.c.b16 %v4903, %v4899
    %v4952 = vpack.c.b16 %v4904, %v4900
    %v4953 = vpack.c.b16 %v4909, %v4905
    %v4954 = vpack.c.b16 %v4910, %v4906
    %v4955 = vpack.c.b16 %v4911, %v4907
    %v4956 = vpack.c.b16 %v4912, %v4908
    %v4957 = vpack.c.b16 %v4917, %v4913
    %v4958 = vpack.c.b16 %v4918, %v4914
    %v4959 = vpack.c.b16 %v4919, %v4915
    %v4960 = vpack.c.b16 %v4920, %v4916
    %v4961 = vpack.c.b16 %v4925, %v4921
    %v4962 = vpack.c.b16 %v4926, %v4922
    %v4963 = vpack.c.b16 %v4927, %v4923
    %v4964 = vpack.c.b16 %v4928, %v4924
    %v4965 = vpack.c.b16 %v4933, %v4929
    %v4966 = vpack.c.b16 %v4934, %v4930
    %v4967 = vpack.c.b16 %v4935, %v4931
    %v4968 = vpack.c.b16 %v4936, %v4932
    %5001 = vmatprep.subr.bf16.mxu0 %v4966
    %5002 = vmatpush1.bf16.msra.mxu0 %v4965
    %5003 = vmatprep.subr.bf16.mxu0 %v4962
    %5004 = vmatpush1.bf16.msra.mxu0 %v4961
    %5005 = vmatprep.subr.bf16.mxu0 %v4958
    %5006 = vmatpush1.bf16.msra.mxu0 %v4957
    %5007 = vmatprep.subr.bf16.mxu0 %v4954
    %5008 = vmatpush1.bf16.msra.mxu0 %v4953
    %5009 = vmatprep.subr.bf16.mxu0 %v4950
    %5010 = vmatpush1.bf16.msra.mxu0 %v4949
    %5011 = vmatprep.subr.bf16.mxu0 %v4946
    %5012 = vmatpush1.bf16.msra.mxu0 %v4945
    %5013 = vmatprep.subr.bf16.mxu0 %v4942
    %5014 = vmatpush1.bf16.msra.mxu0 %v4941
    %5015 = vmatprep.subr.bf16.mxu0 %v4938
    %5016 = vmatpush1.bf16.msra.mxu0 %v4937
    %5017 = vmatprep.subr.bf16.mxu0 0
    %5018 = vmatpush2.bf16.msra.mxu0 0
    %5019 = vmatprep.subr.bf16.mxu0 0
    %5020 = vmatpush2.bf16.msra.mxu0 0
    %5021 = vmatprep.subr.bf16.mxu0 0
    %5022 = vmatpush2.bf16.msra.mxu0 0
    %5023 = vmatprep.subr.bf16.mxu0 0
    %5024 = vmatpush2.bf16.msra.mxu0 0
    %5025 = vmatprep.subr.bf16.mxu0 0
    %5026 = vmatpush2.bf16.msra.mxu0 0
    %5027 = vmatprep.subr.bf16.mxu0 0
    %5028 = vmatpush2.bf16.msra.mxu0 0
    %5029 = vmatprep.subr.bf16.mxu0 0
    %5030 = vmatpush2.bf16.msra.mxu0 0
    %5031 = vmatprep.subr.bf16.mxu0 0
    %5032 = vmatpush2.bf16.msra.mxu0 0
    %5033 = vmatprep.mubr.bf16.mxu0 0
    %5034 = vmatmul.mubr.bf16.gmra.mxu0 %v4790
    %v5035 = vpop.f32.mrf.mxu0
    %v5036 = vadd.f32 0.0, %v5035
    %v5037 = vpop.f32.mrf.mxu0
    %v5038 = vadd.f32 0.0, %v5037
    %v5039 = vpop.f32.mrf.mxu0
    %v5040 = vadd.f32 0.0, %v5039
    %v5041 = vpop.f32.mrf.mxu0
    %v5042 = vadd.f32 0.0, %v5041
    %5043 = vdwg.mxu0
    %5044 = vmatprep.subr.bf16.mxu0 %v4968
    %5045 = vmatpush1.bf16.msra.mxu0 %v4967
    %5046 = vmatprep.subr.bf16.mxu0 %v4964
    %5047 = vmatpush1.bf16.msra.mxu0 %v4963
    %5048 = vmatprep.subr.bf16.mxu0 %v4960
    %5049 = vmatpush1.bf16.msra.mxu0 %v4959
    %5050 = vmatprep.subr.bf16.mxu0 %v4956
    %5051 = vmatpush1.bf16.msra.mxu0 %v4955
    %5052 = vmatprep.subr.bf16.mxu0 %v4952
    %5053 = vmatpush1.bf16.msra.mxu0 %v4951
    %5054 = vmatprep.subr.bf16.mxu0 %v4948
    %5055 = vmatpush1.bf16.msra.mxu0 %v4947
    %5056 = vmatprep.subr.bf16.mxu0 %v4944
    %5057 = vmatpush1.bf16.msra.mxu0 %v4943
    %5058 = vmatprep.subr.bf16.mxu0 %v4940
    %5059 = vmatpush1.bf16.msra.mxu0 %v4939
    %5060 = vmatprep.subr.bf16.mxu0 0
    %5061 = vmatpush2.bf16.msra.mxu0 0
    %5062 = vmatprep.subr.bf16.mxu0 0
    %5063 = vmatpush2.bf16.msra.mxu0 0
    %5064 = vmatprep.subr.bf16.mxu0 0
    %5065 = vmatpush2.bf16.msra.mxu0 0
    %5066 = vmatprep.subr.bf16.mxu0 0
    %5067 = vmatpush2.bf16.msra.mxu0 0
    %5068 = vmatprep.subr.bf16.mxu0 0
    %5069 = vmatpush2.bf16.msra.mxu0 0
    %5070 = vmatprep.subr.bf16.mxu0 0
    %5071 = vmatpush2.bf16.msra.mxu0 0
    %5072 = vmatprep.subr.bf16.mxu0 0
    %5073 = vmatpush2.bf16.msra.mxu0 0
    %5074 = vmatprep.subr.bf16.mxu0 0
    %5075 = vmatpush2.bf16.msra.mxu0 0
    %5076 = vmatprep.mubr.bf16.mxu0 0
    %5077 = vmatmul.mubr.bf16.gmra.mxu0 %v4790
    %v5078 = vpop.f32.mrf.mxu0
    %v5079 = vadd.f32 0.0, %v5078
    %v5080 = vpop.f32.mrf.mxu0
    %v5081 = vadd.f32 0.0, %v5080
    %v5082 = vpop.f32.mrf.mxu0
    %v5083 = vadd.f32 0.0, %v5082
    %v5084 = vpop.f32.mrf.mxu0
    %v5085 = vadd.f32 0.0, %v5084
    %5086 = vdwg.mxu0
    %v5087 = vadd.f32 %v4801, %v5036
    %v5088 = vadd.f32 %v4802, %v5038
    %v5089 = vadd.f32 %v4803, %v5079
    %v5090 = vadd.f32 %v4804, %v5081
    %v5091 = vadd.f32 %v4805, %v5040
    %v5092 = vadd.f32 %v4806, %v5042
    %v5093 = vadd.f32 %v4807, %v5083
    %v5094 = vadd.f32 %v4808, %v5085
    %v5095 = vxor.u32 %v5087, 2147483648
    %v5096 = vxor.u32 %v5091, 2147483648
    %v5097 = vmul.f32 %v5095, 1.442695
    %v5098 = vpow.pop %v5097
    %v5099 = vmul.f32 %v5096, 1.442695
    %v5100 = vpow.pop %v5099
    %v5101 = vadd.f32 %v5098, 1.0
    %v5102 = vadd.f32 %v5100, 1.0
    %v5103 = vrcp.pop %v5101
    %v5104 = vmul.f32 1.0, %v5103
    %v5105 = vrcp.pop %v5102
    %v5106 = vmul.f32 1.0, %v5105
    %v5107 = vxor.u32 %v5088, 2147483648
    %v5108 = vxor.u32 %v5092, 2147483648
    %v5109 = vmul.f32 %v5107, 1.442695
    %v5110 = vpow.pop %v5109
    %v5111 = vmul.f32 %v5108, 1.442695
    %v5112 = vpow.pop %v5111
    %v5113 = vadd.f32 %v5110, 1.0
    %v5114 = vadd.f32 %v5112, 1.0
    %v5115 = vrcp.pop %v5113
    %v5116 = vmul.f32 1.0, %v5115
    %v5117 = vrcp.pop %v5114
    %v5118 = vmul.f32 1.0, %v5117
    %v5119 = vtanh.pop %v5089
    %v5120 = vtanh.pop %v5093
    %v5121 = vxor.u32 %v5090, 2147483648
    %v5122 = vxor.u32 %v5094, 2147483648
    %v5123 = vmul.f32 %v5121, 1.442695
    %v5124 = vpow.pop %v5123
    %v5125 = vmul.f32 %v5122, 1.442695
    %v5126 = vpow.pop %v5125
    %v5127 = vadd.f32 %v5124, 1.0
    %v5128 = vadd.f32 %v5126, 1.0
    %v5129 = vrcp.pop %v5127
    %v5130 = vmul.f32 1.0, %v5129
    %v5131 = vrcp.pop %v5128
    %v5132 = vmul.f32 1.0, %v5131
    %v5133 = vmul.f32 %v5116, %v4784
    %v5134 = vmul.f32 %v5118, %v4785
    %v5135 = vmul.f32 %v5104, %v5119
    %v5136 = vmul.f32 %v5106, %v5120
    %v5137 = vadd.f32 %v5133, %v5135
    %v5138 = vadd.f32 %v5134, %v5136
    %v5139 = vtanh.pop %v5137
    %v5140 = vtanh.pop %v5138
    %v5141 = vmul.f32 %v5130, %v5139
    %v5142 = vmul.f32 %v5132, %v5140
    %v5143 = vpack.c.bf16 %v5142, %v5141
    %v5145 = vunpack.c.l.b16 %v5143
    %v5146 = vunpack.c.h.b16 %v5143
    %v5147 = vpack.c.b16 %v5145, %v5145
    %v5148 = vpack.c.b16 %v5146, %v5146
    %s5151 = scalar_lea.vmem [#allocation5], 16
    %5152 = vst [vmem:[%s5151] sm:$0xf] %v5147
    %5153 = vst [vmem:[%s5151 + $0x4] sm:$0xf] %v5148
    %v5154 = vld [vmem:[%s1739] sm:$0xff]
    %v5155 = vld [vmem:[%s1739 + $0x8] sm:$0xff]
    %v5156 = vld [vmem:[%s1739 + $0x10] sm:$0xff]
    %v5157 = vld [vmem:[%s1739 + $0x18] sm:$0xff]
    %v5158 = vld [vmem:[%s1739 + $0x20] sm:$0xff]
    %v5159 = vld [vmem:[%s1739 + $0x28] sm:$0xff]
    %v5160 = vld [vmem:[%s1739 + $0x30] sm:$0xff]
    %v5161 = vld [vmem:[%s1739 + $0x38] sm:$0xff]
    %v5162 = vld [vmem:[#allocation11] sm:$0xff]
    %v5163 = vld [vmem:[#allocation11 + $0x8] sm:$0xff]
    %v5164 = vld [vmem:[#allocation11 + $0x10] sm:$0xff]
    %v5165 = vld [vmem:[#allocation11 + $0x18] sm:$0xff]
    %v5166 = vld [vmem:[#allocation11 + $0x20] sm:$0xff]
    %v5167 = vld [vmem:[#allocation11 + $0x28] sm:$0xff]
    %v5168 = vld [vmem:[#allocation11 + $0x30] sm:$0xff]
    %v5169 = vld [vmem:[#allocation11 + $0x38] sm:$0xff]
    %v5170 = vld [vmem:[#allocation11 + $0x40] sm:$0xff]
    %v5171 = vld [vmem:[#allocation11 + $0x48] sm:$0xff]
    %v5172 = vld [vmem:[#allocation11 + $0x50] sm:$0xff]
    %v5173 = vld [vmem:[#allocation11 + $0x58] sm:$0xff]
    %v5174 = vld [vmem:[#allocation11 + $0x60] sm:$0xff]
    %v5175 = vld [vmem:[#allocation11 + $0x68] sm:$0xff]
    %v5176 = vld [vmem:[#allocation11 + $0x70] sm:$0xff]
    %v5177 = vld [vmem:[#allocation11 + $0x78] sm:$0xff]
    %v5178 = vld [vmem:[#allocation11 + $0x80] sm:$0xff]
    %v5179 = vld [vmem:[#allocation11 + $0x88] sm:$0xff]
    %v5180 = vld [vmem:[#allocation11 + $0x90] sm:$0xff]
    %v5181 = vld [vmem:[#allocation11 + $0x98] sm:$0xff]
    %v5182 = vld [vmem:[#allocation11 + $0xa0] sm:$0xff]
    %v5183 = vld [vmem:[#allocation11 + $0xa8] sm:$0xff]
    %v5184 = vld [vmem:[#allocation11 + $0xb0] sm:$0xff]
    %v5185 = vld [vmem:[#allocation11 + $0xb8] sm:$0xff]
    %v5186 = vld [vmem:[#allocation11 + $0xc0] sm:$0xff]
    %v5187 = vld [vmem:[#allocation11 + $0xc8] sm:$0xff]
    %v5188 = vld [vmem:[#allocation11 + $0xd0] sm:$0xff]
    %v5189 = vld [vmem:[#allocation11 + $0xd8] sm:$0xff]
    %v5190 = vld [vmem:[#allocation11 + $0xe0] sm:$0xff]
    %v5191 = vld [vmem:[#allocation11 + $0xe8] sm:$0xff]
    %v5192 = vld [vmem:[#allocation11 + $0xf0] sm:$0xff]
    %v5193 = vld [vmem:[#allocation11 + $0xf8] sm:$0xff]
    %v5226 = vunpack.c.l.b16 %v5162
    %v5227 = vunpack.c.h.b16 %v5162
    %v5228 = vunpack.c.l.b16 %v5163
    %v5229 = vunpack.c.h.b16 %v5163
    %v5230 = vunpack.c.l.b16 %v5164
    %v5231 = vunpack.c.h.b16 %v5164
    %v5232 = vunpack.c.l.b16 %v5165
    %v5233 = vunpack.c.h.b16 %v5165
    %v5234 = vunpack.c.l.b16 %v5166
    %v5235 = vunpack.c.h.b16 %v5166
    %v5236 = vunpack.c.l.b16 %v5167
    %v5237 = vunpack.c.h.b16 %v5167
    %v5238 = vunpack.c.l.b16 %v5168
    %v5239 = vunpack.c.h.b16 %v5168
    %v5240 = vunpack.c.l.b16 %v5169
    %v5241 = vunpack.c.h.b16 %v5169
    %v5242 = vunpack.c.l.b16 %v5170
    %v5243 = vunpack.c.h.b16 %v5170
    %v5244 = vunpack.c.l.b16 %v5171
    %v5245 = vunpack.c.h.b16 %v5171
    %v5246 = vunpack.c.l.b16 %v5172
    %v5247 = vunpack.c.h.b16 %v5172
    %v5248 = vunpack.c.l.b16 %v5173
    %v5249 = vunpack.c.h.b16 %v5173
    %v5250 = vunpack.c.l.b16 %v5174
    %v5251 = vunpack.c.h.b16 %v5174
    %v5252 = vunpack.c.l.b16 %v5175
    %v5253 = vunpack.c.h.b16 %v5175
    %v5254 = vunpack.c.l.b16 %v5176
    %v5255 = vunpack.c.h.b16 %v5176
    %v5256 = vunpack.c.l.b16 %v5177
    %v5257 = vunpack.c.h.b16 %v5177
    %v5258 = vunpack.c.l.b16 %v5178
    %v5259 = vunpack.c.h.b16 %v5178
    %v5260 = vunpack.c.l.b16 %v5179
    %v5261 = vunpack.c.h.b16 %v5179
    %v5262 = vunpack.c.l.b16 %v5180
    %v5263 = vunpack.c.h.b16 %v5180
    %v5264 = vunpack.c.l.b16 %v5181
    %v5265 = vunpack.c.h.b16 %v5181
    %v5266 = vunpack.c.l.b16 %v5182
    %v5267 = vunpack.c.h.b16 %v5182
    %v5268 = vunpack.c.l.b16 %v5183
    %v5269 = vunpack.c.h.b16 %v5183
    %v5270 = vunpack.c.l.b16 %v5184
    %v5271 = vunpack.c.h.b16 %v5184
    %v5272 = vunpack.c.l.b16 %v5185
    %v5273 = vunpack.c.h.b16 %v5185
    %v5274 = vunpack.c.l.b16 %v5186
    %v5275 = vunpack.c.h.b16 %v5186
    %v5276 = vunpack.c.l.b16 %v5187
    %v5277 = vunpack.c.h.b16 %v5187
    %v5278 = vunpack.c.l.b16 %v5188
    %v5279 = vunpack.c.h.b16 %v5188
    %v5280 = vunpack.c.l.b16 %v5189
    %v5281 = vunpack.c.h.b16 %v5189
    %v5282 = vunpack.c.l.b16 %v5190
    %v5283 = vunpack.c.h.b16 %v5190
    %v5284 = vunpack.c.l.b16 %v5191
    %v5285 = vunpack.c.h.b16 %v5191
    %v5286 = vunpack.c.l.b16 %v5192
    %v5287 = vunpack.c.h.b16 %v5192
    %v5288 = vunpack.c.l.b16 %v5193
    %v5289 = vunpack.c.h.b16 %v5193
    %v5290 = vpack.c.b16 %v5230, %v5226
    %v5291 = vpack.c.b16 %v5231, %v5227
    %v5292 = vpack.c.b16 %v5232, %v5228
    %v5293 = vpack.c.b16 %v5233, %v5229
    %v5294 = vpack.c.b16 %v5238, %v5234
    %v5295 = vpack.c.b16 %v5239, %v5235
    %v5296 = vpack.c.b16 %v5240, %v5236
    %v5297 = vpack.c.b16 %v5241, %v5237
    %v5298 = vpack.c.b16 %v5246, %v5242
    %v5299 = vpack.c.b16 %v5247, %v5243
    %v5300 = vpack.c.b16 %v5248, %v5244
    %v5301 = vpack.c.b16 %v5249, %v5245
    %v5302 = vpack.c.b16 %v5254, %v5250
    %v5303 = vpack.c.b16 %v5255, %v5251
    %v5304 = vpack.c.b16 %v5256, %v5252
    %v5305 = vpack.c.b16 %v5257, %v5253
    %v5306 = vpack.c.b16 %v5262, %v5258
    %v5307 = vpack.c.b16 %v5263, %v5259
    %v5308 = vpack.c.b16 %v5264, %v5260
    %v5309 = vpack.c.b16 %v5265, %v5261
    %v5310 = vpack.c.b16 %v5270, %v5266
    %v5311 = vpack.c.b16 %v5271, %v5267
    %v5312 = vpack.c.b16 %v5272, %v5268
    %v5313 = vpack.c.b16 %v5273, %v5269
    %v5314 = vpack.c.b16 %v5278, %v5274
    %v5315 = vpack.c.b16 %v5279, %v5275
    %v5316 = vpack.c.b16 %v5280, %v5276
    %v5317 = vpack.c.b16 %v5281, %v5277
    %v5318 = vpack.c.b16 %v5286, %v5282
    %v5319 = vpack.c.b16 %v5287, %v5283
    %v5320 = vpack.c.b16 %v5288, %v5284
    %v5321 = vpack.c.b16 %v5289, %v5285
    %5354 = vmatprep.subr.bf16.mxu0 %v5319
    %5355 = vmatpush1.bf16.msra.mxu0 %v5318
    %5356 = vmatprep.subr.bf16.mxu0 %v5315
    %5357 = vmatpush1.bf16.msra.mxu0 %v5314
    %5358 = vmatprep.subr.bf16.mxu0 %v5311
    %5359 = vmatpush1.bf16.msra.mxu0 %v5310
    %5360 = vmatprep.subr.bf16.mxu0 %v5307
    %5361 = vmatpush1.bf16.msra.mxu0 %v5306
    %5362 = vmatprep.subr.bf16.mxu0 %v5303
    %5363 = vmatpush1.bf16.msra.mxu0 %v5302
    %5364 = vmatprep.subr.bf16.mxu0 %v5299
    %5365 = vmatpush1.bf16.msra.mxu0 %v5298
    %5366 = vmatprep.subr.bf16.mxu0 %v5295
    %5367 = vmatpush1.bf16.msra.mxu0 %v5294
    %5368 = vmatprep.subr.bf16.mxu0 %v5291
    %5369 = vmatpush1.bf16.msra.mxu0 %v5290
    %5370 = vmatprep.subr.bf16.mxu0 0
    %5371 = vmatpush2.bf16.msra.mxu0 0
    %5372 = vmatprep.subr.bf16.mxu0 0
    %5373 = vmatpush2.bf16.msra.mxu0 0
    %5374 = vmatprep.subr.bf16.mxu0 0
    %5375 = vmatpush2.bf16.msra.mxu0 0
    %5376 = vmatprep.subr.bf16.mxu0 0
    %5377 = vmatpush2.bf16.msra.mxu0 0
    %5378 = vmatprep.subr.bf16.mxu0 0
    %5379 = vmatpush2.bf16.msra.mxu0 0
    %5380 = vmatprep.subr.bf16.mxu0 0
    %5381 = vmatpush2.bf16.msra.mxu0 0
    %5382 = vmatprep.subr.bf16.mxu0 0
    %5383 = vmatpush2.bf16.msra.mxu0 0
    %5384 = vmatprep.subr.bf16.mxu0 0
    %5385 = vmatpush2.bf16.msra.mxu0 0
    %5386 = vmatprep.mubr.bf16.mxu0 0
    %5387 = vmatmul.mubr.bf16.gmra.mxu0 %v5143
    %v5388 = vpop.f32.mrf.mxu0
    %v5389 = vadd.f32 0.0, %v5388
    %v5390 = vpop.f32.mrf.mxu0
    %v5391 = vadd.f32 0.0, %v5390
    %v5392 = vpop.f32.mrf.mxu0
    %v5393 = vadd.f32 0.0, %v5392
    %v5394 = vpop.f32.mrf.mxu0
    %v5395 = vadd.f32 0.0, %v5394
    %5396 = vdwg.mxu0
    %5397 = vmatprep.subr.bf16.mxu0 %v5321
    %5398 = vmatpush1.bf16.msra.mxu0 %v5320
    %5399 = vmatprep.subr.bf16.mxu0 %v5317
    %5400 = vmatpush1.bf16.msra.mxu0 %v5316
    %5401 = vmatprep.subr.bf16.mxu0 %v5313
    %5402 = vmatpush1.bf16.msra.mxu0 %v5312
    %5403 = vmatprep.subr.bf16.mxu0 %v5309
    %5404 = vmatpush1.bf16.msra.mxu0 %v5308
    %5405 = vmatprep.subr.bf16.mxu0 %v5305
    %5406 = vmatpush1.bf16.msra.mxu0 %v5304
    %5407 = vmatprep.subr.bf16.mxu0 %v5301
    %5408 = vmatpush1.bf16.msra.mxu0 %v5300
    %5409 = vmatprep.subr.bf16.mxu0 %v5297
    %5410 = vmatpush1.bf16.msra.mxu0 %v5296
    %5411 = vmatprep.subr.bf16.mxu0 %v5293
    %5412 = vmatpush1.bf16.msra.mxu0 %v5292
    %5413 = vmatprep.subr.bf16.mxu0 0
    %5414 = vmatpush2.bf16.msra.mxu0 0
    %5415 = vmatprep.subr.bf16.mxu0 0
    %5416 = vmatpush2.bf16.msra.mxu0 0
    %5417 = vmatprep.subr.bf16.mxu0 0
    %5418 = vmatpush2.bf16.msra.mxu0 0
    %5419 = vmatprep.subr.bf16.mxu0 0
    %5420 = vmatpush2.bf16.msra.mxu0 0
    %5421 = vmatprep.subr.bf16.mxu0 0
    %5422 = vmatpush2.bf16.msra.mxu0 0
    %5423 = vmatprep.subr.bf16.mxu0 0
    %5424 = vmatpush2.bf16.msra.mxu0 0
    %5425 = vmatprep.subr.bf16.mxu0 0
    %5426 = vmatpush2.bf16.msra.mxu0 0
    %5427 = vmatprep.subr.bf16.mxu0 0
    %5428 = vmatpush2.bf16.msra.mxu0 0
    %5429 = vmatprep.mubr.bf16.mxu0 0
    %5430 = vmatmul.mubr.bf16.gmra.mxu0 %v5143
    %v5431 = vpop.f32.mrf.mxu0
    %v5432 = vadd.f32 0.0, %v5431
    %v5433 = vpop.f32.mrf.mxu0
    %v5434 = vadd.f32 0.0, %v5433
    %v5435 = vpop.f32.mrf.mxu0
    %v5436 = vadd.f32 0.0, %v5435
    %v5437 = vpop.f32.mrf.mxu0
    %v5438 = vadd.f32 0.0, %v5437
    %5439 = vdwg.mxu0
    %v5440 = vadd.f32 %v5154, %v5389
    %v5441 = vadd.f32 %v5155, %v5391
    %v5442 = vadd.f32 %v5156, %v5432
    %v5443 = vadd.f32 %v5157, %v5434
    %v5444 = vadd.f32 %v5158, %v5393
    %v5445 = vadd.f32 %v5159, %v5395
    %v5446 = vadd.f32 %v5160, %v5436
    %v5447 = vadd.f32 %v5161, %v5438
    %v5448 = vxor.u32 %v5440, 2147483648
    %v5449 = vxor.u32 %v5444, 2147483648
    %v5450 = vmul.f32 %v5448, 1.442695
    %v5451 = vpow.pop %v5450
    %v5452 = vmul.f32 %v5449, 1.442695
    %v5453 = vpow.pop %v5452
    %v5454 = vadd.f32 %v5451, 1.0
    %v5455 = vadd.f32 %v5453, 1.0
    %v5456 = vrcp.pop %v5454
    %v5457 = vmul.f32 1.0, %v5456
    %v5458 = vrcp.pop %v5455
    %v5459 = vmul.f32 1.0, %v5458
    %v5460 = vxor.u32 %v5441, 2147483648
    %v5461 = vxor.u32 %v5445, 2147483648
    %v5462 = vmul.f32 %v5460, 1.442695
    %v5463 = vpow.pop %v5462
    %v5464 = vmul.f32 %v5461, 1.442695
    %v5465 = vpow.pop %v5464
    %v5466 = vadd.f32 %v5463, 1.0
    %v5467 = vadd.f32 %v5465, 1.0
    %v5468 = vrcp.pop %v5466
    %v5469 = vmul.f32 1.0, %v5468
    %v5470 = vrcp.pop %v5467
    %v5471 = vmul.f32 1.0, %v5470
    %v5472 = vtanh.pop %v5442
    %v5473 = vtanh.pop %v5446
    %v5474 = vxor.u32 %v5443, 2147483648
    %v5475 = vxor.u32 %v5447, 2147483648
    %v5476 = vmul.f32 %v5474, 1.442695
    %v5477 = vpow.pop %v5476
    %v5478 = vmul.f32 %v5475, 1.442695
    %v5479 = vpow.pop %v5478
    %v5480 = vadd.f32 %v5477, 1.0
    %v5481 = vadd.f32 %v5479, 1.0
    %v5482 = vrcp.pop %v5480
    %v5483 = vmul.f32 1.0, %v5482
    %v5484 = vrcp.pop %v5481
    %v5485 = vmul.f32 1.0, %v5484
    %v5486 = vmul.f32 %v5469, %v5137
    %v5487 = vmul.f32 %v5471, %v5138
    %v5488 = vmul.f32 %v5457, %v5472
    %v5489 = vmul.f32 %v5459, %v5473
    %v5490 = vadd.f32 %v5486, %v5488
    %v5491 = vadd.f32 %v5487, %v5489
    %v5492 = vtanh.pop %v5490
    %v5493 = vtanh.pop %v5491
    %v5494 = vmul.f32 %v5483, %v5492
    %v5495 = vmul.f32 %v5485, %v5493
    %v5496 = vpack.c.bf16 %v5495, %v5494
    %v5498 = vunpack.c.l.b16 %v5496
    %v5499 = vunpack.c.h.b16 %v5496
    %v5500 = vpack.c.b16 %v5498, %v5498
    %v5501 = vpack.c.b16 %v5499, %v5499
    %s5504 = scalar_lea.vmem [#allocation5], 24
    %5505 = vst [vmem:[%s5504] sm:$0xf] %v5500
    %5506 = vst [vmem:[%s5504 + $0x4] sm:$0xf] %v5501
    %v5507 = vld [vmem:[%s2095] sm:$0xff]
    %v5508 = vld [vmem:[%s2095 + $0x8] sm:$0xff]
    %v5509 = vld [vmem:[%s2095 + $0x10] sm:$0xff]
    %v5510 = vld [vmem:[%s2095 + $0x18] sm:$0xff]
    %v5511 = vld [vmem:[%s2095 + $0x20] sm:$0xff]
    %v5512 = vld [vmem:[%s2095 + $0x28] sm:$0xff]
    %v5513 = vld [vmem:[%s2095 + $0x30] sm:$0xff]
    %v5514 = vld [vmem:[%s2095 + $0x38] sm:$0xff]
    %v5515 = vld [vmem:[#allocation11] sm:$0xff]
    %v5516 = vld [vmem:[#allocation11 + $0x8] sm:$0xff]
    %v5517 = vld [vmem:[#allocation11 + $0x10] sm:$0xff]
    %v5518 = vld [vmem:[#allocation11 + $0x18] sm:$0xff]
    %v5519 = vld [vmem:[#allocation11 + $0x20] sm:$0xff]
    %v5520 = vld [vmem:[#allocation11 + $0x28] sm:$0xff]
    %v5521 = vld [vmem:[#allocation11 + $0x30] sm:$0xff]
    %v5522 = vld [vmem:[#allocation11 + $0x38] sm:$0xff]
    %v5523 = vld [vmem:[#allocation11 + $0x40] sm:$0xff]
    %v5524 = vld [vmem:[#allocation11 + $0x48] sm:$0xff]
    %v5525 = vld [vmem:[#allocation11 + $0x50] sm:$0xff]
    %v5526 = vld [vmem:[#allocation11 + $0x58] sm:$0xff]
    %v5527 = vld [vmem:[#allocation11 + $0x60] sm:$0xff]
    %v5528 = vld [vmem:[#allocation11 + $0x68] sm:$0xff]
    %v5529 = vld [vmem:[#allocation11 + $0x70] sm:$0xff]
    %v5530 = vld [vmem:[#allocation11 + $0x78] sm:$0xff]
    %v5531 = vld [vmem:[#allocation11 + $0x80] sm:$0xff]
    %v5532 = vld [vmem:[#allocation11 + $0x88] sm:$0xff]
    %v5533 = vld [vmem:[#allocation11 + $0x90] sm:$0xff]
    %v5534 = vld [vmem:[#allocation11 + $0x98] sm:$0xff]
    %v5535 = vld [vmem:[#allocation11 + $0xa0] sm:$0xff]
    %v5536 = vld [vmem:[#allocation11 + $0xa8] sm:$0xff]
    %v5537 = vld [vmem:[#allocation11 + $0xb0] sm:$0xff]
    %v5538 = vld [vmem:[#allocation11 + $0xb8] sm:$0xff]
    %v5539 = vld [vmem:[#allocation11 + $0xc0] sm:$0xff]
    %v5540 = vld [vmem:[#allocation11 + $0xc8] sm:$0xff]
    %v5541 = vld [vmem:[#allocation11 + $0xd0] sm:$0xff]
    %v5542 = vld [vmem:[#allocation11 + $0xd8] sm:$0xff]
    %v5543 = vld [vmem:[#allocation11 + $0xe0] sm:$0xff]
    %v5544 = vld [vmem:[#allocation11 + $0xe8] sm:$0xff]
    %v5545 = vld [vmem:[#allocation11 + $0xf0] sm:$0xff]
    %v5546 = vld [vmem:[#allocation11 + $0xf8] sm:$0xff]
    %v5579 = vunpack.c.l.b16 %v5515
    %v5580 = vunpack.c.h.b16 %v5515
    %v5581 = vunpack.c.l.b16 %v5516
    %v5582 = vunpack.c.h.b16 %v5516
    %v5583 = vunpack.c.l.b16 %v5517
    %v5584 = vunpack.c.h.b16 %v5517
    %v5585 = vunpack.c.l.b16 %v5518
    %v5586 = vunpack.c.h.b16 %v5518
    %v5587 = vunpack.c.l.b16 %v5519
    %v5588 = vunpack.c.h.b16 %v5519
    %v5589 = vunpack.c.l.b16 %v5520
    %v5590 = vunpack.c.h.b16 %v5520
    %v5591 = vunpack.c.l.b16 %v5521
    %v5592 = vunpack.c.h.b16 %v5521
    %v5593 = vunpack.c.l.b16 %v5522
    %v5594 = vunpack.c.h.b16 %v5522
    %v5595 = vunpack.c.l.b16 %v5523
    %v5596 = vunpack.c.h.b16 %v5523
    %v5597 = vunpack.c.l.b16 %v5524
    %v5598 = vunpack.c.h.b16 %v5524
    %v5599 = vunpack.c.l.b16 %v5525
    %v5600 = vunpack.c.h.b16 %v5525
    %v5601 = vunpack.c.l.b16 %v5526
    %v5602 = vunpack.c.h.b16 %v5526
    %v5603 = vunpack.c.l.b16 %v5527
    %v5604 = vunpack.c.h.b16 %v5527
    %v5605 = vunpack.c.l.b16 %v5528
    %v5606 = vunpack.c.h.b16 %v5528
    %v5607 = vunpack.c.l.b16 %v5529
    %v5608 = vunpack.c.h.b16 %v5529
    %v5609 = vunpack.c.l.b16 %v5530
    %v5610 = vunpack.c.h.b16 %v5530
    %v5611 = vunpack.c.l.b16 %v5531
    %v5612 = vunpack.c.h.b16 %v5531
    %v5613 = vunpack.c.l.b16 %v5532
    %v5614 = vunpack.c.h.b16 %v5532
    %v5615 = vunpack.c.l.b16 %v5533
    %v5616 = vunpack.c.h.b16 %v5533
    %v5617 = vunpack.c.l.b16 %v5534
    %v5618 = vunpack.c.h.b16 %v5534
    %v5619 = vunpack.c.l.b16 %v5535
    %v5620 = vunpack.c.h.b16 %v5535
    %v5621 = vunpack.c.l.b16 %v5536
    %v5622 = vunpack.c.h.b16 %v5536
    %v5623 = vunpack.c.l.b16 %v5537
    %v5624 = vunpack.c.h.b16 %v5537
    %v5625 = vunpack.c.l.b16 %v5538
    %v5626 = vunpack.c.h.b16 %v5538
    %v5627 = vunpack.c.l.b16 %v5539
    %v5628 = vunpack.c.h.b16 %v5539
    %v5629 = vunpack.c.l.b16 %v5540
    %v5630 = vunpack.c.h.b16 %v5540
    %v5631 = vunpack.c.l.b16 %v5541
    %v5632 = vunpack.c.h.b16 %v5541
    %v5633 = vunpack.c.l.b16 %v5542
    %v5634 = vunpack.c.h.b16 %v5542
    %v5635 = vunpack.c.l.b16 %v5543
    %v5636 = vunpack.c.h.b16 %v5543
    %v5637 = vunpack.c.l.b16 %v5544
    %v5638 = vunpack.c.h.b16 %v5544
    %v5639 = vunpack.c.l.b16 %v5545
    %v5640 = vunpack.c.h.b16 %v5545
    %v5641 = vunpack.c.l.b16 %v5546
    %v5642 = vunpack.c.h.b16 %v5546
    %v5643 = vpack.c.b16 %v5583, %v5579
    %v5644 = vpack.c.b16 %v5584, %v5580
    %v5645 = vpack.c.b16 %v5585, %v5581
    %v5646 = vpack.c.b16 %v5586, %v5582
    %v5647 = vpack.c.b16 %v5591, %v5587
    %v5648 = vpack.c.b16 %v5592, %v5588
    %v5649 = vpack.c.b16 %v5593, %v5589
    %v5650 = vpack.c.b16 %v5594, %v5590
    %v5651 = vpack.c.b16 %v5599, %v5595
    %v5652 = vpack.c.b16 %v5600, %v5596
    %v5653 = vpack.c.b16 %v5601, %v5597
    %v5654 = vpack.c.b16 %v5602, %v5598
    %v5655 = vpack.c.b16 %v5607, %v5603
    %v5656 = vpack.c.b16 %v5608, %v5604
    %v5657 = vpack.c.b16 %v5609, %v5605
    %v5658 = vpack.c.b16 %v5610, %v5606
    %v5659 = vpack.c.b16 %v5615, %v5611
    %v5660 = vpack.c.b16 %v5616, %v5612
    %v5661 = vpack.c.b16 %v5617, %v5613
    %v5662 = vpack.c.b16 %v5618, %v5614
    %v5663 = vpack.c.b16 %v5623, %v5619
    %v5664 = vpack.c.b16 %v5624, %v5620
    %v5665 = vpack.c.b16 %v5625, %v5621
    %v5666 = vpack.c.b16 %v5626, %v5622
    %v5667 = vpack.c.b16 %v5631, %v5627
    %v5668 = vpack.c.b16 %v5632, %v5628
    %v5669 = vpack.c.b16 %v5633, %v5629
    %v5670 = vpack.c.b16 %v5634, %v5630
    %v5671 = vpack.c.b16 %v5639, %v5635
    %v5672 = vpack.c.b16 %v5640, %v5636
    %v5673 = vpack.c.b16 %v5641, %v5637
    %v5674 = vpack.c.b16 %v5642, %v5638
    %5707 = vmatprep.subr.bf16.mxu0 %v5672
    %5708 = vmatpush1.bf16.msra.mxu0 %v5671
    %5709 = vmatprep.subr.bf16.mxu0 %v5668
    %5710 = vmatpush1.bf16.msra.mxu0 %v5667
    %5711 = vmatprep.subr.bf16.mxu0 %v5664
    %5712 = vmatpush1.bf16.msra.mxu0 %v5663
    %5713 = vmatprep.subr.bf16.mxu0 %v5660
    %5714 = vmatpush1.bf16.msra.mxu0 %v5659
    %5715 = vmatprep.subr.bf16.mxu0 %v5656
    %5716 = vmatpush1.bf16.msra.mxu0 %v5655
    %5717 = vmatprep.subr.bf16.mxu0 %v5652
    %5718 = vmatpush1.bf16.msra.mxu0 %v5651
    %5719 = vmatprep.subr.bf16.mxu0 %v5648
    %5720 = vmatpush1.bf16.msra.mxu0 %v5647
    %5721 = vmatprep.subr.bf16.mxu0 %v5644
    %5722 = vmatpush1.bf16.msra.mxu0 %v5643
    %5723 = vmatprep.subr.bf16.mxu0 0
    %5724 = vmatpush2.bf16.msra.mxu0 0
    %5725 = vmatprep.subr.bf16.mxu0 0
    %5726 = vmatpush2.bf16.msra.mxu0 0
    %5727 = vmatprep.subr.bf16.mxu0 0
    %5728 = vmatpush2.bf16.msra.mxu0 0
    %5729 = vmatprep.subr.bf16.mxu0 0
    %5730 = vmatpush2.bf16.msra.mxu0 0
    %5731 = vmatprep.subr.bf16.mxu0 0
    %5732 = vmatpush2.bf16.msra.mxu0 0
    %5733 = vmatprep.subr.bf16.mxu0 0
    %5734 = vmatpush2.bf16.msra.mxu0 0
    %5735 = vmatprep.subr.bf16.mxu0 0
    %5736 = vmatpush2.bf16.msra.mxu0 0
    %5737 = vmatprep.subr.bf16.mxu0 0
    %5738 = vmatpush2.bf16.msra.mxu0 0
    %5739 = vmatprep.mubr.bf16.mxu0 0
    %5740 = vmatmul.mubr.bf16.gmra.mxu0 %v5496
    %v5741 = vpop.f32.mrf.mxu0
    %v5742 = vadd.f32 0.0, %v5741
    %v5743 = vpop.f32.mrf.mxu0
    %v5744 = vadd.f32 0.0, %v5743
    %v5745 = vpop.f32.mrf.mxu0
    %v5746 = vadd.f32 0.0, %v5745
    %v5747 = vpop.f32.mrf.mxu0
    %v5748 = vadd.f32 0.0, %v5747
    %5749 = vdwg.mxu0
    %5750 = vmatprep.subr.bf16.mxu0 %v5674
    %5751 = vmatpush1.bf16.msra.mxu0 %v5673
    %5752 = vmatprep.subr.bf16.mxu0 %v5670
    %5753 = vmatpush1.bf16.msra.mxu0 %v5669
    %5754 = vmatprep.subr.bf16.mxu0 %v5666
    %5755 = vmatpush1.bf16.msra.mxu0 %v5665
    %5756 = vmatprep.subr.bf16.mxu0 %v5662
    %5757 = vmatpush1.bf16.msra.mxu0 %v5661
    %5758 = vmatprep.subr.bf16.mxu0 %v5658
    %5759 = vmatpush1.bf16.msra.mxu0 %v5657
    %5760 = vmatprep.subr.bf16.mxu0 %v5654
    %5761 = vmatpush1.bf16.msra.mxu0 %v5653
    %5762 = vmatprep.subr.bf16.mxu0 %v5650
    %5763 = vmatpush1.bf16.msra.mxu0 %v5649
    %5764 = vmatprep.subr.bf16.mxu0 %v5646
    %5765 = vmatpush1.bf16.msra.mxu0 %v5645
    %5766 = vmatprep.subr.bf16.mxu0 0
    %5767 = vmatpush2.bf16.msra.mxu0 0
    %5768 = vmatprep.subr.bf16.mxu0 0
    %5769 = vmatpush2.bf16.msra.mxu0 0
    %5770 = vmatprep.subr.bf16.mxu0 0
    %5771 = vmatpush2.bf16.msra.mxu0 0
    %5772 = vmatprep.subr.bf16.mxu0 0
    %5773 = vmatpush2.bf16.msra.mxu0 0
    %5774 = vmatprep.subr.bf16.mxu0 0
    %5775 = vmatpush2.bf16.msra.mxu0 0
    %5776 = vmatprep.subr.bf16.mxu0 0
    %5777 = vmatpush2.bf16.msra.mxu0 0
    %5778 = vmatprep.subr.bf16.mxu0 0
    %5779 = vmatpush2.bf16.msra.mxu0 0
    %5780 = vmatprep.subr.bf16.mxu0 0
    %5781 = vmatpush2.bf16.msra.mxu0 0
    %5782 = vmatprep.mubr.bf16.mxu0 0
    %5783 = vmatmul.mubr.bf16.gmra.mxu0 %v5496
    %v5784 = vpop.f32.mrf.mxu0
    %v5785 = vadd.f32 0.0, %v5784
    %v5786 = vpop.f32.mrf.mxu0
    %v5787 = vadd.f32 0.0, %v5786
    %v5788 = vpop.f32.mrf.mxu0
    %v5789 = vadd.f32 0.0, %v5788
    %v5790 = vpop.f32.mrf.mxu0
    %v5791 = vadd.f32 0.0, %v5790
    %5792 = vdwg.mxu0
    %v5793 = vadd.f32 %v5507, %v5742
    %v5794 = vadd.f32 %v5508, %v5744
    %v5795 = vadd.f32 %v5509, %v5785
    %v5796 = vadd.f32 %v5510, %v5787
    %v5797 = vadd.f32 %v5511, %v5746
    %v5798 = vadd.f32 %v5512, %v5748
    %v5799 = vadd.f32 %v5513, %v5789
    %v5800 = vadd.f32 %v5514, %v5791
    %v5801 = vxor.u32 %v5793, 2147483648
    %v5802 = vxor.u32 %v5797, 2147483648
    %v5803 = vmul.f32 %v5801, 1.442695
    %v5804 = vpow.pop %v5803
    %v5805 = vmul.f32 %v5802, 1.442695
    %v5806 = vpow.pop %v5805
    %v5807 = vadd.f32 %v5804, 1.0
    %v5808 = vadd.f32 %v5806, 1.0
    %v5809 = vrcp.pop %v5807
    %v5810 = vmul.f32 1.0, %v5809
    %v5811 = vrcp.pop %v5808
    %v5812 = vmul.f32 1.0, %v5811
    %v5813 = vxor.u32 %v5794, 2147483648
    %v5814 = vxor.u32 %v5798, 2147483648
    %v5815 = vmul.f32 %v5813, 1.442695
    %v5816 = vpow.pop %v5815
    %v5817 = vmul.f32 %v5814, 1.442695
    %v5818 = vpow.pop %v5817
    %v5819 = vadd.f32 %v5816, 1.0
    %v5820 = vadd.f32 %v5818, 1.0
    %v5821 = vrcp.pop %v5819
    %v5822 = vmul.f32 1.0, %v5821
    %v5823 = vrcp.pop %v5820
    %v5824 = vmul.f32 1.0, %v5823
    %v5825 = vtanh.pop %v5795
    %v5826 = vtanh.pop %v5799
    %v5827 = vxor.u32 %v5796, 2147483648
    %v5828 = vxor.u32 %v5800, 2147483648
    %v5829 = vmul.f32 %v5827, 1.442695
    %v5830 = vpow.pop %v5829
    %v5831 = vmul.f32 %v5828, 1.442695
    %v5832 = vpow.pop %v5831
    %v5833 = vadd.f32 %v5830, 1.0
    %v5834 = vadd.f32 %v5832, 1.0
    %v5835 = vrcp.pop %v5833
    %v5836 = vmul.f32 1.0, %v5835
    %v5837 = vrcp.pop %v5834
    %v5838 = vmul.f32 1.0, %v5837
    %v5839 = vmul.f32 %v5822, %v5490
    %v5840 = vmul.f32 %v5824, %v5491
    %v5841 = vmul.f32 %v5810, %v5825
    %v5842 = vmul.f32 %v5812, %v5826
    %v5843 = vadd.f32 %v5839, %v5841
    %v5844 = vadd.f32 %v5840, %v5842
    %v5845 = vtanh.pop %v5843
    %v5846 = vtanh.pop %v5844
    %v5847 = vmul.f32 %v5836, %v5845
    %v5848 = vmul.f32 %v5838, %v5846
    %v5849 = vpack.c.bf16 %v5848, %v5847
    %v5851 = vunpack.c.l.b16 %v5849
    %v5852 = vunpack.c.h.b16 %v5849
    %v5853 = vpack.c.b16 %v5851, %v5851
    %v5854 = vpack.c.b16 %v5852, %v5852
    %s5857 = scalar_lea.vmem [#allocation5], 32
    %5858 = vst [vmem:[%s5857] sm:$0xf] %v5853
    %5859 = vst [vmem:[%s5857 + $0x4] sm:$0xf] %v5854
    %v5860 = vld [vmem:[%s2451] sm:$0xff]
    %v5861 = vld [vmem:[%s2451 + $0x8] sm:$0xff]
    %v5862 = vld [vmem:[%s2451 + $0x10] sm:$0xff]
    %v5863 = vld [vmem:[%s2451 + $0x18] sm:$0xff]
    %v5864 = vld [vmem:[%s2451 + $0x20] sm:$0xff]
    %v5865 = vld [vmem:[%s2451 + $0x28] sm:$0xff]
    %v5866 = vld [vmem:[%s2451 + $0x30] sm:$0xff]
    %v5867 = vld [vmem:[%s2451 + $0x38] sm:$0xff]
    %v5868 = vld [vmem:[#allocation11] sm:$0xff]
    %v5869 = vld [vmem:[#allocation11 + $0x8] sm:$0xff]
    %v5870 = vld [vmem:[#allocation11 + $0x10] sm:$0xff]
    %v5871 = vld [vmem:[#allocation11 + $0x18] sm:$0xff]
    %v5872 = vld [vmem:[#allocation11 + $0x20] sm:$0xff]
    %v5873 = vld [vmem:[#allocation11 + $0x28] sm:$0xff]
    %v5874 = vld [vmem:[#allocation11 + $0x30] sm:$0xff]
    %v5875 = vld [vmem:[#allocation11 + $0x38] sm:$0xff]
    %v5876 = vld [vmem:[#allocation11 + $0x40] sm:$0xff]
    %v5877 = vld [vmem:[#allocation11 + $0x48] sm:$0xff]
    %v5878 = vld [vmem:[#allocation11 + $0x50] sm:$0xff]
    %v5879 = vld [vmem:[#allocation11 + $0x58] sm:$0xff]
    %v5880 = vld [vmem:[#allocation11 + $0x60] sm:$0xff]
    %v5881 = vld [vmem:[#allocation11 + $0x68] sm:$0xff]
    %v5882 = vld [vmem:[#allocation11 + $0x70] sm:$0xff]
    %v5883 = vld [vmem:[#allocation11 + $0x78] sm:$0xff]
    %v5884 = vld [vmem:[#allocation11 + $0x80] sm:$0xff]
    %v5885 = vld [vmem:[#allocation11 + $0x88] sm:$0xff]
    %v5886 = vld [vmem:[#allocation11 + $0x90] sm:$0xff]
    %v5887 = vld [vmem:[#allocation11 + $0x98] sm:$0xff]
    %v5888 = vld [vmem:[#allocation11 + $0xa0] sm:$0xff]
    %v5889 = vld [vmem:[#allocation11 + $0xa8] sm:$0xff]
    %v5890 = vld [vmem:[#allocation11 + $0xb0] sm:$0xff]
    %v5891 = vld [vmem:[#allocation11 + $0xb8] sm:$0xff]
    %v5892 = vld [vmem:[#allocation11 + $0xc0] sm:$0xff]
    %v5893 = vld [vmem:[#allocation11 + $0xc8] sm:$0xff]
    %v5894 = vld [vmem:[#allocation11 + $0xd0] sm:$0xff]
    %v5895 = vld [vmem:[#allocation11 + $0xd8] sm:$0xff]
    %v5896 = vld [vmem:[#allocation11 + $0xe0] sm:$0xff]
    %v5897 = vld [vmem:[#allocation11 + $0xe8] sm:$0xff]
    %v5898 = vld [vmem:[#allocation11 + $0xf0] sm:$0xff]
    %v5899 = vld [vmem:[#allocation11 + $0xf8] sm:$0xff]
    %v5932 = vunpack.c.l.b16 %v5868
    %v5933 = vunpack.c.h.b16 %v5868
    %v5934 = vunpack.c.l.b16 %v5869
    %v5935 = vunpack.c.h.b16 %v5869
    %v5936 = vunpack.c.l.b16 %v5870
    %v5937 = vunpack.c.h.b16 %v5870
    %v5938 = vunpack.c.l.b16 %v5871
    %v5939 = vunpack.c.h.b16 %v5871
    %v5940 = vunpack.c.l.b16 %v5872
    %v5941 = vunpack.c.h.b16 %v5872
    %v5942 = vunpack.c.l.b16 %v5873
    %v5943 = vunpack.c.h.b16 %v5873
    %v5944 = vunpack.c.l.b16 %v5874
    %v5945 = vunpack.c.h.b16 %v5874
    %v5946 = vunpack.c.l.b16 %v5875
    %v5947 = vunpack.c.h.b16 %v5875
    %v5948 = vunpack.c.l.b16 %v5876
    %v5949 = vunpack.c.h.b16 %v5876
    %v5950 = vunpack.c.l.b16 %v5877
    %v5951 = vunpack.c.h.b16 %v5877
    %v5952 = vunpack.c.l.b16 %v5878
    %v5953 = vunpack.c.h.b16 %v5878
    %v5954 = vunpack.c.l.b16 %v5879
    %v5955 = vunpack.c.h.b16 %v5879
    %v5956 = vunpack.c.l.b16 %v5880
    %v5957 = vunpack.c.h.b16 %v5880
    %v5958 = vunpack.c.l.b16 %v5881
    %v5959 = vunpack.c.h.b16 %v5881
    %v5960 = vunpack.c.l.b16 %v5882
    %v5961 = vunpack.c.h.b16 %v5882
    %v5962 = vunpack.c.l.b16 %v5883
    %v5963 = vunpack.c.h.b16 %v5883
    %v5964 = vunpack.c.l.b16 %v5884
    %v5965 = vunpack.c.h.b16 %v5884
    %v5966 = vunpack.c.l.b16 %v5885
    %v5967 = vunpack.c.h.b16 %v5885
    %v5968 = vunpack.c.l.b16 %v5886
    %v5969 = vunpack.c.h.b16 %v5886
    %v5970 = vunpack.c.l.b16 %v5887
    %v5971 = vunpack.c.h.b16 %v5887
    %v5972 = vunpack.c.l.b16 %v5888
    %v5973 = vunpack.c.h.b16 %v5888
    %v5974 = vunpack.c.l.b16 %v5889
    %v5975 = vunpack.c.h.b16 %v5889
    %v5976 = vunpack.c.l.b16 %v5890
    %v5977 = vunpack.c.h.b16 %v5890
    %v5978 = vunpack.c.l.b16 %v5891
    %v5979 = vunpack.c.h.b16 %v5891
    %v5980 = vunpack.c.l.b16 %v5892
    %v5981 = vunpack.c.h.b16 %v5892
    %v5982 = vunpack.c.l.b16 %v5893
    %v5983 = vunpack.c.h.b16 %v5893
    %v5984 = vunpack.c.l.b16 %v5894
    %v5985 = vunpack.c.h.b16 %v5894
    %v5986 = vunpack.c.l.b16 %v5895
    %v5987 = vunpack.c.h.b16 %v5895
    %v5988 = vunpack.c.l.b16 %v5896
    %v5989 = vunpack.c.h.b16 %v5896
    %v5990 = vunpack.c.l.b16 %v5897
    %v5991 = vunpack.c.h.b16 %v5897
    %v5992 = vunpack.c.l.b16 %v5898
    %v5993 = vunpack.c.h.b16 %v5898
    %v5994 = vunpack.c.l.b16 %v5899
    %v5995 = vunpack.c.h.b16 %v5899
    %v5996 = vpack.c.b16 %v5936, %v5932
    %v5997 = vpack.c.b16 %v5937, %v5933
    %v5998 = vpack.c.b16 %v5938, %v5934
    %v5999 = vpack.c.b16 %v5939, %v5935
    %v6000 = vpack.c.b16 %v5944, %v5940
    %v6001 = vpack.c.b16 %v5945, %v5941
    %v6002 = vpack.c.b16 %v5946, %v5942
    %v6003 = vpack.c.b16 %v5947, %v5943
    %v6004 = vpack.c.b16 %v5952, %v5948
    %v6005 = vpack.c.b16 %v5953, %v5949
    %v6006 = vpack.c.b16 %v5954, %v5950
    %v6007 = vpack.c.b16 %v5955, %v5951
    %v6008 = vpack.c.b16 %v5960, %v5956
    %v6009 = vpack.c.b16 %v5961, %v5957
    %v6010 = vpack.c.b16 %v5962, %v5958
    %v6011 = vpack.c.b16 %v5963, %v5959
    %v6012 = vpack.c.b16 %v5968, %v5964
    %v6013 = vpack.c.b16 %v5969, %v5965
    %v6014 = vpack.c.b16 %v5970, %v5966
    %v6015 = vpack.c.b16 %v5971, %v5967
    %v6016 = vpack.c.b16 %v5976, %v5972
    %v6017 = vpack.c.b16 %v5977, %v5973
    %v6018 = vpack.c.b16 %v5978, %v5974
    %v6019 = vpack.c.b16 %v5979, %v5975
    %v6020 = vpack.c.b16 %v5984, %v5980
    %v6021 = vpack.c.b16 %v5985, %v5981
    %v6022 = vpack.c.b16 %v5986, %v5982
    %v6023 = vpack.c.b16 %v5987, %v5983
    %v6024 = vpack.c.b16 %v5992, %v5988
    %v6025 = vpack.c.b16 %v5993, %v5989
    %v6026 = vpack.c.b16 %v5994, %v5990
    %v6027 = vpack.c.b16 %v5995, %v5991
    %6060 = vmatprep.subr.bf16.mxu0 %v6025
    %6061 = vmatpush1.bf16.msra.mxu0 %v6024
    %6062 = vmatprep.subr.bf16.mxu0 %v6021
    %6063 = vmatpush1.bf16.msra.mxu0 %v6020
    %6064 = vmatprep.subr.bf16.mxu0 %v6017
    %6065 = vmatpush1.bf16.msra.mxu0 %v6016
    %6066 = vmatprep.subr.bf16.mxu0 %v6013
    %6067 = vmatpush1.bf16.msra.mxu0 %v6012
    %6068 = vmatprep.subr.bf16.mxu0 %v6009
    %6069 = vmatpush1.bf16.msra.mxu0 %v6008
    %6070 = vmatprep.subr.bf16.mxu0 %v6005
    %6071 = vmatpush1.bf16.msra.mxu0 %v6004
    %6072 = vmatprep.subr.bf16.mxu0 %v6001
    %6073 = vmatpush1.bf16.msra.mxu0 %v6000
    %6074 = vmatprep.subr.bf16.mxu0 %v5997
    %6075 = vmatpush1.bf16.msra.mxu0 %v5996
    %6076 = vmatprep.subr.bf16.mxu0 0
    %6077 = vmatpush2.bf16.msra.mxu0 0
    %6078 = vmatprep.subr.bf16.mxu0 0
    %6079 = vmatpush2.bf16.msra.mxu0 0
    %6080 = vmatprep.subr.bf16.mxu0 0
    %6081 = vmatpush2.bf16.msra.mxu0 0
    %6082 = vmatprep.subr.bf16.mxu0 0
    %6083 = vmatpush2.bf16.msra.mxu0 0
    %6084 = vmatprep.subr.bf16.mxu0 0
    %6085 = vmatpush2.bf16.msra.mxu0 0
    %6086 = vmatprep.subr.bf16.mxu0 0
    %6087 = vmatpush2.bf16.msra.mxu0 0
    %6088 = vmatprep.subr.bf16.mxu0 0
    %6089 = vmatpush2.bf16.msra.mxu0 0
    %6090 = vmatprep.subr.bf16.mxu0 0
    %6091 = vmatpush2.bf16.msra.mxu0 0
    %6092 = vmatprep.mubr.bf16.mxu0 0
    %6093 = vmatmul.mubr.bf16.gmra.mxu0 %v5849
    %v6094 = vpop.f32.mrf.mxu0
    %v6095 = vadd.f32 0.0, %v6094
    %v6096 = vpop.f32.mrf.mxu0
    %v6097 = vadd.f32 0.0, %v6096
    %v6098 = vpop.f32.mrf.mxu0
    %v6099 = vadd.f32 0.0, %v6098
    %v6100 = vpop.f32.mrf.mxu0
    %v6101 = vadd.f32 0.0, %v6100
    %6102 = vdwg.mxu0
    %6103 = vmatprep.subr.bf16.mxu0 %v6027
    %6104 = vmatpush1.bf16.msra.mxu0 %v6026
    %6105 = vmatprep.subr.bf16.mxu0 %v6023
    %6106 = vmatpush1.bf16.msra.mxu0 %v6022
    %6107 = vmatprep.subr.bf16.mxu0 %v6019
    %6108 = vmatpush1.bf16.msra.mxu0 %v6018
    %6109 = vmatprep.subr.bf16.mxu0 %v6015
    %6110 = vmatpush1.bf16.msra.mxu0 %v6014
    %6111 = vmatprep.subr.bf16.mxu0 %v6011
    %6112 = vmatpush1.bf16.msra.mxu0 %v6010
    %6113 = vmatprep.subr.bf16.mxu0 %v6007
    %6114 = vmatpush1.bf16.msra.mxu0 %v6006
    %6115 = vmatprep.subr.bf16.mxu0 %v6003
    %6116 = vmatpush1.bf16.msra.mxu0 %v6002
    %6117 = vmatprep.subr.bf16.mxu0 %v5999
    %6118 = vmatpush1.bf16.msra.mxu0 %v5998
    %6119 = vmatprep.subr.bf16.mxu0 0
    %6120 = vmatpush2.bf16.msra.mxu0 0
    %6121 = vmatprep.subr.bf16.mxu0 0
    %6122 = vmatpush2.bf16.msra.mxu0 0
    %6123 = vmatprep.subr.bf16.mxu0 0
    %6124 = vmatpush2.bf16.msra.mxu0 0
    %6125 = vmatprep.subr.bf16.mxu0 0
    %6126 = vmatpush2.bf16.msra.mxu0 0
    %6127 = vmatprep.subr.bf16.mxu0 0
    %6128 = vmatpush2.bf16.msra.mxu0 0
    %6129 = vmatprep.subr.bf16.mxu0 0
    %6130 = vmatpush2.bf16.msra.mxu0 0
    %6131 = vmatprep.subr.bf16.mxu0 0
    %6132 = vmatpush2.bf16.msra.mxu0 0
    %6133 = vmatprep.subr.bf16.mxu0 0
    %6134 = vmatpush2.bf16.msra.mxu0 0
    %6135 = vmatprep.mubr.bf16.mxu0 0
    %6136 = vmatmul.mubr.bf16.gmra.mxu0 %v5849
    %v6137 = vpop.f32.mrf.mxu0
    %v6138 = vadd.f32 0.0, %v6137
    %v6139 = vpop.f32.mrf.mxu0
    %v6140 = vadd.f32 0.0, %v6139
    %v6141 = vpop.f32.mrf.mxu0
    %v6142 = vadd.f32 0.0, %v6141
    %v6143 = vpop.f32.mrf.mxu0
    %v6144 = vadd.f32 0.0, %v6143
    %6145 = vdwg.mxu0
    %v6146 = vadd.f32 %v5860, %v6095
    %v6147 = vadd.f32 %v5861, %v6097
    %v6148 = vadd.f32 %v5862, %v6138
    %v6149 = vadd.f32 %v5863, %v6140
    %v6150 = vadd.f32 %v5864, %v6099
    %v6151 = vadd.f32 %v5865, %v6101
    %v6152 = vadd.f32 %v5866, %v6142
    %v6153 = vadd.f32 %v5867, %v6144
    %v6154 = vxor.u32 %v6146, 2147483648
    %v6155 = vxor.u32 %v6150, 2147483648
    %v6156 = vmul.f32 %v6154, 1.442695
    %v6157 = vpow.pop %v6156
    %v6158 = vmul.f32 %v6155, 1.442695
    %v6159 = vpow.pop %v6158
    %v6160 = vadd.f32 %v6157, 1.0
    %v6161 = vadd.f32 %v6159, 1.0
    %v6162 = vrcp.pop %v6160
    %v6163 = vmul.f32 1.0, %v6162
    %v6164 = vrcp.pop %v6161
    %v6165 = vmul.f32 1.0, %v6164
    %v6166 = vxor.u32 %v6147, 2147483648
    %v6167 = vxor.u32 %v6151, 2147483648
    %v6168 = vmul.f32 %v6166, 1.442695
    %v6169 = vpow.pop %v6168
    %v6170 = vmul.f32 %v6167, 1.442695
    %v6171 = vpow.pop %v6170
    %v6172 = vadd.f32 %v6169, 1.0
    %v6173 = vadd.f32 %v6171, 1.0
    %v6174 = vrcp.pop %v6172
    %v6175 = vmul.f32 1.0, %v6174
    %v6176 = vrcp.pop %v6173
    %v6177 = vmul.f32 1.0, %v6176
    %v6178 = vtanh.pop %v6148
    %v6179 = vtanh.pop %v6152
    %v6180 = vxor.u32 %v6149, 2147483648
    %v6181 = vxor.u32 %v6153, 2147483648
    %v6182 = vmul.f32 %v6180, 1.442695
    %v6183 = vpow.pop %v6182
    %v6184 = vmul.f32 %v6181, 1.442695
    %v6185 = vpow.pop %v6184
    %v6186 = vadd.f32 %v6183, 1.0
    %v6187 = vadd.f32 %v6185, 1.0
    %v6188 = vrcp.pop %v6186
    %v6189 = vmul.f32 1.0, %v6188
    %v6190 = vrcp.pop %v6187
    %v6191 = vmul.f32 1.0, %v6190
    %v6192 = vmul.f32 %v6175, %v5843
    %v6193 = vmul.f32 %v6177, %v5844
    %v6194 = vmul.f32 %v6163, %v6178
    %v6195 = vmul.f32 %v6165, %v6179
    %v6196 = vadd.f32 %v6192, %v6194
    %v6197 = vadd.f32 %v6193, %v6195
    %v6198 = vtanh.pop %v6196
    %v6199 = vtanh.pop %v6197
    %v6200 = vmul.f32 %v6189, %v6198
    %v6201 = vmul.f32 %v6191, %v6199
    %v6202 = vpack.c.bf16 %v6201, %v6200
    %v6204 = vunpack.c.l.b16 %v6202
    %v6205 = vunpack.c.h.b16 %v6202
    %v6206 = vpack.c.b16 %v6204, %v6204
    %v6207 = vpack.c.b16 %v6205, %v6205
    %s6210 = scalar_lea.vmem [#allocation5], 40
    %6211 = vst [vmem:[%s6210] sm:$0xf] %v6206
    %6212 = vst [vmem:[%s6210 + $0x4] sm:$0xf] %v6207
    %v6213 = vld [vmem:[%s2807] sm:$0xff]
    %v6214 = vld [vmem:[%s2807 + $0x8] sm:$0xff]
    %v6215 = vld [vmem:[%s2807 + $0x10] sm:$0xff]
    %v6216 = vld [vmem:[%s2807 + $0x18] sm:$0xff]
    %v6217 = vld [vmem:[%s2807 + $0x20] sm:$0xff]
    %v6218 = vld [vmem:[%s2807 + $0x28] sm:$0xff]
    %v6219 = vld [vmem:[%s2807 + $0x30] sm:$0xff]
    %v6220 = vld [vmem:[%s2807 + $0x38] sm:$0xff]
    %v6221 = vld [vmem:[#allocation11] sm:$0xff]
    %v6222 = vld [vmem:[#allocation11 + $0x8] sm:$0xff]
    %v6223 = vld [vmem:[#allocation11 + $0x10] sm:$0xff]
    %v6224 = vld [vmem:[#allocation11 + $0x18] sm:$0xff]
    %v6225 = vld [vmem:[#allocation11 + $0x20] sm:$0xff]
    %v6226 = vld [vmem:[#allocation11 + $0x28] sm:$0xff]
    %v6227 = vld [vmem:[#allocation11 + $0x30] sm:$0xff]
    %v6228 = vld [vmem:[#allocation11 + $0x38] sm:$0xff]
    %v6229 = vld [vmem:[#allocation11 + $0x40] sm:$0xff]
    %v6230 = vld [vmem:[#allocation11 + $0x48] sm:$0xff]
    %v6231 = vld [vmem:[#allocation11 + $0x50] sm:$0xff]
    %v6232 = vld [vmem:[#allocation11 + $0x58] sm:$0xff]
    %v6233 = vld [vmem:[#allocation11 + $0x60] sm:$0xff]
    %v6234 = vld [vmem:[#allocation11 + $0x68] sm:$0xff]
    %v6235 = vld [vmem:[#allocation11 + $0x70] sm:$0xff]
    %v6236 = vld [vmem:[#allocation11 + $0x78] sm:$0xff]
    %v6237 = vld [vmem:[#allocation11 + $0x80] sm:$0xff]
    %v6238 = vld [vmem:[#allocation11 + $0x88] sm:$0xff]
    %v6239 = vld [vmem:[#allocation11 + $0x90] sm:$0xff]
    %v6240 = vld [vmem:[#allocation11 + $0x98] sm:$0xff]
    %v6241 = vld [vmem:[#allocation11 + $0xa0] sm:$0xff]
    %v6242 = vld [vmem:[#allocation11 + $0xa8] sm:$0xff]
    %v6243 = vld [vmem:[#allocation11 + $0xb0] sm:$0xff]
    %v6244 = vld [vmem:[#allocation11 + $0xb8] sm:$0xff]
    %v6245 = vld [vmem:[#allocation11 + $0xc0] sm:$0xff]
    %v6246 = vld [vmem:[#allocation11 + $0xc8] sm:$0xff]
    %v6247 = vld [vmem:[#allocation11 + $0xd0] sm:$0xff]
    %v6248 = vld [vmem:[#allocation11 + $0xd8] sm:$0xff]
    %v6249 = vld [vmem:[#allocation11 + $0xe0] sm:$0xff]
    %v6250 = vld [vmem:[#allocation11 + $0xe8] sm:$0xff]
    %v6251 = vld [vmem:[#allocation11 + $0xf0] sm:$0xff]
    %v6252 = vld [vmem:[#allocation11 + $0xf8] sm:$0xff]
    %v6285 = vunpack.c.l.b16 %v6221
    %v6286 = vunpack.c.h.b16 %v6221
    %v6287 = vunpack.c.l.b16 %v6222
    %v6288 = vunpack.c.h.b16 %v6222
    %v6289 = vunpack.c.l.b16 %v6223
    %v6290 = vunpack.c.h.b16 %v6223
    %v6291 = vunpack.c.l.b16 %v6224
    %v6292 = vunpack.c.h.b16 %v6224
    %v6293 = vunpack.c.l.b16 %v6225
    %v6294 = vunpack.c.h.b16 %v6225
    %v6295 = vunpack.c.l.b16 %v6226
    %v6296 = vunpack.c.h.b16 %v6226
    %v6297 = vunpack.c.l.b16 %v6227
    %v6298 = vunpack.c.h.b16 %v6227
    %v6299 = vunpack.c.l.b16 %v6228
    %v6300 = vunpack.c.h.b16 %v6228
    %v6301 = vunpack.c.l.b16 %v6229
    %v6302 = vunpack.c.h.b16 %v6229
    %v6303 = vunpack.c.l.b16 %v6230
    %v6304 = vunpack.c.h.b16 %v6230
    %v6305 = vunpack.c.l.b16 %v6231
    %v6306 = vunpack.c.h.b16 %v6231
    %v6307 = vunpack.c.l.b16 %v6232
    %v6308 = vunpack.c.h.b16 %v6232
    %v6309 = vunpack.c.l.b16 %v6233
    %v6310 = vunpack.c.h.b16 %v6233
    %v6311 = vunpack.c.l.b16 %v6234
    %v6312 = vunpack.c.h.b16 %v6234
    %v6313 = vunpack.c.l.b16 %v6235
    %v6314 = vunpack.c.h.b16 %v6235
    %v6315 = vunpack.c.l.b16 %v6236
    %v6316 = vunpack.c.h.b16 %v6236
    %v6317 = vunpack.c.l.b16 %v6237
    %v6318 = vunpack.c.h.b16 %v6237
    %v6319 = vunpack.c.l.b16 %v6238
    %v6320 = vunpack.c.h.b16 %v6238
    %v6321 = vunpack.c.l.b16 %v6239
    %v6322 = vunpack.c.h.b16 %v6239
    %v6323 = vunpack.c.l.b16 %v6240
    %v6324 = vunpack.c.h.b16 %v6240
    %v6325 = vunpack.c.l.b16 %v6241
    %v6326 = vunpack.c.h.b16 %v6241
    %v6327 = vunpack.c.l.b16 %v6242
    %v6328 = vunpack.c.h.b16 %v6242
    %v6329 = vunpack.c.l.b16 %v6243
    %v6330 = vunpack.c.h.b16 %v6243
    %v6331 = vunpack.c.l.b16 %v6244
    %v6332 = vunpack.c.h.b16 %v6244
    %v6333 = vunpack.c.l.b16 %v6245
    %v6334 = vunpack.c.h.b16 %v6245
    %v6335 = vunpack.c.l.b16 %v6246
    %v6336 = vunpack.c.h.b16 %v6246
    %v6337 = vunpack.c.l.b16 %v6247
    %v6338 = vunpack.c.h.b16 %v6247
    %v6339 = vunpack.c.l.b16 %v6248
    %v6340 = vunpack.c.h.b16 %v6248
    %v6341 = vunpack.c.l.b16 %v6249
    %v6342 = vunpack.c.h.b16 %v6249
    %v6343 = vunpack.c.l.b16 %v6250
    %v6344 = vunpack.c.h.b16 %v6250
    %v6345 = vunpack.c.l.b16 %v6251
    %v6346 = vunpack.c.h.b16 %v6251
    %v6347 = vunpack.c.l.b16 %v6252
    %v6348 = vunpack.c.h.b16 %v6252
    %v6349 = vpack.c.b16 %v6289, %v6285
    %v6350 = vpack.c.b16 %v6290, %v6286
    %v6351 = vpack.c.b16 %v6291, %v6287
    %v6352 = vpack.c.b16 %v6292, %v6288
    %v6353 = vpack.c.b16 %v6297, %v6293
    %v6354 = vpack.c.b16 %v6298, %v6294
    %v6355 = vpack.c.b16 %v6299, %v6295
    %v6356 = vpack.c.b16 %v6300, %v6296
    %v6357 = vpack.c.b16 %v6305, %v6301
    %v6358 = vpack.c.b16 %v6306, %v6302
    %v6359 = vpack.c.b16 %v6307, %v6303
    %v6360 = vpack.c.b16 %v6308, %v6304
    %v6361 = vpack.c.b16 %v6313, %v6309
    %v6362 = vpack.c.b16 %v6314, %v6310
    %v6363 = vpack.c.b16 %v6315, %v6311
    %v6364 = vpack.c.b16 %v6316, %v6312
    %v6365 = vpack.c.b16 %v6321, %v6317
    %v6366 = vpack.c.b16 %v6322, %v6318
    %v6367 = vpack.c.b16 %v6323, %v6319
    %v6368 = vpack.c.b16 %v6324, %v6320
    %v6369 = vpack.c.b16 %v6329, %v6325
    %v6370 = vpack.c.b16 %v6330, %v6326
    %v6371 = vpack.c.b16 %v6331, %v6327
    %v6372 = vpack.c.b16 %v6332, %v6328
    %v6373 = vpack.c.b16 %v6337, %v6333
    %v6374 = vpack.c.b16 %v6338, %v6334
    %v6375 = vpack.c.b16 %v6339, %v6335
    %v6376 = vpack.c.b16 %v6340, %v6336
    %v6377 = vpack.c.b16 %v6345, %v6341
    %v6378 = vpack.c.b16 %v6346, %v6342
    %v6379 = vpack.c.b16 %v6347, %v6343
    %v6380 = vpack.c.b16 %v6348, %v6344
    %6413 = vmatprep.subr.bf16.mxu0 %v6378
    %6414 = vmatpush1.bf16.msra.mxu0 %v6377
    %6415 = vmatprep.subr.bf16.mxu0 %v6374
    %6416 = vmatpush1.bf16.msra.mxu0 %v6373
    %6417 = vmatprep.subr.bf16.mxu0 %v6370
    %6418 = vmatpush1.bf16.msra.mxu0 %v6369
    %6419 = vmatprep.subr.bf16.mxu0 %v6366
    %6420 = vmatpush1.bf16.msra.mxu0 %v6365
    %6421 = vmatprep.subr.bf16.mxu0 %v6362
    %6422 = vmatpush1.bf16.msra.mxu0 %v6361
    %6423 = vmatprep.subr.bf16.mxu0 %v6358
    %6424 = vmatpush1.bf16.msra.mxu0 %v6357
    %6425 = vmatprep.subr.bf16.mxu0 %v6354
    %6426 = vmatpush1.bf16.msra.mxu0 %v6353
    %6427 = vmatprep.subr.bf16.mxu0 %v6350
    %6428 = vmatpush1.bf16.msra.mxu0 %v6349
    %6429 = vmatprep.subr.bf16.mxu0 0
    %6430 = vmatpush2.bf16.msra.mxu0 0
    %6431 = vmatprep.subr.bf16.mxu0 0
    %6432 = vmatpush2.bf16.msra.mxu0 0
    %6433 = vmatprep.subr.bf16.mxu0 0
    %6434 = vmatpush2.bf16.msra.mxu0 0
    %6435 = vmatprep.subr.bf16.mxu0 0
    %6436 = vmatpush2.bf16.msra.mxu0 0
    %6437 = vmatprep.subr.bf16.mxu0 0
    %6438 = vmatpush2.bf16.msra.mxu0 0
    %6439 = vmatprep.subr.bf16.mxu0 0
    %6440 = vmatpush2.bf16.msra.mxu0 0
    %6441 = vmatprep.subr.bf16.mxu0 0
    %6442 = vmatpush2.bf16.msra.mxu0 0
    %6443 = vmatprep.subr.bf16.mxu0 0
    %6444 = vmatpush2.bf16.msra.mxu0 0
    %6445 = vmatprep.mubr.bf16.mxu0 0
    %6446 = vmatmul.mubr.bf16.gmra.mxu0 %v6202
    %v6447 = vpop.f32.mrf.mxu0
    %v6448 = vadd.f32 0.0, %v6447
    %v6449 = vpop.f32.mrf.mxu0
    %v6450 = vadd.f32 0.0, %v6449
    %v6451 = vpop.f32.mrf.mxu0
    %v6452 = vadd.f32 0.0, %v6451
    %v6453 = vpop.f32.mrf.mxu0
    %v6454 = vadd.f32 0.0, %v6453
    %6455 = vdwg.mxu0
    %6456 = vmatprep.subr.bf16.mxu0 %v6380
    %6457 = vmatpush1.bf16.msra.mxu0 %v6379
    %6458 = vmatprep.subr.bf16.mxu0 %v6376
    %6459 = vmatpush1.bf16.msra.mxu0 %v6375
    %6460 = vmatprep.subr.bf16.mxu0 %v6372
    %6461 = vmatpush1.bf16.msra.mxu0 %v6371
    %6462 = vmatprep.subr.bf16.mxu0 %v6368
    %6463 = vmatpush1.bf16.msra.mxu0 %v6367
    %6464 = vmatprep.subr.bf16.mxu0 %v6364
    %6465 = vmatpush1.bf16.msra.mxu0 %v6363
    %6466 = vmatprep.subr.bf16.mxu0 %v6360
    %6467 = vmatpush1.bf16.msra.mxu0 %v6359
    %6468 = vmatprep.subr.bf16.mxu0 %v6356
    %6469 = vmatpush1.bf16.msra.mxu0 %v6355
    %6470 = vmatprep.subr.bf16.mxu0 %v6352
    %6471 = vmatpush1.bf16.msra.mxu0 %v6351
    %6472 = vmatprep.subr.bf16.mxu0 0
    %6473 = vmatpush2.bf16.msra.mxu0 0
    %6474 = vmatprep.subr.bf16.mxu0 0
    %6475 = vmatpush2.bf16.msra.mxu0 0
    %6476 = vmatprep.subr.bf16.mxu0 0
    %6477 = vmatpush2.bf16.msra.mxu0 0
    %6478 = vmatprep.subr.bf16.mxu0 0
    %6479 = vmatpush2.bf16.msra.mxu0 0
    %6480 = vmatprep.subr.bf16.mxu0 0
    %6481 = vmatpush2.bf16.msra.mxu0 0
    %6482 = vmatprep.subr.bf16.mxu0 0
    %6483 = vmatpush2.bf16.msra.mxu0 0
    %6484 = vmatprep.subr.bf16.mxu0 0
    %6485 = vmatpush2.bf16.msra.mxu0 0
    %6486 = vmatprep.subr.bf16.mxu0 0
    %6487 = vmatpush2.bf16.msra.mxu0 0
    %6488 = vmatprep.mubr.bf16.mxu0 0
    %6489 = vmatmul.mubr.bf16.gmra.mxu0 %v6202
    %v6490 = vpop.f32.mrf.mxu0
    %v6491 = vadd.f32 0.0, %v6490
    %v6492 = vpop.f32.mrf.mxu0
    %v6493 = vadd.f32 0.0, %v6492
    %v6494 = vpop.f32.mrf.mxu0
    %v6495 = vadd.f32 0.0, %v6494
    %v6496 = vpop.f32.mrf.mxu0
    %v6497 = vadd.f32 0.0, %v6496
    %6498 = vdwg.mxu0
    %v6499 = vadd.f32 %v6213, %v6448
    %v6500 = vadd.f32 %v6214, %v6450
    %v6501 = vadd.f32 %v6215, %v6491
    %v6502 = vadd.f32 %v6216, %v6493
    %v6503 = vadd.f32 %v6217, %v6452
    %v6504 = vadd.f32 %v6218, %v6454
    %v6505 = vadd.f32 %v6219, %v6495
    %v6506 = vadd.f32 %v6220, %v6497
    %v6507 = vxor.u32 %v6499, 2147483648
    %v6508 = vxor.u32 %v6503, 2147483648
    %v6509 = vmul.f32 %v6507, 1.442695
    %v6510 = vpow.pop %v6509
    %v6511 = vmul.f32 %v6508, 1.442695
    %v6512 = vpow.pop %v6511
    %v6513 = vadd.f32 %v6510, 1.0
    %v6514 = vadd.f32 %v6512, 1.0
    %v6515 = vrcp.pop %v6513
    %v6516 = vmul.f32 1.0, %v6515
    %v6517 = vrcp.pop %v6514
    %v6518 = vmul.f32 1.0, %v6517
    %v6519 = vxor.u32 %v6500, 2147483648
    %v6520 = vxor.u32 %v6504, 2147483648
    %v6521 = vmul.f32 %v6519, 1.442695
    %v6522 = vpow.pop %v6521
    %v6523 = vmul.f32 %v6520, 1.442695
    %v6524 = vpow.pop %v6523
    %v6525 = vadd.f32 %v6522, 1.0
    %v6526 = vadd.f32 %v6524, 1.0
    %v6527 = vrcp.pop %v6525
    %v6528 = vmul.f32 1.0, %v6527
    %v6529 = vrcp.pop %v6526
    %v6530 = vmul.f32 1.0, %v6529
    %v6531 = vtanh.pop %v6501
    %v6532 = vtanh.pop %v6505
    %v6533 = vxor.u32 %v6502, 2147483648
    %v6534 = vxor.u32 %v6506, 2147483648
    %v6535 = vmul.f32 %v6533, 1.442695
    %v6536 = vpow.pop %v6535
    %v6537 = vmul.f32 %v6534, 1.442695
    %v6538 = vpow.pop %v6537
    %v6539 = vadd.f32 %v6536, 1.0
    %v6540 = vadd.f32 %v6538, 1.0
    %v6541 = vrcp.pop %v6539
    %v6542 = vmul.f32 1.0, %v6541
    %v6543 = vrcp.pop %v6540
    %v6544 = vmul.f32 1.0, %v6543
    %v6545 = vmul.f32 %v6528, %v6196
    %v6546 = vmul.f32 %v6530, %v6197
    %v6547 = vmul.f32 %v6516, %v6531
    %v6548 = vmul.f32 %v6518, %v6532
    %v6549 = vadd.f32 %v6545, %v6547
    %v6550 = vadd.f32 %v6546, %v6548
    %v6551 = vtanh.pop %v6549
    %v6552 = vtanh.pop %v6550
    %v6553 = vmul.f32 %v6542, %v6551
    %v6554 = vmul.f32 %v6544, %v6552
    %v6555 = vpack.c.bf16 %v6554, %v6553
    %v6557 = vunpack.c.l.b16 %v6555
    %v6558 = vunpack.c.h.b16 %v6555
    %v6559 = vpack.c.b16 %v6557, %v6557
    %v6560 = vpack.c.b16 %v6558, %v6558
    %s6563 = scalar_lea.vmem [#allocation5], 48
    %6564 = vst [vmem:[%s6563] sm:$0xf] %v6559
    %6565 = vst [vmem:[%s6563 + $0x4] sm:$0xf] %v6560
    %v6566 = vld [vmem:[%s3163] sm:$0xff]
    %v6567 = vld [vmem:[%s3163 + $0x8] sm:$0xff]
    %v6568 = vld [vmem:[%s3163 + $0x10] sm:$0xff]
    %v6569 = vld [vmem:[%s3163 + $0x18] sm:$0xff]
    %v6570 = vld [vmem:[%s3163 + $0x20] sm:$0xff]
    %v6571 = vld [vmem:[%s3163 + $0x28] sm:$0xff]
    %v6572 = vld [vmem:[%s3163 + $0x30] sm:$0xff]
    %v6573 = vld [vmem:[%s3163 + $0x38] sm:$0xff]
    %v6574 = vld [vmem:[#allocation11] sm:$0xff]
    %v6575 = vld [vmem:[#allocation11 + $0x8] sm:$0xff]
    %v6576 = vld [vmem:[#allocation11 + $0x10] sm:$0xff]
    %v6577 = vld [vmem:[#allocation11 + $0x18] sm:$0xff]
    %v6578 = vld [vmem:[#allocation11 + $0x20] sm:$0xff]
    %v6579 = vld [vmem:[#allocation11 + $0x28] sm:$0xff]
    %v6580 = vld [vmem:[#allocation11 + $0x30] sm:$0xff]
    %v6581 = vld [vmem:[#allocation11 + $0x38] sm:$0xff]
    %v6582 = vld [vmem:[#allocation11 + $0x40] sm:$0xff]
    %v6583 = vld [vmem:[#allocation11 + $0x48] sm:$0xff]
    %v6584 = vld [vmem:[#allocation11 + $0x50] sm:$0xff]
    %v6585 = vld [vmem:[#allocation11 + $0x58] sm:$0xff]
    %v6586 = vld [vmem:[#allocation11 + $0x60] sm:$0xff]
    %v6587 = vld [vmem:[#allocation11 + $0x68] sm:$0xff]
    %v6588 = vld [vmem:[#allocation11 + $0x70] sm:$0xff]
    %v6589 = vld [vmem:[#allocation11 + $0x78] sm:$0xff]
    %v6590 = vld [vmem:[#allocation11 + $0x80] sm:$0xff]
    %v6591 = vld [vmem:[#allocation11 + $0x88] sm:$0xff]
    %v6592 = vld [vmem:[#allocation11 + $0x90] sm:$0xff]
    %v6593 = vld [vmem:[#allocation11 + $0x98] sm:$0xff]
    %v6594 = vld [vmem:[#allocation11 + $0xa0] sm:$0xff]
    %v6595 = vld [vmem:[#allocation11 + $0xa8] sm:$0xff]
    %v6596 = vld [vmem:[#allocation11 + $0xb0] sm:$0xff]
    %v6597 = vld [vmem:[#allocation11 + $0xb8] sm:$0xff]
    %v6598 = vld [vmem:[#allocation11 + $0xc0] sm:$0xff]
    %v6599 = vld [vmem:[#allocation11 + $0xc8] sm:$0xff]
    %v6600 = vld [vmem:[#allocation11 + $0xd0] sm:$0xff]
    %v6601 = vld [vmem:[#allocation11 + $0xd8] sm:$0xff]
    %v6602 = vld [vmem:[#allocation11 + $0xe0] sm:$0xff]
    %v6603 = vld [vmem:[#allocation11 + $0xe8] sm:$0xff]
    %v6604 = vld [vmem:[#allocation11 + $0xf0] sm:$0xff]
    %v6605 = vld [vmem:[#allocation11 + $0xf8] sm:$0xff]
    %v6638 = vunpack.c.l.b16 %v6574
    %v6639 = vunpack.c.h.b16 %v6574
    %v6640 = vunpack.c.l.b16 %v6575
    %v6641 = vunpack.c.h.b16 %v6575
    %v6642 = vunpack.c.l.b16 %v6576
    %v6643 = vunpack.c.h.b16 %v6576
    %v6644 = vunpack.c.l.b16 %v6577
    %v6645 = vunpack.c.h.b16 %v6577
    %v6646 = vunpack.c.l.b16 %v6578
    %v6647 = vunpack.c.h.b16 %v6578
    %v6648 = vunpack.c.l.b16 %v6579
    %v6649 = vunpack.c.h.b16 %v6579
    %v6650 = vunpack.c.l.b16 %v6580
    %v6651 = vunpack.c.h.b16 %v6580
    %v6652 = vunpack.c.l.b16 %v6581
    %v6653 = vunpack.c.h.b16 %v6581
    %v6654 = vunpack.c.l.b16 %v6582
    %v6655 = vunpack.c.h.b16 %v6582
    %v6656 = vunpack.c.l.b16 %v6583
    %v6657 = vunpack.c.h.b16 %v6583
    %v6658 = vunpack.c.l.b16 %v6584
    %v6659 = vunpack.c.h.b16 %v6584
    %v6660 = vunpack.c.l.b16 %v6585
    %v6661 = vunpack.c.h.b16 %v6585
    %v6662 = vunpack.c.l.b16 %v6586
    %v6663 = vunpack.c.h.b16 %v6586
    %v6664 = vunpack.c.l.b16 %v6587
    %v6665 = vunpack.c.h.b16 %v6587
    %v6666 = vunpack.c.l.b16 %v6588
    %v6667 = vunpack.c.h.b16 %v6588
    %v6668 = vunpack.c.l.b16 %v6589
    %v6669 = vunpack.c.h.b16 %v6589
    %v6670 = vunpack.c.l.b16 %v6590
    %v6671 = vunpack.c.h.b16 %v6590
    %v6672 = vunpack.c.l.b16 %v6591
    %v6673 = vunpack.c.h.b16 %v6591
    %v6674 = vunpack.c.l.b16 %v6592
    %v6675 = vunpack.c.h.b16 %v6592
    %v6676 = vunpack.c.l.b16 %v6593
    %v6677 = vunpack.c.h.b16 %v6593
    %v6678 = vunpack.c.l.b16 %v6594
    %v6679 = vunpack.c.h.b16 %v6594
    %v6680 = vunpack.c.l.b16 %v6595
    %v6681 = vunpack.c.h.b16 %v6595
    %v6682 = vunpack.c.l.b16 %v6596
    %v6683 = vunpack.c.h.b16 %v6596
    %v6684 = vunpack.c.l.b16 %v6597
    %v6685 = vunpack.c.h.b16 %v6597
    %v6686 = vunpack.c.l.b16 %v6598
    %v6687 = vunpack.c.h.b16 %v6598
    %v6688 = vunpack.c.l.b16 %v6599
    %v6689 = vunpack.c.h.b16 %v6599
    %v6690 = vunpack.c.l.b16 %v6600
    %v6691 = vunpack.c.h.b16 %v6600
    %v6692 = vunpack.c.l.b16 %v6601
    %v6693 = vunpack.c.h.b16 %v6601
    %v6694 = vunpack.c.l.b16 %v6602
    %v6695 = vunpack.c.h.b16 %v6602
    %v6696 = vunpack.c.l.b16 %v6603
    %v6697 = vunpack.c.h.b16 %v6603
    %v6698 = vunpack.c.l.b16 %v6604
    %v6699 = vunpack.c.h.b16 %v6604
    %v6700 = vunpack.c.l.b16 %v6605
    %v6701 = vunpack.c.h.b16 %v6605
    %v6702 = vpack.c.b16 %v6642, %v6638
    %v6703 = vpack.c.b16 %v6643, %v6639
    %v6704 = vpack.c.b16 %v6644, %v6640
    %v6705 = vpack.c.b16 %v6645, %v6641
    %v6706 = vpack.c.b16 %v6650, %v6646
    %v6707 = vpack.c.b16 %v6651, %v6647
    %v6708 = vpack.c.b16 %v6652, %v6648
    %v6709 = vpack.c.b16 %v6653, %v6649
    %v6710 = vpack.c.b16 %v6658, %v6654
    %v6711 = vpack.c.b16 %v6659, %v6655
    %v6712 = vpack.c.b16 %v6660, %v6656
    %v6713 = vpack.c.b16 %v6661, %v6657
    %v6714 = vpack.c.b16 %v6666, %v6662
    %v6715 = vpack.c.b16 %v6667, %v6663
    %v6716 = vpack.c.b16 %v6668, %v6664
    %v6717 = vpack.c.b16 %v6669, %v6665
    %v6718 = vpack.c.b16 %v6674, %v6670
    %v6719 = vpack.c.b16 %v6675, %v6671
    %v6720 = vpack.c.b16 %v6676, %v6672
    %v6721 = vpack.c.b16 %v6677, %v6673
    %v6722 = vpack.c.b16 %v6682, %v6678
    %v6723 = vpack.c.b16 %v6683, %v6679
    %v6724 = vpack.c.b16 %v6684, %v6680
    %v6725 = vpack.c.b16 %v6685, %v6681
    %v6726 = vpack.c.b16 %v6690, %v6686
    %v6727 = vpack.c.b16 %v6691, %v6687
    %v6728 = vpack.c.b16 %v6692, %v6688
    %v6729 = vpack.c.b16 %v6693, %v6689
    %v6730 = vpack.c.b16 %v6698, %v6694
    %v6731 = vpack.c.b16 %v6699, %v6695
    %v6732 = vpack.c.b16 %v6700, %v6696
    %v6733 = vpack.c.b16 %v6701, %v6697
    %6766 = vmatprep.subr.bf16.mxu0 %v6731
    %6767 = vmatpush1.bf16.msra.mxu0 %v6730
    %6768 = vmatprep.subr.bf16.mxu0 %v6727
    %6769 = vmatpush1.bf16.msra.mxu0 %v6726
    %6770 = vmatprep.subr.bf16.mxu0 %v6723
    %6771 = vmatpush1.bf16.msra.mxu0 %v6722
    %6772 = vmatprep.subr.bf16.mxu0 %v6719
    %6773 = vmatpush1.bf16.msra.mxu0 %v6718
    %6774 = vmatprep.subr.bf16.mxu0 %v6715
    %6775 = vmatpush1.bf16.msra.mxu0 %v6714
    %6776 = vmatprep.subr.bf16.mxu0 %v6711
    %6777 = vmatpush1.bf16.msra.mxu0 %v6710
    %6778 = vmatprep.subr.bf16.mxu0 %v6707
    %6779 = vmatpush1.bf16.msra.mxu0 %v6706
    %6780 = vmatprep.subr.bf16.mxu0 %v6703
    %6781 = vmatpush1.bf16.msra.mxu0 %v6702
    %6782 = vmatprep.subr.bf16.mxu0 0
    %6783 = vmatpush2.bf16.msra.mxu0 0
    %6784 = vmatprep.subr.bf16.mxu0 0
    %6785 = vmatpush2.bf16.msra.mxu0 0
    %6786 = vmatprep.subr.bf16.mxu0 0
    %6787 = vmatpush2.bf16.msra.mxu0 0
    %6788 = vmatprep.subr.bf16.mxu0 0
    %6789 = vmatpush2.bf16.msra.mxu0 0
    %6790 = vmatprep.subr.bf16.mxu0 0
    %6791 = vmatpush2.bf16.msra.mxu0 0
    %6792 = vmatprep.subr.bf16.mxu0 0
    %6793 = vmatpush2.bf16.msra.mxu0 0
    %6794 = vmatprep.subr.bf16.mxu0 0
    %6795 = vmatpush2.bf16.msra.mxu0 0
    %6796 = vmatprep.subr.bf16.mxu0 0
    %6797 = vmatpush2.bf16.msra.mxu0 0
    %6798 = vmatprep.mubr.bf16.mxu0 0
    %6799 = vmatmul.mubr.bf16.gmra.mxu0 %v6555
    %v6800 = vpop.f32.mrf.mxu0
    %v6801 = vadd.f32 0.0, %v6800
    %v6802 = vpop.f32.mrf.mxu0
    %v6803 = vadd.f32 0.0, %v6802
    %v6804 = vpop.f32.mrf.mxu0
    %v6805 = vadd.f32 0.0, %v6804
    %v6806 = vpop.f32.mrf.mxu0
    %v6807 = vadd.f32 0.0, %v6806
    %6808 = vdwg.mxu0
    %6809 = vmatprep.subr.bf16.mxu0 %v6733
    %6810 = vmatpush1.bf16.msra.mxu0 %v6732
    %6811 = vmatprep.subr.bf16.mxu0 %v6729
    %6812 = vmatpush1.bf16.msra.mxu0 %v6728
    %6813 = vmatprep.subr.bf16.mxu0 %v6725
    %6814 = vmatpush1.bf16.msra.mxu0 %v6724
    %6815 = vmatprep.subr.bf16.mxu0 %v6721
    %6816 = vmatpush1.bf16.msra.mxu0 %v6720
    %6817 = vmatprep.subr.bf16.mxu0 %v6717
    %6818 = vmatpush1.bf16.msra.mxu0 %v6716
    %6819 = vmatprep.subr.bf16.mxu0 %v6713
    %6820 = vmatpush1.bf16.msra.mxu0 %v6712
    %6821 = vmatprep.subr.bf16.mxu0 %v6709
    %6822 = vmatpush1.bf16.msra.mxu0 %v6708
    %6823 = vmatprep.subr.bf16.mxu0 %v6705
    %6824 = vmatpush1.bf16.msra.mxu0 %v6704
    %6825 = vmatprep.subr.bf16.mxu0 0
    %6826 = vmatpush2.bf16.msra.mxu0 0
    %6827 = vmatprep.subr.bf16.mxu0 0
    %6828 = vmatpush2.bf16.msra.mxu0 0
    %6829 = vmatprep.subr.bf16.mxu0 0
    %6830 = vmatpush2.bf16.msra.mxu0 0
    %6831 = vmatprep.subr.bf16.mxu0 0
    %6832 = vmatpush2.bf16.msra.mxu0 0
    %6833 = vmatprep.subr.bf16.mxu0 0
    %6834 = vmatpush2.bf16.msra.mxu0 0
    %6835 = vmatprep.subr.bf16.mxu0 0
    %6836 = vmatpush2.bf16.msra.mxu0 0
    %6837 = vmatprep.subr.bf16.mxu0 0
    %6838 = vmatpush2.bf16.msra.mxu0 0
    %6839 = vmatprep.subr.bf16.mxu0 0
    %6840 = vmatpush2.bf16.msra.mxu0 0
    %6841 = vmatprep.mubr.bf16.mxu0 0
    %6842 = vmatmul.mubr.bf16.gmra.mxu0 %v6555
    %v6843 = vpop.f32.mrf.mxu0
    %v6844 = vadd.f32 0.0, %v6843
    %v6845 = vpop.f32.mrf.mxu0
    %v6846 = vadd.f32 0.0, %v6845
    %v6847 = vpop.f32.mrf.mxu0
    %v6848 = vadd.f32 0.0, %v6847
    %v6849 = vpop.f32.mrf.mxu0
    %v6850 = vadd.f32 0.0, %v6849
    %6851 = vdwg.mxu0
    %v6852 = vadd.f32 %v6566, %v6801
    %v6853 = vadd.f32 %v6567, %v6803
    %v6854 = vadd.f32 %v6568, %v6844
    %v6855 = vadd.f32 %v6569, %v6846
    %v6856 = vadd.f32 %v6570, %v6805
    %v6857 = vadd.f32 %v6571, %v6807
    %v6858 = vadd.f32 %v6572, %v6848
    %v6859 = vadd.f32 %v6573, %v6850
    %v6860 = vxor.u32 %v6852, 2147483648
    %v6861 = vxor.u32 %v6856, 2147483648
    %v6862 = vmul.f32 %v6860, 1.442695
    %v6863 = vpow.pop %v6862
    %v6864 = vmul.f32 %v6861, 1.442695
    %v6865 = vpow.pop %v6864
    %v6866 = vadd.f32 %v6863, 1.0
    %v6867 = vadd.f32 %v6865, 1.0
    %v6868 = vrcp.pop %v6866
    %v6869 = vmul.f32 1.0, %v6868
    %v6870 = vrcp.pop %v6867
    %v6871 = vmul.f32 1.0, %v6870
    %v6872 = vxor.u32 %v6853, 2147483648
    %v6873 = vxor.u32 %v6857, 2147483648
    %v6874 = vmul.f32 %v6872, 1.442695
    %v6875 = vpow.pop %v6874
    %v6876 = vmul.f32 %v6873, 1.442695
    %v6877 = vpow.pop %v6876
    %v6878 = vadd.f32 %v6875, 1.0
    %v6879 = vadd.f32 %v6877, 1.0
    %v6880 = vrcp.pop %v6878
    %v6881 = vmul.f32 1.0, %v6880
    %v6882 = vrcp.pop %v6879
    %v6883 = vmul.f32 1.0, %v6882
    %v6884 = vtanh.pop %v6854
    %v6885 = vtanh.pop %v6858
    %v6886 = vxor.u32 %v6855, 2147483648
    %v6887 = vxor.u32 %v6859, 2147483648
    %v6888 = vmul.f32 %v6886, 1.442695
    %v6889 = vpow.pop %v6888
    %v6890 = vmul.f32 %v6887, 1.442695
    %v6891 = vpow.pop %v6890
    %v6892 = vadd.f32 %v6889, 1.0
    %v6893 = vadd.f32 %v6891, 1.0
    %v6894 = vrcp.pop %v6892
    %v6895 = vmul.f32 1.0, %v6894
    %v6896 = vrcp.pop %v6893
    %v6897 = vmul.f32 1.0, %v6896
    %v6898 = vmul.f32 %v6881, %v6549
    %v6899 = vmul.f32 %v6883, %v6550
    %v6900 = vmul.f32 %v6869, %v6884
    %v6901 = vmul.f32 %v6871, %v6885
    %v6902 = vadd.f32 %v6898, %v6900
    %v6903 = vadd.f32 %v6899, %v6901
    %v6904 = vtanh.pop %v6902
    %v6905 = vtanh.pop %v6903
    %v6906 = vmul.f32 %v6895, %v6904
    %v6907 = vmul.f32 %v6897, %v6905
    %v6908 = vpack.c.bf16 %v6907, %v6906
    %v6910 = vunpack.c.l.b16 %v6908
    %v6911 = vunpack.c.h.b16 %v6908
    %v6912 = vpack.c.b16 %v6910, %v6910
    %v6913 = vpack.c.b16 %v6911, %v6911
    %s6916 = scalar_lea.vmem [#allocation5], 56
    %6917 = vst [vmem:[%s6916] sm:$0xf] %v6912
    %6918 = vst [vmem:[%s6916 + $0x4] sm:$0xf] %v6913
    %s6919 = scalar_lea.vmem %s12, 16
    %6920 = vst [vmem:[%s6919] sm:$0xff] %v6906
    %6921 = vst [vmem:[%s6919 + $0x8] sm:$0xff] %v6907
    %s6922 = scalar_lea.vmem %s13, 16
    %6923 = vst [vmem:[%s6922] sm:$0xff] %v6902
    %6924 = vst [vmem:[%s6922 + $0x8] sm:$0xff] %v6903
    %v6925 = vld [vmem:[#allocation5] sm:$0xf]
    %v6926 = vld [vmem:[#allocation5 + $0x4] sm:$0xf]
    %v6927 = vld [vmem:[#allocation5 + $0x8] sm:$0xf]
    %v6928 = vld [vmem:[#allocation5 + $0xc] sm:$0xf]
    %v6929 = vld [vmem:[#allocation5 + $0x10] sm:$0xf]
    %v6930 = vld [vmem:[#allocation5 + $0x14] sm:$0xf]
    %v6931 = vld [vmem:[#allocation5 + $0x18] sm:$0xf]
    %v6932 = vld [vmem:[#allocation5 + $0x1c] sm:$0xf]
    %v6933 = vld [vmem:[#allocation5 + $0x20] sm:$0xf]
    %v6934 = vld [vmem:[#allocation5 + $0x24] sm:$0xf]
    %v6935 = vld [vmem:[#allocation5 + $0x28] sm:$0xf]
    %v6936 = vld [vmem:[#allocation5 + $0x2c] sm:$0xf]
    %v6937 = vld [vmem:[#allocation5 + $0x30] sm:$0xf]
    %v6938 = vld [vmem:[#allocation5 + $0x34] sm:$0xf]
    %v6939 = vld [vmem:[#allocation5 + $0x38] sm:$0xf]
    %v6940 = vld [vmem:[#allocation5 + $0x3c] sm:$0xf]
    %v6941 = vld [vmem:[%s9] sm:$0xf]
    %v6942 = vld [vmem:[%s9 + $0x4] sm:$0xf]
    %v6943 = vld [vmem:[%s9 + $0x8] sm:$0xf]
    %v6944 = vld [vmem:[%s9 + $0xc] sm:$0xf]
    %v6945 = vld [vmem:[%s9 + $0x10] sm:$0xf]
    %v6946 = vld [vmem:[%s9 + $0x14] sm:$0xf]
    %v6947 = vld [vmem:[%s9 + $0x18] sm:$0xf]
    %v6948 = vld [vmem:[%s9 + $0x1c] sm:$0xf]
    %v6949 = vld [vmem:[%s9 + $0x20] sm:$0xf]
    %v6950 = vld [vmem:[%s9 + $0x24] sm:$0xf]
    %v6951 = vld [vmem:[%s9 + $0x28] sm:$0xf]
    %v6952 = vld [vmem:[%s9 + $0x2c] sm:$0xf]
    %v6953 = vld [vmem:[%s9 + $0x30] sm:$0xf]
    %v6954 = vld [vmem:[%s9 + $0x34] sm:$0xf]
    %v6955 = vld [vmem:[%s9 + $0x38] sm:$0xf]
    %v6956 = vld [vmem:[%s9 + $0x3c] sm:$0xf]
    %v6957 = vld [vmem:[%s10] sm:$0x1]
    %v6959 = vlaneseq
    %v6960 = vshrl.u32 %v6959, 7
    %v6961 = vsub.s32 0, %v6960
    %v6962 = vrot.slane %v6957, %v6961
    %v6980 = vunpack.c.l.b16 %v6925
    %v6981 = vunpack.c.l.b16 %v6926
    %v6982 = vunpack.c.l.b16 %v6927
    %v6983 = vunpack.c.l.b16 %v6928
    %v6984 = vunpack.c.l.b16 %v6929
    %v6985 = vunpack.c.l.b16 %v6930
    %v6986 = vunpack.c.l.b16 %v6931
    %v6987 = vunpack.c.l.b16 %v6932
    %v6988 = vunpack.c.l.b16 %v6933
    %v6989 = vunpack.c.l.b16 %v6934
    %v6990 = vunpack.c.l.b16 %v6935
    %v6991 = vunpack.c.l.b16 %v6936
    %v6992 = vunpack.c.l.b16 %v6937
    %v6993 = vunpack.c.l.b16 %v6938
    %v6994 = vunpack.c.l.b16 %v6939
    %v6995 = vunpack.c.l.b16 %v6940
    %v6996 = vpack.c.b16 %v6981, %v6980
    %v6997 = vpack.c.b16 %v6983, %v6982
    %v6998 = vpack.c.b16 %v6985, %v6984
    %v6999 = vpack.c.b16 %v6987, %v6986
    %v7000 = vpack.c.b16 %v6989, %v6988
    %v7001 = vpack.c.b16 %v6991, %v6990
    %v7002 = vpack.c.b16 %v6993, %v6992
    %v7003 = vpack.c.b16 %v6995, %v6994
    %v7028 = vunpack.c.l.b16 %v6941
    %v7029 = vunpack.c.l.b16 %v6942
    %v7030 = vunpack.c.l.b16 %v6943
    %v7031 = vunpack.c.l.b16 %v6944
    %v7032 = vunpack.c.l.b16 %v6945
    %v7033 = vunpack.c.l.b16 %v6946
    %v7034 = vunpack.c.l.b16 %v6947
    %v7035 = vunpack.c.l.b16 %v6948
    %v7036 = vunpack.c.l.b16 %v6949
    %v7037 = vunpack.c.l.b16 %v6950
    %v7038 = vunpack.c.l.b16 %v6951
    %v7039 = vunpack.c.l.b16 %v6952
    %v7040 = vunpack.c.l.b16 %v6953
    %v7041 = vunpack.c.l.b16 %v6954
    %v7042 = vunpack.c.l.b16 %v6955
    %v7043 = vunpack.c.l.b16 %v6956
    %v7044 = vpack.c.b16 %v7029, %v7028
    %v7045 = vpack.c.b16 %v7031, %v7030
    %v7046 = vpack.c.b16 %v7033, %v7032
    %v7047 = vpack.c.b16 %v7035, %v7034
    %v7048 = vpack.c.b16 %v7037, %v7036
    %v7049 = vpack.c.b16 %v7039, %v7038
    %v7050 = vpack.c.b16 %v7041, %v7040
    %v7051 = vpack.c.b16 %v7043, %v7042
    %7060 = vmatprep.subr.bf16.mxu0 0
    %7061 = vmatpush1.bf16.msra.mxu0 %v7051
    %7062 = vmatprep.subr.bf16.mxu0 0
    %7063 = vmatpush1.bf16.msra.mxu0 %v7050
    %7064 = vmatprep.subr.bf16.mxu0 0
    %7065 = vmatpush1.bf16.msra.mxu0 %v7049
    %7066 = vmatprep.subr.bf16.mxu0 0
    %7067 = vmatpush1.bf16.msra.mxu0 %v7048
    %7068 = vmatprep.subr.bf16.mxu0 0
    %7069 = vmatpush1.bf16.msra.mxu0 %v7047
    %7070 = vmatprep.subr.bf16.mxu0 0
    %7071 = vmatpush1.bf16.msra.mxu0 %v7046
    %7072 = vmatprep.subr.bf16.mxu0 0
    %7073 = vmatpush1.bf16.msra.mxu0 %v7045
    %7074 = vmatprep.subr.bf16.mxu0 0
    %7075 = vmatpush1.bf16.msra.mxu0 %v7044
    %7076 = vmatprep.subr.bf16.mxu0 0
    %7077 = vmatpush2.bf16.msra.mxu0 0
    %7078 = vmatprep.subr.bf16.mxu0 0
    %7079 = vmatpush2.bf16.msra.mxu0 0
    %7080 = vmatprep.subr.bf16.mxu0 0
    %7081 = vmatpush2.bf16.msra.mxu0 0
    %7082 = vmatprep.subr.bf16.mxu0 0
    %7083 = vmatpush2.bf16.msra.mxu0 0
    %7084 = vmatprep.subr.bf16.mxu0 0
    %7085 = vmatpush2.bf16.msra.mxu0 0
    %7086 = vmatprep.subr.bf16.mxu0 0
    %7087 = vmatpush2.bf16.msra.mxu0 0
    %7088 = vmatprep.subr.bf16.mxu0 0
    %7089 = vmatpush2.bf16.msra.mxu0 0
    %7090 = vmatprep.subr.bf16.mxu0 0
    %7091 = vmatpush2.bf16.msra.mxu0 0
    %7092 = vmatprep.mubr.bf16.mxu0 0
    %7093 = vmatmul.mubr.bf16.gmra.mxu0 %v6996
    %v7094 = vpop.f32.mrf.mxu0
    %v7095 = vadd.f32 %v6962, %v7094
    %v7096 = vpop.f32.mrf.mxu0
    %v7097 = vpop.f32.mrf.mxu0
    %v7098 = vadd.f32 %v6962, %v7097
    %v7099 = vpop.f32.mrf.mxu0
    %7100 = vmatprep.mubr.bf16.mxu0 0
    %7101 = vmatmul.mubr.bf16.gmra.mxu0 %v6997
    %v7102 = vpop.f32.mrf.mxu0
    %v7103 = vadd.f32 %v6962, %v7102
    %v7104 = vpop.f32.mrf.mxu0
    %v7105 = vpop.f32.mrf.mxu0
    %v7106 = vadd.f32 %v6962, %v7105
    %v7107 = vpop.f32.mrf.mxu0
    %7108 = vmatprep.mubr.bf16.mxu0 0
    %7109 = vmatmul.mubr.bf16.gmra.mxu0 %v6998
    %v7110 = vpop.f32.mrf.mxu0
    %v7111 = vadd.f32 %v6962, %v7110
    %v7112 = vpop.f32.mrf.mxu0
    %v7113 = vpop.f32.mrf.mxu0
    %v7114 = vadd.f32 %v6962, %v7113
    %v7115 = vpop.f32.mrf.mxu0
    %7116 = vmatprep.mubr.bf16.mxu0 0
    %7117 = vmatmul.mubr.bf16.gmra.mxu0 %v6999
    %v7118 = vpop.f32.mrf.mxu0
    %v7119 = vadd.f32 %v6962, %v7118
    %v7120 = vpop.f32.mrf.mxu0
    %v7121 = vpop.f32.mrf.mxu0
    %v7122 = vadd.f32 %v6962, %v7121
    %v7123 = vpop.f32.mrf.mxu0
    %7124 = vmatprep.mubr.bf16.mxu0 0
    %7125 = vmatmul.mubr.bf16.gmra.mxu0 %v7000
    %v7126 = vpop.f32.mrf.mxu0
    %v7127 = vadd.f32 %v6962, %v7126
    %v7128 = vpop.f32.mrf.mxu0
    %v7129 = vpop.f32.mrf.mxu0
    %v7130 = vadd.f32 %v6962, %v7129
    %v7131 = vpop.f32.mrf.mxu0
    %7132 = vmatprep.mubr.bf16.mxu0 0
    %7133 = vmatmul.mubr.bf16.gmra.mxu0 %v7001
    %v7134 = vpop.f32.mrf.mxu0
    %v7135 = vadd.f32 %v6962, %v7134
    %v7136 = vpop.f32.mrf.mxu0
    %v7137 = vpop.f32.mrf.mxu0
    %v7138 = vadd.f32 %v6962, %v7137
    %v7139 = vpop.f32.mrf.mxu0
    %7140 = vmatprep.mubr.bf16.mxu0 0
    %7141 = vmatmul.mubr.bf16.gmra.mxu0 %v7002
    %v7142 = vpop.f32.mrf.mxu0
    %v7143 = vadd.f32 %v6962, %v7142
    %v7144 = vpop.f32.mrf.mxu0
    %v7145 = vpop.f32.mrf.mxu0
    %v7146 = vadd.f32 %v6962, %v7145
    %v7147 = vpop.f32.mrf.mxu0
    %7148 = vmatprep.mubr.bf16.mxu0 0
    %7149 = vmatmul.mubr.bf16.gmra.mxu0 %v7003
    %v7150 = vpop.f32.mrf.mxu0
    %v7151 = vadd.f32 %v6962, %v7150
    %v7152 = vpop.f32.mrf.mxu0
    %v7153 = vpop.f32.mrf.mxu0
    %v7154 = vadd.f32 %v6962, %v7153
    %v7155 = vpop.f32.mrf.mxu0
    %7156 = vdwg.mxu0
    %7157 = vst [vmem:[%s11] sm:$0xff] %v7095
    %7158 = vst [vmem:[%s11 + $0x8] sm:$0xff] %v7098
    %7159 = vst [vmem:[%s11 + $0x10] sm:$0xff] %v7103
    %7160 = vst [vmem:[%s11 + $0x18] sm:$0xff] %v7106
    %7161 = vst [vmem:[%s11 + $0x20] sm:$0xff] %v7111
    %7162 = vst [vmem:[%s11 + $0x28] sm:$0xff] %v7114
    %7163 = vst [vmem:[%s11 + $0x30] sm:$0xff] %v7119
    %7164 = vst [vmem:[%s11 + $0x38] sm:$0xff] %v7122
    %7165 = vst [vmem:[%s11 + $0x40] sm:$0xff] %v7127
    %7166 = vst [vmem:[%s11 + $0x48] sm:$0xff] %v7130
    %7167 = vst [vmem:[%s11 + $0x50] sm:$0xff] %v7135
    %7168 = vst [vmem:[%s11 + $0x58] sm:$0xff] %v7138
    %7169 = vst [vmem:[%s11 + $0x60] sm:$0xff] %v7143
    %7170 = vst [vmem:[%s11 + $0x68] sm:$0xff] %v7146
    %7171 = vst [vmem:[%s11 + $0x70] sm:$0xff] %v7151
    %7172 = vst [vmem:[%s11 + $0x78] sm:$0xff] %v7154
    // Predicated region
    $region62: #{char_rnn_forward.1} parent=1 // pred_check
      _
    $region63: #{char_rnn_forward.1} parent=1 // pred_check_branch
      %7174 = sbr.rel (0) target = $region65
    $region64: #{char_rnn_forward.1} parent=1 // pred_region
      _
    $region65: #{char_rnn_forward.1} parent=1 // pred_fallthru
      _
    // Predicated region
    $region66: #{char_rnn_forward.1} parent=1 // pred_check
      _
    $region67: #{char_rnn_forward.1} parent=1 // pred_check_branch
      %7176 = sbr.rel (0) target = $region69
    $region68: #{char_rnn_forward.1} parent=1 // pred_region
      _
    $region69: #{char_rnn_forward.1} parent=1 // pred_fallthru
      _
    // Predicated region
    $region70: #{char_rnn_forward.1} parent=1 // pred_check
      _
    $region71: #{char_rnn_forward.1} parent=1 // pred_check_branch
      %7178 = sbr.rel (0) target = $region73
    $region72: #{char_rnn_forward.1} parent=1 // pred_region
      _
    $region73: #{char_rnn_forward.1} parent=1 // pred_fallthru
      _
    // Predicated region
    $region74: #{char_rnn_forward.1} parent=1 // pred_check
      _
    $region75: #{char_rnn_forward.1} parent=1 // pred_check_branch
      %7180 = sbr.rel (0) target = $region77
    $region76: #{char_rnn_forward.1} parent=1 // pred_region
      _
    $region77: #{char_rnn_forward.1} parent=1 // pred_fallthru
      _
    // Predicated region
    $region78: #{char_rnn_forward.1} parent=1 // pred_check
      _
    $region79: #{char_rnn_forward.1} parent=1 // pred_check_branch
      %7182 = sbr.rel (0) target = $region81
    $region80: #{char_rnn_forward.1} parent=1 // pred_region
      _
    $region81: #{char_rnn_forward.1} parent=1 // pred_fallthru
      _
    // Predicated region
    $region82: #{char_rnn_forward.1} parent=1 // pred_check
      _
    $region83: #{char_rnn_forward.1} parent=1 // pred_check_branch
      %7184 = sbr.rel (0) target = $region85
    $region84: #{char_rnn_forward.1} parent=1 // pred_region
      _
    $region85: #{char_rnn_forward.1} parent=1 // pred_fallthru
      _
    %7185 = vsyncpa [#allocation7], 1
    %7186 = vsyncpa [#allocation9], 1
    %7187 = vsyncpa [#allocation12], 1

</llo_original>
